<compile_context>
chip_gen: v7x
topology: tpu7x:2x2x1
jax: 0.10.0
libtpu: 0.0.40
codegen_flags: <defaults>
</compile_context>

<pallas_src>
import functools
import math

import jax
import jax.numpy as jnp
from jax.experimental import pallas as pl
from jax.experimental.pallas import tpu as pltpu

EPS = 1e-5
_TM = 1024   # row tile for pointwise (1x1) conv matmuls


def _gp(semantics):
    return pltpu.CompilerParams(dimension_semantics=semantics)


def _row_tile(m):
    # Biggest tile that fits, but prefer >=2 tiles so both TensorCores get work.
    tm = min(_TM, m)
    if m // tm < 2 and m >= 16 and (m // 2) % 8 == 0:
        tm = m // 2
    return tm


# ----------------------------- Pallas kernels ------------------------------

def _pw_kernel(x_ref, w_ref, s_ref, b_ref, o_ref, *, relu):
    # 1x1 conv (+ fused BN [+ReLU]) on a (TM, Cin) row tile; bf16 MXU, f32 acc
    y = jnp.dot(x_ref[...].astype(jnp.bfloat16), w_ref[...],
                preferred_element_type=jnp.float32)
    y = y * s_ref[...] + b_ref[...]
    if relu:
        y = jnp.maximum(y, 0.0)
    o_ref[...] = y.astype(o_ref.dtype)


def _fused_s1_branch_kernel(x_ref, w1_ref, s1_ref, b1_ref, k_ref, s2_ref,
                            b2_ref, w3_ref, s3_ref, b3_ref, o_ref,
                            pad_ref, *, H, W):
    # stride-1 branch2: 1x1+BN+ReLU -> dw3x3+BN -> 1x1+BN+ReLU, all in VMEM.
    # Zero the padded scratch only once; the interior is overwritten each step
    # and the border is never written, so it stays zero.
    @pl.when(pl.program_id(0) == 0)
    def _():
        pad_ref[...] = jnp.zeros_like(pad_ref)

    # pointwise 1
    y = jnp.dot(x_ref[0], w1_ref[...], preferred_element_type=jnp.float32)
    y = jnp.maximum(y * s1_ref[...] + b1_ref[...], 0.0)          # (H*W, Ch) f32

    # single slab store into the interior of the padded scratch
    pad_ref[1:H + 1, 1:W + 1, :] = y.reshape(H, W, -1)

    # depthwise 3x3 stride 1 (+BN); 3 partial accumulators break the MAC chain
    acc = [None, None, None]
    for t in range(9):
        dy, dx = t // 3, t % 3
        term = pad_ref[dy:dy + H, dx:dx + W, :] * k_ref[t]
        j = t % 3
        acc[j] = term if acc[j] is None else acc[j] + term
    z = (acc[0] + acc[1] + acc[2]) * s2_ref[...] + b2_ref[...]   # (H, W, Ch)

    # second pointwise matmul fed directly from registers (no scratch round-trip)
    o = jnp.dot(z.reshape(H * W, -1).astype(jnp.bfloat16), w3_ref[...],
                preferred_element_type=jnp.float32)
    o_ref[0] = jnp.maximum(o * s3_ref[...] + b3_ref[...], 0.0).astype(o_ref.dtype)


def _dw_s2_pw_kernel(ph_ref, k_ref, sd_ref, bd_ref, w_ref, sp_ref, bp_ref,
                     o_ref, *, Ho, Wo):
    # dw3x3 stride-2 (+BN) -> 1x1 (+BN+ReLU); taps from 2x2 phase split.
    acc = [None, None, None]
    for t in range(9):
        dy, dx = t // 3, t % 3
        pidx = 2 * (dy & 1) + (dx & 1)
        r0, c0 = dy // 2, dx // 2
        tap = ph_ref[pidx, r0:r0 + Ho, c0:c0 + Wo, :].astype(jnp.float32)
        term = tap * k_ref[t]
        j = t % 3
        acc[j] = term if acc[j] is None else acc[j] + term
    z = (acc[0] + acc[1] + acc[2]) * sd_ref[...] + bd_ref[...]   # (Ho, Wo, C)

    # pointwise matmul fed from registers (no scratch round-trip)
    y = jnp.dot(z.reshape(Ho * Wo, -1).astype(jnp.bfloat16), w_ref[...],
                preferred_element_type=jnp.float32)
    o_ref[0] = jnp.maximum(y * sp_ref[...] + bp_ref[...], 0.0).astype(o_ref.dtype)


def _maxpool_s2_kernel(ph_ref, o_ref, *, Ho, Wo):
    m = None
    for t in range(9):
        dy, dx = t // 3, t % 3
        pidx = 2 * (dy & 1) + (dx & 1)
        r0, c0 = dy // 2, dx // 2
        tap = ph_ref[pidx, r0:r0 + Ho, c0:c0 + Wo, :]
        m = tap if m is None else jnp.maximum(m, tap)
    o_ref[0] = m.astype(o_ref.dtype)


def _head_kernel(x_ref, w_ref, b_ref, o_ref):
    # global average pool over spatial positions + final linear layer
    xm = jnp.mean(x_ref[...].astype(jnp.float32), axis=1)       # (N, C)
    o_ref[...] = jnp.dot(xm.astype(jnp.bfloat16), w_ref[...],
                         preferred_element_type=jnp.float32) + b_ref[...]


# ----------------------------- kernel wrappers ------------------------------

def pw_conv_bn(x2d, w, scale, bias, relu):
    M, Cin = x2d.shape
    Cout = w.shape[1]
    tm = _row_tile(M)
    return pl.pallas_call(
        functools.partial(_pw_kernel, relu=relu),
        out_shape=jax.ShapeDtypeStruct((M, Cout), jnp.bfloat16),
        grid=(pl.cdiv(M, tm),),
        in_specs=[
            pl.BlockSpec((tm, Cin), lambda m: (m, 0)),
            pl.BlockSpec((Cin, Cout), lambda m: (0, 0)),
            pl.BlockSpec((1, Cout), lambda m: (0, 0)),
            pl.BlockSpec((1, Cout), lambda m: (0, 0)),
        ],
        out_specs=pl.BlockSpec((tm, Cout), lambda m: (m, 0)),
        compiler_params=_gp(("parallel",)),
    )(x2d, w, scale, bias)


def _out_hw(h, stride):
    # conv/pool output size for kernel=3, pad=1
    return (h + 2 - 3) // stride + 1


def _extract_taps(x_nhwc, stride, pad_value=0.0):
    # (N,H,W,C) -> (9, N, Ho, Wo, C) 3x3 tap stack (used only for the tiny stem)
    N, H, W, C = x_nhwc.shape
    Ho, Wo = _out_hw(H, stride), _out_hw(W, stride)
    xp = jnp.pad(x_nhwc, ((0, 0), (1, 1), (1, 1), (0, 0)),
                 constant_values=pad_value)
    taps = []
    for dy in range(3):
        for dx in range(3):
            taps.append(jax.lax.slice(
                xp, (0, dy, dx, 0),
                (N, dy + (Ho - 1) * stride + 1, dx + (Wo - 1) * stride + 1, C),
                (1, stride, stride, 1)))
    return jnp.stack(taps, axis=0), Ho, Wo


def stem_conv_bn_relu(x_nhwc, p):
    # 3x3/s2 dense conv as one im2col matmul: (M, 9*Cin) @ (9*Cin, Cout)
    N, H, W, Cin = x_nhwc.shape
    taps, Ho, Wo = _extract_taps(x_nhwc, 2)
    M = N * Ho * Wo
    patches = jnp.transpose(taps, (1, 2, 3, 0, 4)).reshape(M, 9 * Cin)
    patches = patches.astype(jnp.bfloat16)
    out = pw_conv_bn(patches, p["w"], p["scale"], p["bias"], relu=True)
    return out.reshape(N, Ho, Wo, p["w"].shape[1])


def _phase_split(xp):
    # (N, Hp, Wp, C) with Hp, Wp even -> (N*4, Hp//2, Wp//2, C); phase order
    # [(row even, col even), (even, odd), (odd, even), (odd, odd)]
    N, Hp, Wp, C = xp.shape
    ph = jnp.stack([xp[:, a::2, b::2, :] for a in (0, 1) for b in (0, 1)],
                   axis=1)
    return ph.reshape(N * 4, Hp // 2, Wp // 2, C)


def dw_s2_pw(v, dw_p, pw_p):
    # depthwise 3x3 stride-2 + BN, fused with the following 1x1 + BN + ReLU
    N, H, W, C = v.shape
    assert H % 2 == 0 and W % 2 == 0, "stride-2 ops require even spatial dims"
    Ho, Wo = H // 2, W // 2
    Cout = pw_p["w"].shape[1]
    xp = jnp.pad(v, ((0, 0), (1, 1), (1, 1), (0, 0)))
    ph = _phase_split(xp)                                  # (N*4, Ho+1, Wo+1, C)
    out = pl.pallas_call(
        functools.partial(_dw_s2_pw_kernel, Ho=Ho, Wo=Wo),
        out_shape=jax.ShapeDtypeStruct((N, Ho * Wo, Cout), jnp.bfloat16),
        grid=(N,),
        in_specs=[
            pl.BlockSpec((4, Ho + 1, Wo + 1, C), lambda n: (n, 0, 0, 0)),
            pl.BlockSpec((9, 1, C), lambda n: (0, 0, 0)),
            pl.BlockSpec((1, C), lambda n: (0, 0)),
            pl.BlockSpec((1, C), lambda n: (0, 0)),
            pl.BlockSpec((C, Cout), lambda n: (0, 0)),
            pl.BlockSpec((1, Cout), lambda n: (0, 0)),
            pl.BlockSpec((1, Cout), lambda n: (0, 0)),
        ],
        out_specs=pl.BlockSpec((1, Ho * Wo, Cout), lambda n: (n, 0, 0)),
        compiler_params=_gp(("parallel",)),
    )(ph, dw_p["k"], dw_p["scale"], dw_p["bias"],
      pw_p["w"], pw_p["scale"], pw_p["bias"])
    return out.reshape(N, Ho, Wo, Cout)


def maxpool3x3_s2(x):
    N, H, W, C = x.shape
    assert H % 2 == 0 and W % 2 == 0, "maxpool requires even spatial dims"
    Ho, Wo = H // 2, W // 2
    xp = jnp.pad(x, ((0, 0), (1, 1), (1, 1), (0, 0)),
                 constant_values=-jnp.inf)
    ph = _phase_split(xp)
    return pl.pallas_call(
        functools.partial(_maxpool_s2_kernel, Ho=Ho, Wo=Wo),
        out_shape=jax.ShapeDtypeStruct((N, Ho, Wo, C), jnp.bfloat16),
        grid=(N,),
        in_specs=[pl.BlockSpec((4, Ho + 1, Wo + 1, C), lambda n: (n, 0, 0, 0))],
        out_specs=pl.BlockSpec((1, Ho, Wo, C), lambda n: (n, 0, 0, 0)),
        compiler_params=_gp(("parallel",)),
    )(ph)


def channel_shuffle(x_nhwc, groups=2):
    # same channel permutation as PyTorch channel_shuffle (layout glue)
    # TODO(synk): could be folded into the next block's 1x1 weights to save one
    # HBM pass per block; kept as explicit glue for correctness/clarity here.
    N, H, W, C = x_nhwc.shape
    x = x_nhwc.reshape(N, H, W, groups, C // groups)
    x = jnp.swapaxes(x, 3, 4)
    return x.reshape(N, H, W, C)


# ------------------------------- blocks -------------------------------------

def inv_res_s1_forward(p, x):
    # stride-1 InvertedResidual: branch2 fully fused in one pallas_call
    N, H, W, C = x.shape
    Ch = C // 2
    x1 = x[..., :Ch]
    x2 = x[..., Ch:].reshape(N, H * W, Ch)
    pw1, dw, pw2 = p["b2_pw1"], p["b2_dw"], p["b2_pw2"]
    b2 = pl.pallas_call(
        functools.partial(_fused_s1_branch_kernel, H=H, W=W),
        out_shape=jax.ShapeDtypeStruct((N, H * W, Ch), jnp.bfloat16),
        grid=(N,),
        in_specs=[
            pl.BlockSpec((1, H * W, Ch), lambda n: (n, 0, 0)),
            pl.BlockSpec((Ch, Ch), lambda n: (0, 0)),
            pl.BlockSpec((1, Ch), lambda n: (0, 0)),
            pl.BlockSpec((1, Ch), lambda n: (0, 0)),
            pl.BlockSpec((9, 1, Ch), lambda n: (0, 0, 0)),
            pl.BlockSpec((1, Ch), lambda n: (0, 0)),
            pl.BlockSpec((1, Ch), lambda n: (0, 0)),
            pl.BlockSpec((Ch, Ch), lambda n: (0, 0)),
            pl.BlockSpec((1, Ch), lambda n: (0, 0)),
            pl.BlockSpec((1, Ch), lambda n: (0, 0)),
        ],
        out_specs=pl.BlockSpec((1, H * W, Ch), lambda n: (n, 0, 0)),
        scratch_shapes=[pltpu.VMEM((H + 2, W + 2, Ch), jnp.float32)],
        compiler_params=_gp(("parallel",)),
    )(x2, pw1["w"], pw1["scale"], pw1["bias"],
      dw["k"], dw["scale"], dw["bias"],
      pw2["w"], pw2["scale"], pw2["bias"])
    b2 = b2.reshape(N, H, W, Ch)
    out = jnp.concatenate([x1, b2], axis=-1)
    return channel_shuffle(out, 2)


def inv_res_s2_forward(p, x):
    N, H, W, Cin = x.shape
    # branch1: dw3x3 s2 + BN -> 1x1 + BN + ReLU (fused dw->pw kernel)
    b1 = dw_s2_pw(x, p["b1_dw"], p["b1_pw"])
    # branch2: 1x1 + BN + ReLU -> dw3x3 s2 + BN -> 1x1 + BN + ReLU
    y = pw_conv_bn(x.reshape(N * H * W, Cin), **p["b2_pw1"], relu=True)
    y = y.reshape(N, H, W, -1)
    b2 = dw_s2_pw(y, p["b2_dw"], p["b2_pw2"])
    out = jnp.concatenate([b1, b2], axis=-1)
    return channel_shuffle(out, 2)


# ----------------------------- parameter init -------------------------------

def _bn_params(key, c):
    k1, k2, k3, k4 = jax.random.split(key, 4)
    gamma = jax.random.uniform(k1, (c,), minval=0.5, maxval=1.5)
    beta = jax.random.normal(k2, (c,)) * 0.1
    mean = jax.random.normal(k3, (c,)) * 0.1
    var = jax.random.uniform(k4, (c,), minval=0.5, maxval=1.5)
    scale = gamma / jnp.sqrt(var + EPS)
    bias = beta - mean * scale
    return (scale.reshape(1, c).astype(jnp.float32),
            bias.reshape(1, c).astype(jnp.float32))


def _pw_params(key, cin, cout):
    kw, kb = jax.random.split(key)
    w = jax.random.normal(kw, (cin, cout)) * (1.0 / math.sqrt(cin))
    s, b = _bn_params(kb, cout)
    return dict(w=w.astype(jnp.bfloat16), scale=s, bias=b)


def _dw_params(key, c):
    kw, kb = jax.random.split(key)
    k = jax.random.normal(kw, (9, 1, c)) * (1.0 / 3.0)
    s, b = _bn_params(kb, c)
    return dict(k=k.astype(jnp.float32), scale=s, bias=b)


def _inverted_residual_params(key, input_c, output_c, stride):
    assert output_c % 2 == 0
    bf = output_c // 2
    assert stride != 1 or input_c == bf * 2
    keys = jax.random.split(key, 5)
    p = dict(stride=stride)
    if stride == 2:
        p["b1_dw"] = _dw_params(keys[0], input_c)
        p["b1_pw"] = _pw_params(keys[1], input_c, bf)
    b2_in = input_c if stride > 1 else bf
    p["b2_pw1"] = _pw_params(keys[2], b2_in, bf)
    p["b2_dw"] = _dw_params(keys[3], bf)
    p["b2_pw2"] = _pw_params(keys[4], bf, bf)
    return p


def init_shufflenetv2_params(key, stages_repeats, stages_out_channels,
                             num_classes):
    assert len(stages_repeats) == 3 and len(stages_out_channels) == 5
    params = {"num_classes": num_classes}
    keys = jax.random.split(key, 6)

    input_channels = 3
    out_c = stages_out_channels[0]
    kw, kb = jax.random.split(keys[0])
    w = jax.random.normal(kw, (3, 3, input_channels, out_c)) * (
        1.0 / math.sqrt(9 * input_channels))
    s, b = _bn_params(kb, out_c)
    params["conv1"] = dict(
        w=w.reshape(9 * input_channels, out_c).astype(jnp.bfloat16),  # im2col
        scale=s, bias=b)
    input_channels = out_c

    for idx, (name, repeats, out_c) in enumerate(
            zip(["stage2", "stage3", "stage4"], stages_repeats,
                stages_out_channels[1:4])):
        skeys = jax.random.split(keys[1 + idx], repeats)
        blocks = [_inverted_residual_params(skeys[0], input_channels, out_c, 2)]
        for i in range(repeats - 1):
            blocks.append(_inverted_residual_params(skeys[i + 1], out_c, out_c, 1))
        params[name] = blocks
        input_channels = out_c

    out_c = stages_out_channels[-1]
    params["conv5"] = _pw_params(keys[4], input_channels, out_c)

    # fc: pad the output lane dim to a multiple of 128 (lane-dense store);
    # real logits are the first `num_classes` columns.
    ncp = -(-num_classes // 128) * 128
    kw, kb = jax.random.split(keys[5])
    fc_w = jnp.zeros((out_c, ncp), jnp.float32)
    fc_w = fc_w.at[:, :num_classes].set(
        jax.random.normal(kw, (out_c, num_classes)) * (1.0 / math.sqrt(out_c)))
    fc_b = jnp.zeros((1, ncp), jnp.float32)
    fc_b = fc_b.at[:, :num_classes].set(
        jax.random.normal(kb, (1, num_classes)) * 0.1)
    params["fc_w"] = fc_w.astype(jnp.bfloat16)
    params["fc_b"] = fc_b.astype(jnp.float32)
    return params


# ------------------------------- forward pass -------------------------------

def shufflenetv2_forward(params, x_nchw):
    x = jnp.transpose(x_nchw, (0, 2, 3, 1)).astype(jnp.bfloat16)  # NCHW -> NHWC
    x = stem_conv_bn_relu(x, params["conv1"])
    x = maxpool3x3_s2(x)
    for name in ["stage2", "stage3", "stage4"]:
        for p in params[name]:
            if p["stride"] == 1:
                x = inv_res_s1_forward(p, x)
            else:
                x = inv_res_s2_forward(p, x)

    N, H, W, C = x.shape
    x = pw_conv_bn(x.reshape(N * H * W, C), **params["conv5"], relu=True)
    C = x.shape[-1]
    x = x.reshape(N, H * W, C)

    ncp = params["fc_w"].shape[1]
    logits = pl.pallas_call(
        _head_kernel,
        out_shape=jax.ShapeDtypeStruct((N, ncp), jnp.float32),
        grid=(1,),
        in_specs=[
            pl.BlockSpec((N, H * W, C), lambda i: (0, 0, 0)),
            pl.BlockSpec((C, ncp), lambda i: (0, 0)),
            pl.BlockSpec((1, ncp), lambda i: (0, 0)),
        ],
        out_specs=pl.BlockSpec((N, ncp), lambda i: (0, 0)),
        compiler_params=_gp(("arbitrary",)),
    )(x, params["fc_w"], params["fc_b"])
    return logits[:, :params["num_classes"]]


# ---------------------------------- main -------------------------------------

if __name__ == "__main__":
    key = jax.random.PRNGKey(0)
    kp, kx = jax.random.split(key)

    # small ShuffleNetV2 config (3 stage-repeats, 5 stage channel counts)
    stages_repeats = [2, 2, 2]
    stages_out_channels = [8, 16, 32, 64, 128]
    num_classes = 10

    params = init_shufflenetv2_params(kp, stages_repeats, stages_out_channels,
                                      num_classes)

    # NCHW input, as the PyTorch module expects
    x = jax.random.normal(kx, (2, 3, 32, 32), dtype=jnp.float32)

    fwd = jax.jit(lambda inp: shufflenetv2_forward(params, inp))
    logits = fwd(x)
    jax.block_until_ready(logits)

    assert logits.shape == (2, num_classes)
    assert jnp.all(jnp.isfinite(logits))
    print("KERNEL_OK")
</pallas_src>

<mosaic_0001>
module attributes {stable_mosaic.version = 11 : i64} {
  func.func @_pw_kernel(%arg0: i32, %arg1: memref<256x27xbf16, #tpu.memory_space<vmem>>, %arg2: memref<27x8xbf16, #tpu.memory_space<vmem>>, %arg3: memref<1x8xf32, #tpu.memory_space<vmem>>, %arg4: memref<1x8xf32, #tpu.memory_space<vmem>>, %arg5: memref<256x8xbf16, #tpu.memory_space<vmem>>) attributes {dimension_semantics = [#tpu.dimension_semantics<parallel>], iteration_bounds = array<i64: 2>, scalar_prefetch = 0 : i64, scratch_operands = 0 : i64, tpu.core_type = #tpu.core_type<tc>, window_params = [{transform_indices = @transform_0, window_bounds = array<i64: 256, 27>}, {pipeline_mode = #tpu.pipeline_mode<synchronous>, transform_indices = @transform_1, window_bounds = array<i64: 27, 8>}, {pipeline_mode = #tpu.pipeline_mode<synchronous>, transform_indices = @transform_2, window_bounds = array<i64: 1, 8>}, {pipeline_mode = #tpu.pipeline_mode<synchronous>, transform_indices = @transform_3, window_bounds = array<i64: 1, 8>}, {transform_indices = @transform_4, window_bounds = array<i64: 256, 8>}]} {
    %c0 = arith.constant 0 : index
    %c0_0 = arith.constant 0 : index
    %0 = vector.load %arg1[%c0, %c0_0] : memref<256x27xbf16, #tpu.memory_space<vmem>>, vector<256x27xbf16>
    %c0_1 = arith.constant 0 : index
    %c0_2 = arith.constant 0 : index
    %1 = vector.load %arg2[%c0_1, %c0_2] : memref<27x8xbf16, #tpu.memory_space<vmem>>, vector<27x8xbf16>
    %cst = arith.constant dense<0.000000e+00> : vector<256x8xf32>
    %2 = tpu.matmul %0, %1, %cst {dimension_numbers = #tpu.dot_dimension_numbers<[1], [0], [0], [1], [0, 0, 1, 1], [], []>} : vector<256x27xbf16>, vector<27x8xbf16>, vector<256x8xf32> -> vector<256x8xf32>
    %c0_3 = arith.constant 0 : index
    %c0_4 = arith.constant 0 : index
    %3 = vector.load %arg3[%c0_3, %c0_4] : memref<1x8xf32, #tpu.memory_space<vmem>>, vector<1x8xf32>
    %4 = vector.broadcast %3 : vector<1x8xf32> to vector<256x8xf32>
    %5 = arith.mulf %2, %4 : vector<256x8xf32>
    %c0_5 = arith.constant 0 : index
    %c0_6 = arith.constant 0 : index
    %6 = vector.load %arg4[%c0_5, %c0_6] : memref<1x8xf32, #tpu.memory_space<vmem>>, vector<1x8xf32>
    %7 = vector.broadcast %6 : vector<1x8xf32> to vector<256x8xf32>
    %8 = arith.addf %5, %7 : vector<256x8xf32>
    %cst_7 = arith.constant 0.000000e+00 : f32
    %9 = vector.broadcast %cst_7 : f32 to vector<256x8xf32>
    %10 = arith.maximumf %8, %9 : vector<256x8xf32>
    %11 = arith.truncf %10 : vector<256x8xf32> to vector<256x8xbf16>
    %c0_8 = arith.constant 0 : index
    %c0_9 = arith.constant 0 : index
    %12 = vector.load %arg5[%c0_8, %c0_9] : memref<256x8xbf16, #tpu.memory_space<vmem>>, vector<256x8xbf16>
    tpu.vector_store %arg5[%c0_8, %c0_9], %11 {strides = array<i32>} : memref<256x8xbf16, #tpu.memory_space<vmem>>, vector<256x8xbf16>,
    return
  }
  func.func @transform_0(%arg0: i32) -> (i32, i32) {
    %c0_i32 = arith.constant 0 : i32
    %c0_i32_0 = arith.constant 0 : i32
    return %arg0, %c0_i32 : i32, i32
  }
  func.func @transform_1(%arg0: i32) -> (i32, i32) {
    %c0_i32 = arith.constant 0 : i32
    %c0_i32_0 = arith.constant 0 : i32
    %c0_i32_1 = arith.constant 0 : i32
    return %c0_i32, %c0_i32_0 : i32, i32
  }
  func.func @transform_2(%arg0: i32) -> (i32, i32) {
    %c0_i32 = arith.constant 0 : i32
    %c0_i32_0 = arith.constant 0 : i32
    %c0_i32_1 = arith.constant 0 : i32
    return %c0_i32, %c0_i32_0 : i32, i32
  }
  func.func @transform_3(%arg0: i32) -> (i32, i32) {
    %c0_i32 = arith.constant 0 : i32
    %c0_i32_0 = arith.constant 0 : i32
    %c0_i32_1 = arith.constant 0 : i32
    return %c0_i32, %c0_i32_0 : i32, i32
  }
  func.func @transform_4(%arg0: i32) -> (i32, i32) {
    %c0_i32 = arith.constant 0 : i32
    %c0_i32_0 = arith.constant 0 : i32
    return %arg0, %c0_i32 : i32, i32
  }
}

module attributes {stable_mosaic.version = 11 : i64} {
  func.func @_maxpool_s2_kernel(%arg0: i32, %arg1: memref<4x9x9x8xbf16, #tpu.memory_space<vmem>>, %arg2: memref<1x8x8x8xbf16, #tpu.memory_space<vmem>>) attributes {dimension_semantics = [#tpu.dimension_semantics<parallel>], iteration_bounds = array<i64: 2>, scalar_prefetch = 0 : i64, scratch_operands = 0 : i64, tpu.core_type = #tpu.core_type<tc>, window_params = [{transform_indices = @transform_0, window_bounds = array<i64: 4, 9, 9, 8>}, {transform_indices = @transform_1, window_bounds = array<i64: 1, 8, 8, 8>}]} {
    %c0 = arith.constant 0 : index
    %c0_0 = arith.constant 0 : index
    %c0_1 = arith.constant 0 : index
    %c0_2 = arith.constant 0 : index
    %0 = vector.load %arg1[%c0, %c0_0, %c0_1, %c0_2] : memref<4x9x9x8xbf16, #tpu.memory_space<vmem>>, vector<1x8x8x8xbf16>
    %1 = vector.shape_cast %0 : vector<1x8x8x8xbf16> to vector<8x8x8xbf16>
    %c1 = arith.constant 1 : index
    %c0_3 = arith.constant 0 : index
    %c0_4 = arith.constant 0 : index
    %c0_5 = arith.constant 0 : index
    %2 = vector.load %arg1[%c1, %c0_3, %c0_4, %c0_5] : memref<4x9x9x8xbf16, #tpu.memory_space<vmem>>, vector<1x8x8x8xbf16>
    %3 = vector.shape_cast %2 : vector<1x8x8x8xbf16> to vector<8x8x8xbf16>
    %4 = arith.maximumf %1, %3 : vector<8x8x8xbf16>
    %c0_6 = arith.constant 0 : index
    %c0_7 = arith.constant 0 : index
    %c1_8 = arith.constant 1 : index
    %c0_9 = arith.constant 0 : index
    %5 = vector.load %arg1[%c0_6, %c0_7, %c1_8, %c0_9] : memref<4x9x9x8xbf16, #tpu.memory_space<vmem>>, vector<1x8x8x8xbf16>
    %6 = vector.shape_cast %5 : vector<1x8x8x8xbf16> to vector<8x8x8xbf16>
    %7 = arith.maximumf %4, %6 : vector<8x8x8xbf16>
    %c2 = arith.constant 2 : index
    %c0_10 = arith.constant 0 : index
    %c0_11 = arith.constant 0 : index
    %c0_12 = arith.constant 0 : index
    %8 = vector.load %arg1[%c2, %c0_10, %c0_11, %c0_12] : memref<4x9x9x8xbf16, #tpu.memory_space<vmem>>, vector<1x8x8x8xbf16>
    %9 = vector.shape_cast %8 : vector<1x8x8x8xbf16> to vector<8x8x8xbf16>
    %10 = arith.maximumf %7, %9 : vector<8x8x8xbf16>
    %c3 = arith.constant 3 : index
    %c0_13 = arith.constant 0 : index
    %c0_14 = arith.constant 0 : index
    %c0_15 = arith.constant 0 : index
    %11 = vector.load %arg1[%c3, %c0_13, %c0_14, %c0_15] : memref<4x9x9x8xbf16, #tpu.memory_space<vmem>>, vector<1x8x8x8xbf16>
    %12 = vector.shape_cast %11 : vector<1x8x8x8xbf16> to vector<8x8x8xbf16>
    %13 = arith.maximumf %10, %12 : vector<8x8x8xbf16>
    %c2_16 = arith.constant 2 : index
    %c0_17 = arith.constant 0 : index
    %c1_18 = arith.constant 1 : index
    %c0_19 = arith.constant 0 : index
    %14 = vector.load %arg1[%c2_16, %c0_17, %c1_18, %c0_19] : memref<4x9x9x8xbf16, #tpu.memory_space<vmem>>, vector<1x8x8x8xbf16>
    %15 = vector.shape_cast %14 : vector<1x8x8x8xbf16> to vector<8x8x8xbf16>
    %16 = arith.maximumf %13, %15 : vector<8x8x8xbf16>
    %c0_20 = arith.constant 0 : index
    %c1_21 = arith.constant 1 : index
    %c0_22 = arith.constant 0 : index
    %c0_23 = arith.constant 0 : index
    %17 = vector.load %arg1[%c0_20, %c1_21, %c0_22, %c0_23] : memref<4x9x9x8xbf16, #tpu.memory_space<vmem>>, vector<1x8x8x8xbf16>
    %18 = vector.shape_cast %17 : vector<1x8x8x8xbf16> to vector<8x8x8xbf16>
    %19 = arith.maximumf %16, %18 : vector<8x8x8xbf16>
    %c1_24 = arith.constant 1 : index
    %c1_25 = arith.constant 1 : index
    %c0_26 = arith.constant 0 : index
    %c0_27 = arith.constant 0 : index
    %20 = vector.load %arg1[%c1_24, %c1_25, %c0_26, %c0_27] : memref<4x9x9x8xbf16, #tpu.memory_space<vmem>>, vector<1x8x8x8xbf16>
    %21 = vector.shape_cast %20 : vector<1x8x8x8xbf16> to vector<8x8x8xbf16>
    %22 = arith.maximumf %19, %21 : vector<8x8x8xbf16>
    %c0_28 = arith.constant 0 : index
    %c1_29 = arith.constant 1 : index
    %c1_30 = arith.constant 1 : index
    %c0_31 = arith.constant 0 : index
    %23 = vector.load %arg1[%c0_28, %c1_29, %c1_30, %c0_31] : memref<4x9x9x8xbf16, #tpu.memory_space<vmem>>, vector<1x8x8x8xbf16>
    %24 = vector.shape_cast %23 : vector<1x8x8x8xbf16> to vector<8x8x8xbf16>
    %25 = arith.maximumf %22, %24 : vector<8x8x8xbf16>
    %c0_32 = arith.constant 0 : index
    %c0_33 = arith.constant 0 : index
    %c0_34 = arith.constant 0 : index
    %c0_35 = arith.constant 0 : index
    %26 = vector.load %arg2[%c0_32, %c0_33, %c0_34, %c0_35] : memref<1x8x8x8xbf16, #tpu.memory_space<vmem>>, vector<1x8x8x8xbf16>
    %27 = vector.shape_cast %26 : vector<1x8x8x8xbf16> to vector<8x8x8xbf16>
    %28 = vector.shape_cast %25 : vector<8x8x8xbf16> to vector<1x8x8x8xbf16>
    tpu.vector_store %arg2[%c0_32, %c0_33, %c0_34, %c0_35], %28 {strides = array<i32>} : memref<1x8x8x8xbf16, #tpu.memory_space<vmem>>, vector<1x8x8x8xbf16>,
    return
  }
  func.func @transform_0(%arg0: i32) -> (i32, i32, i32, i32) {
    %c0_i32 = arith.constant 0 : i32
    %c0_i32_0 = arith.constant 0 : i32
    %c0_i32_1 = arith.constant 0 : i32
    %c0_i32_2 = arith.constant 0 : i32
    return %arg0, %c0_i32, %c0_i32_0, %c0_i32_1 : i32, i32, i32, i32
  }
  func.func @transform_1(%arg0: i32) -> (i32, i32, i32, i32) {
    %c0_i32 = arith.constant 0 : i32
    %c0_i32_0 = arith.constant 0 : i32
    %c0_i32_1 = arith.constant 0 : i32
    %c0_i32_2 = arith.constant 0 : i32
    return %arg0, %c0_i32, %c0_i32_0, %c0_i32_1 : i32, i32, i32, i32
  }
}

module attributes {stable_mosaic.version = 11 : i64} {
  func.func @_pw_kernel(%arg0: i32, %arg1: memref<64x8xbf16, #tpu.memory_space<vmem>>, %arg2: memref<8x8xbf16, #tpu.memory_space<vmem>>, %arg3: memref<1x8xf32, #tpu.memory_space<vmem>>, %arg4: memref<1x8xf32, #tpu.memory_space<vmem>>, %arg5: memref<64x8xbf16, #tpu.memory_space<vmem>>) attributes {dimension_semantics = [#tpu.dimension_semantics<parallel>], iteration_bounds = array<i64: 2>, scalar_prefetch = 0 : i64, scratch_operands = 0 : i64, tpu.core_type = #tpu.core_type<tc>, window_params = [{transform_indices = @transform_0, window_bounds = array<i64: 64, 8>}, {pipeline_mode = #tpu.pipeline_mode<synchronous>, transform_indices = @transform_1, window_bounds = array<i64: 8, 8>}, {pipeline_mode = #tpu.pipeline_mode<synchronous>, transform_indices = @transform_2, window_bounds = array<i64: 1, 8>}, {pipeline_mode = #tpu.pipeline_mode<synchronous>, transform_indices = @transform_3, window_bounds = array<i64: 1, 8>}, {transform_indices = @transform_4, window_bounds = array<i64: 64, 8>}]} {
    %c0 = arith.constant 0 : index
    %c0_0 = arith.constant 0 : index
    %0 = vector.load %arg1[%c0, %c0_0] : memref<64x8xbf16, #tpu.memory_space<vmem>>, vector<64x8xbf16>
    %c0_1 = arith.constant 0 : index
    %c0_2 = arith.constant 0 : index
    %1 = vector.load %arg2[%c0_1, %c0_2] : memref<8x8xbf16, #tpu.memory_space<vmem>>, vector<8x8xbf16>
    %cst = arith.constant dense<0.000000e+00> : vector<64x8xf32>
    %2 = tpu.matmul %0, %1, %cst {dimension_numbers = #tpu.dot_dimension_numbers<[1], [0], [0], [1], [0, 0, 1, 1], [], []>} : vector<64x8xbf16>, vector<8x8xbf16>, vector<64x8xf32> -> vector<64x8xf32>
    %c0_3 = arith.constant 0 : index
    %c0_4 = arith.constant 0 : index
    %3 = vector.load %arg3[%c0_3, %c0_4] : memref<1x8xf32, #tpu.memory_space<vmem>>, vector<1x8xf32>
    %4 = vector.broadcast %3 : vector<1x8xf32> to vector<64x8xf32>
    %5 = arith.mulf %2, %4 : vector<64x8xf32>
    %c0_5 = arith.constant 0 : index
    %c0_6 = arith.constant 0 : index
    %6 = vector.load %arg4[%c0_5, %c0_6] : memref<1x8xf32, #tpu.memory_space<vmem>>, vector<1x8xf32>
    %7 = vector.broadcast %6 : vector<1x8xf32> to vector<64x8xf32>
    %8 = arith.addf %5, %7 : vector<64x8xf32>
    %cst_7 = arith.constant 0.000000e+00 : f32
    %9 = vector.broadcast %cst_7 : f32 to vector<64x8xf32>
    %10 = arith.maximumf %8, %9 : vector<64x8xf32>
    %11 = arith.truncf %10 : vector<64x8xf32> to vector<64x8xbf16>
    %c0_8 = arith.constant 0 : index
    %c0_9 = arith.constant 0 : index
    %12 = vector.load %arg5[%c0_8, %c0_9] : memref<64x8xbf16, #tpu.memory_space<vmem>>, vector<64x8xbf16>
    tpu.vector_store %arg5[%c0_8, %c0_9], %11 {strides = array<i32>} : memref<64x8xbf16, #tpu.memory_space<vmem>>, vector<64x8xbf16>,
    return
  }
  func.func @transform_0(%arg0: i32) -> (i32, i32) {
    %c0_i32 = arith.constant 0 : i32
    %c0_i32_0 = arith.constant 0 : i32
    return %arg0, %c0_i32 : i32, i32
  }
  func.func @transform_1(%arg0: i32) -> (i32, i32) {
    %c0_i32 = arith.constant 0 : i32
    %c0_i32_0 = arith.constant 0 : i32
    %c0_i32_1 = arith.constant 0 : i32
    return %c0_i32, %c0_i32_0 : i32, i32
  }
  func.func @transform_2(%arg0: i32) -> (i32, i32) {
    %c0_i32 = arith.constant 0 : i32
    %c0_i32_0 = arith.constant 0 : i32
    %c0_i32_1 = arith.constant 0 : i32
    return %c0_i32, %c0_i32_0 : i32, i32
  }
  func.func @transform_3(%arg0: i32) -> (i32, i32) {
    %c0_i32 = arith.constant 0 : i32
    %c0_i32_0 = arith.constant 0 : i32
    %c0_i32_1 = arith.constant 0 : i32
    return %c0_i32, %c0_i32_0 : i32, i32
  }
  func.func @transform_4(%arg0: i32) -> (i32, i32) {
    %c0_i32 = arith.constant 0 : i32
    %c0_i32_0 = arith.constant 0 : i32
    return %arg0, %c0_i32 : i32, i32
  }
}

module attributes {stable_mosaic.version = 11 : i64} {
  func.func @_dw_s2_pw_kernel(%arg0: i32, %arg1: memref<4x5x5x8xbf16, #tpu.memory_space<vmem>>, %arg2: memref<9x1x8xf32, #tpu.memory_space<vmem>>, %arg3: memref<1x8xf32, #tpu.memory_space<vmem>>, %arg4: memref<1x8xf32, #tpu.memory_space<vmem>>, %arg5: memref<8x8xbf16, #tpu.memory_space<vmem>>, %arg6: memref<1x8xf32, #tpu.memory_space<vmem>>, %arg7: memref<1x8xf32, #tpu.memory_space<vmem>>, %arg8: memref<1x16x8xbf16, #tpu.memory_space<vmem>>) attributes {dimension_semantics = [#tpu.dimension_semantics<parallel>], iteration_bounds = array<i64: 2>, scalar_prefetch = 0 : i64, scratch_operands = 0 : i64, tpu.core_type = #tpu.core_type<tc>, window_params = [{transform_indices = @transform_0, window_bounds = array<i64: 4, 5, 5, 8>}, {pipeline_mode = #tpu.pipeline_mode<synchronous>, transform_indices = @transform_1, window_bounds = array<i64: 9, 1, 8>}, {pipeline_mode = #tpu.pipeline_mode<synchronous>, transform_indices = @transform_2, window_bounds = array<i64: 1, 8>}, {pipeline_mode = #tpu.pipeline_mode<synchronous>, transform_indices = @transform_3, window_bounds = array<i64: 1, 8>}, {pipeline_mode = #tpu.pipeline_mode<synchronous>, transform_indices = @transform_4, window_bounds = array<i64: 8, 8>}, {pipeline_mode = #tpu.pipeline_mode<synchronous>, transform_indices = @transform_5, window_bounds = array<i64: 1, 8>}, {pipeline_mode = #tpu.pipeline_mode<synchronous>, transform_indices = @transform_6, window_bounds = array<i64: 1, 8>}, {transform_indices = @transform_7, window_bounds = array<i64: 1, 16, 8>}]} {
    %c0 = arith.constant 0 : index
    %c0_0 = arith.constant 0 : index
    %c0_1 = arith.constant 0 : index
    %c0_2 = arith.constant 0 : index
    %0 = vector.load %arg1[%c0, %c0_0, %c0_1, %c0_2] : memref<4x5x5x8xbf16, #tpu.memory_space<vmem>>, vector<1x4x4x8xbf16>
    %1 = vector.shape_cast %0 : vector<1x4x4x8xbf16> to vector<4x4x8xbf16>
    %2 = arith.extf %1 : vector<4x4x8xbf16> to vector<4x4x8xf32>
    %c0_3 = arith.constant 0 : index
    %c0_4 = arith.constant 0 : index
    %c0_5 = arith.constant 0 : index
    %3 = vector.load %arg2[%c0_3, %c0_4, %c0_5] : memref<9x1x8xf32, #tpu.memory_space<vmem>>, vector<1x1x8xf32>
    %4 = vector.shape_cast %3 : vector<1x1x8xf32> to vector<1x8xf32>
    %5 = vector.shape_cast %4 : vector<1x8xf32> to vector<1x1x8xf32>
    %6 = vector.broadcast %5 : vector<1x1x8xf32> to vector<4x4x8xf32>
    %7 = arith.mulf %2, %6 : vector<4x4x8xf32>
    %c1 = arith.constant 1 : index
    %c0_6 = arith.constant 0 : index
    %c0_7 = arith.constant 0 : index
    %c0_8 = arith.constant 0 : index
    %8 = vector.load %arg1[%c1, %c0_6, %c0_7, %c0_8] : memref<4x5x5x8xbf16, #tpu.memory_space<vmem>>, vector<1x4x4x8xbf16>
    %9 = vector.shape_cast %8 : vector<1x4x4x8xbf16> to vector<4x4x8xbf16>
    %10 = arith.extf %9 : vector<4x4x8xbf16> to vector<4x4x8xf32>
    %c1_9 = arith.constant 1 : index
    %c0_10 = arith.constant 0 : index
    %c0_11 = arith.constant 0 : index
    %11 = vector.load %arg2[%c1_9, %c0_10, %c0_11] : memref<9x1x8xf32, #tpu.memory_space<vmem>>, vector<1x1x8xf32>
    %12 = vector.shape_cast %11 : vector<1x1x8xf32> to vector<1x8xf32>
    %13 = vector.shape_cast %12 : vector<1x8xf32> to vector<1x1x8xf32>
    %14 = vector.broadcast %13 : vector<1x1x8xf32> to vector<4x4x8xf32>
    %15 = arith.mulf %10, %14 : vector<4x4x8xf32>
    %c0_12 = arith.constant 0 : index
    %c0_13 = arith.constant 0 : index
    %c1_14 = arith.constant 1 : index
    %c0_15 = arith.constant 0 : index
    %16 = vector.load %arg1[%c0_12, %c0_13, %c1_14, %c0_15] : memref<4x5x5x8xbf16, #tpu.memory_space<vmem>>, vector<1x4x4x8xbf16>
    %17 = vector.shape_cast %16 : vector<1x4x4x8xbf16> to vector<4x4x8xbf16>
    %18 = arith.extf %17 : vector<4x4x8xbf16> to vector<4x4x8xf32>
    %c2 = arith.constant 2 : index
    %c0_16 = arith.constant 0 : index
    %c0_17 = arith.constant 0 : index
    %19 = vector.load %arg2[%c2, %c0_16, %c0_17] : memref<9x1x8xf32, #tpu.memory_space<vmem>>, vector<1x1x8xf32>
    %20 = vector.shape_cast %19 : vector<1x1x8xf32> to vector<1x8xf32>
    %21 = vector.shape_cast %20 : vector<1x8xf32> to vector<1x1x8xf32>
    %22 = vector.broadcast %21 : vector<1x1x8xf32> to vector<4x4x8xf32>
    %23 = arith.mulf %18, %22 : vector<4x4x8xf32>
    %c2_18 = arith.constant 2 : index
    %c0_19 = arith.constant 0 : index
    %c0_20 = arith.constant 0 : index
    %c0_21 = arith.constant 0 : index
    %24 = vector.load %arg1[%c2_18, %c0_19, %c0_20, %c0_21] : memref<4x5x5x8xbf16, #tpu.memory_space<vmem>>, vector<1x4x4x8xbf16>
    %25 = vector.shape_cast %24 : vector<1x4x4x8xbf16> to vector<4x4x8xbf16>
    %26 = arith.extf %25 : vector<4x4x8xbf16> to vector<4x4x8xf32>
    %c3 = arith.constant 3 : index
    %c0_22 = arith.constant 0 : index
    %c0_23 = arith.constant 0 : index
    %27 = vector.load %arg2[%c3, %c0_22, %c0_23] : memref<9x1x8xf32, #tpu.memory_space<vmem>>, vector<1x1x8xf32>
    %28 = vector.shape_cast %27 : vector<1x1x8xf32> to vector<1x8xf32>
    %29 = vector.shape_cast %28 : vector<1x8xf32> to vector<1x1x8xf32>
    %30 = vector.broadcast %29 : vector<1x1x8xf32> to vector<4x4x8xf32>
    %31 = arith.mulf %26, %30 : vector<4x4x8xf32>
    %32 = arith.addf %7, %31 : vector<4x4x8xf32>
    %c3_24 = arith.constant 3 : index
    %c0_25 = arith.constant 0 : index
    %c0_26 = arith.constant 0 : index
    %c0_27 = arith.constant 0 : index
    %33 = vector.load %arg1[%c3_24, %c0_25, %c0_26, %c0_27] : memref<4x5x5x8xbf16, #tpu.memory_space<vmem>>, vector<1x4x4x8xbf16>
    %34 = vector.shape_cast %33 : vector<1x4x4x8xbf16> to vector<4x4x8xbf16>
    %35 = arith.extf %34 : vector<4x4x8xbf16> to vector<4x4x8xf32>
    %c4 = arith.constant 4 : index
    %c0_28 = arith.constant 0 : index
    %c0_29 = arith.constant 0 : index
    %36 = vector.load %arg2[%c4, %c0_28, %c0_29] : memref<9x1x8xf32, #tpu.memory_space<vmem>>, vector<1x1x8xf32>
    %37 = vector.shape_cast %36 : vector<1x1x8xf32> to vector<1x8xf32>
    %38 = vector.shape_cast %37 : vector<1x8xf32> to vector<1x1x8xf32>
    %39 = vector.broadcast %38 : vector<1x1x8xf32> to vector<4x4x8xf32>
    %40 = arith.mulf %35, %39 : vector<4x4x8xf32>
    %41 = arith.addf %15, %40 : vector<4x4x8xf32>
    %c2_30 = arith.constant 2 : index
    %c0_31 = arith.constant 0 : index
    %c1_32 = arith.constant 1 : index
    %c0_33 = arith.constant 0 : index
    %42 = vector.load %arg1[%c2_30, %c0_31, %c1_32, %c0_33] : memref<4x5x5x8xbf16, #tpu.memory_space<vmem>>, vector<1x4x4x8xbf16>
    %43 = vector.shape_cast %42 : vector<1x4x4x8xbf16> to vector<4x4x8xbf16>
    %44 = arith.extf %43 : vector<4x4x8xbf16> to vector<4x4x8xf32>
    %c5 = arith.constant 5 : index
    %c0_34 = arith.constant 0 : index
    %c0_35 = arith.constant 0 : index
    %45 = vector.load %arg2[%c5, %c0_34, %c0_35] : memref<9x1x8xf32, #tpu.memory_space<vmem>>, vector<1x1x8xf32>
    %46 = vector.shape_cast %45 : vector<1x1x8xf32> to vector<1x8xf32>
    %47 = vector.shape_cast %46 : vector<1x8xf32> to vector<1x1x8xf32>
    %48 = vector.broadcast %47 : vector<1x1x8xf32> to vector<4x4x8xf32>
    %49 = arith.mulf %44, %48 : vector<4x4x8xf32>
    %50 = arith.addf %23, %49 : vector<4x4x8xf32>
    %c0_36 = arith.constant 0 : index
    %c1_37 = arith.constant 1 : index
    %c0_38 = arith.constant 0 : index
    %c0_39 = arith.constant 0 : index
    %51 = vector.load %arg1[%c0_36, %c1_37, %c0_38, %c0_39] : memref<4x5x5x8xbf16, #tpu.memory_space<vmem>>, vector<1x4x4x8xbf16>
    %52 = vector.shape_cast %51 : vector<1x4x4x8xbf16> to vector<4x4x8xbf16>
    %53 = arith.extf %52 : vector<4x4x8xbf16> to vector<4x4x8xf32>
    %c6 = arith.constant 6 : index
    %c0_40 = arith.constant 0 : index
    %c0_41 = arith.constant 0 : index
    %54 = vector.load %arg2[%c6, %c0_40, %c0_41] : memref<9x1x8xf32, #tpu.memory_space<vmem>>, vector<1x1x8xf32>
    %55 = vector.shape_cast %54 : vector<1x1x8xf32> to vector<1x8xf32>
    %56 = vector.shape_cast %55 : vector<1x8xf32> to vector<1x1x8xf32>
    %57 = vector.broadcast %56 : vector<1x1x8xf32> to vector<4x4x8xf32>
    %58 = arith.mulf %53, %57 : vector<4x4x8xf32>
    %59 = arith.addf %32, %58 : vector<4x4x8xf32>
    %c1_42 = arith.constant 1 : index
    %c1_43 = arith.constant 1 : index
    %c0_44 = arith.constant 0 : index
    %c0_45 = arith.constant 0 : index
    %60 = vector.load %arg1[%c1_42, %c1_43, %c0_44, %c0_45] : memref<4x5x5x8xbf16, #tpu.memory_space<vmem>>, vector<1x4x4x8xbf16>
    %61 = vector.shape_cast %60 : vector<1x4x4x8xbf16> to vector<4x4x8xbf16>
    %62 = arith.extf %61 : vector<4x4x8xbf16> to vector<4x4x8xf32>
    %c7 = arith.constant 7 : index
    %c0_46 = arith.constant 0 : index
    %c0_47 = arith.constant 0 : index
    %63 = vector.load %arg2[%c7, %c0_46, %c0_47] : memref<9x1x8xf32, #tpu.memory_space<vmem>>, vector<1x1x8xf32>
    %64 = vector.shape_cast %63 : vector<1x1x8xf32> to vector<1x8xf32>
    %65 = vector.shape_cast %64 : vector<1x8xf32> to vector<1x1x8xf32>
    %66 = vector.broadcast %65 : vector<1x1x8xf32> to vector<4x4x8xf32>
    %67 = arith.mulf %62, %66 : vector<4x4x8xf32>
    %68 = arith.addf %41, %67 : vector<4x4x8xf32>
    %c0_48 = arith.constant 0 : index
    %c1_49 = arith.constant 1 : index
    %c1_50 = arith.constant 1 : index
    %c0_51 = arith.constant 0 : index
    %69 = vector.load %arg1[%c0_48, %c1_49, %c1_50, %c0_51] : memref<4x5x5x8xbf16, #tpu.memory_space<vmem>>, vector<1x4x4x8xbf16>
    %70 = vector.shape_cast %69 : vector<1x4x4x8xbf16> to vector<4x4x8xbf16>
    %71 = arith.extf %70 : vector<4x4x8xbf16> to vector<4x4x8xf32>
    %c8 = arith.constant 8 : index
    %c0_52 = arith.constant 0 : index
    %c0_53 = arith.constant 0 : index
    %72 = vector.load %arg2[%c8, %c0_52, %c0_53] : memref<9x1x8xf32, #tpu.memory_space<vmem>>, vector<1x1x8xf32>
    %73 = vector.shape_cast %72 : vector<1x1x8xf32> to vector<1x8xf32>
    %74 = vector.shape_cast %73 : vector<1x8xf32> to vector<1x1x8xf32>
    %75 = vector.broadcast %74 : vector<1x1x8xf32> to vector<4x4x8xf32>
    %76 = arith.mulf %71, %75 : vector<4x4x8xf32>
    %77 = arith.addf %50, %76 : vector<4x4x8xf32>
    %78 = arith.addf %59, %68 : vector<4x4x8xf32>
    %79 = arith.addf %78, %77 : vector<4x4x8xf32>
    %c0_54 = arith.constant 0 : index
    %c0_55 = arith.constant 0 : index
    %80 = vector.load %arg3[%c0_54, %c0_55] : memref<1x8xf32, #tpu.memory_space<vmem>>, vector<1x8xf32>
    %81 = vector.shape_cast %80 : vector<1x8xf32> to vector<1x1x8xf32>
    %82 = vector.broadcast %81 : vector<1x1x8xf32> to vector<4x4x8xf32>
    %83 = arith.mulf %79, %82 : vector<4x4x8xf32>
    %c0_56 = arith.constant 0 : index
    %c0_57 = arith.constant 0 : index
    %84 = vector.load %arg4[%c0_56, %c0_57] : memref<1x8xf32, #tpu.memory_space<vmem>>, vector<1x8xf32>
    %85 = vector.shape_cast %84 : vector<1x8xf32> to vector<1x1x8xf32>
    %86 = vector.broadcast %85 : vector<1x1x8xf32> to vector<4x4x8xf32>
    %87 = arith.addf %83, %86 : vector<4x4x8xf32>
    %88 = vector.shape_cast %87 : vector<4x4x8xf32> to vector<16x8xf32>
    %89 = arith.truncf %88 : vector<16x8xf32> to vector<16x8xbf16>
    %c0_58 = arith.constant 0 : index
    %c0_59 = arith.constant 0 : index
    %90 = vector.load %arg5[%c0_58, %c0_59] : memref<8x8xbf16, #tpu.memory_space<vmem>>, vector<8x8xbf16>
    %cst = arith.constant dense<0.000000e+00> : vector<16x8xf32>
    %91 = tpu.matmul %89, %90, %cst {dimension_numbers = #tpu.dot_dimension_numbers<[1], [0], [0], [1], [0, 0, 1, 1], [], []>} : vector<16x8xbf16>, vector<8x8xbf16>, vector<16x8xf32> -> vector<16x8xf32>
    %c0_60 = arith.constant 0 : index
    %c0_61 = arith.constant 0 : index
    %92 = vector.load %arg6[%c0_60, %c0_61] : memref<1x8xf32, #tpu.memory_space<vmem>>, vector<1x8xf32>
    %93 = vector.broadcast %92 : vector<1x8xf32> to vector<16x8xf32>
    %94 = arith.mulf %91, %93 : vector<16x8xf32>
    %c0_62 = arith.constant 0 : index
    %c0_63 = arith.constant 0 : index
    %95 = vector.load %arg7[%c0_62, %c0_63] : memref<1x8xf32, #tpu.memory_space<vmem>>, vector<1x8xf32>
    %96 = vector.broadcast %95 : vector<1x8xf32> to vector<16x8xf32>
    %97 = arith.addf %94, %96 : vector<16x8xf32>
    %cst_64 = arith.constant 0.000000e+00 : f32
    %98 = vector.broadcast %cst_64 : f32 to vector<16x8xf32>
    %99 = arith.maximumf %97, %98 : vector<16x8xf32>
    %100 = arith.truncf %99 : vector<16x8xf32> to vector<16x8xbf16>
    %c0_65 = arith.constant 0 : index
    %c0_66 = arith.constant 0 : index
    %c0_67 = arith.constant 0 : index
    %101 = vector.load %arg8[%c0_65, %c0_66, %c0_67] : memref<1x16x8xbf16, #tpu.memory_space<vmem>>, vector<1x16x8xbf16>
    %102 = vector.shape_cast %101 : vector<1x16x8xbf16> to vector<16x8xbf16>
    %103 = vector.shape_cast %100 : vector<16x8xbf16> to vector<1x16x8xbf16>
    tpu.vector_store %arg8[%c0_65, %c0_66, %c0_67], %103 {strides = array<i32>} : memref<1x16x8xbf16, #tpu.memory_space<vmem>>, vector<1x16x8xbf16>,
    return
  }
  func.func @transform_0(%arg0: i32) -> (i32, i32, i32, i32) {
    %c0_i32 = arith.constant 0 : i32
    %c0_i32_0 = arith.constant 0 : i32
    %c0_i32_1 = arith.constant 0 : i32
    %c0_i32_2 = arith.constant 0 : i32
    return %arg0, %c0_i32, %c0_i32_0, %c0_i32_1 : i32, i32, i32, i32
  }
  func.func @transform_1(%arg0: i32) -> (i32, i32, i32) {
    %c0_i32 = arith.constant 0 : i32
    %c0_i32_0 = arith.constant 0 : i32
    %c0_i32_1 = arith.constant 0 : i32
    %c0_i32_2 = arith.constant 0 : i32
    return %c0_i32, %c0_i32_0, %c0_i32_1 : i32, i32, i32
  }
  func.func @transform_2(%arg0: i32) -> (i32, i32) {
    %c0_i32 = arith.constant 0 : i32
    %c0_i32_0 = arith.constant 0 : i32
    %c0_i32_1 = arith.constant 0 : i32
    return %c0_i32, %c0_i32_0 : i32, i32
  }
  func.func @transform_3(%arg0: i32) -> (i32, i32) {
    %c0_i32 = arith.constant 0 : i32
    %c0_i32_0 = arith.constant 0 : i32
    %c0_i32_1 = arith.constant 0 : i32
    return %c0_i32, %c0_i32_0 : i32, i32
  }
  func.func @transform_4(%arg0: i32) -> (i32, i32) {
    %c0_i32 = arith.constant 0 : i32
    %c0_i32_0 = arith.constant 0 : i32
    %c0_i32_1 = arith.constant 0 : i32
    return %c0_i32, %c0_i32_0 : i32, i32
  }
  func.func @transform_5(%arg0: i32) -> (i32, i32) {
    %c0_i32 = arith.constant 0 : i32
    %c0_i32_0 = arith.constant 0 : i32
    %c0_i32_1 = arith.constant 0 : i32
    return %c0_i32, %c0_i32_0 : i32, i32
  }
  func.func @transform_6(%arg0: i32) -> (i32, i32) {
    %c0_i32 = arith.constant 0 : i32
    %c0_i32_0 = arith.constant 0 : i32
    %c0_i32_1 = arith.constant 0 : i32
    return %c0_i32, %c0_i32_0 : i32, i32
  }
  func.func @transform_7(%arg0: i32) -> (i32, i32, i32) {
    %c0_i32 = arith.constant 0 : i32
    %c0_i32_0 = arith.constant 0 : i32
    %c0_i32_1 = arith.constant 0 : i32
    return %arg0, %c0_i32, %c0_i32_0 : i32, i32, i32
  }
}

module attributes {stable_mosaic.version = 11 : i64} {
  func.func @_fused_s1_branch_kernel(%arg0: i32, %arg1: memref<1x16x8xbf16, #tpu.memory_space<vmem>>, %arg2: memref<8x8xbf16, #tpu.memory_space<vmem>>, %arg3: memref<1x8xf32, #tpu.memory_space<vmem>>, %arg4: memref<1x8xf32, #tpu.memory_space<vmem>>, %arg5: memref<9x1x8xf32, #tpu.memory_space<vmem>>, %arg6: memref<1x8xf32, #tpu.memory_space<vmem>>, %arg7: memref<1x8xf32, #tpu.memory_space<vmem>>, %arg8: memref<8x8xbf16, #tpu.memory_space<vmem>>, %arg9: memref<1x8xf32, #tpu.memory_space<vmem>>, %arg10: memref<1x8xf32, #tpu.memory_space<vmem>>, %arg11: memref<1x16x8xbf16, #tpu.memory_space<vmem>>, %arg12: memref<6x6x8xf32, #tpu.memory_space<vmem>>) attributes {dimension_semantics = [#tpu.dimension_semantics<parallel>], iteration_bounds = array<i64: 2>, scalar_prefetch = 0 : i64, scratch_operands = 1 : i64, tpu.core_type = #tpu.core_type<tc>, window_params = [{transform_indices = @transform_0, window_bounds = array<i64: 1, 16, 8>}, {pipeline_mode = #tpu.pipeline_mode<synchronous>, transform_indices = @transform_1, window_bounds = array<i64: 8, 8>}, {pipeline_mode = #tpu.pipeline_mode<synchronous>, transform_indices = @transform_2, window_bounds = array<i64: 1, 8>}, {pipeline_mode = #tpu.pipeline_mode<synchronous>, transform_indices = @transform_3, window_bounds = array<i64: 1, 8>}, {pipeline_mode = #tpu.pipeline_mode<synchronous>, transform_indices = @transform_4, window_bounds = array<i64: 9, 1, 8>}, {pipeline_mode = #tpu.pipeline_mode<synchronous>, transform_indices = @transform_5, window_bounds = array<i64: 1, 8>}, {pipeline_mode = #tpu.pipeline_mode<synchronous>, transform_indices = @transform_6, window_bounds = array<i64: 1, 8>}, {pipeline_mode = #tpu.pipeline_mode<synchronous>, transform_indices = @transform_7, window_bounds = array<i64: 8, 8>}, {pipeline_mode = #tpu.pipeline_mode<synchronous>, transform_indices = @transform_8, window_bounds = array<i64: 1, 8>}, {pipeline_mode = #tpu.pipeline_mode<synchronous>, transform_indices = @transform_9, window_bounds = array<i64: 1, 8>}, {transform_indices = @transform_10, window_bounds = array<i64: 1, 16, 8>}]} {
    %c0_i32 = arith.constant 0 : i32
    %0 = arith.cmpi eq, %arg0, %c0_i32 : i32
    %1 = arith.extui %0 : i1 to i32
    %c0_i32_0 = arith.constant 0 : i32
    %2 = arith.cmpi ne, %1, %c0_i32_0 : i32
    scf.if %2 {
      %cst_74 = arith.constant 0.000000e+00 : f32
      %103 = vector.broadcast %cst_74 : f32 to vector<6x6x8xf32>
      %c0_75 = arith.constant 0 : index
      %c0_76 = arith.constant 0 : index
      %c0_77 = arith.constant 0 : index
      %104 = vector.load %arg12[%c0_75, %c0_76, %c0_77] : memref<6x6x8xf32, #tpu.memory_space<vmem>>, vector<6x6x8xf32>
      tpu.vector_store %arg12[%c0_75, %c0_76, %c0_77], %103 {strides = array<i32>} : memref<6x6x8xf32, #tpu.memory_space<vmem>>, vector<6x6x8xf32>,
    } else {
    }
    %c0 = arith.constant 0 : index
    %c0_1 = arith.constant 0 : index
    %c0_2 = arith.constant 0 : index
    %3 = vector.load %arg1[%c0, %c0_1, %c0_2] : memref<1x16x8xbf16, #tpu.memory_space<vmem>>, vector<1x16x8xbf16>
    %4 = vector.shape_cast %3 : vector<1x16x8xbf16> to vector<16x8xbf16>
    %c0_3 = arith.constant 0 : index
    %c0_4 = arith.constant 0 : index
    %5 = vector.load %arg2[%c0_3, %c0_4] : memref<8x8xbf16, #tpu.memory_space<vmem>>, vector<8x8xbf16>
    %cst = arith.constant dense<0.000000e+00> : vector<16x8xf32>
    %6 = tpu.matmul %4, %5, %cst {dimension_numbers = #tpu.dot_dimension_numbers<[1], [0], [0], [1], [0, 0, 1, 1], [], []>} : vector<16x8xbf16>, vector<8x8xbf16>, vector<16x8xf32> -> vector<16x8xf32>
    %c0_5 = arith.constant 0 : index
    %c0_6 = arith.constant 0 : index
    %7 = vector.load %arg3[%c0_5, %c0_6] : memref<1x8xf32, #tpu.memory_space<vmem>>, vector<1x8xf32>
    %8 = vector.broadcast %7 : vector<1x8xf32> to vector<16x8xf32>
    %9 = arith.mulf %6, %8 : vector<16x8xf32>
    %c0_7 = arith.constant 0 : index
    %c0_8 = arith.constant 0 : index
    %10 = vector.load %arg4[%c0_7, %c0_8] : memref<1x8xf32, #tpu.memory_space<vmem>>, vector<1x8xf32>
    %11 = vector.broadcast %10 : vector<1x8xf32> to vector<16x8xf32>
    %12 = arith.addf %9, %11 : vector<16x8xf32>
    %cst_9 = arith.constant 0.000000e+00 : f32
    %13 = vector.broadcast %cst_9 : f32 to vector<16x8xf32>
    %14 = arith.maximumf %12, %13 : vector<16x8xf32>
    %15 = vector.shape_cast %14 : vector<16x8xf32> to vector<4x4x8xf32>
    %c1 = arith.constant 1 : index
    %c1_10 = arith.constant 1 : index
    %c0_11 = arith.constant 0 : index
    %16 = vector.load %arg12[%c1, %c1_10, %c0_11] : memref<6x6x8xf32, #tpu.memory_space<vmem>>, vector<4x4x8xf32>
    tpu.vector_store %arg12[%c1, %c1_10, %c0_11], %15 {strides = array<i32>} : memref<6x6x8xf32, #tpu.memory_space<vmem>>, vector<4x4x8xf32>,
    %c0_12 = arith.constant 0 : index
    %c0_13 = arith.constant 0 : index
    %c0_14 = arith.constant 0 : index
    %17 = vector.load %arg12[%c0_12, %c0_13, %c0_14] : memref<6x6x8xf32, #tpu.memory_space<vmem>>, vector<4x4x8xf32>
    %c0_15 = arith.constant 0 : index
    %c0_16 = arith.constant 0 : index
    %c0_17 = arith.constant 0 : index
    %18 = vector.load %arg5[%c0_15, %c0_16, %c0_17] : memref<9x1x8xf32, #tpu.memory_space<vmem>>, vector<1x1x8xf32>
    %19 = vector.shape_cast %18 : vector<1x1x8xf32> to vector<1x8xf32>
    %20 = vector.shape_cast %19 : vector<1x8xf32> to vector<1x1x8xf32>
    %21 = vector.broadcast %20 : vector<1x1x8xf32> to vector<4x4x8xf32>
    %22 = arith.mulf %17, %21 : vector<4x4x8xf32>
    %c0_18 = arith.constant 0 : index
    %c1_19 = arith.constant 1 : index
    %c0_20 = arith.constant 0 : index
    %23 = vector.load %arg12[%c0_18, %c1_19, %c0_20] : memref<6x6x8xf32, #tpu.memory_space<vmem>>, vector<4x4x8xf32>
    %c1_21 = arith.constant 1 : index
    %c0_22 = arith.constant 0 : index
    %c0_23 = arith.constant 0 : index
    %24 = vector.load %arg5[%c1_21, %c0_22, %c0_23] : memref<9x1x8xf32, #tpu.memory_space<vmem>>, vector<1x1x8xf32>
    %25 = vector.shape_cast %24 : vector<1x1x8xf32> to vector<1x8xf32>
    %26 = vector.shape_cast %25 : vector<1x8xf32> to vector<1x1x8xf32>
    %27 = vector.broadcast %26 : vector<1x1x8xf32> to vector<4x4x8xf32>
    %28 = arith.mulf %23, %27 : vector<4x4x8xf32>
    %c0_24 = arith.constant 0 : index
    %c2 = arith.constant 2 : index
    %c0_25 = arith.constant 0 : index
    %29 = vector.load %arg12[%c0_24, %c2, %c0_25] : memref<6x6x8xf32, #tpu.memory_space<vmem>>, vector<4x4x8xf32>
    %c2_26 = arith.constant 2 : index
    %c0_27 = arith.constant 0 : index
    %c0_28 = arith.constant 0 : index
    %30 = vector.load %arg5[%c2_26, %c0_27, %c0_28] : memref<9x1x8xf32, #tpu.memory_space<vmem>>, vector<1x1x8xf32>
    %31 = vector.shape_cast %30 : vector<1x1x8xf32> to vector<1x8xf32>
    %32 = vector.shape_cast %31 : vector<1x8xf32> to vector<1x1x8xf32>
    %33 = vector.broadcast %32 : vector<1x1x8xf32> to vector<4x4x8xf32>
    %34 = arith.mulf %29, %33 : vector<4x4x8xf32>
    %c1_29 = arith.constant 1 : index
    %c0_30 = arith.constant 0 : index
    %c0_31 = arith.constant 0 : index
    %35 = vector.load %arg12[%c1_29, %c0_30, %c0_31] : memref<6x6x8xf32, #tpu.memory_space<vmem>>, vector<4x4x8xf32>
    %c3 = arith.constant 3 : index
    %c0_32 = arith.constant 0 : index
    %c0_33 = arith.constant 0 : index
    %36 = vector.load %arg5[%c3, %c0_32, %c0_33] : memref<9x1x8xf32, #tpu.memory_space<vmem>>, vector<1x1x8xf32>
    %37 = vector.shape_cast %36 : vector<1x1x8xf32> to vector<1x8xf32>
    %38 = vector.shape_cast %37 : vector<1x8xf32> to vector<1x1x8xf32>
    %39 = vector.broadcast %38 : vector<1x1x8xf32> to vector<4x4x8xf32>
    %40 = arith.mulf %35, %39 : vector<4x4x8xf32>
    %41 = arith.addf %22, %40 : vector<4x4x8xf32>
    %c1_34 = arith.constant 1 : index
    %c1_35 = arith.constant 1 : index
    %c0_36 = arith.constant 0 : index
    %42 = vector.load %arg12[%c1_34, %c1_35, %c0_36] : memref<6x6x8xf32, #tpu.memory_space<vmem>>, vector<4x4x8xf32>
    %c4 = arith.constant 4 : index
    %c0_37 = arith.constant 0 : index
    %c0_38 = arith.constant 0 : index
    %43 = vector.load %arg5[%c4, %c0_37, %c0_38] : memref<9x1x8xf32, #tpu.memory_space<vmem>>, vector<1x1x8xf32>
    %44 = vector.shape_cast %43 : vector<1x1x8xf32> to vector<1x8xf32>
    %45 = vector.shape_cast %44 : vector<1x8xf32> to vector<1x1x8xf32>
    %46 = vector.broadcast %45 : vector<1x1x8xf32> to vector<4x4x8xf32>
    %47 = arith.mulf %42, %46 : vector<4x4x8xf32>
    %48 = arith.addf %28, %47 : vector<4x4x8xf32>
    %c1_39 = arith.constant 1 : index
    %c2_40 = arith.constant 2 : index
    %c0_41 = arith.constant 0 : index
    %49 = vector.load %arg12[%c1_39, %c2_40, %c0_41] : memref<6x6x8xf32, #tpu.memory_space<vmem>>, vector<4x4x8xf32>
    %c5 = arith.constant 5 : index
    %c0_42 = arith.constant 0 : index
    %c0_43 = arith.constant 0 : index
    %50 = vector.load %arg5[%c5, %c0_42, %c0_43] : memref<9x1x8xf32, #tpu.memory_space<vmem>>, vector<1x1x8xf32>
    %51 = vector.shape_cast %50 : vector<1x1x8xf32> to vector<1x8xf32>
    %52 = vector.shape_cast %51 : vector<1x8xf32> to vector<1x1x8xf32>
    %53 = vector.broadcast %52 : vector<1x1x8xf32> to vector<4x4x8xf32>
    %54 = arith.mulf %49, %53 : vector<4x4x8xf32>
    %55 = arith.addf %34, %54 : vector<4x4x8xf32>
    %c2_44 = arith.constant 2 : index
    %c0_45 = arith.constant 0 : index
    %c0_46 = arith.constant 0 : index
    %56 = vector.load %arg12[%c2_44, %c0_45, %c0_46] : memref<6x6x8xf32, #tpu.memory_space<vmem>>, vector<4x4x8xf32>
    %c6 = arith.constant 6 : index
    %c0_47 = arith.constant 0 : index
    %c0_48 = arith.constant 0 : index
    %57 = vector.load %arg5[%c6, %c0_47, %c0_48] : memref<9x1x8xf32, #tpu.memory_space<vmem>>, vector<1x1x8xf32>
    %58 = vector.shape_cast %57 : vector<1x1x8xf32> to vector<1x8xf32>
    %59 = vector.shape_cast %58 : vector<1x8xf32> to vector<1x1x8xf32>
    %60 = vector.broadcast %59 : vector<1x1x8xf32> to vector<4x4x8xf32>
    %61 = arith.mulf %56, %60 : vector<4x4x8xf32>
    %62 = arith.addf %41, %61 : vector<4x4x8xf32>
    %c2_49 = arith.constant 2 : index
    %c1_50 = arith.constant 1 : index
    %c0_51 = arith.constant 0 : index
    %63 = vector.load %arg12[%c2_49, %c1_50, %c0_51] : memref<6x6x8xf32, #tpu.memory_space<vmem>>, vector<4x4x8xf32>
    %c7 = arith.constant 7 : index
    %c0_52 = arith.constant 0 : index
    %c0_53 = arith.constant 0 : index
    %64 = vector.load %arg5[%c7, %c0_52, %c0_53] : memref<9x1x8xf32, #tpu.memory_space<vmem>>, vector<1x1x8xf32>
    %65 = vector.shape_cast %64 : vector<1x1x8xf32> to vector<1x8xf32>
    %66 = vector.shape_cast %65 : vector<1x8xf32> to vector<1x1x8xf32>
    %67 = vector.broadcast %66 : vector<1x1x8xf32> to vector<4x4x8xf32>
    %68 = arith.mulf %63, %67 : vector<4x4x8xf32>
    %69 = arith.addf %48, %68 : vector<4x4x8xf32>
    %c2_54 = arith.constant 2 : index
    %c2_55 = arith.constant 2 : index
    %c0_56 = arith.constant 0 : index
    %70 = vector.load %arg12[%c2_54, %c2_55, %c0_56] : memref<6x6x8xf32, #tpu.memory_space<vmem>>, vector<4x4x8xf32>
    %c8 = arith.constant 8 : index
    %c0_57 = arith.constant 0 : index
    %c0_58 = arith.constant 0 : index
    %71 = vector.load %arg5[%c8, %c0_57, %c0_58] : memref<9x1x8xf32, #tpu.memory_space<vmem>>, vector<1x1x8xf32>
    %72 = vector.shape_cast %71 : vector<1x1x8xf32> to vector<1x8xf32>
    %73 = vector.shape_cast %72 : vector<1x8xf32> to vector<1x1x8xf32>
    %74 = vector.broadcast %73 : vector<1x1x8xf32> to vector<4x4x8xf32>
    %75 = arith.mulf %70, %74 : vector<4x4x8xf32>
    %76 = arith.addf %55, %75 : vector<4x4x8xf32>
    %77 = arith.addf %62, %69 : vector<4x4x8xf32>
    %78 = arith.addf %77, %76 : vector<4x4x8xf32>
    %c0_59 = arith.constant 0 : index
    %c0_60 = arith.constant 0 : index
    %79 = vector.load %arg6[%c0_59, %c0_60] : memref<1x8xf32, #tpu.memory_space<vmem>>, vector<1x8xf32>
    %80 = vector.shape_cast %79 : vector<1x8xf32> to vector<1x1x8xf32>
    %81 = vector.broadcast %80 : vector<1x1x8xf32> to vector<4x4x8xf32>
    %82 = arith.mulf %78, %81 : vector<4x4x8xf32>
    %c0_61 = arith.constant 0 : index
    %c0_62 = arith.constant 0 : index
    %83 = vector.load %arg7[%c0_61, %c0_62] : memref<1x8xf32, #tpu.memory_space<vmem>>, vector<1x8xf32>
    %84 = vector.shape_cast %83 : vector<1x8xf32> to vector<1x1x8xf32>
    %85 = vector.broadcast %84 : vector<1x1x8xf32> to vector<4x4x8xf32>
    %86 = arith.addf %82, %85 : vector<4x4x8xf32>
    %87 = vector.shape_cast %86 : vector<4x4x8xf32> to vector<16x8xf32>
    %88 = arith.truncf %87 : vector<16x8xf32> to vector<16x8xbf16>
    %c0_63 = arith.constant 0 : index
    %c0_64 = arith.constant 0 : index
    %89 = vector.load %arg8[%c0_63, %c0_64] : memref<8x8xbf16, #tpu.memory_space<vmem>>, vector<8x8xbf16>
    %cst_65 = arith.constant dense<0.000000e+00> : vector<16x8xf32>
    %90 = tpu.matmul %88, %89, %cst_65 {dimension_numbers = #tpu.dot_dimension_numbers<[1], [0], [0], [1], [0, 0, 1, 1], [], []>} : vector<16x8xbf16>, vector<8x8xbf16>, vector<16x8xf32> -> vector<16x8xf32>
    %c0_66 = arith.constant 0 : index
    %c0_67 = arith.constant 0 : index
    %91 = vector.load %arg9[%c0_66, %c0_67] : memref<1x8xf32, #tpu.memory_space<vmem>>, vector<1x8xf32>
    %92 = vector.broadcast %91 : vector<1x8xf32> to vector<16x8xf32>
    %93 = arith.mulf %90, %92 : vector<16x8xf32>
    %c0_68 = arith.constant 0 : index
    %c0_69 = arith.constant 0 : index
    %94 = vector.load %arg10[%c0_68, %c0_69] : memref<1x8xf32, #tpu.memory_space<vmem>>, vector<1x8xf32>
    %95 = vector.broadcast %94 : vector<1x8xf32> to vector<16x8xf32>
    %96 = arith.addf %93, %95 : vector<16x8xf32>
    %cst_70 = arith.constant 0.000000e+00 : f32
    %97 = vector.broadcast %cst_70 : f32 to vector<16x8xf32>
    %98 = arith.maximumf %96, %97 : vector<16x8xf32>
    %99 = arith.truncf %98 : vector<16x8xf32> to vector<16x8xbf16>
    %c0_71 = arith.constant 0 : index
    %c0_72 = arith.constant 0 : index
    %c0_73 = arith.constant 0 : index
    %100 = vector.load %arg11[%c0_71, %c0_72, %c0_73] : memref<1x16x8xbf16, #tpu.memory_space<vmem>>, vector<1x16x8xbf16>
    %101 = vector.shape_cast %100 : vector<1x16x8xbf16> to vector<16x8xbf16>
    %102 = vector.shape_cast %99 : vector<16x8xbf16> to vector<1x16x8xbf16>
    tpu.vector_store %arg11[%c0_71, %c0_72, %c0_73], %102 {strides = array<i32>} : memref<1x16x8xbf16, #tpu.memory_space<vmem>>, vector<1x16x8xbf16>,
    return
  }
  func.func @transform_0(%arg0: i32) -> (i32, i32, i32) {
    %c0_i32 = arith.constant 0 : i32
    %c0_i32_0 = arith.constant 0 : i32
    %c0_i32_1 = arith.constant 0 : i32
    return %arg0, %c0_i32, %c0_i32_0 : i32, i32, i32
  }
  func.func @transform_1(%arg0: i32) -> (i32, i32) {
    %c0_i32 = arith.constant 0 : i32
    %c0_i32_0 = arith.constant 0 : i32
    %c0_i32_1 = arith.constant 0 : i32
    return %c0_i32, %c0_i32_0 : i32, i32
  }
  func.func @transform_2(%arg0: i32) -> (i32, i32) {
    %c0_i32 = arith.constant 0 : i32
    %c0_i32_0 = arith.constant 0 : i32
    %c0_i32_1 = arith.constant 0 : i32
    return %c0_i32, %c0_i32_0 : i32, i32
  }
  func.func @transform_3(%arg0: i32) -> (i32, i32) {
    %c0_i32 = arith.constant 0 : i32
    %c0_i32_0 = arith.constant 0 : i32
    %c0_i32_1 = arith.constant 0 : i32
    return %c0_i32, %c0_i32_0 : i32, i32
  }
  func.func @transform_4(%arg0: i32) -> (i32, i32, i32) {
    %c0_i32 = arith.constant 0 : i32
    %c0_i32_0 = arith.constant 0 : i32
    %c0_i32_1 = arith.constant 0 : i32
    %c0_i32_2 = arith.constant 0 : i32
    return %c0_i32, %c0_i32_0, %c0_i32_1 : i32, i32, i32
  }
  func.func @transform_5(%arg0: i32) -> (i32, i32) {
    %c0_i32 = arith.constant 0 : i32
    %c0_i32_0 = arith.constant 0 : i32
    %c0_i32_1 = arith.constant 0 : i32
    return %c0_i32, %c0_i32_0 : i32, i32
  }
  func.func @transform_6(%arg0: i32) -> (i32, i32) {
    %c0_i32 = arith.constant 0 : i32
    %c0_i32_0 = arith.constant 0 : i32
    %c0_i32_1 = arith.constant 0 : i32
    return %c0_i32, %c0_i32_0 : i32, i32
  }
  func.func @transform_7(%arg0: i32) -> (i32, i32) {
    %c0_i32 = arith.constant 0 : i32
    %c0_i32_0 = arith.constant 0 : i32
    %c0_i32_1 = arith.constant 0 : i32
    return %c0_i32, %c0_i32_0 : i32, i32
  }
  func.func @transform_8(%arg0: i32) -> (i32, i32) {
    %c0_i32 = arith.constant 0 : i32
    %c0_i32_0 = arith.constant 0 : i32
    %c0_i32_1 = arith.constant 0 : i32
    return %c0_i32, %c0_i32_0 : i32, i32
  }
  func.func @transform_9(%arg0: i32) -> (i32, i32) {
    %c0_i32 = arith.constant 0 : i32
    %c0_i32_0 = arith.constant 0 : i32
    %c0_i32_1 = arith.constant 0 : i32
    return %c0_i32, %c0_i32_0 : i32, i32
  }
  func.func @transform_10(%arg0: i32) -> (i32, i32, i32) {
    %c0_i32 = arith.constant 0 : i32
    %c0_i32_0 = arith.constant 0 : i32
    %c0_i32_1 = arith.constant 0 : i32
    return %arg0, %c0_i32, %c0_i32_0 : i32, i32, i32
  }
}

module attributes {stable_mosaic.version = 11 : i64} {
  func.func @_dw_s2_pw_kernel(%arg0: i32, %arg1: memref<4x3x3x16xbf16, #tpu.memory_space<vmem>>, %arg2: memref<9x1x16xf32, #tpu.memory_space<vmem>>, %arg3: memref<1x16xf32, #tpu.memory_space<vmem>>, %arg4: memref<1x16xf32, #tpu.memory_space<vmem>>, %arg5: memref<16x16xbf16, #tpu.memory_space<vmem>>, %arg6: memref<1x16xf32, #tpu.memory_space<vmem>>, %arg7: memref<1x16xf32, #tpu.memory_space<vmem>>, %arg8: memref<1x4x16xbf16, #tpu.memory_space<vmem>>) attributes {dimension_semantics = [#tpu.dimension_semantics<parallel>], iteration_bounds = array<i64: 2>, scalar_prefetch = 0 : i64, scratch_operands = 0 : i64, tpu.core_type = #tpu.core_type<tc>, window_params = [{transform_indices = @transform_0, window_bounds = array<i64: 4, 3, 3, 16>}, {pipeline_mode = #tpu.pipeline_mode<synchronous>, transform_indices = @transform_1, window_bounds = array<i64: 9, 1, 16>}, {pipeline_mode = #tpu.pipeline_mode<synchronous>, transform_indices = @transform_2, window_bounds = array<i64: 1, 16>}, {pipeline_mode = #tpu.pipeline_mode<synchronous>, transform_indices = @transform_3, window_bounds = array<i64: 1, 16>}, {pipeline_mode = #tpu.pipeline_mode<synchronous>, transform_indices = @transform_4, window_bounds = array<i64: 16, 16>}, {pipeline_mode = #tpu.pipeline_mode<synchronous>, transform_indices = @transform_5, window_bounds = array<i64: 1, 16>}, {pipeline_mode = #tpu.pipeline_mode<synchronous>, transform_indices = @transform_6, window_bounds = array<i64: 1, 16>}, {transform_indices = @transform_7, window_bounds = array<i64: 1, 4, 16>}]} {
    %c0 = arith.constant 0 : index
    %c0_0 = arith.constant 0 : index
    %c0_1 = arith.constant 0 : index
    %c0_2 = arith.constant 0 : index
    %0 = vector.load %arg1[%c0, %c0_0, %c0_1, %c0_2] : memref<4x3x3x16xbf16, #tpu.memory_space<vmem>>, vector<1x2x2x16xbf16>
    %1 = vector.shape_cast %0 : vector<1x2x2x16xbf16> to vector<2x2x16xbf16>
    %2 = arith.extf %1 : vector<2x2x16xbf16> to vector<2x2x16xf32>
    %c0_3 = arith.constant 0 : index
    %c0_4 = arith.constant 0 : index
    %c0_5 = arith.constant 0 : index
    %3 = vector.load %arg2[%c0_3, %c0_4, %c0_5] : memref<9x1x16xf32, #tpu.memory_space<vmem>>, vector<1x1x16xf32>
    %4 = vector.shape_cast %3 : vector<1x1x16xf32> to vector<1x16xf32>
    %5 = vector.shape_cast %4 : vector<1x16xf32> to vector<1x1x16xf32>
    %6 = vector.broadcast %5 : vector<1x1x16xf32> to vector<2x2x16xf32>
    %7 = arith.mulf %2, %6 : vector<2x2x16xf32>
    %c1 = arith.constant 1 : index
    %c0_6 = arith.constant 0 : index
    %c0_7 = arith.constant 0 : index
    %c0_8 = arith.constant 0 : index
    %8 = vector.load %arg1[%c1, %c0_6, %c0_7, %c0_8] : memref<4x3x3x16xbf16, #tpu.memory_space<vmem>>, vector<1x2x2x16xbf16>
    %9 = vector.shape_cast %8 : vector<1x2x2x16xbf16> to vector<2x2x16xbf16>
    %10 = arith.extf %9 : vector<2x2x16xbf16> to vector<2x2x16xf32>
    %c1_9 = arith.constant 1 : index
    %c0_10 = arith.constant 0 : index
    %c0_11 = arith.constant 0 : index
    %11 = vector.load %arg2[%c1_9, %c0_10, %c0_11] : memref<9x1x16xf32, #tpu.memory_space<vmem>>, vector<1x1x16xf32>
    %12 = vector.shape_cast %11 : vector<1x1x16xf32> to vector<1x16xf32>
    %13 = vector.shape_cast %12 : vector<1x16xf32> to vector<1x1x16xf32>
    %14 = vector.broadcast %13 : vector<1x1x16xf32> to vector<2x2x16xf32>
    %15 = arith.mulf %10, %14 : vector<2x2x16xf32>
    %c0_12 = arith.constant 0 : index
    %c0_13 = arith.constant 0 : index
    %c1_14 = arith.constant 1 : index
    %c0_15 = arith.constant 0 : index
    %16 = vector.load %arg1[%c0_12, %c0_13, %c1_14, %c0_15] : memref<4x3x3x16xbf16, #tpu.memory_space<vmem>>, vector<1x2x2x16xbf16>
    %17 = vector.shape_cast %16 : vector<1x2x2x16xbf16> to vector<2x2x16xbf16>
    %18 = arith.extf %17 : vector<2x2x16xbf16> to vector<2x2x16xf32>
    %c2 = arith.constant 2 : index
    %c0_16 = arith.constant 0 : index
    %c0_17 = arith.constant 0 : index
    %19 = vector.load %arg2[%c2, %c0_16, %c0_17] : memref<9x1x16xf32, #tpu.memory_space<vmem>>, vector<1x1x16xf32>
    %20 = vector.shape_cast %19 : vector<1x1x16xf32> to vector<1x16xf32>
    %21 = vector.shape_cast %20 : vector<1x16xf32> to vector<1x1x16xf32>
    %22 = vector.broadcast %21 : vector<1x1x16xf32> to vector<2x2x16xf32>
    %23 = arith.mulf %18, %22 : vector<2x2x16xf32>
    %c2_18 = arith.constant 2 : index
    %c0_19 = arith.constant 0 : index
    %c0_20 = arith.constant 0 : index
    %c0_21 = arith.constant 0 : index
    %24 = vector.load %arg1[%c2_18, %c0_19, %c0_20, %c0_21] : memref<4x3x3x16xbf16, #tpu.memory_space<vmem>>, vector<1x2x2x16xbf16>
    %25 = vector.shape_cast %24 : vector<1x2x2x16xbf16> to vector<2x2x16xbf16>
    %26 = arith.extf %25 : vector<2x2x16xbf16> to vector<2x2x16xf32>
    %c3 = arith.constant 3 : index
    %c0_22 = arith.constant 0 : index
    %c0_23 = arith.constant 0 : index
    %27 = vector.load %arg2[%c3, %c0_22, %c0_23] : memref<9x1x16xf32, #tpu.memory_space<vmem>>, vector<1x1x16xf32>
    %28 = vector.shape_cast %27 : vector<1x1x16xf32> to vector<1x16xf32>
    %29 = vector.shape_cast %28 : vector<1x16xf32> to vector<1x1x16xf32>
    %30 = vector.broadcast %29 : vector<1x1x16xf32> to vector<2x2x16xf32>
    %31 = arith.mulf %26, %30 : vector<2x2x16xf32>
    %32 = arith.addf %7, %31 : vector<2x2x16xf32>
    %c3_24 = arith.constant 3 : index
    %c0_25 = arith.constant 0 : index
    %c0_26 = arith.constant 0 : index
    %c0_27 = arith.constant 0 : index
    %33 = vector.load %arg1[%c3_24, %c0_25, %c0_26, %c0_27] : memref<4x3x3x16xbf16, #tpu.memory_space<vmem>>, vector<1x2x2x16xbf16>
    %34 = vector.shape_cast %33 : vector<1x2x2x16xbf16> to vector<2x2x16xbf16>
    %35 = arith.extf %34 : vector<2x2x16xbf16> to vector<2x2x16xf32>
    %c4 = arith.constant 4 : index
    %c0_28 = arith.constant 0 : index
    %c0_29 = arith.constant 0 : index
    %36 = vector.load %arg2[%c4, %c0_28, %c0_29] : memref<9x1x16xf32, #tpu.memory_space<vmem>>, vector<1x1x16xf32>
    %37 = vector.shape_cast %36 : vector<1x1x16xf32> to vector<1x16xf32>
    %38 = vector.shape_cast %37 : vector<1x16xf32> to vector<1x1x16xf32>
    %39 = vector.broadcast %38 : vector<1x1x16xf32> to vector<2x2x16xf32>
    %40 = arith.mulf %35, %39 : vector<2x2x16xf32>
    %41 = arith.addf %15, %40 : vector<2x2x16xf32>
    %c2_30 = arith.constant 2 : index
    %c0_31 = arith.constant 0 : index
    %c1_32 = arith.constant 1 : index
    %c0_33 = arith.constant 0 : index
    %42 = vector.load %arg1[%c2_30, %c0_31, %c1_32, %c0_33] : memref<4x3x3x16xbf16, #tpu.memory_space<vmem>>, vector<1x2x2x16xbf16>
    %43 = vector.shape_cast %42 : vector<1x2x2x16xbf16> to vector<2x2x16xbf16>
    %44 = arith.extf %43 : vector<2x2x16xbf16> to vector<2x2x16xf32>
    %c5 = arith.constant 5 : index
    %c0_34 = arith.constant 0 : index
    %c0_35 = arith.constant 0 : index
    %45 = vector.load %arg2[%c5, %c0_34, %c0_35] : memref<9x1x16xf32, #tpu.memory_space<vmem>>, vector<1x1x16xf32>
    %46 = vector.shape_cast %45 : vector<1x1x16xf32> to vector<1x16xf32>
    %47 = vector.shape_cast %46 : vector<1x16xf32> to vector<1x1x16xf32>
    %48 = vector.broadcast %47 : vector<1x1x16xf32> to vector<2x2x16xf32>
    %49 = arith.mulf %44, %48 : vector<2x2x16xf32>
    %50 = arith.addf %23, %49 : vector<2x2x16xf32>
    %c0_36 = arith.constant 0 : index
    %c1_37 = arith.constant 1 : index
    %c0_38 = arith.constant 0 : index
    %c0_39 = arith.constant 0 : index
    %51 = vector.load %arg1[%c0_36, %c1_37, %c0_38, %c0_39] : memref<4x3x3x16xbf16, #tpu.memory_space<vmem>>, vector<1x2x2x16xbf16>
    %52 = vector.shape_cast %51 : vector<1x2x2x16xbf16> to vector<2x2x16xbf16>
    %53 = arith.extf %52 : vector<2x2x16xbf16> to vector<2x2x16xf32>
    %c6 = arith.constant 6 : index
    %c0_40 = arith.constant 0 : index
    %c0_41 = arith.constant 0 : index
    %54 = vector.load %arg2[%c6, %c0_40, %c0_41] : memref<9x1x16xf32, #tpu.memory_space<vmem>>, vector<1x1x16xf32>
    %55 = vector.shape_cast %54 : vector<1x1x16xf32> to vector<1x16xf32>
    %56 = vector.shape_cast %55 : vector<1x16xf32> to vector<1x1x16xf32>
    %57 = vector.broadcast %56 : vector<1x1x16xf32> to vector<2x2x16xf32>
    %58 = arith.mulf %53, %57 : vector<2x2x16xf32>
    %59 = arith.addf %32, %58 : vector<2x2x16xf32>
    %c1_42 = arith.constant 1 : index
    %c1_43 = arith.constant 1 : index
    %c0_44 = arith.constant 0 : index
    %c0_45 = arith.constant 0 : index
    %60 = vector.load %arg1[%c1_42, %c1_43, %c0_44, %c0_45] : memref<4x3x3x16xbf16, #tpu.memory_space<vmem>>, vector<1x2x2x16xbf16>
    %61 = vector.shape_cast %60 : vector<1x2x2x16xbf16> to vector<2x2x16xbf16>
    %62 = arith.extf %61 : vector<2x2x16xbf16> to vector<2x2x16xf32>
    %c7 = arith.constant 7 : index
    %c0_46 = arith.constant 0 : index
    %c0_47 = arith.constant 0 : index
    %63 = vector.load %arg2[%c7, %c0_46, %c0_47] : memref<9x1x16xf32, #tpu.memory_space<vmem>>, vector<1x1x16xf32>
    %64 = vector.shape_cast %63 : vector<1x1x16xf32> to vector<1x16xf32>
    %65 = vector.shape_cast %64 : vector<1x16xf32> to vector<1x1x16xf32>
    %66 = vector.broadcast %65 : vector<1x1x16xf32> to vector<2x2x16xf32>
    %67 = arith.mulf %62, %66 : vector<2x2x16xf32>
    %68 = arith.addf %41, %67 : vector<2x2x16xf32>
    %c0_48 = arith.constant 0 : index
    %c1_49 = arith.constant 1 : index
    %c1_50 = arith.constant 1 : index
    %c0_51 = arith.constant 0 : index
    %69 = vector.load %arg1[%c0_48, %c1_49, %c1_50, %c0_51] : memref<4x3x3x16xbf16, #tpu.memory_space<vmem>>, vector<1x2x2x16xbf16>
    %70 = vector.shape_cast %69 : vector<1x2x2x16xbf16> to vector<2x2x16xbf16>
    %71 = arith.extf %70 : vector<2x2x16xbf16> to vector<2x2x16xf32>
    %c8 = arith.constant 8 : index
    %c0_52 = arith.constant 0 : index
    %c0_53 = arith.constant 0 : index
    %72 = vector.load %arg2[%c8, %c0_52, %c0_53] : memref<9x1x16xf32, #tpu.memory_space<vmem>>, vector<1x1x16xf32>
    %73 = vector.shape_cast %72 : vector<1x1x16xf32> to vector<1x16xf32>
    %74 = vector.shape_cast %73 : vector<1x16xf32> to vector<1x1x16xf32>
    %75 = vector.broadcast %74 : vector<1x1x16xf32> to vector<2x2x16xf32>
    %76 = arith.mulf %71, %75 : vector<2x2x16xf32>
    %77 = arith.addf %50, %76 : vector<2x2x16xf32>
    %78 = arith.addf %59, %68 : vector<2x2x16xf32>
    %79 = arith.addf %78, %77 : vector<2x2x16xf32>
    %c0_54 = arith.constant 0 : index
    %c0_55 = arith.constant 0 : index
    %80 = vector.load %arg3[%c0_54, %c0_55] : memref<1x16xf32, #tpu.memory_space<vmem>>, vector<1x16xf32>
    %81 = vector.shape_cast %80 : vector<1x16xf32> to vector<1x1x16xf32>
    %82 = vector.broadcast %81 : vector<1x1x16xf32> to vector<2x2x16xf32>
    %83 = arith.mulf %79, %82 : vector<2x2x16xf32>
    %c0_56 = arith.constant 0 : index
    %c0_57 = arith.constant 0 : index
    %84 = vector.load %arg4[%c0_56, %c0_57] : memref<1x16xf32, #tpu.memory_space<vmem>>, vector<1x16xf32>
    %85 = vector.shape_cast %84 : vector<1x16xf32> to vector<1x1x16xf32>
    %86 = vector.broadcast %85 : vector<1x1x16xf32> to vector<2x2x16xf32>
    %87 = arith.addf %83, %86 : vector<2x2x16xf32>
    %88 = vector.shape_cast %87 : vector<2x2x16xf32> to vector<4x16xf32>
    %89 = arith.truncf %88 : vector<4x16xf32> to vector<4x16xbf16>
    %c0_58 = arith.constant 0 : index
    %c0_59 = arith.constant 0 : index
    %90 = vector.load %arg5[%c0_58, %c0_59] : memref<16x16xbf16, #tpu.memory_space<vmem>>, vector<16x16xbf16>
    %cst = arith.constant dense<0.000000e+00> : vector<4x16xf32>
    %91 = tpu.matmul %89, %90, %cst {dimension_numbers = #tpu.dot_dimension_numbers<[1], [0], [0], [1], [0, 0, 1, 1], [], []>} : vector<4x16xbf16>, vector<16x16xbf16>, vector<4x16xf32> -> vector<4x16xf32>
    %c0_60 = arith.constant 0 : index
    %c0_61 = arith.constant 0 : index
    %92 = vector.load %arg6[%c0_60, %c0_61] : memref<1x16xf32, #tpu.memory_space<vmem>>, vector<1x16xf32>
    %93 = vector.broadcast %92 : vector<1x16xf32> to vector<4x16xf32>
    %94 = arith.mulf %91, %93 : vector<4x16xf32>
    %c0_62 = arith.constant 0 : index
    %c0_63 = arith.constant 0 : index
    %95 = vector.load %arg7[%c0_62, %c0_63] : memref<1x16xf32, #tpu.memory_space<vmem>>, vector<1x16xf32>
    %96 = vector.broadcast %95 : vector<1x16xf32> to vector<4x16xf32>
    %97 = arith.addf %94, %96 : vector<4x16xf32>
    %cst_64 = arith.constant 0.000000e+00 : f32
    %98 = vector.broadcast %cst_64 : f32 to vector<4x16xf32>
    %99 = arith.maximumf %97, %98 : vector<4x16xf32>
    %100 = arith.truncf %99 : vector<4x16xf32> to vector<4x16xbf16>
    %c0_65 = arith.constant 0 : index
    %c0_66 = arith.constant 0 : index
    %c0_67 = arith.constant 0 : index
    %101 = vector.load %arg8[%c0_65, %c0_66, %c0_67] : memref<1x4x16xbf16, #tpu.memory_space<vmem>>, vector<1x4x16xbf16>
    %102 = vector.shape_cast %101 : vector<1x4x16xbf16> to vector<4x16xbf16>
    %103 = vector.shape_cast %100 : vector<4x16xbf16> to vector<1x4x16xbf16>
    tpu.vector_store %arg8[%c0_65, %c0_66, %c0_67], %103 {strides = array<i32>} : memref<1x4x16xbf16, #tpu.memory_space<vmem>>, vector<1x4x16xbf16>,
    return
  }
  func.func @transform_0(%arg0: i32) -> (i32, i32, i32, i32) {
    %c0_i32 = arith.constant 0 : i32
    %c0_i32_0 = arith.constant 0 : i32
    %c0_i32_1 = arith.constant 0 : i32
    %c0_i32_2 = arith.constant 0 : i32
    return %arg0, %c0_i32, %c0_i32_0, %c0_i32_1 : i32, i32, i32, i32
  }
  func.func @transform_1(%arg0: i32) -> (i32, i32, i32) {
    %c0_i32 = arith.constant 0 : i32
    %c0_i32_0 = arith.constant 0 : i32
    %c0_i32_1 = arith.constant 0 : i32
    %c0_i32_2 = arith.constant 0 : i32
    return %c0_i32, %c0_i32_0, %c0_i32_1 : i32, i32, i32
  }
  func.func @transform_2(%arg0: i32) -> (i32, i32) {
    %c0_i32 = arith.constant 0 : i32
    %c0_i32_0 = arith.constant 0 : i32
    %c0_i32_1 = arith.constant 0 : i32
    return %c0_i32, %c0_i32_0 : i32, i32
  }
  func.func @transform_3(%arg0: i32) -> (i32, i32) {
    %c0_i32 = arith.constant 0 : i32
    %c0_i32_0 = arith.constant 0 : i32
    %c0_i32_1 = arith.constant 0 : i32
    return %c0_i32, %c0_i32_0 : i32, i32
  }
  func.func @transform_4(%arg0: i32) -> (i32, i32) {
    %c0_i32 = arith.constant 0 : i32
    %c0_i32_0 = arith.constant 0 : i32
    %c0_i32_1 = arith.constant 0 : i32
    return %c0_i32, %c0_i32_0 : i32, i32
  }
  func.func @transform_5(%arg0: i32) -> (i32, i32) {
    %c0_i32 = arith.constant 0 : i32
    %c0_i32_0 = arith.constant 0 : i32
    %c0_i32_1 = arith.constant 0 : i32
    return %c0_i32, %c0_i32_0 : i32, i32
  }
  func.func @transform_6(%arg0: i32) -> (i32, i32) {
    %c0_i32 = arith.constant 0 : i32
    %c0_i32_0 = arith.constant 0 : i32
    %c0_i32_1 = arith.constant 0 : i32
    return %c0_i32, %c0_i32_0 : i32, i32
  }
  func.func @transform_7(%arg0: i32) -> (i32, i32, i32) {
    %c0_i32 = arith.constant 0 : i32
    %c0_i32_0 = arith.constant 0 : i32
    %c0_i32_1 = arith.constant 0 : i32
    return %arg0, %c0_i32, %c0_i32_0 : i32, i32, i32
  }
}

module attributes {stable_mosaic.version = 11 : i64} {
  func.func @_pw_kernel(%arg0: i32, %arg1: memref<16x16xbf16, #tpu.memory_space<vmem>>, %arg2: memref<16x16xbf16, #tpu.memory_space<vmem>>, %arg3: memref<1x16xf32, #tpu.memory_space<vmem>>, %arg4: memref<1x16xf32, #tpu.memory_space<vmem>>, %arg5: memref<16x16xbf16, #tpu.memory_space<vmem>>) attributes {dimension_semantics = [#tpu.dimension_semantics<parallel>], iteration_bounds = array<i64: 2>, scalar_prefetch = 0 : i64, scratch_operands = 0 : i64, tpu.core_type = #tpu.core_type<tc>, window_params = [{transform_indices = @transform_0, window_bounds = array<i64: 16, 16>}, {pipeline_mode = #tpu.pipeline_mode<synchronous>, transform_indices = @transform_1, window_bounds = array<i64: 16, 16>}, {pipeline_mode = #tpu.pipeline_mode<synchronous>, transform_indices = @transform_2, window_bounds = array<i64: 1, 16>}, {pipeline_mode = #tpu.pipeline_mode<synchronous>, transform_indices = @transform_3, window_bounds = array<i64: 1, 16>}, {transform_indices = @transform_4, window_bounds = array<i64: 16, 16>}]} {
    %c0 = arith.constant 0 : index
    %c0_0 = arith.constant 0 : index
    %0 = vector.load %arg1[%c0, %c0_0] : memref<16x16xbf16, #tpu.memory_space<vmem>>, vector<16x16xbf16>
    %c0_1 = arith.constant 0 : index
    %c0_2 = arith.constant 0 : index
    %1 = vector.load %arg2[%c0_1, %c0_2] : memref<16x16xbf16, #tpu.memory_space<vmem>>, vector<16x16xbf16>
    %cst = arith.constant dense<0.000000e+00> : vector<16x16xf32>
    %2 = tpu.matmul %0, %1, %cst {dimension_numbers = #tpu.dot_dimension_numbers<[1], [0], [0], [1], [0, 0, 1, 1], [], []>} : vector<16x16xbf16>, vector<16x16xbf16>, vector<16x16xf32> -> vector<16x16xf32>
    %c0_3 = arith.constant 0 : index
    %c0_4 = arith.constant 0 : index
    %3 = vector.load %arg3[%c0_3, %c0_4] : memref<1x16xf32, #tpu.memory_space<vmem>>, vector<1x16xf32>
    %4 = vector.broadcast %3 : vector<1x16xf32> to vector<16x16xf32>
    %5 = arith.mulf %2, %4 : vector<16x16xf32>
    %c0_5 = arith.constant 0 : index
    %c0_6 = arith.constant 0 : index
    %6 = vector.load %arg4[%c0_5, %c0_6] : memref<1x16xf32, #tpu.memory_space<vmem>>, vector<1x16xf32>
    %7 = vector.broadcast %6 : vector<1x16xf32> to vector<16x16xf32>
    %8 = arith.addf %5, %7 : vector<16x16xf32>
    %cst_7 = arith.constant 0.000000e+00 : f32
    %9 = vector.broadcast %cst_7 : f32 to vector<16x16xf32>
    %10 = arith.maximumf %8, %9 : vector<16x16xf32>
    %11 = arith.truncf %10 : vector<16x16xf32> to vector<16x16xbf16>
    %c0_8 = arith.constant 0 : index
    %c0_9 = arith.constant 0 : index
    %12 = vector.load %arg5[%c0_8, %c0_9] : memref<16x16xbf16, #tpu.memory_space<vmem>>, vector<16x16xbf16>
    tpu.vector_store %arg5[%c0_8, %c0_9], %11 {strides = array<i32>} : memref<16x16xbf16, #tpu.memory_space<vmem>>, vector<16x16xbf16>,
    return
  }
  func.func @transform_0(%arg0: i32) -> (i32, i32) {
    %c0_i32 = arith.constant 0 : i32
    %c0_i32_0 = arith.constant 0 : i32
    return %arg0, %c0_i32 : i32, i32
  }
  func.func @transform_1(%arg0: i32) -> (i32, i32) {
    %c0_i32 = arith.constant 0 : i32
    %c0_i32_0 = arith.constant 0 : i32
    %c0_i32_1 = arith.constant 0 : i32
    return %c0_i32, %c0_i32_0 : i32, i32
  }
  func.func @transform_2(%arg0: i32) -> (i32, i32) {
    %c0_i32 = arith.constant 0 : i32
    %c0_i32_0 = arith.constant 0 : i32
    %c0_i32_1 = arith.constant 0 : i32
    return %c0_i32, %c0_i32_0 : i32, i32
  }
  func.func @transform_3(%arg0: i32) -> (i32, i32) {
    %c0_i32 = arith.constant 0 : i32
    %c0_i32_0 = arith.constant 0 : i32
    %c0_i32_1 = arith.constant 0 : i32
    return %c0_i32, %c0_i32_0 : i32, i32
  }
  func.func @transform_4(%arg0: i32) -> (i32, i32) {
    %c0_i32 = arith.constant 0 : i32
    %c0_i32_0 = arith.constant 0 : i32
    return %arg0, %c0_i32 : i32, i32
  }
}

module attributes {stable_mosaic.version = 11 : i64} {
  func.func @_fused_s1_branch_kernel(%arg0: i32, %arg1: memref<1x4x16xbf16, #tpu.memory_space<vmem>>, %arg2: memref<16x16xbf16, #tpu.memory_space<vmem>>, %arg3: memref<1x16xf32, #tpu.memory_space<vmem>>, %arg4: memref<1x16xf32, #tpu.memory_space<vmem>>, %arg5: memref<9x1x16xf32, #tpu.memory_space<vmem>>, %arg6: memref<1x16xf32, #tpu.memory_space<vmem>>, %arg7: memref<1x16xf32, #tpu.memory_space<vmem>>, %arg8: memref<16x16xbf16, #tpu.memory_space<vmem>>, %arg9: memref<1x16xf32, #tpu.memory_space<vmem>>, %arg10: memref<1x16xf32, #tpu.memory_space<vmem>>, %arg11: memref<1x4x16xbf16, #tpu.memory_space<vmem>>, %arg12: memref<4x4x16xf32, #tpu.memory_space<vmem>>) attributes {dimension_semantics = [#tpu.dimension_semantics<parallel>], iteration_bounds = array<i64: 2>, scalar_prefetch = 0 : i64, scratch_operands = 1 : i64, tpu.core_type = #tpu.core_type<tc>, window_params = [{transform_indices = @transform_0, window_bounds = array<i64: 1, 4, 16>}, {pipeline_mode = #tpu.pipeline_mode<synchronous>, transform_indices = @transform_1, window_bounds = array<i64: 16, 16>}, {pipeline_mode = #tpu.pipeline_mode<synchronous>, transform_indices = @transform_2, window_bounds = array<i64: 1, 16>}, {pipeline_mode = #tpu.pipeline_mode<synchronous>, transform_indices = @transform_3, window_bounds = array<i64: 1, 16>}, {pipeline_mode = #tpu.pipeline_mode<synchronous>, transform_indices = @transform_4, window_bounds = array<i64: 9, 1, 16>}, {pipeline_mode = #tpu.pipeline_mode<synchronous>, transform_indices = @transform_5, window_bounds = array<i64: 1, 16>}, {pipeline_mode = #tpu.pipeline_mode<synchronous>, transform_indices = @transform_6, window_bounds = array<i64: 1, 16>}, {pipeline_mode = #tpu.pipeline_mode<synchronous>, transform_indices = @transform_7, window_bounds = array<i64: 16, 16>}, {pipeline_mode = #tpu.pipeline_mode<synchronous>, transform_indices = @transform_8, window_bounds = array<i64: 1, 16>}, {pipeline_mode = #tpu.pipeline_mode<synchronous>, transform_indices = @transform_9, window_bounds = array<i64: 1, 16>}, {transform_indices = @transform_10, window_bounds = array<i64: 1, 4, 16>}]} {
    %c0_i32 = arith.constant 0 : i32
    %0 = arith.cmpi eq, %arg0, %c0_i32 : i32
    %1 = arith.extui %0 : i1 to i32
    %c0_i32_0 = arith.constant 0 : i32
    %2 = arith.cmpi ne, %1, %c0_i32_0 : i32
    scf.if %2 {
      %cst_74 = arith.constant 0.000000e+00 : f32
      %103 = vector.broadcast %cst_74 : f32 to vector<4x4x16xf32>
      %c0_75 = arith.constant 0 : index
      %c0_76 = arith.constant 0 : index
      %c0_77 = arith.constant 0 : index
      %104 = vector.load %arg12[%c0_75, %c0_76, %c0_77] : memref<4x4x16xf32, #tpu.memory_space<vmem>>, vector<4x4x16xf32>
      tpu.vector_store %arg12[%c0_75, %c0_76, %c0_77], %103 {strides = array<i32>} : memref<4x4x16xf32, #tpu.memory_space<vmem>>, vector<4x4x16xf32>,
    } else {
    }
    %c0 = arith.constant 0 : index
    %c0_1 = arith.constant 0 : index
    %c0_2 = arith.constant 0 : index
    %3 = vector.load %arg1[%c0, %c0_1, %c0_2] : memref<1x4x16xbf16, #tpu.memory_space<vmem>>, vector<1x4x16xbf16>
    %4 = vector.shape_cast %3 : vector<1x4x16xbf16> to vector<4x16xbf16>
    %c0_3 = arith.constant 0 : index
    %c0_4 = arith.constant 0 : index
    %5 = vector.load %arg2[%c0_3, %c0_4] : memref<16x16xbf16, #tpu.memory_space<vmem>>, vector<16x16xbf16>
    %cst = arith.constant dense<0.000000e+00> : vector<4x16xf32>
    %6 = tpu.matmul %4, %5, %cst {dimension_numbers = #tpu.dot_dimension_numbers<[1], [0], [0], [1], [0, 0, 1, 1], [], []>} : vector<4x16xbf16>, vector<16x16xbf16>, vector<4x16xf32> -> vector<4x16xf32>
    %c0_5 = arith.constant 0 : index
    %c0_6 = arith.constant 0 : index
    %7 = vector.load %arg3[%c0_5, %c0_6] : memref<1x16xf32, #tpu.memory_space<vmem>>, vector<1x16xf32>
    %8 = vector.broadcast %7 : vector<1x16xf32> to vector<4x16xf32>
    %9 = arith.mulf %6, %8 : vector<4x16xf32>
    %c0_7 = arith.constant 0 : index
    %c0_8 = arith.constant 0 : index
    %10 = vector.load %arg4[%c0_7, %c0_8] : memref<1x16xf32, #tpu.memory_space<vmem>>, vector<1x16xf32>
    %11 = vector.broadcast %10 : vector<1x16xf32> to vector<4x16xf32>
    %12 = arith.addf %9, %11 : vector<4x16xf32>
    %cst_9 = arith.constant 0.000000e+00 : f32
    %13 = vector.broadcast %cst_9 : f32 to vector<4x16xf32>
    %14 = arith.maximumf %12, %13 : vector<4x16xf32>
    %15 = vector.shape_cast %14 : vector<4x16xf32> to vector<2x2x16xf32>
    %c1 = arith.constant 1 : index
    %c1_10 = arith.constant 1 : index
    %c0_11 = arith.constant 0 : index
    %16 = vector.load %arg12[%c1, %c1_10, %c0_11] : memref<4x4x16xf32, #tpu.memory_space<vmem>>, vector<2x2x16xf32>
    tpu.vector_store %arg12[%c1, %c1_10, %c0_11], %15 {strides = array<i32>} : memref<4x4x16xf32, #tpu.memory_space<vmem>>, vector<2x2x16xf32>,
    %c0_12 = arith.constant 0 : index
    %c0_13 = arith.constant 0 : index
    %c0_14 = arith.constant 0 : index
    %17 = vector.load %arg12[%c0_12, %c0_13, %c0_14] : memref<4x4x16xf32, #tpu.memory_space<vmem>>, vector<2x2x16xf32>
    %c0_15 = arith.constant 0 : index
    %c0_16 = arith.constant 0 : index
    %c0_17 = arith.constant 0 : index
    %18 = vector.load %arg5[%c0_15, %c0_16, %c0_17] : memref<9x1x16xf32, #tpu.memory_space<vmem>>, vector<1x1x16xf32>
    %19 = vector.shape_cast %18 : vector<1x1x16xf32> to vector<1x16xf32>
    %20 = vector.shape_cast %19 : vector<1x16xf32> to vector<1x1x16xf32>
    %21 = vector.broadcast %20 : vector<1x1x16xf32> to vector<2x2x16xf32>
    %22 = arith.mulf %17, %21 : vector<2x2x16xf32>
    %c0_18 = arith.constant 0 : index
    %c1_19 = arith.constant 1 : index
    %c0_20 = arith.constant 0 : index
    %23 = vector.load %arg12[%c0_18, %c1_19, %c0_20] : memref<4x4x16xf32, #tpu.memory_space<vmem>>, vector<2x2x16xf32>
    %c1_21 = arith.constant 1 : index
    %c0_22 = arith.constant 0 : index
    %c0_23 = arith.constant 0 : index
    %24 = vector.load %arg5[%c1_21, %c0_22, %c0_23] : memref<9x1x16xf32, #tpu.memory_space<vmem>>, vector<1x1x16xf32>
    %25 = vector.shape_cast %24 : vector<1x1x16xf32> to vector<1x16xf32>
    %26 = vector.shape_cast %25 : vector<1x16xf32> to vector<1x1x16xf32>
    %27 = vector.broadcast %26 : vector<1x1x16xf32> to vector<2x2x16xf32>
    %28 = arith.mulf %23, %27 : vector<2x2x16xf32>
    %c0_24 = arith.constant 0 : index
    %c2 = arith.constant 2 : index
    %c0_25 = arith.constant 0 : index
    %29 = vector.load %arg12[%c0_24, %c2, %c0_25] : memref<4x4x16xf32, #tpu.memory_space<vmem>>, vector<2x2x16xf32>
    %c2_26 = arith.constant 2 : index
    %c0_27 = arith.constant 0 : index
    %c0_28 = arith.constant 0 : index
    %30 = vector.load %arg5[%c2_26, %c0_27, %c0_28] : memref<9x1x16xf32, #tpu.memory_space<vmem>>, vector<1x1x16xf32>
    %31 = vector.shape_cast %30 : vector<1x1x16xf32> to vector<1x16xf32>
    %32 = vector.shape_cast %31 : vector<1x16xf32> to vector<1x1x16xf32>
    %33 = vector.broadcast %32 : vector<1x1x16xf32> to vector<2x2x16xf32>
    %34 = arith.mulf %29, %33 : vector<2x2x16xf32>
    %c1_29 = arith.constant 1 : index
    %c0_30 = arith.constant 0 : index
    %c0_31 = arith.constant 0 : index
    %35 = vector.load %arg12[%c1_29, %c0_30, %c0_31] : memref<4x4x16xf32, #tpu.memory_space<vmem>>, vector<2x2x16xf32>
    %c3 = arith.constant 3 : index
    %c0_32 = arith.constant 0 : index
    %c0_33 = arith.constant 0 : index
    %36 = vector.load %arg5[%c3, %c0_32, %c0_33] : memref<9x1x16xf32, #tpu.memory_space<vmem>>, vector<1x1x16xf32>
    %37 = vector.shape_cast %36 : vector<1x1x16xf32> to vector<1x16xf32>
    %38 = vector.shape_cast %37 : vector<1x16xf32> to vector<1x1x16xf32>
    %39 = vector.broadcast %38 : vector<1x1x16xf32> to vector<2x2x16xf32>
    %40 = arith.mulf %35, %39 : vector<2x2x16xf32>
    %41 = arith.addf %22, %40 : vector<2x2x16xf32>
    %c1_34 = arith.constant 1 : index
    %c1_35 = arith.constant 1 : index
    %c0_36 = arith.constant 0 : index
    %42 = vector.load %arg12[%c1_34, %c1_35, %c0_36] : memref<4x4x16xf32, #tpu.memory_space<vmem>>, vector<2x2x16xf32>
    %c4 = arith.constant 4 : index
    %c0_37 = arith.constant 0 : index
    %c0_38 = arith.constant 0 : index
    %43 = vector.load %arg5[%c4, %c0_37, %c0_38] : memref<9x1x16xf32, #tpu.memory_space<vmem>>, vector<1x1x16xf32>
    %44 = vector.shape_cast %43 : vector<1x1x16xf32> to vector<1x16xf32>
    %45 = vector.shape_cast %44 : vector<1x16xf32> to vector<1x1x16xf32>
    %46 = vector.broadcast %45 : vector<1x1x16xf32> to vector<2x2x16xf32>
    %47 = arith.mulf %42, %46 : vector<2x2x16xf32>
    %48 = arith.addf %28, %47 : vector<2x2x16xf32>
    %c1_39 = arith.constant 1 : index
    %c2_40 = arith.constant 2 : index
    %c0_41 = arith.constant 0 : index
    %49 = vector.load %arg12[%c1_39, %c2_40, %c0_41] : memref<4x4x16xf32, #tpu.memory_space<vmem>>, vector<2x2x16xf32>
    %c5 = arith.constant 5 : index
    %c0_42 = arith.constant 0 : index
    %c0_43 = arith.constant 0 : index
    %50 = vector.load %arg5[%c5, %c0_42, %c0_43] : memref<9x1x16xf32, #tpu.memory_space<vmem>>, vector<1x1x16xf32>
    %51 = vector.shape_cast %50 : vector<1x1x16xf32> to vector<1x16xf32>
    %52 = vector.shape_cast %51 : vector<1x16xf32> to vector<1x1x16xf32>
    %53 = vector.broadcast %52 : vector<1x1x16xf32> to vector<2x2x16xf32>
    %54 = arith.mulf %49, %53 : vector<2x2x16xf32>
    %55 = arith.addf %34, %54 : vector<2x2x16xf32>
    %c2_44 = arith.constant 2 : index
    %c0_45 = arith.constant 0 : index
    %c0_46 = arith.constant 0 : index
    %56 = vector.load %arg12[%c2_44, %c0_45, %c0_46] : memref<4x4x16xf32, #tpu.memory_space<vmem>>, vector<2x2x16xf32>
    %c6 = arith.constant 6 : index
    %c0_47 = arith.constant 0 : index
    %c0_48 = arith.constant 0 : index
    %57 = vector.load %arg5[%c6, %c0_47, %c0_48] : memref<9x1x16xf32, #tpu.memory_space<vmem>>, vector<1x1x16xf32>
    %58 = vector.shape_cast %57 : vector<1x1x16xf32> to vector<1x16xf32>
    %59 = vector.shape_cast %58 : vector<1x16xf32> to vector<1x1x16xf32>
    %60 = vector.broadcast %59 : vector<1x1x16xf32> to vector<2x2x16xf32>
    %61 = arith.mulf %56, %60 : vector<2x2x16xf32>
    %62 = arith.addf %41, %61 : vector<2x2x16xf32>
    %c2_49 = arith.constant 2 : index
    %c1_50 = arith.constant 1 : index
    %c0_51 = arith.constant 0 : index
    %63 = vector.load %arg12[%c2_49, %c1_50, %c0_51] : memref<4x4x16xf32, #tpu.memory_space<vmem>>, vector<2x2x16xf32>
    %c7 = arith.constant 7 : index
    %c0_52 = arith.constant 0 : index
    %c0_53 = arith.constant 0 : index
    %64 = vector.load %arg5[%c7, %c0_52, %c0_53] : memref<9x1x16xf32, #tpu.memory_space<vmem>>, vector<1x1x16xf32>
    %65 = vector.shape_cast %64 : vector<1x1x16xf32> to vector<1x16xf32>
    %66 = vector.shape_cast %65 : vector<1x16xf32> to vector<1x1x16xf32>
    %67 = vector.broadcast %66 : vector<1x1x16xf32> to vector<2x2x16xf32>
    %68 = arith.mulf %63, %67 : vector<2x2x16xf32>
    %69 = arith.addf %48, %68 : vector<2x2x16xf32>
    %c2_54 = arith.constant 2 : index
    %c2_55 = arith.constant 2 : index
    %c0_56 = arith.constant 0 : index
    %70 = vector.load %arg12[%c2_54, %c2_55, %c0_56] : memref<4x4x16xf32, #tpu.memory_space<vmem>>, vector<2x2x16xf32>
    %c8 = arith.constant 8 : index
    %c0_57 = arith.constant 0 : index
    %c0_58 = arith.constant 0 : index
    %71 = vector.load %arg5[%c8, %c0_57, %c0_58] : memref<9x1x16xf32, #tpu.memory_space<vmem>>, vector<1x1x16xf32>
    %72 = vector.shape_cast %71 : vector<1x1x16xf32> to vector<1x16xf32>
    %73 = vector.shape_cast %72 : vector<1x16xf32> to vector<1x1x16xf32>
    %74 = vector.broadcast %73 : vector<1x1x16xf32> to vector<2x2x16xf32>
    %75 = arith.mulf %70, %74 : vector<2x2x16xf32>
    %76 = arith.addf %55, %75 : vector<2x2x16xf32>
    %77 = arith.addf %62, %69 : vector<2x2x16xf32>
    %78 = arith.addf %77, %76 : vector<2x2x16xf32>
    %c0_59 = arith.constant 0 : index
    %c0_60 = arith.constant 0 : index
    %79 = vector.load %arg6[%c0_59, %c0_60] : memref<1x16xf32, #tpu.memory_space<vmem>>, vector<1x16xf32>
    %80 = vector.shape_cast %79 : vector<1x16xf32> to vector<1x1x16xf32>
    %81 = vector.broadcast %80 : vector<1x1x16xf32> to vector<2x2x16xf32>
    %82 = arith.mulf %78, %81 : vector<2x2x16xf32>
    %c0_61 = arith.constant 0 : index
    %c0_62 = arith.constant 0 : index
    %83 = vector.load %arg7[%c0_61, %c0_62] : memref<1x16xf32, #tpu.memory_space<vmem>>, vector<1x16xf32>
    %84 = vector.shape_cast %83 : vector<1x16xf32> to vector<1x1x16xf32>
    %85 = vector.broadcast %84 : vector<1x1x16xf32> to vector<2x2x16xf32>
    %86 = arith.addf %82, %85 : vector<2x2x16xf32>
    %87 = vector.shape_cast %86 : vector<2x2x16xf32> to vector<4x16xf32>
    %88 = arith.truncf %87 : vector<4x16xf32> to vector<4x16xbf16>
    %c0_63 = arith.constant 0 : index
    %c0_64 = arith.constant 0 : index
    %89 = vector.load %arg8[%c0_63, %c0_64] : memref<16x16xbf16, #tpu.memory_space<vmem>>, vector<16x16xbf16>
    %cst_65 = arith.constant dense<0.000000e+00> : vector<4x16xf32>
    %90 = tpu.matmul %88, %89, %cst_65 {dimension_numbers = #tpu.dot_dimension_numbers<[1], [0], [0], [1], [0, 0, 1, 1], [], []>} : vector<4x16xbf16>, vector<16x16xbf16>, vector<4x16xf32> -> vector<4x16xf32>
    %c0_66 = arith.constant 0 : index
    %c0_67 = arith.constant 0 : index
    %91 = vector.load %arg9[%c0_66, %c0_67] : memref<1x16xf32, #tpu.memory_space<vmem>>, vector<1x16xf32>
    %92 = vector.broadcast %91 : vector<1x16xf32> to vector<4x16xf32>
    %93 = arith.mulf %90, %92 : vector<4x16xf32>
    %c0_68 = arith.constant 0 : index
    %c0_69 = arith.constant 0 : index
    %94 = vector.load %arg10[%c0_68, %c0_69] : memref<1x16xf32, #tpu.memory_space<vmem>>, vector<1x16xf32>
    %95 = vector.broadcast %94 : vector<1x16xf32> to vector<4x16xf32>
    %96 = arith.addf %93, %95 : vector<4x16xf32>
    %cst_70 = arith.constant 0.000000e+00 : f32
    %97 = vector.broadcast %cst_70 : f32 to vector<4x16xf32>
    %98 = arith.maximumf %96, %97 : vector<4x16xf32>
    %99 = arith.truncf %98 : vector<4x16xf32> to vector<4x16xbf16>
    %c0_71 = arith.constant 0 : index
    %c0_72 = arith.constant 0 : index
    %c0_73 = arith.constant 0 : index
    %100 = vector.load %arg11[%c0_71, %c0_72, %c0_73] : memref<1x4x16xbf16, #tpu.memory_space<vmem>>, vector<1x4x16xbf16>
    %101 = vector.shape_cast %100 : vector<1x4x16xbf16> to vector<4x16xbf16>
    %102 = vector.shape_cast %99 : vector<4x16xbf16> to vector<1x4x16xbf16>
    tpu.vector_store %arg11[%c0_71, %c0_72, %c0_73], %102 {strides = array<i32>} : memref<1x4x16xbf16, #tpu.memory_space<vmem>>, vector<1x4x16xbf16>,
    return
  }
  func.func @transform_0(%arg0: i32) -> (i32, i32, i32) {
    %c0_i32 = arith.constant 0 : i32
    %c0_i32_0 = arith.constant 0 : i32
    %c0_i32_1 = arith.constant 0 : i32
    return %arg0, %c0_i32, %c0_i32_0 : i32, i32, i32
  }
  func.func @transform_1(%arg0: i32) -> (i32, i32) {
    %c0_i32 = arith.constant 0 : i32
    %c0_i32_0 = arith.constant 0 : i32
    %c0_i32_1 = arith.constant 0 : i32
    return %c0_i32, %c0_i32_0 : i32, i32
  }
  func.func @transform_2(%arg0: i32) -> (i32, i32) {
    %c0_i32 = arith.constant 0 : i32
    %c0_i32_0 = arith.constant 0 : i32
    %c0_i32_1 = arith.constant 0 : i32
    return %c0_i32, %c0_i32_0 : i32, i32
  }
  func.func @transform_3(%arg0: i32) -> (i32, i32) {
    %c0_i32 = arith.constant 0 : i32
    %c0_i32_0 = arith.constant 0 : i32
    %c0_i32_1 = arith.constant 0 : i32
    return %c0_i32, %c0_i32_0 : i32, i32
  }
  func.func @transform_4(%arg0: i32) -> (i32, i32, i32) {
    %c0_i32 = arith.constant 0 : i32
    %c0_i32_0 = arith.constant 0 : i32
    %c0_i32_1 = arith.constant 0 : i32
    %c0_i32_2 = arith.constant 0 : i32
    return %c0_i32, %c0_i32_0, %c0_i32_1 : i32, i32, i32
  }
  func.func @transform_5(%arg0: i32) -> (i32, i32) {
    %c0_i32 = arith.constant 0 : i32
    %c0_i32_0 = arith.constant 0 : i32
    %c0_i32_1 = arith.constant 0 : i32
    return %c0_i32, %c0_i32_0 : i32, i32
  }
  func.func @transform_6(%arg0: i32) -> (i32, i32) {
    %c0_i32 = arith.constant 0 : i32
    %c0_i32_0 = arith.constant 0 : i32
    %c0_i32_1 = arith.constant 0 : i32
    return %c0_i32, %c0_i32_0 : i32, i32
  }
  func.func @transform_7(%arg0: i32) -> (i32, i32) {
    %c0_i32 = arith.constant 0 : i32
    %c0_i32_0 = arith.constant 0 : i32
    %c0_i32_1 = arith.constant 0 : i32
    return %c0_i32, %c0_i32_0 : i32, i32
  }
  func.func @transform_8(%arg0: i32) -> (i32, i32) {
    %c0_i32 = arith.constant 0 : i32
    %c0_i32_0 = arith.constant 0 : i32
    %c0_i32_1 = arith.constant 0 : i32
    return %c0_i32, %c0_i32_0 : i32, i32
  }
  func.func @transform_9(%arg0: i32) -> (i32, i32) {
    %c0_i32 = arith.constant 0 : i32
    %c0_i32_0 = arith.constant 0 : i32
    %c0_i32_1 = arith.constant 0 : i32
    return %c0_i32, %c0_i32_0 : i32, i32
  }
  func.func @transform_10(%arg0: i32) -> (i32, i32, i32) {
    %c0_i32 = arith.constant 0 : i32
    %c0_i32_0 = arith.constant 0 : i32
    %c0_i32_1 = arith.constant 0 : i32
    return %arg0, %c0_i32, %c0_i32_0 : i32, i32, i32
  }
}

module attributes {stable_mosaic.version = 11 : i64} {
  func.func @_dw_s2_pw_kernel(%arg0: i32, %arg1: memref<4x2x2x32xbf16, #tpu.memory_space<vmem>>, %arg2: memref<9x1x32xf32, #tpu.memory_space<vmem>>, %arg3: memref<1x32xf32, #tpu.memory_space<vmem>>, %arg4: memref<1x32xf32, #tpu.memory_space<vmem>>, %arg5: memref<32x32xbf16, #tpu.memory_space<vmem>>, %arg6: memref<1x32xf32, #tpu.memory_space<vmem>>, %arg7: memref<1x32xf32, #tpu.memory_space<vmem>>, %arg8: memref<1x1x32xbf16, #tpu.memory_space<vmem>>) attributes {dimension_semantics = [#tpu.dimension_semantics<parallel>], iteration_bounds = array<i64: 2>, scalar_prefetch = 0 : i64, scratch_operands = 0 : i64, tpu.core_type = #tpu.core_type<tc>, window_params = [{transform_indices = @transform_0, window_bounds = array<i64: 4, 2, 2, 32>}, {pipeline_mode = #tpu.pipeline_mode<synchronous>, transform_indices = @transform_1, window_bounds = array<i64: 9, 1, 32>}, {pipeline_mode = #tpu.pipeline_mode<synchronous>, transform_indices = @transform_2, window_bounds = array<i64: 1, 32>}, {pipeline_mode = #tpu.pipeline_mode<synchronous>, transform_indices = @transform_3, window_bounds = array<i64: 1, 32>}, {pipeline_mode = #tpu.pipeline_mode<synchronous>, transform_indices = @transform_4, window_bounds = array<i64: 32, 32>}, {pipeline_mode = #tpu.pipeline_mode<synchronous>, transform_indices = @transform_5, window_bounds = array<i64: 1, 32>}, {pipeline_mode = #tpu.pipeline_mode<synchronous>, transform_indices = @transform_6, window_bounds = array<i64: 1, 32>}, {transform_indices = @transform_7, window_bounds = array<i64: 1, 1, 32>}]} {
    %c0 = arith.constant 0 : index
    %c0_0 = arith.constant 0 : index
    %c0_1 = arith.constant 0 : index
    %c0_2 = arith.constant 0 : index
    %0 = vector.load %arg1[%c0, %c0_0, %c0_1, %c0_2] : memref<4x2x2x32xbf16, #tpu.memory_space<vmem>>, vector<1x1x1x32xbf16>
    %1 = vector.shape_cast %0 : vector<1x1x1x32xbf16> to vector<1x1x32xbf16>
    %2 = arith.extf %1 : vector<1x1x32xbf16> to vector<1x1x32xf32>
    %c0_3 = arith.constant 0 : index
    %c0_4 = arith.constant 0 : index
    %c0_5 = arith.constant 0 : index
    %3 = vector.load %arg2[%c0_3, %c0_4, %c0_5] : memref<9x1x32xf32, #tpu.memory_space<vmem>>, vector<1x1x32xf32>
    %4 = vector.shape_cast %3 : vector<1x1x32xf32> to vector<1x32xf32>
    %5 = vector.shape_cast %4 : vector<1x32xf32> to vector<1x1x32xf32>
    %6 = arith.mulf %2, %5 : vector<1x1x32xf32>
    %c1 = arith.constant 1 : index
    %c0_6 = arith.constant 0 : index
    %c0_7 = arith.constant 0 : index
    %c0_8 = arith.constant 0 : index
    %7 = vector.load %arg1[%c1, %c0_6, %c0_7, %c0_8] : memref<4x2x2x32xbf16, #tpu.memory_space<vmem>>, vector<1x1x1x32xbf16>
    %8 = vector.shape_cast %7 : vector<1x1x1x32xbf16> to vector<1x1x32xbf16>
    %9 = arith.extf %8 : vector<1x1x32xbf16> to vector<1x1x32xf32>
    %c1_9 = arith.constant 1 : index
    %c0_10 = arith.constant 0 : index
    %c0_11 = arith.constant 0 : index
    %10 = vector.load %arg2[%c1_9, %c0_10, %c0_11] : memref<9x1x32xf32, #tpu.memory_space<vmem>>, vector<1x1x32xf32>
    %11 = vector.shape_cast %10 : vector<1x1x32xf32> to vector<1x32xf32>
    %12 = vector.shape_cast %11 : vector<1x32xf32> to vector<1x1x32xf32>
    %13 = arith.mulf %9, %12 : vector<1x1x32xf32>
    %c0_12 = arith.constant 0 : index
    %c0_13 = arith.constant 0 : index
    %c1_14 = arith.constant 1 : index
    %c0_15 = arith.constant 0 : index
    %14 = vector.load %arg1[%c0_12, %c0_13, %c1_14, %c0_15] : memref<4x2x2x32xbf16, #tpu.memory_space<vmem>>, vector<1x1x1x32xbf16>
    %15 = vector.shape_cast %14 : vector<1x1x1x32xbf16> to vector<1x1x32xbf16>
    %16 = arith.extf %15 : vector<1x1x32xbf16> to vector<1x1x32xf32>
    %c2 = arith.constant 2 : index
    %c0_16 = arith.constant 0 : index
    %c0_17 = arith.constant 0 : index
    %17 = vector.load %arg2[%c2, %c0_16, %c0_17] : memref<9x1x32xf32, #tpu.memory_space<vmem>>, vector<1x1x32xf32>
    %18 = vector.shape_cast %17 : vector<1x1x32xf32> to vector<1x32xf32>
    %19 = vector.shape_cast %18 : vector<1x32xf32> to vector<1x1x32xf32>
    %20 = arith.mulf %16, %19 : vector<1x1x32xf32>
    %c2_18 = arith.constant 2 : index
    %c0_19 = arith.constant 0 : index
    %c0_20 = arith.constant 0 : index
    %c0_21 = arith.constant 0 : index
    %21 = vector.load %arg1[%c2_18, %c0_19, %c0_20, %c0_21] : memref<4x2x2x32xbf16, #tpu.memory_space<vmem>>, vector<1x1x1x32xbf16>
    %22 = vector.shape_cast %21 : vector<1x1x1x32xbf16> to vector<1x1x32xbf16>
    %23 = arith.extf %22 : vector<1x1x32xbf16> to vector<1x1x32xf32>
    %c3 = arith.constant 3 : index
    %c0_22 = arith.constant 0 : index
    %c0_23 = arith.constant 0 : index
    %24 = vector.load %arg2[%c3, %c0_22, %c0_23] : memref<9x1x32xf32, #tpu.memory_space<vmem>>, vector<1x1x32xf32>
    %25 = vector.shape_cast %24 : vector<1x1x32xf32> to vector<1x32xf32>
    %26 = vector.shape_cast %25 : vector<1x32xf32> to vector<1x1x32xf32>
    %27 = arith.mulf %23, %26 : vector<1x1x32xf32>
    %28 = arith.addf %6, %27 : vector<1x1x32xf32>
    %c3_24 = arith.constant 3 : index
    %c0_25 = arith.constant 0 : index
    %c0_26 = arith.constant 0 : index
    %c0_27 = arith.constant 0 : index
    %29 = vector.load %arg1[%c3_24, %c0_25, %c0_26, %c0_27] : memref<4x2x2x32xbf16, #tpu.memory_space<vmem>>, vector<1x1x1x32xbf16>
    %30 = vector.shape_cast %29 : vector<1x1x1x32xbf16> to vector<1x1x32xbf16>
    %31 = arith.extf %30 : vector<1x1x32xbf16> to vector<1x1x32xf32>
    %c4 = arith.constant 4 : index
    %c0_28 = arith.constant 0 : index
    %c0_29 = arith.constant 0 : index
    %32 = vector.load %arg2[%c4, %c0_28, %c0_29] : memref<9x1x32xf32, #tpu.memory_space<vmem>>, vector<1x1x32xf32>
    %33 = vector.shape_cast %32 : vector<1x1x32xf32> to vector<1x32xf32>
    %34 = vector.shape_cast %33 : vector<1x32xf32> to vector<1x1x32xf32>
    %35 = arith.mulf %31, %34 : vector<1x1x32xf32>
    %36 = arith.addf %13, %35 : vector<1x1x32xf32>
    %c2_30 = arith.constant 2 : index
    %c0_31 = arith.constant 0 : index
    %c1_32 = arith.constant 1 : index
    %c0_33 = arith.constant 0 : index
    %37 = vector.load %arg1[%c2_30, %c0_31, %c1_32, %c0_33] : memref<4x2x2x32xbf16, #tpu.memory_space<vmem>>, vector<1x1x1x32xbf16>
    %38 = vector.shape_cast %37 : vector<1x1x1x32xbf16> to vector<1x1x32xbf16>
    %39 = arith.extf %38 : vector<1x1x32xbf16> to vector<1x1x32xf32>
    %c5 = arith.constant 5 : index
    %c0_34 = arith.constant 0 : index
    %c0_35 = arith.constant 0 : index
    %40 = vector.load %arg2[%c5, %c0_34, %c0_35] : memref<9x1x32xf32, #tpu.memory_space<vmem>>, vector<1x1x32xf32>
    %41 = vector.shape_cast %40 : vector<1x1x32xf32> to vector<1x32xf32>
    %42 = vector.shape_cast %41 : vector<1x32xf32> to vector<1x1x32xf32>
    %43 = arith.mulf %39, %42 : vector<1x1x32xf32>
    %44 = arith.addf %20, %43 : vector<1x1x32xf32>
    %c0_36 = arith.constant 0 : index
    %c1_37 = arith.constant 1 : index
    %c0_38 = arith.constant 0 : index
    %c0_39 = arith.constant 0 : index
    %45 = vector.load %arg1[%c0_36, %c1_37, %c0_38, %c0_39] : memref<4x2x2x32xbf16, #tpu.memory_space<vmem>>, vector<1x1x1x32xbf16>
    %46 = vector.shape_cast %45 : vector<1x1x1x32xbf16> to vector<1x1x32xbf16>
    %47 = arith.extf %46 : vector<1x1x32xbf16> to vector<1x1x32xf32>
    %c6 = arith.constant 6 : index
    %c0_40 = arith.constant 0 : index
    %c0_41 = arith.constant 0 : index
    %48 = vector.load %arg2[%c6, %c0_40, %c0_41] : memref<9x1x32xf32, #tpu.memory_space<vmem>>, vector<1x1x32xf32>
    %49 = vector.shape_cast %48 : vector<1x1x32xf32> to vector<1x32xf32>
    %50 = vector.shape_cast %49 : vector<1x32xf32> to vector<1x1x32xf32>
    %51 = arith.mulf %47, %50 : vector<1x1x32xf32>
    %52 = arith.addf %28, %51 : vector<1x1x32xf32>
    %c1_42 = arith.constant 1 : index
    %c1_43 = arith.constant 1 : index
    %c0_44 = arith.constant 0 : index
    %c0_45 = arith.constant 0 : index
    %53 = vector.load %arg1[%c1_42, %c1_43, %c0_44, %c0_45] : memref<4x2x2x32xbf16, #tpu.memory_space<vmem>>, vector<1x1x1x32xbf16>
    %54 = vector.shape_cast %53 : vector<1x1x1x32xbf16> to vector<1x1x32xbf16>
    %55 = arith.extf %54 : vector<1x1x32xbf16> to vector<1x1x32xf32>
    %c7 = arith.constant 7 : index
    %c0_46 = arith.constant 0 : index
    %c0_47 = arith.constant 0 : index
    %56 = vector.load %arg2[%c7, %c0_46, %c0_47] : memref<9x1x32xf32, #tpu.memory_space<vmem>>, vector<1x1x32xf32>
    %57 = vector.shape_cast %56 : vector<1x1x32xf32> to vector<1x32xf32>
    %58 = vector.shape_cast %57 : vector<1x32xf32> to vector<1x1x32xf32>
    %59 = arith.mulf %55, %58 : vector<1x1x32xf32>
    %60 = arith.addf %36, %59 : vector<1x1x32xf32>
    %c0_48 = arith.constant 0 : index
    %c1_49 = arith.constant 1 : index
    %c1_50 = arith.constant 1 : index
    %c0_51 = arith.constant 0 : index
    %61 = vector.load %arg1[%c0_48, %c1_49, %c1_50, %c0_51] : memref<4x2x2x32xbf16, #tpu.memory_space<vmem>>, vector<1x1x1x32xbf16>
    %62 = vector.shape_cast %61 : vector<1x1x1x32xbf16> to vector<1x1x32xbf16>
    %63 = arith.extf %62 : vector<1x1x32xbf16> to vector<1x1x32xf32>
    %c8 = arith.constant 8 : index
    %c0_52 = arith.constant 0 : index
    %c0_53 = arith.constant 0 : index
    %64 = vector.load %arg2[%c8, %c0_52, %c0_53] : memref<9x1x32xf32, #tpu.memory_space<vmem>>, vector<1x1x32xf32>
    %65 = vector.shape_cast %64 : vector<1x1x32xf32> to vector<1x32xf32>
    %66 = vector.shape_cast %65 : vector<1x32xf32> to vector<1x1x32xf32>
    %67 = arith.mulf %63, %66 : vector<1x1x32xf32>
    %68 = arith.addf %44, %67 : vector<1x1x32xf32>
    %69 = arith.addf %52, %60 : vector<1x1x32xf32>
    %70 = arith.addf %69, %68 : vector<1x1x32xf32>
    %c0_54 = arith.constant 0 : index
    %c0_55 = arith.constant 0 : index
    %71 = vector.load %arg3[%c0_54, %c0_55] : memref<1x32xf32, #tpu.memory_space<vmem>>, vector<1x32xf32>
    %72 = vector.shape_cast %71 : vector<1x32xf32> to vector<1x1x32xf32>
    %73 = arith.mulf %70, %72 : vector<1x1x32xf32>
    %c0_56 = arith.constant 0 : index
    %c0_57 = arith.constant 0 : index
    %74 = vector.load %arg4[%c0_56, %c0_57] : memref<1x32xf32, #tpu.memory_space<vmem>>, vector<1x32xf32>
    %75 = vector.shape_cast %74 : vector<1x32xf32> to vector<1x1x32xf32>
    %76 = arith.addf %73, %75 : vector<1x1x32xf32>
    %77 = vector.shape_cast %76 : vector<1x1x32xf32> to vector<1x32xf32>
    %78 = arith.truncf %77 : vector<1x32xf32> to vector<1x32xbf16>
    %c0_58 = arith.constant 0 : index
    %c0_59 = arith.constant 0 : index
    %79 = vector.load %arg5[%c0_58, %c0_59] : memref<32x32xbf16, #tpu.memory_space<vmem>>, vector<32x32xbf16>
    %cst = arith.constant dense<0.000000e+00> : vector<1x32xf32>
    %80 = tpu.matmul %78, %79, %cst {dimension_numbers = #tpu.dot_dimension_numbers<[1], [0], [0], [1], [0, 0, 1, 1], [], []>} : vector<1x32xbf16>, vector<32x32xbf16>, vector<1x32xf32> -> vector<1x32xf32>
    %c0_60 = arith.constant 0 : index
    %c0_61 = arith.constant 0 : index
    %81 = vector.load %arg6[%c0_60, %c0_61] : memref<1x32xf32, #tpu.memory_space<vmem>>, vector<1x32xf32>
    %82 = arith.mulf %80, %81 : vector<1x32xf32>
    %c0_62 = arith.constant 0 : index
    %c0_63 = arith.constant 0 : index
    %83 = vector.load %arg7[%c0_62, %c0_63] : memref<1x32xf32, #tpu.memory_space<vmem>>, vector<1x32xf32>
    %84 = arith.addf %82, %83 : vector<1x32xf32>
    %cst_64 = arith.constant 0.000000e+00 : f32
    %85 = vector.broadcast %cst_64 : f32 to vector<1x32xf32>
    %86 = arith.maximumf %84, %85 : vector<1x32xf32>
    %87 = arith.truncf %86 : vector<1x32xf32> to vector<1x32xbf16>
    %c0_65 = arith.constant 0 : index
    %c0_66 = arith.constant 0 : index
    %c0_67 = arith.constant 0 : index
    %88 = vector.load %arg8[%c0_65, %c0_66, %c0_67] : memref<1x1x32xbf16, #tpu.memory_space<vmem>>, vector<1x1x32xbf16>
    %89 = vector.shape_cast %88 : vector<1x1x32xbf16> to vector<1x32xbf16>
    %90 = vector.shape_cast %87 : vector<1x32xbf16> to vector<1x1x32xbf16>
    tpu.vector_store %arg8[%c0_65, %c0_66, %c0_67], %90 {strides = array<i32>} : memref<1x1x32xbf16, #tpu.memory_space<vmem>>, vector<1x1x32xbf16>,
    return
  }
  func.func @transform_0(%arg0: i32) -> (i32, i32, i32, i32) {
    %c0_i32 = arith.constant 0 : i32
    %c0_i32_0 = arith.constant 0 : i32
    %c0_i32_1 = arith.constant 0 : i32
    %c0_i32_2 = arith.constant 0 : i32
    return %arg0, %c0_i32, %c0_i32_0, %c0_i32_1 : i32, i32, i32, i32
  }
  func.func @transform_1(%arg0: i32) -> (i32, i32, i32) {
    %c0_i32 = arith.constant 0 : i32
    %c0_i32_0 = arith.constant 0 : i32
    %c0_i32_1 = arith.constant 0 : i32
    %c0_i32_2 = arith.constant 0 : i32
    return %c0_i32, %c0_i32_0, %c0_i32_1 : i32, i32, i32
  }
  func.func @transform_2(%arg0: i32) -> (i32, i32) {
    %c0_i32 = arith.constant 0 : i32
    %c0_i32_0 = arith.constant 0 : i32
    %c0_i32_1 = arith.constant 0 : i32
    return %c0_i32, %c0_i32_0 : i32, i32
  }
  func.func @transform_3(%arg0: i32) -> (i32, i32) {
    %c0_i32 = arith.constant 0 : i32
    %c0_i32_0 = arith.constant 0 : i32
    %c0_i32_1 = arith.constant 0 : i32
    return %c0_i32, %c0_i32_0 : i32, i32
  }
  func.func @transform_4(%arg0: i32) -> (i32, i32) {
    %c0_i32 = arith.constant 0 : i32
    %c0_i32_0 = arith.constant 0 : i32
    %c0_i32_1 = arith.constant 0 : i32
    return %c0_i32, %c0_i32_0 : i32, i32
  }
  func.func @transform_5(%arg0: i32) -> (i32, i32) {
    %c0_i32 = arith.constant 0 : i32
    %c0_i32_0 = arith.constant 0 : i32
    %c0_i32_1 = arith.constant 0 : i32
    return %c0_i32, %c0_i32_0 : i32, i32
  }
  func.func @transform_6(%arg0: i32) -> (i32, i32) {
    %c0_i32 = arith.constant 0 : i32
    %c0_i32_0 = arith.constant 0 : i32
    %c0_i32_1 = arith.constant 0 : i32
    return %c0_i32, %c0_i32_0 : i32, i32
  }
  func.func @transform_7(%arg0: i32) -> (i32, i32, i32) {
    %c0_i32 = arith.constant 0 : i32
    %c0_i32_0 = arith.constant 0 : i32
    %c0_i32_1 = arith.constant 0 : i32
    return %arg0, %c0_i32, %c0_i32_0 : i32, i32, i32
  }
}

module attributes {stable_mosaic.version = 11 : i64} {
  func.func @_pw_kernel(%arg0: i32, %arg1: memref<8x32xbf16, #tpu.memory_space<vmem>>, %arg2: memref<32x32xbf16, #tpu.memory_space<vmem>>, %arg3: memref<1x32xf32, #tpu.memory_space<vmem>>, %arg4: memref<1x32xf32, #tpu.memory_space<vmem>>, %arg5: memref<8x32xbf16, #tpu.memory_space<vmem>>) attributes {dimension_semantics = [#tpu.dimension_semantics<parallel>], iteration_bounds = array<i64: 1>, scalar_prefetch = 0 : i64, scratch_operands = 0 : i64, tpu.core_type = #tpu.core_type<tc>, window_params = [{transform_indices = @transform_0, window_bounds = array<i64: 8, 32>}, {pipeline_mode = #tpu.pipeline_mode<synchronous>, transform_indices = @transform_1, window_bounds = array<i64: 32, 32>}, {pipeline_mode = #tpu.pipeline_mode<synchronous>, transform_indices = @transform_2, window_bounds = array<i64: 1, 32>}, {pipeline_mode = #tpu.pipeline_mode<synchronous>, transform_indices = @transform_3, window_bounds = array<i64: 1, 32>}, {transform_indices = @transform_4, window_bounds = array<i64: 8, 32>}]} {
    %c0 = arith.constant 0 : index
    %c0_0 = arith.constant 0 : index
    %0 = vector.load %arg1[%c0, %c0_0] : memref<8x32xbf16, #tpu.memory_space<vmem>>, vector<8x32xbf16>
    %c0_1 = arith.constant 0 : index
    %c0_2 = arith.constant 0 : index
    %1 = vector.load %arg2[%c0_1, %c0_2] : memref<32x32xbf16, #tpu.memory_space<vmem>>, vector<32x32xbf16>
    %cst = arith.constant dense<0.000000e+00> : vector<8x32xf32>
    %2 = tpu.matmul %0, %1, %cst {dimension_numbers = #tpu.dot_dimension_numbers<[1], [0], [0], [1], [0, 0, 1, 1], [], []>} : vector<8x32xbf16>, vector<32x32xbf16>, vector<8x32xf32> -> vector<8x32xf32>
    %c0_3 = arith.constant 0 : index
    %c0_4 = arith.constant 0 : index
    %3 = vector.load %arg3[%c0_3, %c0_4] : memref<1x32xf32, #tpu.memory_space<vmem>>, vector<1x32xf32>
    %4 = vector.broadcast %3 : vector<1x32xf32> to vector<8x32xf32>
    %5 = arith.mulf %2, %4 : vector<8x32xf32>
    %c0_5 = arith.constant 0 : index
    %c0_6 = arith.constant 0 : index
    %6 = vector.load %arg4[%c0_5, %c0_6] : memref<1x32xf32, #tpu.memory_space<vmem>>, vector<1x32xf32>
    %7 = vector.broadcast %6 : vector<1x32xf32> to vector<8x32xf32>
    %8 = arith.addf %5, %7 : vector<8x32xf32>
    %cst_7 = arith.constant 0.000000e+00 : f32
    %9 = vector.broadcast %cst_7 : f32 to vector<8x32xf32>
    %10 = arith.maximumf %8, %9 : vector<8x32xf32>
    %11 = arith.truncf %10 : vector<8x32xf32> to vector<8x32xbf16>
    %c0_8 = arith.constant 0 : index
    %c0_9 = arith.constant 0 : index
    %12 = vector.load %arg5[%c0_8, %c0_9] : memref<8x32xbf16, #tpu.memory_space<vmem>>, vector<8x32xbf16>
    tpu.vector_store %arg5[%c0_8, %c0_9], %11 {strides = array<i32>} : memref<8x32xbf16, #tpu.memory_space<vmem>>, vector<8x32xbf16>,
    return
  }
  func.func @transform_0(%arg0: i32) -> (i32, i32) {
    %c0_i32 = arith.constant 0 : i32
    %c0_i32_0 = arith.constant 0 : i32
    return %arg0, %c0_i32 : i32, i32
  }
  func.func @transform_1(%arg0: i32) -> (i32, i32) {
    %c0_i32 = arith.constant 0 : i32
    %c0_i32_0 = arith.constant 0 : i32
    %c0_i32_1 = arith.constant 0 : i32
    return %c0_i32, %c0_i32_0 : i32, i32
  }
  func.func @transform_2(%arg0: i32) -> (i32, i32) {
    %c0_i32 = arith.constant 0 : i32
    %c0_i32_0 = arith.constant 0 : i32
    %c0_i32_1 = arith.constant 0 : i32
    return %c0_i32, %c0_i32_0 : i32, i32
  }
  func.func @transform_3(%arg0: i32) -> (i32, i32) {
    %c0_i32 = arith.constant 0 : i32
    %c0_i32_0 = arith.constant 0 : i32
    %c0_i32_1 = arith.constant 0 : i32
    return %c0_i32, %c0_i32_0 : i32, i32
  }
  func.func @transform_4(%arg0: i32) -> (i32, i32) {
    %c0_i32 = arith.constant 0 : i32
    %c0_i32_0 = arith.constant 0 : i32
    return %arg0, %c0_i32 : i32, i32
  }
}

module attributes {stable_mosaic.version = 11 : i64} {
  func.func @_fused_s1_branch_kernel(%arg0: i32, %arg1: memref<1x1x32xbf16, #tpu.memory_space<vmem>>, %arg2: memref<32x32xbf16, #tpu.memory_space<vmem>>, %arg3: memref<1x32xf32, #tpu.memory_space<vmem>>, %arg4: memref<1x32xf32, #tpu.memory_space<vmem>>, %arg5: memref<9x1x32xf32, #tpu.memory_space<vmem>>, %arg6: memref<1x32xf32, #tpu.memory_space<vmem>>, %arg7: memref<1x32xf32, #tpu.memory_space<vmem>>, %arg8: memref<32x32xbf16, #tpu.memory_space<vmem>>, %arg9: memref<1x32xf32, #tpu.memory_space<vmem>>, %arg10: memref<1x32xf32, #tpu.memory_space<vmem>>, %arg11: memref<1x1x32xbf16, #tpu.memory_space<vmem>>, %arg12: memref<3x3x32xf32, #tpu.memory_space<vmem>>) attributes {dimension_semantics = [#tpu.dimension_semantics<parallel>], iteration_bounds = array<i64: 2>, scalar_prefetch = 0 : i64, scratch_operands = 1 : i64, tpu.core_type = #tpu.core_type<tc>, window_params = [{transform_indices = @transform_0, window_bounds = array<i64: 1, 1, 32>}, {pipeline_mode = #tpu.pipeline_mode<synchronous>, transform_indices = @transform_1, window_bounds = array<i64: 32, 32>}, {pipeline_mode = #tpu.pipeline_mode<synchronous>, transform_indices = @transform_2, window_bounds = array<i64: 1, 32>}, {pipeline_mode = #tpu.pipeline_mode<synchronous>, transform_indices = @transform_3, window_bounds = array<i64: 1, 32>}, {pipeline_mode = #tpu.pipeline_mode<synchronous>, transform_indices = @transform_4, window_bounds = array<i64: 9, 1, 32>}, {pipeline_mode = #tpu.pipeline_mode<synchronous>, transform_indices = @transform_5, window_bounds = array<i64: 1, 32>}, {pipeline_mode = #tpu.pipeline_mode<synchronous>, transform_indices = @transform_6, window_bounds = array<i64: 1, 32>}, {pipeline_mode = #tpu.pipeline_mode<synchronous>, transform_indices = @transform_7, window_bounds = array<i64: 32, 32>}, {pipeline_mode = #tpu.pipeline_mode<synchronous>, transform_indices = @transform_8, window_bounds = array<i64: 1, 32>}, {pipeline_mode = #tpu.pipeline_mode<synchronous>, transform_indices = @transform_9, window_bounds = array<i64: 1, 32>}, {transform_indices = @transform_10, window_bounds = array<i64: 1, 1, 32>}]} {
    %c0_i32 = arith.constant 0 : i32
    %0 = arith.cmpi eq, %arg0, %c0_i32 : i32
    %1 = arith.extui %0 : i1 to i32
    %c0_i32_0 = arith.constant 0 : i32
    %2 = arith.cmpi ne, %1, %c0_i32_0 : i32
    scf.if %2 {
      %cst_74 = arith.constant 0.000000e+00 : f32
      %88 = vector.broadcast %cst_74 : f32 to vector<3x3x32xf32>
      %c0_75 = arith.constant 0 : index
      %c0_76 = arith.constant 0 : index
      %c0_77 = arith.constant 0 : index
      %89 = vector.load %arg12[%c0_75, %c0_76, %c0_77] : memref<3x3x32xf32, #tpu.memory_space<vmem>>, vector<3x3x32xf32>
      tpu.vector_store %arg12[%c0_75, %c0_76, %c0_77], %88 {strides = array<i32>} : memref<3x3x32xf32, #tpu.memory_space<vmem>>, vector<3x3x32xf32>,
    } else {
    }
    %c0 = arith.constant 0 : index
    %c0_1 = arith.constant 0 : index
    %c0_2 = arith.constant 0 : index
    %3 = vector.load %arg1[%c0, %c0_1, %c0_2] : memref<1x1x32xbf16, #tpu.memory_space<vmem>>, vector<1x1x32xbf16>
    %4 = vector.shape_cast %3 : vector<1x1x32xbf16> to vector<1x32xbf16>
    %c0_3 = arith.constant 0 : index
    %c0_4 = arith.constant 0 : index
    %5 = vector.load %arg2[%c0_3, %c0_4] : memref<32x32xbf16, #tpu.memory_space<vmem>>, vector<32x32xbf16>
    %cst = arith.constant dense<0.000000e+00> : vector<1x32xf32>
    %6 = tpu.matmul %4, %5, %cst {dimension_numbers = #tpu.dot_dimension_numbers<[1], [0], [0], [1], [0, 0, 1, 1], [], []>} : vector<1x32xbf16>, vector<32x32xbf16>, vector<1x32xf32> -> vector<1x32xf32>
    %c0_5 = arith.constant 0 : index
    %c0_6 = arith.constant 0 : index
    %7 = vector.load %arg3[%c0_5, %c0_6] : memref<1x32xf32, #tpu.memory_space<vmem>>, vector<1x32xf32>
    %8 = arith.mulf %6, %7 : vector<1x32xf32>
    %c0_7 = arith.constant 0 : index
    %c0_8 = arith.constant 0 : index
    %9 = vector.load %arg4[%c0_7, %c0_8] : memref<1x32xf32, #tpu.memory_space<vmem>>, vector<1x32xf32>
    %10 = arith.addf %8, %9 : vector<1x32xf32>
    %cst_9 = arith.constant 0.000000e+00 : f32
    %11 = vector.broadcast %cst_9 : f32 to vector<1x32xf32>
    %12 = arith.maximumf %10, %11 : vector<1x32xf32>
    %13 = vector.shape_cast %12 : vector<1x32xf32> to vector<1x1x32xf32>
    %c1 = arith.constant 1 : index
    %c1_10 = arith.constant 1 : index
    %c0_11 = arith.constant 0 : index
    %14 = vector.load %arg12[%c1, %c1_10, %c0_11] : memref<3x3x32xf32, #tpu.memory_space<vmem>>, vector<1x1x32xf32>
    tpu.vector_store %arg12[%c1, %c1_10, %c0_11], %13 {strides = array<i32>} : memref<3x3x32xf32, #tpu.memory_space<vmem>>, vector<1x1x32xf32>,
    %c0_12 = arith.constant 0 : index
    %c0_13 = arith.constant 0 : index
    %c0_14 = arith.constant 0 : index
    %15 = vector.load %arg12[%c0_12, %c0_13, %c0_14] : memref<3x3x32xf32, #tpu.memory_space<vmem>>, vector<1x1x32xf32>
    %c0_15 = arith.constant 0 : index
    %c0_16 = arith.constant 0 : index
    %c0_17 = arith.constant 0 : index
    %16 = vector.load %arg5[%c0_15, %c0_16, %c0_17] : memref<9x1x32xf32, #tpu.memory_space<vmem>>, vector<1x1x32xf32>
    %17 = vector.shape_cast %16 : vector<1x1x32xf32> to vector<1x32xf32>
    %18 = vector.shape_cast %17 : vector<1x32xf32> to vector<1x1x32xf32>
    %19 = arith.mulf %15, %18 : vector<1x1x32xf32>
    %c0_18 = arith.constant 0 : index
    %c1_19 = arith.constant 1 : index
    %c0_20 = arith.constant 0 : index
    %20 = vector.load %arg12[%c0_18, %c1_19, %c0_20] : memref<3x3x32xf32, #tpu.memory_space<vmem>>, vector<1x1x32xf32>
    %c1_21 = arith.constant 1 : index
    %c0_22 = arith.constant 0 : index
    %c0_23 = arith.constant 0 : index
    %21 = vector.load %arg5[%c1_21, %c0_22, %c0_23] : memref<9x1x32xf32, #tpu.memory_space<vmem>>, vector<1x1x32xf32>
    %22 = vector.shape_cast %21 : vector<1x1x32xf32> to vector<1x32xf32>
    %23 = vector.shape_cast %22 : vector<1x32xf32> to vector<1x1x32xf32>
    %24 = arith.mulf %20, %23 : vector<1x1x32xf32>
    %c0_24 = arith.constant 0 : index
    %c2 = arith.constant 2 : index
    %c0_25 = arith.constant 0 : index
    %25 = vector.load %arg12[%c0_24, %c2, %c0_25] : memref<3x3x32xf32, #tpu.memory_space<vmem>>, vector<1x1x32xf32>
    %c2_26 = arith.constant 2 : index
    %c0_27 = arith.constant 0 : index
    %c0_28 = arith.constant 0 : index
    %26 = vector.load %arg5[%c2_26, %c0_27, %c0_28] : memref<9x1x32xf32, #tpu.memory_space<vmem>>, vector<1x1x32xf32>
    %27 = vector.shape_cast %26 : vector<1x1x32xf32> to vector<1x32xf32>
    %28 = vector.shape_cast %27 : vector<1x32xf32> to vector<1x1x32xf32>
    %29 = arith.mulf %25, %28 : vector<1x1x32xf32>
    %c1_29 = arith.constant 1 : index
    %c0_30 = arith.constant 0 : index
    %c0_31 = arith.constant 0 : index
    %30 = vector.load %arg12[%c1_29, %c0_30, %c0_31] : memref<3x3x32xf32, #tpu.memory_space<vmem>>, vector<1x1x32xf32>
    %c3 = arith.constant 3 : index
    %c0_32 = arith.constant 0 : index
    %c0_33 = arith.constant 0 : index
    %31 = vector.load %arg5[%c3, %c0_32, %c0_33] : memref<9x1x32xf32, #tpu.memory_space<vmem>>, vector<1x1x32xf32>
    %32 = vector.shape_cast %31 : vector<1x1x32xf32> to vector<1x32xf32>
    %33 = vector.shape_cast %32 : vector<1x32xf32> to vector<1x1x32xf32>
    %34 = arith.mulf %30, %33 : vector<1x1x32xf32>
    %35 = arith.addf %19, %34 : vector<1x1x32xf32>
    %c1_34 = arith.constant 1 : index
    %c1_35 = arith.constant 1 : index
    %c0_36 = arith.constant 0 : index
    %36 = vector.load %arg12[%c1_34, %c1_35, %c0_36] : memref<3x3x32xf32, #tpu.memory_space<vmem>>, vector<1x1x32xf32>
    %c4 = arith.constant 4 : index
    %c0_37 = arith.constant 0 : index
    %c0_38 = arith.constant 0 : index
    %37 = vector.load %arg5[%c4, %c0_37, %c0_38] : memref<9x1x32xf32, #tpu.memory_space<vmem>>, vector<1x1x32xf32>
    %38 = vector.shape_cast %37 : vector<1x1x32xf32> to vector<1x32xf32>
    %39 = vector.shape_cast %38 : vector<1x32xf32> to vector<1x1x32xf32>
    %40 = arith.mulf %36, %39 : vector<1x1x32xf32>
    %41 = arith.addf %24, %40 : vector<1x1x32xf32>
    %c1_39 = arith.constant 1 : index
    %c2_40 = arith.constant 2 : index
    %c0_41 = arith.constant 0 : index
    %42 = vector.load %arg12[%c1_39, %c2_40, %c0_41] : memref<3x3x32xf32, #tpu.memory_space<vmem>>, vector<1x1x32xf32>
    %c5 = arith.constant 5 : index
    %c0_42 = arith.constant 0 : index
    %c0_43 = arith.constant 0 : index
    %43 = vector.load %arg5[%c5, %c0_42, %c0_43] : memref<9x1x32xf32, #tpu.memory_space<vmem>>, vector<1x1x32xf32>
    %44 = vector.shape_cast %43 : vector<1x1x32xf32> to vector<1x32xf32>
    %45 = vector.shape_cast %44 : vector<1x32xf32> to vector<1x1x32xf32>
    %46 = arith.mulf %42, %45 : vector<1x1x32xf32>
    %47 = arith.addf %29, %46 : vector<1x1x32xf32>
    %c2_44 = arith.constant 2 : index
    %c0_45 = arith.constant 0 : index
    %c0_46 = arith.constant 0 : index
    %48 = vector.load %arg12[%c2_44, %c0_45, %c0_46] : memref<3x3x32xf32, #tpu.memory_space<vmem>>, vector<1x1x32xf32>
    %c6 = arith.constant 6 : index
    %c0_47 = arith.constant 0 : index
    %c0_48 = arith.constant 0 : index
    %49 = vector.load %arg5[%c6, %c0_47, %c0_48] : memref<9x1x32xf32, #tpu.memory_space<vmem>>, vector<1x1x32xf32>
    %50 = vector.shape_cast %49 : vector<1x1x32xf32> to vector<1x32xf32>
    %51 = vector.shape_cast %50 : vector<1x32xf32> to vector<1x1x32xf32>
    %52 = arith.mulf %48, %51 : vector<1x1x32xf32>
    %53 = arith.addf %35, %52 : vector<1x1x32xf32>
    %c2_49 = arith.constant 2 : index
    %c1_50 = arith.constant 1 : index
    %c0_51 = arith.constant 0 : index
    %54 = vector.load %arg12[%c2_49, %c1_50, %c0_51] : memref<3x3x32xf32, #tpu.memory_space<vmem>>, vector<1x1x32xf32>
    %c7 = arith.constant 7 : index
    %c0_52 = arith.constant 0 : index
    %c0_53 = arith.constant 0 : index
    %55 = vector.load %arg5[%c7, %c0_52, %c0_53] : memref<9x1x32xf32, #tpu.memory_space<vmem>>, vector<1x1x32xf32>
    %56 = vector.shape_cast %55 : vector<1x1x32xf32> to vector<1x32xf32>
    %57 = vector.shape_cast %56 : vector<1x32xf32> to vector<1x1x32xf32>
    %58 = arith.mulf %54, %57 : vector<1x1x32xf32>
    %59 = arith.addf %41, %58 : vector<1x1x32xf32>
    %c2_54 = arith.constant 2 : index
    %c2_55 = arith.constant 2 : index
    %c0_56 = arith.constant 0 : index
    %60 = vector.load %arg12[%c2_54, %c2_55, %c0_56] : memref<3x3x32xf32, #tpu.memory_space<vmem>>, vector<1x1x32xf32>
    %c8 = arith.constant 8 : index
    %c0_57 = arith.constant 0 : index
    %c0_58 = arith.constant 0 : index
    %61 = vector.load %arg5[%c8, %c0_57, %c0_58] : memref<9x1x32xf32, #tpu.memory_space<vmem>>, vector<1x1x32xf32>
    %62 = vector.shape_cast %61 : vector<1x1x32xf32> to vector<1x32xf32>
    %63 = vector.shape_cast %62 : vector<1x32xf32> to vector<1x1x32xf32>
    %64 = arith.mulf %60, %63 : vector<1x1x32xf32>
    %65 = arith.addf %47, %64 : vector<1x1x32xf32>
    %66 = arith.addf %53, %59 : vector<1x1x32xf32>
    %67 = arith.addf %66, %65 : vector<1x1x32xf32>
    %c0_59 = arith.constant 0 : index
    %c0_60 = arith.constant 0 : index
    %68 = vector.load %arg6[%c0_59, %c0_60] : memref<1x32xf32, #tpu.memory_space<vmem>>, vector<1x32xf32>
    %69 = vector.shape_cast %68 : vector<1x32xf32> to vector<1x1x32xf32>
    %70 = arith.mulf %67, %69 : vector<1x1x32xf32>
    %c0_61 = arith.constant 0 : index
    %c0_62 = arith.constant 0 : index
    %71 = vector.load %arg7[%c0_61, %c0_62] : memref<1x32xf32, #tpu.memory_space<vmem>>, vector<1x32xf32>
    %72 = vector.shape_cast %71 : vector<1x32xf32> to vector<1x1x32xf32>
    %73 = arith.addf %70, %72 : vector<1x1x32xf32>
    %74 = vector.shape_cast %73 : vector<1x1x32xf32> to vector<1x32xf32>
    %75 = arith.truncf %74 : vector<1x32xf32> to vector<1x32xbf16>
    %c0_63 = arith.constant 0 : index
    %c0_64 = arith.constant 0 : index
    %76 = vector.load %arg8[%c0_63, %c0_64] : memref<32x32xbf16, #tpu.memory_space<vmem>>, vector<32x32xbf16>
    %cst_65 = arith.constant dense<0.000000e+00> : vector<1x32xf32>
    %77 = tpu.matmul %75, %76, %cst_65 {dimension_numbers = #tpu.dot_dimension_numbers<[1], [0], [0], [1], [0, 0, 1, 1], [], []>} : vector<1x32xbf16>, vector<32x32xbf16>, vector<1x32xf32> -> vector<1x32xf32>
    %c0_66 = arith.constant 0 : index
    %c0_67 = arith.constant 0 : index
    %78 = vector.load %arg9[%c0_66, %c0_67] : memref<1x32xf32, #tpu.memory_space<vmem>>, vector<1x32xf32>
    %79 = arith.mulf %77, %78 : vector<1x32xf32>
    %c0_68 = arith.constant 0 : index
    %c0_69 = arith.constant 0 : index
    %80 = vector.load %arg10[%c0_68, %c0_69] : memref<1x32xf32, #tpu.memory_space<vmem>>, vector<1x32xf32>
    %81 = arith.addf %79, %80 : vector<1x32xf32>
    %cst_70 = arith.constant 0.000000e+00 : f32
    %82 = vector.broadcast %cst_70 : f32 to vector<1x32xf32>
    %83 = arith.maximumf %81, %82 : vector<1x32xf32>
    %84 = arith.truncf %83 : vector<1x32xf32> to vector<1x32xbf16>
    %c0_71 = arith.constant 0 : index
    %c0_72 = arith.constant 0 : index
    %c0_73 = arith.constant 0 : index
    %85 = vector.load %arg11[%c0_71, %c0_72, %c0_73] : memref<1x1x32xbf16, #tpu.memory_space<vmem>>, vector<1x1x32xbf16>
    %86 = vector.shape_cast %85 : vector<1x1x32xbf16> to vector<1x32xbf16>
    %87 = vector.shape_cast %84 : vector<1x32xbf16> to vector<1x1x32xbf16>
    tpu.vector_store %arg11[%c0_71, %c0_72, %c0_73], %87 {strides = array<i32>} : memref<1x1x32xbf16, #tpu.memory_space<vmem>>, vector<1x1x32xbf16>,
    return
  }
  func.func @transform_0(%arg0: i32) -> (i32, i32, i32) {
    %c0_i32 = arith.constant 0 : i32
    %c0_i32_0 = arith.constant 0 : i32
    %c0_i32_1 = arith.constant 0 : i32
    return %arg0, %c0_i32, %c0_i32_0 : i32, i32, i32
  }
  func.func @transform_1(%arg0: i32) -> (i32, i32) {
    %c0_i32 = arith.constant 0 : i32
    %c0_i32_0 = arith.constant 0 : i32
    %c0_i32_1 = arith.constant 0 : i32
    return %c0_i32, %c0_i32_0 : i32, i32
  }
  func.func @transform_2(%arg0: i32) -> (i32, i32) {
    %c0_i32 = arith.constant 0 : i32
    %c0_i32_0 = arith.constant 0 : i32
    %c0_i32_1 = arith.constant 0 : i32
    return %c0_i32, %c0_i32_0 : i32, i32
  }
  func.func @transform_3(%arg0: i32) -> (i32, i32) {
    %c0_i32 = arith.constant 0 : i32
    %c0_i32_0 = arith.constant 0 : i32
    %c0_i32_1 = arith.constant 0 : i32
    return %c0_i32, %c0_i32_0 : i32, i32
  }
  func.func @transform_4(%arg0: i32) -> (i32, i32, i32) {
    %c0_i32 = arith.constant 0 : i32
    %c0_i32_0 = arith.constant 0 : i32
    %c0_i32_1 = arith.constant 0 : i32
    %c0_i32_2 = arith.constant 0 : i32
    return %c0_i32, %c0_i32_0, %c0_i32_1 : i32, i32, i32
  }
  func.func @transform_5(%arg0: i32) -> (i32, i32) {
    %c0_i32 = arith.constant 0 : i32
    %c0_i32_0 = arith.constant 0 : i32
    %c0_i32_1 = arith.constant 0 : i32
    return %c0_i32, %c0_i32_0 : i32, i32
  }
  func.func @transform_6(%arg0: i32) -> (i32, i32) {
    %c0_i32 = arith.constant 0 : i32
    %c0_i32_0 = arith.constant 0 : i32
    %c0_i32_1 = arith.constant 0 : i32
    return %c0_i32, %c0_i32_0 : i32, i32
  }
  func.func @transform_7(%arg0: i32) -> (i32, i32) {
    %c0_i32 = arith.constant 0 : i32
    %c0_i32_0 = arith.constant 0 : i32
    %c0_i32_1 = arith.constant 0 : i32
    return %c0_i32, %c0_i32_0 : i32, i32
  }
  func.func @transform_8(%arg0: i32) -> (i32, i32) {
    %c0_i32 = arith.constant 0 : i32
    %c0_i32_0 = arith.constant 0 : i32
    %c0_i32_1 = arith.constant 0 : i32
    return %c0_i32, %c0_i32_0 : i32, i32
  }
  func.func @transform_9(%arg0: i32) -> (i32, i32) {
    %c0_i32 = arith.constant 0 : i32
    %c0_i32_0 = arith.constant 0 : i32
    %c0_i32_1 = arith.constant 0 : i32
    return %c0_i32, %c0_i32_0 : i32, i32
  }
  func.func @transform_10(%arg0: i32) -> (i32, i32, i32) {
    %c0_i32 = arith.constant 0 : i32
    %c0_i32_0 = arith.constant 0 : i32
    %c0_i32_1 = arith.constant 0 : i32
    return %arg0, %c0_i32, %c0_i32_0 : i32, i32, i32
  }
}

module attributes {stable_mosaic.version = 11 : i64} {
  func.func @_pw_kernel(%arg0: i32, %arg1: memref<2x64xbf16, #tpu.memory_space<vmem>>, %arg2: memref<64x128xbf16, #tpu.memory_space<vmem>>, %arg3: memref<1x128xf32, #tpu.memory_space<vmem>>, %arg4: memref<1x128xf32, #tpu.memory_space<vmem>>, %arg5: memref<2x128xbf16, #tpu.memory_space<vmem>>) attributes {dimension_semantics = [#tpu.dimension_semantics<parallel>], iteration_bounds = array<i64: 1>, scalar_prefetch = 0 : i64, scratch_operands = 0 : i64, tpu.core_type = #tpu.core_type<tc>, window_params = [{transform_indices = @transform_0, window_bounds = array<i64: 2, 64>}, {pipeline_mode = #tpu.pipeline_mode<synchronous>, transform_indices = @transform_1, window_bounds = array<i64: 64, 128>}, {pipeline_mode = #tpu.pipeline_mode<synchronous>, transform_indices = @transform_2, window_bounds = array<i64: 1, 128>}, {pipeline_mode = #tpu.pipeline_mode<synchronous>, transform_indices = @transform_3, window_bounds = array<i64: 1, 128>}, {transform_indices = @transform_4, window_bounds = array<i64: 2, 128>}]} {
    %c0 = arith.constant 0 : index
    %c0_0 = arith.constant 0 : index
    %0 = vector.load %arg1[%c0, %c0_0] : memref<2x64xbf16, #tpu.memory_space<vmem>>, vector<2x64xbf16>
    %c0_1 = arith.constant 0 : index
    %c0_2 = arith.constant 0 : index
    %1 = vector.load %arg2[%c0_1, %c0_2] : memref<64x128xbf16, #tpu.memory_space<vmem>>, vector<64x128xbf16>
    %cst = arith.constant dense<0.000000e+00> : vector<2x128xf32>
    %2 = tpu.matmul %0, %1, %cst {dimension_numbers = #tpu.dot_dimension_numbers<[1], [0], [0], [1], [0, 0, 1, 1], [], []>} : vector<2x64xbf16>, vector<64x128xbf16>, vector<2x128xf32> -> vector<2x128xf32>
    %c0_3 = arith.constant 0 : index
    %c0_4 = arith.constant 0 : index
    %3 = vector.load %arg3[%c0_3, %c0_4] : memref<1x128xf32, #tpu.memory_space<vmem>>, vector<1x128xf32>
    %4 = vector.broadcast %3 : vector<1x128xf32> to vector<2x128xf32>
    %5 = arith.mulf %2, %4 : vector<2x128xf32>
    %c0_5 = arith.constant 0 : index
    %c0_6 = arith.constant 0 : index
    %6 = vector.load %arg4[%c0_5, %c0_6] : memref<1x128xf32, #tpu.memory_space<vmem>>, vector<1x128xf32>
    %7 = vector.broadcast %6 : vector<1x128xf32> to vector<2x128xf32>
    %8 = arith.addf %5, %7 : vector<2x128xf32>
    %cst_7 = arith.constant 0.000000e+00 : f32
    %9 = vector.broadcast %cst_7 : f32 to vector<2x128xf32>
    %10 = arith.maximumf %8, %9 : vector<2x128xf32>
    %11 = arith.truncf %10 : vector<2x128xf32> to vector<2x128xbf16>
    %c0_8 = arith.constant 0 : index
    %c0_9 = arith.constant 0 : index
    %12 = vector.load %arg5[%c0_8, %c0_9] : memref<2x128xbf16, #tpu.memory_space<vmem>>, vector<2x128xbf16>
    tpu.vector_store %arg5[%c0_8, %c0_9], %11 {strides = array<i32>} : memref<2x128xbf16, #tpu.memory_space<vmem>>, vector<2x128xbf16>,
    return
  }
  func.func @transform_0(%arg0: i32) -> (i32, i32) {
    %c0_i32 = arith.constant 0 : i32
    %c0_i32_0 = arith.constant 0 : i32
    return %arg0, %c0_i32 : i32, i32
  }
  func.func @transform_1(%arg0: i32) -> (i32, i32) {
    %c0_i32 = arith.constant 0 : i32
    %c0_i32_0 = arith.constant 0 : i32
    %c0_i32_1 = arith.constant 0 : i32
    return %c0_i32, %c0_i32_0 : i32, i32
  }
  func.func @transform_2(%arg0: i32) -> (i32, i32) {
    %c0_i32 = arith.constant 0 : i32
    %c0_i32_0 = arith.constant 0 : i32
    %c0_i32_1 = arith.constant 0 : i32
    return %c0_i32, %c0_i32_0 : i32, i32
  }
  func.func @transform_3(%arg0: i32) -> (i32, i32) {
    %c0_i32 = arith.constant 0 : i32
    %c0_i32_0 = arith.constant 0 : i32
    %c0_i32_1 = arith.constant 0 : i32
    return %c0_i32, %c0_i32_0 : i32, i32
  }
  func.func @transform_4(%arg0: i32) -> (i32, i32) {
    %c0_i32 = arith.constant 0 : i32
    %c0_i32_0 = arith.constant 0 : i32
    return %arg0, %c0_i32 : i32, i32
  }
}

module attributes {stable_mosaic.version = 11 : i64} {
  func.func @_head_kernel(%arg0: i32, %arg1: memref<2x1x128xbf16, #tpu.memory_space<vmem>>, %arg2: memref<128x128xbf16, #tpu.memory_space<vmem>>, %arg3: memref<1x128xf32, #tpu.memory_space<vmem>>, %arg4: memref<2x128xf32, #tpu.memory_space<vmem>>) attributes {dimension_semantics = [#tpu.dimension_semantics<arbitrary>], iteration_bounds = array<i64: 1>, scalar_prefetch = 0 : i64, scratch_operands = 0 : i64, tpu.core_type = #tpu.core_type<tc>, window_params = [{pipeline_mode = #tpu.pipeline_mode<synchronous>, transform_indices = @transform_0, window_bounds = array<i64: 2, 1, 128>}, {pipeline_mode = #tpu.pipeline_mode<synchronous>, transform_indices = @transform_1, window_bounds = array<i64: 128, 128>}, {pipeline_mode = #tpu.pipeline_mode<synchronous>, transform_indices = @transform_2, window_bounds = array<i64: 1, 128>}, {pipeline_mode = #tpu.pipeline_mode<synchronous>, transform_indices = @transform_3, window_bounds = array<i64: 2, 128>}]} {
    %c0 = arith.constant 0 : index
    %c0_0 = arith.constant 0 : index
    %c0_1 = arith.constant 0 : index
    %0 = vector.load %arg1[%c0, %c0_0, %c0_1] : memref<2x1x128xbf16, #tpu.memory_space<vmem>>, vector<2x1x128xbf16>
    %1 = arith.extf %0 : vector<2x1x128xbf16> to vector<2x1x128xf32>
    %cst = arith.constant dense<0.000000e+00> : vector<2x128xf32>
    %2 = vector.multi_reduction <add>, %1, %cst [1] : vector<2x1x128xf32> to vector<2x128xf32>
    %cst_2 = arith.constant 1.000000e+00 : f32
    %3 = vector.broadcast %cst_2 : f32 to vector<2x128xf32>
    %4 = arith.divf %2, %3 : vector<2x128xf32>
    %5 = arith.truncf %4 : vector<2x128xf32> to vector<2x128xbf16>
    %c0_3 = arith.constant 0 : index
    %c0_4 = arith.constant 0 : index
    %6 = vector.load %arg2[%c0_3, %c0_4] : memref<128x128xbf16, #tpu.memory_space<vmem>>, vector<128x128xbf16>
    %cst_5 = arith.constant dense<0.000000e+00> : vector<2x128xf32>
    %7 = tpu.matmul %5, %6, %cst_5 {dimension_numbers = #tpu.dot_dimension_numbers<[1], [0], [0], [1], [0, 0, 1, 1], [], []>} : vector<2x128xbf16>, vector<128x128xbf16>, vector<2x128xf32> -> vector<2x128xf32>
    %c0_6 = arith.constant 0 : index
    %c0_7 = arith.constant 0 : index
    %8 = vector.load %arg3[%c0_6, %c0_7] : memref<1x128xf32, #tpu.memory_space<vmem>>, vector<1x128xf32>
    %9 = vector.broadcast %8 : vector<1x128xf32> to vector<2x128xf32>
    %10 = arith.addf %7, %9 : vector<2x128xf32>
    %c0_8 = arith.constant 0 : index
    %c0_9 = arith.constant 0 : index
    %11 = vector.load %arg4[%c0_8, %c0_9] : memref<2x128xf32, #tpu.memory_space<vmem>>, vector<2x128xf32>
    tpu.vector_store %arg4[%c0_8, %c0_9], %10 {strides = array<i32>} : memref<2x128xf32, #tpu.memory_space<vmem>>, vector<2x128xf32>,
    return
  }
  func.func @transform_0(%arg0: i32) -> (i32, i32, i32) {
    %c0_i32 = arith.constant 0 : i32
    %c0_i32_0 = arith.constant 0 : i32
    %c0_i32_1 = arith.constant 0 : i32
    %c0_i32_2 = arith.constant 0 : i32
    return %c0_i32, %c0_i32_0, %c0_i32_1 : i32, i32, i32
  }
  func.func @transform_1(%arg0: i32) -> (i32, i32) {
    %c0_i32 = arith.constant 0 : i32
    %c0_i32_0 = arith.constant 0 : i32
    %c0_i32_1 = arith.constant 0 : i32
    return %c0_i32, %c0_i32_0 : i32, i32
  }
  func.func @transform_2(%arg0: i32) -> (i32, i32) {
    %c0_i32 = arith.constant 0 : i32
    %c0_i32_0 = arith.constant 0 : i32
    %c0_i32_1 = arith.constant 0 : i32
    return %c0_i32, %c0_i32_0 : i32, i32
  }
  func.func @transform_3(%arg0: i32) -> (i32, i32) {
    %c0_i32 = arith.constant 0 : i32
    %c0_i32_0 = arith.constant 0 : i32
    %c0_i32_1 = arith.constant 0 : i32
    return %c0_i32, %c0_i32_0 : i32, i32
  }
}

</mosaic_0001>

<llo_original>
// kernel: _lambda_.16
$region0: #{_lambda_.16}
  #allocation0 [shape = 'u32[]', space=smem, size = 0x4, offset = 0x4, fixed_abs, tag = 'smem constant byte address 0x4 - core index']
  #allocation1 [shape = 'u32[144,128]{1,0:T(1,128)}', space=vmem, size = 0x12000, scoped, tag = 'internal scratch']
  %s0 = inlined_call_operand.vmem [shape: bf16[512,27], index: 0, kind: input, shape index: {}]
  %s1 = inlined_call_operand.vmem [shape: bf16[27,8], index: 1, kind: input, shape index: {}]
  %s2 = inlined_call_operand.vmem [shape: f32[1,8], index: 2, kind: input, shape index: {}]
  %s3 = inlined_call_operand.vmem [shape: f32[1,8], index: 3, kind: input, shape index: {}]
  %s4 = inlined_call_operand.vmem [shape: bf16[512,8], index: 4, kind: output, shape index: {}]
  %s5 = sld [smem:[#allocation0]]
  $region49: #{_lambda_.16} parent=0
    _
  %s7 = ssub.s32 1, %s5
  %s8 = scalar_select 0, %s7, %s5
  loop: start=0, step=1, limit=4
  $region2: #{_lambda_.16} parent=0 // loop_pre_header
    _
  $region3: #{_lambda_.16} parent=0 // loop_header
    %s10 = sphi 0, %s14
    %p11 = scmp.ge.s32.totalorder %s10, 4
    %s20 = sphi 0, %s22
    %s23 = sphi 0, %s20
    %s24 = sphi 0, %s23
    %s40 = sphi 0, %s24
    %s44 = sphi 0, %s44
    %s46 = sphi 0, %s44
    %s47 = sphi 0, %s46
    %s61 = sphi 0, %s47
    %s65 = sphi 0, %s65
    %s67 = sphi 0, %s65
    %s68 = sphi 0, %s67
    %s82 = sphi 0, %s68
    %s86 = sphi 0, %s86
    %s88 = sphi 0, %s86
    %s89 = sphi 0, %s88
    %s103 = sphi 0, %s89
    %s109 = sphi 0, %s111
    %s112 = sphi 0, %s109
    %s113 = sphi 0, %s112
    %s129 = sphi 0, %s113
  $region4: #{_lambda_.16} parent=0 // loop_header_branch
    %13 = sbr.rel (%p11) target = $region8
  $region5: #{_lambda_.16} parent=0 // loop_body
    %s15 = ssub.s32 %s10, 1
    %s16 = ssub.s32 %s10, 2
    %s17 = sadd.s32 %s10, 1
    %s18 = ssub.s32 %s10, %s17
    %p19 = scmp.eq.s32.totalorder %s18, 0
    %s21 = sadd.s32 %s20, 1
    %s22 = scalar_select %p19, %s20, %s21
    %p25 = pneg %p19
    %p26 = scmp.eq.s32.totalorder %s10, 1
    %p27 = por %p25, %p26
    %p28 = scmp.ne.s32.totalorder %s20, %s23
    %p29 = scmp.eq.s32.totalorder %s10, 0
    %p30 = por %p28, %p29
    %p31 = scmp.ne.s32.totalorder %s20, %s23
    %p32 = scmp.eq.s32.totalorder %s15, 1
    %p33 = por %p31, %p32
    %p34 = scmp.ne.s32.totalorder %s23, %s24
    %p35 = scmp.eq.s32.totalorder %s15, 0
    %p36 = por %p34, %p35
    %p37 = scmp.ne.s32.totalorder %s23, %s24
    %p38 = scmp.eq.s32.totalorder %s16, 1
    %p39 = por %p37, %p38
    %p41 = scmp.ne.s32.totalorder %s24, %s40
    %p42 = scmp.eq.s32.totalorder %s16, 0
    %p43 = por %p41, %p42
    %s45 = sadd.s32 %s44, 1
    %p48 = scmp.eq.s32.totalorder %s10, 1
    %p49 = scmp.ne.s32.totalorder %s44, %s46
    %p50 = scmp.eq.s32.totalorder %s10, 0
    %p51 = por %p49, %p50
    %p52 = scmp.ne.s32.totalorder %s44, %s46
    %p53 = scmp.eq.s32.totalorder %s15, 1
    %p54 = por %p52, %p53
    %p55 = scmp.ne.s32.totalorder %s46, %s47
    %p56 = scmp.eq.s32.totalorder %s15, 0
    %p57 = por %p55, %p56
    %p58 = scmp.ne.s32.totalorder %s46, %s47
    %p59 = scmp.eq.s32.totalorder %s16, 1
    %p60 = por %p58, %p59
    %p62 = scmp.ne.s32.totalorder %s47, %s61
    %p63 = scmp.eq.s32.totalorder %s16, 0
    %p64 = por %p62, %p63
    %s66 = sadd.s32 %s65, 1
    %p69 = scmp.eq.s32.totalorder %s10, 1
    %p70 = scmp.ne.s32.totalorder %s65, %s67
    %p71 = scmp.eq.s32.totalorder %s10, 0
    %p72 = por %p70, %p71
    %p73 = scmp.ne.s32.totalorder %s65, %s67
    %p74 = scmp.eq.s32.totalorder %s15, 1
    %p75 = por %p73, %p74
    %p76 = scmp.ne.s32.totalorder %s67, %s68
    %p77 = scmp.eq.s32.totalorder %s15, 0
    %p78 = por %p76, %p77
    %p79 = scmp.ne.s32.totalorder %s67, %s68
    %p80 = scmp.eq.s32.totalorder %s16, 1
    %p81 = por %p79, %p80
    %p83 = scmp.ne.s32.totalorder %s68, %s82
    %p84 = scmp.eq.s32.totalorder %s16, 0
    %p85 = por %p83, %p84
    %s87 = sadd.s32 %s86, 1
    %p90 = scmp.eq.s32.totalorder %s10, 1
    %p91 = scmp.ne.s32.totalorder %s86, %s88
    %p92 = scmp.eq.s32.totalorder %s10, 0
    %p93 = por %p91, %p92
    %p94 = scmp.ne.s32.totalorder %s86, %s88
    %p95 = scmp.eq.s32.totalorder %s15, 1
    %p96 = por %p94, %p95
    %p97 = scmp.ne.s32.totalorder %s88, %s89
    %p98 = scmp.eq.s32.totalorder %s15, 0
    %p99 = por %p97, %p98
    %p100 = scmp.ne.s32.totalorder %s88, %s89
    %p101 = scmp.eq.s32.totalorder %s16, 1
    %p102 = por %p100, %p101
    %p104 = scmp.ne.s32.totalorder %s89, %s103
    %p105 = scmp.eq.s32.totalorder %s16, 0
    %p106 = por %p104, %p105
    %s107 = ssub.s32 %s10, %s17
    %p108 = scmp.eq.s32.totalorder %s107, 0
    %s110 = sadd.s32 %s109, 1
    %s111 = scalar_select %p108, %s109, %s110
    %p114 = pneg %p108
    %p115 = scmp.eq.s32.totalorder %s10, 1
    %p116 = por %p114, %p115
    %p117 = scmp.ne.s32.totalorder %s109, %s112
    %p118 = scmp.eq.s32.totalorder %s10, 0
    %p119 = por %p117, %p118
    %p120 = scmp.ne.s32.totalorder %s109, %s112
    %p121 = scmp.eq.s32.totalorder %s15, 1
    %p122 = por %p120, %p121
    %p123 = scmp.ne.s32.totalorder %s112, %s113
    %p124 = scmp.eq.s32.totalorder %s15, 0
    %p125 = por %p123, %p124
    %p126 = scmp.ne.s32.totalorder %s112, %s113
    %p127 = scmp.eq.s32.totalorder %s16, 1
    %p128 = por %p126, %p127
    %p130 = scmp.ne.s32.totalorder %s113, %s129
    %p131 = scmp.eq.s32.totalorder %s16, 0
    %p132 = por %p130, %p131
    %p133 = scmp.le.s32.totalorder 1, %s10
    %p134 = scmp.lt.s32.totalorder %s10, 3
    %p135 = pnand %p133, %p134
    %p136 = pneg %p135
    // Predicated region
    $region9: #{_lambda_.16} parent=5 // pred_check
      _
    $region10: #{_lambda_.16} parent=5 // pred_check_branch
      %138 = sbr.rel (%p135) target = $region12
    $region11: #{_lambda_.16} parent=5 // pred_region
      %s139 = ssub.s32 %s10, 1
      // Predicated region
      $region13: #{_lambda_.16} parent=11 // pred_check
        %p140 = pneg %p57
      $region14: #{_lambda_.16} parent=11 // pred_check_branch
        %142 = sbr.rel (%p140) target = $region16
      $region15: #{_lambda_.16} parent=11 // pred_region
        _
      $region16: #{_lambda_.16} parent=11 // pred_fallthru
        _
      // Predicated region
      $region17: #{_lambda_.16} parent=11 // pred_check
        %p143 = pneg %p78
      $region18: #{_lambda_.16} parent=11 // pred_check_branch
        %145 = sbr.rel (%p143) target = $region20
      $region19: #{_lambda_.16} parent=11 // pred_region
        _
      $region20: #{_lambda_.16} parent=11 // pred_fallthru
        _
      // Predicated region
      $region21: #{_lambda_.16} parent=11 // pred_check
        %p146 = pneg %p99
      $region22: #{_lambda_.16} parent=11 // pred_check_branch
        %148 = sbr.rel (%p146) target = $region24
      $region23: #{_lambda_.16} parent=11 // pred_region
        _
      $region24: #{_lambda_.16} parent=11 // pred_fallthru
        _
    $region12: #{_lambda_.16} parent=5 // pred_fallthru
      _
    %p149 = scmp.lt.s32.totalorder %s10, 2
    // Predicated region
    $region25: #{_lambda_.16} parent=5 // pred_check
      %p150 = pneg %p149
    $region26: #{_lambda_.16} parent=5 // pred_check_branch
      %152 = sbr.rel (%p150) target = $region28
    $region27: #{_lambda_.16} parent=5 // pred_region
      // Predicated region
      $region29: #{_lambda_.16} parent=27 // pred_check
        %p153 = pneg %p30
      $region30: #{_lambda_.16} parent=27 // pred_check_branch
        %155 = sbr.rel (%p153) target = $region32
      $region31: #{_lambda_.16} parent=27 // pred_region
        %s156 = smul.u32 32, %s10
        %p157 = scmp.lt.s32.totalorder %s156, 63
        %s158 = scalar_select %p157, %s156, 63
        %s159 = smul.addr %s158, 4
        %s160 = scalar_lea.vmem %s0, %s159
        %s161 = smul.u32 32, %s10
      $region32: #{_lambda_.16} parent=27 // pred_fallthru
        _
    $region28: #{_lambda_.16} parent=5 // pred_fallthru
      _
    %p162 = scmp.le.s32.totalorder 1, %s10
    %p163 = scmp.lt.s32.totalorder %s10, 3
    %p164 = pnand %p162, %p163
    %p165 = pneg %p164
    // Predicated region
    $region33: #{_lambda_.16} parent=5 // pred_check
      _
    $region34: #{_lambda_.16} parent=5 // pred_check_branch
      %167 = sbr.rel (%p164) target = $region36
    $region35: #{_lambda_.16} parent=5 // pred_region
      %s168 = ssub.s32 %s10, 1
      %s169 = smul.u32 32, %s15
      %p170 = scmp.lt.s32.totalorder %s169, 63
      %s171 = scalar_select %p170, %s169, 63
      %s172 = smul.addr %s171, 4
      %s173 = scalar_lea.vmem %s0, %s172
      %p174 = pneg %p36
      %p175 = pneg %p33
      %p176 = pneg %p57
      %p177 = pneg %p54
      %p178 = pneg %p78
      %p179 = pneg %p75
      %p180 = pneg %p99
      %p181 = pneg %p96
      %p182 = pneg %p125
      %p183 = pneg %p122
      %s184 = smul.u32 32, %s15
      %p185 = scmp.lt.s32.totalorder %s184, 63
      %s186 = scalar_select %p185, %s184, 63
      %s187 = smul.addr %s186, 4
      %s188 = scalar_lea.vmem %s4, %s187
      %s189 = smul.u32 32, %s15
      %p190 = scmp.lt.s32.totalorder %s189, 63
      %s191 = scalar_select %p190, %s189, 63
      %s192 = smul.addr %s191, 4
      %s193 = scalar_lea.vmem %s0, %s192
      %s194 = smul.u32 32, %s15
      %s195 = smul.u32 32, %s15
      %p196 = scmp.lt.s32.totalorder %s195, 63
      %s197 = scalar_select %p196, %s195, 63
      %s198 = smul.addr %s197, 4
      %s199 = scalar_lea.vmem %s4, %s198
      %s200 = smul.u32 32, %s15
      %v202 = vld [vmem:[%s193] sm:$0xf]
      %v203 = vld [vmem:[%s193 + $0x4] sm:$0xf]
      %v204 = vld [vmem:[%s193 + $0x8] sm:$0xf]
      %v205 = vld [vmem:[%s193 + $0xc] sm:$0xf]
      %v206 = vld [vmem:[%s193 + $0x10] sm:$0xf]
      %v207 = vld [vmem:[%s193 + $0x14] sm:$0xf]
      %v208 = vld [vmem:[%s193 + $0x18] sm:$0xf]
      %v209 = vld [vmem:[%s193 + $0x1c] sm:$0xf]
      %v210 = vld [vmem:[%s193 + $0x20] sm:$0xf]
      %v211 = vld [vmem:[%s193 + $0x24] sm:$0xf]
      %v212 = vld [vmem:[%s193 + $0x28] sm:$0xf]
      %v213 = vld [vmem:[%s193 + $0x2c] sm:$0xf]
      %v214 = vld [vmem:[%s193 + $0x30] sm:$0xf]
      %v215 = vld [vmem:[%s193 + $0x34] sm:$0xf]
      %v216 = vld [vmem:[%s193 + $0x38] sm:$0xf]
      %v217 = vld [vmem:[%s193 + $0x3c] sm:$0xf]
      %v218 = vld [vmem:[%s193 + $0x40] sm:$0xf]
      %v219 = vld [vmem:[%s193 + $0x44] sm:$0xf]
      %v220 = vld [vmem:[%s193 + $0x48] sm:$0xf]
      %v221 = vld [vmem:[%s193 + $0x4c] sm:$0xf]
      %v222 = vld [vmem:[%s193 + $0x50] sm:$0xf]
      %v223 = vld [vmem:[%s193 + $0x54] sm:$0xf]
      %v224 = vld [vmem:[%s193 + $0x58] sm:$0xf]
      %v225 = vld [vmem:[%s193 + $0x5c] sm:$0xf]
      %v226 = vld [vmem:[%s193 + $0x60] sm:$0xf]
      %v227 = vld [vmem:[%s193 + $0x64] sm:$0xf]
      %v228 = vld [vmem:[%s193 + $0x68] sm:$0xf]
      %v229 = vld [vmem:[%s193 + $0x6c] sm:$0xf]
      %v230 = vld [vmem:[%s193 + $0x70] sm:$0xf]
      %v231 = vld [vmem:[%s193 + $0x74] sm:$0xf]
      %v232 = vld [vmem:[%s193 + $0x78] sm:$0xf]
      %v233 = vld [vmem:[%s193 + $0x7c] sm:$0xf]
      %v234 = vld [vmem:[%s1] sm:$0xf]
      %v235 = vld [vmem:[%s1 + $0x4] sm:$0xf]
      %v236 = vld [vmem:[%s1 + $0x8] sm:$0xf]
      %v237 = vld [vmem:[%s1 + $0xc] sm:$0x3]
      %v270 = vunpack.c.l.b16 %v202
      %v271 = vunpack.c.l.b16 %v203
      %v272 = vunpack.c.l.b16 %v204
      %v273 = vunpack.c.l.b16 %v205
      %v274 = vunpack.c.l.b16 %v206
      %v275 = vunpack.c.l.b16 %v207
      %v276 = vunpack.c.l.b16 %v208
      %v277 = vunpack.c.l.b16 %v209
      %v278 = vunpack.c.l.b16 %v210
      %v279 = vunpack.c.l.b16 %v211
      %v280 = vunpack.c.l.b16 %v212
      %v281 = vunpack.c.l.b16 %v213
      %v282 = vunpack.c.l.b16 %v214
      %v283 = vunpack.c.l.b16 %v215
      %v284 = vunpack.c.l.b16 %v216
      %v285 = vunpack.c.l.b16 %v217
      %v286 = vunpack.c.l.b16 %v218
      %v287 = vunpack.c.l.b16 %v219
      %v288 = vunpack.c.l.b16 %v220
      %v289 = vunpack.c.l.b16 %v221
      %v290 = vunpack.c.l.b16 %v222
      %v291 = vunpack.c.l.b16 %v223
      %v292 = vunpack.c.l.b16 %v224
      %v293 = vunpack.c.l.b16 %v225
      %v294 = vunpack.c.l.b16 %v226
      %v295 = vunpack.c.l.b16 %v227
      %v296 = vunpack.c.l.b16 %v228
      %v297 = vunpack.c.l.b16 %v229
      %v298 = vunpack.c.l.b16 %v230
      %v299 = vunpack.c.l.b16 %v231
      %v300 = vunpack.c.l.b16 %v232
      %v301 = vunpack.c.l.b16 %v233
      %v302 = vpack.c.b16 %v271, %v270
      %v303 = vpack.c.b16 %v273, %v272
      %v304 = vpack.c.b16 %v275, %v274
      %v305 = vpack.c.b16 %v277, %v276
      %v306 = vpack.c.b16 %v279, %v278
      %v307 = vpack.c.b16 %v281, %v280
      %v308 = vpack.c.b16 %v283, %v282
      %v309 = vpack.c.b16 %v285, %v284
      %v310 = vpack.c.b16 %v287, %v286
      %v311 = vpack.c.b16 %v289, %v288
      %v312 = vpack.c.b16 %v291, %v290
      %v313 = vpack.c.b16 %v293, %v292
      %v314 = vpack.c.b16 %v295, %v294
      %v315 = vpack.c.b16 %v297, %v296
      %v316 = vpack.c.b16 %v299, %v298
      %v317 = vpack.c.b16 %v301, %v300
      %v322 = vunpack.c.l.b16 %v234
      %v323 = vunpack.c.l.b16 %v235
      %v324 = vunpack.c.l.b16 %v236
      %v325 = vunpack.c.l.b16 %v237
      %v326 = vpack.c.b16 %v323, %v322
      %v327 = vpack.c.b16 %v325, %v324
      %vm329 = vcmask 220160
      %v331 = vsel %vm329, %v302, 0
      %v334 = vsel %vm329, %v303, 0
      %v337 = vsel %vm329, %v304, 0
      %v340 = vsel %vm329, %v305, 0
      %v343 = vsel %vm329, %v306, 0
      %v346 = vsel %vm329, %v307, 0
      %v349 = vsel %vm329, %v308, 0
      %v352 = vsel %vm329, %v309, 0
      %v355 = vsel %vm329, %v310, 0
      %v358 = vsel %vm329, %v311, 0
      %v361 = vsel %vm329, %v312, 0
      %v364 = vsel %vm329, %v313, 0
      %v367 = vsel %vm329, %v314, 0
      %v370 = vsel %vm329, %v315, 0
      %v373 = vsel %vm329, %v316, 0
      %v376 = vsel %vm329, %v317, 0
      %vm378 = vcmask 1044480
      %vm379 = vcmask 1045504
      %v380 = vsel %vm378, 4294967295, 65535
      %v381 = vsel %vm379, %v380, 0
      %v383 = vand.u32 %v327, %v381
      %385 = vmatprep.subr.bf16.mxu0 0
      %386 = vmatpush1.bf16.msra.mxu0 %v326
      %387 = vmatprep.subr.bf16.mxu0 0
      %388 = vmatpush1.bf16.msra.mxu0 %v383
      %389 = vmatprep.subr.bf16.mxu0 0
      %390 = vmatpush1.bf16.msra.mxu0 0
      %391 = vmatprep.subr.bf16.mxu0 0
      %392 = vmatpush1.bf16.msra.mxu0 0
      %393 = vmatprep.subr.bf16.mxu0 0
      %394 = vmatpush1.bf16.msra.mxu0 0
      %395 = vmatprep.subr.bf16.mxu0 0
      %396 = vmatpush1.bf16.msra.mxu0 0
      %397 = vmatprep.subr.bf16.mxu0 0
      %398 = vmatpush1.bf16.msra.mxu0 0
      %399 = vmatprep.subr.bf16.mxu0 0
      %400 = vmatpush1.bf16.msra.mxu0 0
      %401 = vmatprep.subr.bf16.mxu0 0
      %402 = vmatpush1.bf16.msra.mxu0 0
      %403 = vmatprep.subr.bf16.mxu0 0
      %404 = vmatpush1.bf16.msra.mxu0 0
      %405 = vmatprep.subr.bf16.mxu0 0
      %406 = vmatpush1.bf16.msra.mxu0 0
      %407 = vmatprep.subr.bf16.mxu0 0
      %408 = vmatpush1.bf16.msra.mxu0 0
      %409 = vmatprep.subr.bf16.mxu0 0
      %410 = vmatpush1.bf16.msra.mxu0 0
      %411 = vmatprep.subr.bf16.mxu0 0
      %412 = vmatpush1.bf16.msra.mxu0 0
      %413 = vmatprep.subr.bf16.mxu0 0
      %414 = vmatpush1.bf16.msra.mxu0 0
      %415 = vmatprep.subr.bf16.mxu0 0
      %416 = vmatpush1.bf16.msra.mxu0 0
      %417 = vmatprep.mubr.bf16.mxu0 0
      %418 = vmatmul.mubr.bf16.gmra.mrb[0].mxu0 %v331
      %v419 = vpop.f32.mrb[0].mxu0
      %v420 = vadd.f32 0.0, %v419
      %v421 = vpop.f32.mrb[0].mxu0
      %v422 = vpop.f32.mrb[0].mxu0
      %v423 = vadd.f32 0.0, %v422
      %v424 = vpop.f32.mrb[0].mxu0
      %425 = vmatprep.mubr.bf16.mxu0 0
      %426 = vmatmul.mubr.bf16.gmra.mrb[0].mxu0 %v334
      %v427 = vpop.f32.mrb[0].mxu0
      %v428 = vadd.f32 0.0, %v427
      %v429 = vpop.f32.mrb[0].mxu0
      %v430 = vpop.f32.mrb[0].mxu0
      %v431 = vadd.f32 0.0, %v430
      %v432 = vpop.f32.mrb[0].mxu0
      %433 = vmatprep.mubr.bf16.mxu0 0
      %434 = vmatmul.mubr.bf16.gmra.mrb[0].mxu0 %v337
      %v435 = vpop.f32.mrb[0].mxu0
      %v436 = vadd.f32 0.0, %v435
      %v437 = vpop.f32.mrb[0].mxu0
      %v438 = vpop.f32.mrb[0].mxu0
      %v439 = vadd.f32 0.0, %v438
      %v440 = vpop.f32.mrb[0].mxu0
      %441 = vmatprep.mubr.bf16.mxu0 0
      %442 = vmatmul.mubr.bf16.gmra.mrb[0].mxu0 %v340
      %v443 = vpop.f32.mrb[0].mxu0
      %v444 = vadd.f32 0.0, %v443
      %v445 = vpop.f32.mrb[0].mxu0
      %v446 = vpop.f32.mrb[0].mxu0
      %v447 = vadd.f32 0.0, %v446
      %v448 = vpop.f32.mrb[0].mxu0
      %449 = vmatprep.mubr.bf16.mxu0 0
      %450 = vmatmul.mubr.bf16.gmra.mrb[0].mxu0 %v343
      %v451 = vpop.f32.mrb[0].mxu0
      %v452 = vadd.f32 0.0, %v451
      %v453 = vpop.f32.mrb[0].mxu0
      %v454 = vpop.f32.mrb[0].mxu0
      %v455 = vadd.f32 0.0, %v454
      %v456 = vpop.f32.mrb[0].mxu0
      %457 = vmatprep.mubr.bf16.mxu0 0
      %458 = vmatmul.mubr.bf16.gmra.mrb[0].mxu0 %v346
      %v459 = vpop.f32.mrb[0].mxu0
      %v460 = vadd.f32 0.0, %v459
      %v461 = vpop.f32.mrb[0].mxu0
      %v462 = vpop.f32.mrb[0].mxu0
      %v463 = vadd.f32 0.0, %v462
      %v464 = vpop.f32.mrb[0].mxu0
      %465 = vmatprep.mubr.bf16.mxu0 0
      %466 = vmatmul.mubr.bf16.gmra.mrb[0].mxu0 %v349
      %v467 = vpop.f32.mrb[0].mxu0
      %v468 = vadd.f32 0.0, %v467
      %v469 = vpop.f32.mrb[0].mxu0
      %v470 = vpop.f32.mrb[0].mxu0
      %v471 = vadd.f32 0.0, %v470
      %v472 = vpop.f32.mrb[0].mxu0
      %473 = vmatprep.mubr.bf16.mxu0 0
      %474 = vmatmul.mubr.bf16.gmra.mrb[0].mxu0 %v352
      %v475 = vpop.f32.mrb[0].mxu0
      %v476 = vadd.f32 0.0, %v475
      %v477 = vpop.f32.mrb[0].mxu0
      %v478 = vpop.f32.mrb[0].mxu0
      %v479 = vadd.f32 0.0, %v478
      %v480 = vpop.f32.mrb[0].mxu0
      %481 = vmatprep.mubr.bf16.mxu0 0
      %482 = vmatmul.mubr.bf16.gmra.mrb[0].mxu0 %v355
      %v483 = vpop.f32.mrb[0].mxu0
      %v484 = vadd.f32 0.0, %v483
      %v485 = vpop.f32.mrb[0].mxu0
      %v486 = vpop.f32.mrb[0].mxu0
      %v487 = vadd.f32 0.0, %v486
      %v488 = vpop.f32.mrb[0].mxu0
      %489 = vmatprep.mubr.bf16.mxu0 0
      %490 = vmatmul.mubr.bf16.gmra.mrb[0].mxu0 %v358
      %v491 = vpop.f32.mrb[0].mxu0
      %v492 = vadd.f32 0.0, %v491
      %v493 = vpop.f32.mrb[0].mxu0
      %v494 = vpop.f32.mrb[0].mxu0
      %v495 = vadd.f32 0.0, %v494
      %v496 = vpop.f32.mrb[0].mxu0
      %497 = vmatprep.mubr.bf16.mxu0 0
      %498 = vmatmul.mubr.bf16.gmra.mrb[0].mxu0 %v361
      %v499 = vpop.f32.mrb[0].mxu0
      %v500 = vadd.f32 0.0, %v499
      %v501 = vpop.f32.mrb[0].mxu0
      %v502 = vpop.f32.mrb[0].mxu0
      %v503 = vadd.f32 0.0, %v502
      %v504 = vpop.f32.mrb[0].mxu0
      %505 = vmatprep.mubr.bf16.mxu0 0
      %506 = vmatmul.mubr.bf16.gmra.mrb[0].mxu0 %v364
      %v507 = vpop.f32.mrb[0].mxu0
      %v508 = vadd.f32 0.0, %v507
      %v509 = vpop.f32.mrb[0].mxu0
      %v510 = vpop.f32.mrb[0].mxu0
      %v511 = vadd.f32 0.0, %v510
      %v512 = vpop.f32.mrb[0].mxu0
      %513 = vmatprep.mubr.bf16.mxu0 0
      %514 = vmatmul.mubr.bf16.gmra.mrb[0].mxu0 %v367
      %v515 = vpop.f32.mrb[0].mxu0
      %v516 = vadd.f32 0.0, %v515
      %v517 = vpop.f32.mrb[0].mxu0
      %v518 = vpop.f32.mrb[0].mxu0
      %v519 = vadd.f32 0.0, %v518
      %v520 = vpop.f32.mrb[0].mxu0
      %521 = vmatprep.mubr.bf16.mxu0 0
      %522 = vmatmul.mubr.bf16.gmra.mrb[0].mxu0 %v370
      %v523 = vpop.f32.mrb[0].mxu0
      %v524 = vadd.f32 0.0, %v523
      %v525 = vpop.f32.mrb[0].mxu0
      %v526 = vpop.f32.mrb[0].mxu0
      %v527 = vadd.f32 0.0, %v526
      %v528 = vpop.f32.mrb[0].mxu0
      %529 = vmatprep.mubr.bf16.mxu0 0
      %530 = vmatmul.mubr.bf16.gmra.mrb[0].mxu0 %v373
      %v531 = vpop.f32.mrb[0].mxu0
      %v532 = vadd.f32 0.0, %v531
      %v533 = vpop.f32.mrb[0].mxu0
      %v534 = vpop.f32.mrb[0].mxu0
      %v535 = vadd.f32 0.0, %v534
      %v536 = vpop.f32.mrb[0].mxu0
      %537 = vmatprep.mubr.bf16.mxu0 0
      %538 = vmatmul.mubr.bf16.gmra.mrb[0].mxu0 %v376
      %v539 = vpop.f32.mrb[0].mxu0
      %v540 = vadd.f32 0.0, %v539
      %v541 = vpop.f32.mrb[0].mxu0
      %v542 = vpop.f32.mrb[0].mxu0
      %v543 = vadd.f32 0.0, %v542
      %v544 = vpop.f32.mrb[0].mxu0
      %545 = vdwg.mxu0
      %v546 = vld [vmem:[%s2] sm:$0x1]
      %v548 = vlaneseq
      %v549 = vshrl.u32 %v548, 7
      %v550 = vsub.s32 0, %v549
      %v551 = vrot.slane %v546, %v550
      %v553 = vmul.f32 %v420, %v551
      %v554 = vmul.f32 %v423, %v551
      %v555 = vmul.f32 %v428, %v551
      %v556 = vmul.f32 %v431, %v551
      %v557 = vmul.f32 %v436, %v551
      %v558 = vmul.f32 %v439, %v551
      %v559 = vmul.f32 %v444, %v551
      %v560 = vmul.f32 %v447, %v551
      %v561 = vmul.f32 %v452, %v551
      %v562 = vmul.f32 %v455, %v551
      %v563 = vmul.f32 %v460, %v551
      %v564 = vmul.f32 %v463, %v551
      %v565 = vmul.f32 %v468, %v551
      %v566 = vmul.f32 %v471, %v551
      %v567 = vmul.f32 %v476, %v551
      %v568 = vmul.f32 %v479, %v551
      %v569 = vmul.f32 %v484, %v551
      %v570 = vmul.f32 %v487, %v551
      %v571 = vmul.f32 %v492, %v551
      %v572 = vmul.f32 %v495, %v551
      %v573 = vmul.f32 %v500, %v551
      %v574 = vmul.f32 %v503, %v551
      %v575 = vmul.f32 %v508, %v551
      %v576 = vmul.f32 %v511, %v551
      %v577 = vmul.f32 %v516, %v551
      %v578 = vmul.f32 %v519, %v551
      %v579 = vmul.f32 %v524, %v551
      %v580 = vmul.f32 %v527, %v551
      %v581 = vmul.f32 %v532, %v551
      %v582 = vmul.f32 %v535, %v551
      %v583 = vmul.f32 %v540, %v551
      %v584 = vmul.f32 %v543, %v551
      %v585 = vld [vmem:[%s3] sm:$0x1]
      %v587 = vlaneseq
      %v588 = vshrl.u32 %v587, 7
      %v589 = vsub.s32 0, %v588
      %v590 = vrot.slane %v585, %v589
      %v592 = vadd.f32 %v553, %v590
      %v593 = vadd.f32 %v554, %v590
      %v594 = vadd.f32 %v555, %v590
      %v595 = vadd.f32 %v556, %v590
      %v596 = vadd.f32 %v557, %v590
      %v597 = vadd.f32 %v558, %v590
      %v598 = vadd.f32 %v559, %v590
      %v599 = vadd.f32 %v560, %v590
      %v600 = vadd.f32 %v561, %v590
      %v601 = vadd.f32 %v562, %v590
      %v602 = vadd.f32 %v563, %v590
      %v603 = vadd.f32 %v564, %v590
      %v604 = vadd.f32 %v565, %v590
      %v605 = vadd.f32 %v566, %v590
      %v606 = vadd.f32 %v567, %v590
      %v607 = vadd.f32 %v568, %v590
      %v608 = vadd.f32 %v569, %v590
      %v609 = vadd.f32 %v570, %v590
      %v610 = vadd.f32 %v571, %v590
      %v611 = vadd.f32 %v572, %v590
      %v612 = vadd.f32 %v573, %v590
      %v613 = vadd.f32 %v574, %v590
      %v614 = vadd.f32 %v575, %v590
      %v615 = vadd.f32 %v576, %v590
      %v616 = vadd.f32 %v577, %v590
      %v617 = vadd.f32 %v578, %v590
      %v618 = vadd.f32 %v579, %v590
      %v619 = vadd.f32 %v580, %v590
      %v620 = vadd.f32 %v581, %v590
      %v621 = vadd.f32 %v582, %v590
      %v622 = vadd.f32 %v583, %v590
      %v623 = vadd.f32 %v584, %v590
      %v624 = vmax.f32 %v592, 0.0
      %v625 = vmax.f32 %v593, 0.0
      %v626 = vmax.f32 %v594, 0.0
      %v627 = vmax.f32 %v595, 0.0
      %v628 = vmax.f32 %v596, 0.0
      %v629 = vmax.f32 %v597, 0.0
      %v630 = vmax.f32 %v598, 0.0
      %v631 = vmax.f32 %v599, 0.0
      %v632 = vmax.f32 %v600, 0.0
      %v633 = vmax.f32 %v601, 0.0
      %v634 = vmax.f32 %v602, 0.0
      %v635 = vmax.f32 %v603, 0.0
      %v636 = vmax.f32 %v604, 0.0
      %v637 = vmax.f32 %v605, 0.0
      %v638 = vmax.f32 %v606, 0.0
      %v639 = vmax.f32 %v607, 0.0
      %v640 = vmax.f32 %v608, 0.0
      %v641 = vmax.f32 %v609, 0.0
      %v642 = vmax.f32 %v610, 0.0
      %v643 = vmax.f32 %v611, 0.0
      %v644 = vmax.f32 %v612, 0.0
      %v645 = vmax.f32 %v613, 0.0
      %v646 = vmax.f32 %v614, 0.0
      %v647 = vmax.f32 %v615, 0.0
      %v648 = vmax.f32 %v616, 0.0
      %v649 = vmax.f32 %v617, 0.0
      %v650 = vmax.f32 %v618, 0.0
      %v651 = vmax.f32 %v619, 0.0
      %v652 = vmax.f32 %v620, 0.0
      %v653 = vmax.f32 %v621, 0.0
      %v654 = vmax.f32 %v622, 0.0
      %v655 = vmax.f32 %v623, 0.0
      %v656 = vpack.c.bf16 %v625, %v624
      %v657 = vpack.c.bf16 %v627, %v626
      %v658 = vpack.c.bf16 %v629, %v628
      %v659 = vpack.c.bf16 %v631, %v630
      %v660 = vpack.c.bf16 %v633, %v632
      %v661 = vpack.c.bf16 %v635, %v634
      %v662 = vpack.c.bf16 %v637, %v636
      %v663 = vpack.c.bf16 %v639, %v638
      %v664 = vpack.c.bf16 %v641, %v640
      %v665 = vpack.c.bf16 %v643, %v642
      %v666 = vpack.c.bf16 %v645, %v644
      %v667 = vpack.c.bf16 %v647, %v646
      %v668 = vpack.c.bf16 %v649, %v648
      %v669 = vpack.c.bf16 %v651, %v650
      %v670 = vpack.c.bf16 %v653, %v652
      %v671 = vpack.c.bf16 %v655, %v654
      %v688 = vunpack.c.l.b16 %v656
      %v689 = vunpack.c.h.b16 %v656
      %v690 = vunpack.c.l.b16 %v657
      %v691 = vunpack.c.h.b16 %v657
      %v692 = vunpack.c.l.b16 %v658
      %v693 = vunpack.c.h.b16 %v658
      %v694 = vunpack.c.l.b16 %v659
      %v695 = vunpack.c.h.b16 %v659
      %v696 = vunpack.c.l.b16 %v660
      %v697 = vunpack.c.h.b16 %v660
      %v698 = vunpack.c.l.b16 %v661
      %v699 = vunpack.c.h.b16 %v661
      %v700 = vunpack.c.l.b16 %v662
      %v701 = vunpack.c.h.b16 %v662
      %v702 = vunpack.c.l.b16 %v663
      %v703 = vunpack.c.h.b16 %v663
      %v704 = vunpack.c.l.b16 %v664
      %v705 = vunpack.c.h.b16 %v664
      %v706 = vunpack.c.l.b16 %v665
      %v707 = vunpack.c.h.b16 %v665
      %v708 = vunpack.c.l.b16 %v666
      %v709 = vunpack.c.h.b16 %v666
      %v710 = vunpack.c.l.b16 %v667
      %v711 = vunpack.c.h.b16 %v667
      %v712 = vunpack.c.l.b16 %v668
      %v713 = vunpack.c.h.b16 %v668
      %v714 = vunpack.c.l.b16 %v669
      %v715 = vunpack.c.h.b16 %v669
      %v716 = vunpack.c.l.b16 %v670
      %v717 = vunpack.c.h.b16 %v670
      %v718 = vunpack.c.l.b16 %v671
      %v719 = vunpack.c.h.b16 %v671
      %v720 = vpack.c.b16 %v688, %v688
      %v721 = vpack.c.b16 %v689, %v689
      %v722 = vpack.c.b16 %v690, %v690
      %v723 = vpack.c.b16 %v691, %v691
      %v724 = vpack.c.b16 %v692, %v692
      %v725 = vpack.c.b16 %v693, %v693
      %v726 = vpack.c.b16 %v694, %v694
      %v727 = vpack.c.b16 %v695, %v695
      %v728 = vpack.c.b16 %v696, %v696
      %v729 = vpack.c.b16 %v697, %v697
      %v730 = vpack.c.b16 %v698, %v698
      %v731 = vpack.c.b16 %v699, %v699
      %v732 = vpack.c.b16 %v700, %v700
      %v733 = vpack.c.b16 %v701, %v701
      %v734 = vpack.c.b16 %v702, %v702
      %v735 = vpack.c.b16 %v703, %v703
      %v736 = vpack.c.b16 %v704, %v704
      %v737 = vpack.c.b16 %v705, %v705
      %v738 = vpack.c.b16 %v706, %v706
      %v739 = vpack.c.b16 %v707, %v707
      %v740 = vpack.c.b16 %v708, %v708
      %v741 = vpack.c.b16 %v709, %v709
      %v742 = vpack.c.b16 %v710, %v710
      %v743 = vpack.c.b16 %v711, %v711
      %v744 = vpack.c.b16 %v712, %v712
      %v745 = vpack.c.b16 %v713, %v713
      %v746 = vpack.c.b16 %v714, %v714
      %v747 = vpack.c.b16 %v715, %v715
      %v748 = vpack.c.b16 %v716, %v716
      %v749 = vpack.c.b16 %v717, %v717
      %v750 = vpack.c.b16 %v718, %v718
      %v751 = vpack.c.b16 %v719, %v719
      %vm784 = vcmask 60416
      %785 = vst.msk [vmem:[%s199] sm:$0xf] %vm784, %v720
      %786 = vst.msk [vmem:[%s199 + $0x4] sm:$0xf] %vm784, %v721
      %787 = vst.msk [vmem:[%s199 + $0x8] sm:$0xf] %vm784, %v722
      %788 = vst.msk [vmem:[%s199 + $0xc] sm:$0xf] %vm784, %v723
      %789 = vst.msk [vmem:[%s199 + $0x10] sm:$0xf] %vm784, %v724
      %790 = vst.msk [vmem:[%s199 + $0x14] sm:$0xf] %vm784, %v725
      %791 = vst.msk [vmem:[%s199 + $0x18] sm:$0xf] %vm784, %v726
      %792 = vst.msk [vmem:[%s199 + $0x1c] sm:$0xf] %vm784, %v727
      %793 = vst.msk [vmem:[%s199 + $0x20] sm:$0xf] %vm784, %v728
      %794 = vst.msk [vmem:[%s199 + $0x24] sm:$0xf] %vm784, %v729
      %795 = vst.msk [vmem:[%s199 + $0x28] sm:$0xf] %vm784, %v730
      %796 = vst.msk [vmem:[%s199 + $0x2c] sm:$0xf] %vm784, %v731
      %797 = vst.msk [vmem:[%s199 + $0x30] sm:$0xf] %vm784, %v732
      %798 = vst.msk [vmem:[%s199 + $0x34] sm:$0xf] %vm784, %v733
      %799 = vst.msk [vmem:[%s199 + $0x38] sm:$0xf] %vm784, %v734
      %800 = vst.msk [vmem:[%s199 + $0x3c] sm:$0xf] %vm784, %v735
      %801 = vst.msk [vmem:[%s199 + $0x40] sm:$0xf] %vm784, %v736
      %802 = vst.msk [vmem:[%s199 + $0x44] sm:$0xf] %vm784, %v737
      %803 = vst.msk [vmem:[%s199 + $0x48] sm:$0xf] %vm784, %v738
      %804 = vst.msk [vmem:[%s199 + $0x4c] sm:$0xf] %vm784, %v739
      %805 = vst.msk [vmem:[%s199 + $0x50] sm:$0xf] %vm784, %v740
      %806 = vst.msk [vmem:[%s199 + $0x54] sm:$0xf] %vm784, %v741
      %807 = vst.msk [vmem:[%s199 + $0x58] sm:$0xf] %vm784, %v742
      %808 = vst.msk [vmem:[%s199 + $0x5c] sm:$0xf] %vm784, %v743
      %809 = vst.msk [vmem:[%s199 + $0x60] sm:$0xf] %vm784, %v744
      %810 = vst.msk [vmem:[%s199 + $0x64] sm:$0xf] %vm784, %v745
      %811 = vst.msk [vmem:[%s199 + $0x68] sm:$0xf] %vm784, %v746
      %812 = vst.msk [vmem:[%s199 + $0x6c] sm:$0xf] %vm784, %v747
      %813 = vst.msk [vmem:[%s199 + $0x70] sm:$0xf] %vm784, %v748
      %814 = vst.msk [vmem:[%s199 + $0x74] sm:$0xf] %vm784, %v749
      %815 = vst.msk [vmem:[%s199 + $0x78] sm:$0xf] %vm784, %v750
      %816 = vst.msk [vmem:[%s199 + $0x7c] sm:$0xf] %vm784, %v751
      %s817 = smul.u32 32, %s15
      %p818 = scmp.lt.s32.totalorder %s817, 63
      %s819 = scalar_select %p818, %s817, 63
      %s820 = smul.addr %s819, 4
      %s821 = scalar_lea.vmem %s4, %s820
      // Predicated region
      $region37: #{_lambda_.16} parent=35 // pred_check
        %p822 = pneg %p122
      $region38: #{_lambda_.16} parent=35 // pred_check_branch
        %824 = sbr.rel (%p822) target = $region40
      $region39: #{_lambda_.16} parent=35 // pred_region
        %s825 = smul.u32 32, %s15
      $region40: #{_lambda_.16} parent=35 // pred_fallthru
        _
    $region36: #{_lambda_.16} parent=5 // pred_fallthru
      _
    %p826 = scmp.le.s32.totalorder 2, %s10
    // Predicated region
    $region41: #{_lambda_.16} parent=5 // pred_check
      %p827 = pneg %p826
    $region42: #{_lambda_.16} parent=5 // pred_check_branch
      %829 = sbr.rel (%p827) target = $region44
    $region43: #{_lambda_.16} parent=5 // pred_region
      %s830 = ssub.s32 %s10, 2
      // Predicated region
      $region45: #{_lambda_.16} parent=43 // pred_check
        %p831 = pneg %p128
      $region46: #{_lambda_.16} parent=43 // pred_check_branch
        %833 = sbr.rel (%p831) target = $region48
      $region47: #{_lambda_.16} parent=43 // pred_region
        %s834 = smul.u32 32, %s16
        %p835 = scmp.lt.s32.totalorder %s834, 63
        %s836 = scalar_select %p835, %s834, 63
        %s837 = smul.addr %s836, 4
        %s838 = scalar_lea.vmem %s4, %s837
      $region48: #{_lambda_.16} parent=43 // pred_fallthru
        _
    $region44: #{_lambda_.16} parent=5 // pred_fallthru
      _
  $region6: #{_lambda_.16} parent=0 // loop_footer
    %s14 = sadd.s32 1, %s10
  $region7: #{_lambda_.16} parent=0 // loop_footer_branch
    %9 = sbr.rel target = $region3
  $region8: #{_lambda_.16} parent=0 // loop_exit
    _

// kernel: _lambda_.17
$region0: #{_lambda_.17}
  #allocation0 [shape = 'u32[]', space=smem, size = 0x4, offset = 0x4, fixed_abs, tag = 'smem constant byte address 0x4 - core index']
  #allocation1 [shape = 'u32[144,128]{1,0:T(1,128)}', space=vmem, size = 0x12000, scoped, tag = 'internal scratch']
  %s0 = inlined_call_operand.vmem [shape: bf16[8,9,9,8], index: 0, kind: input, shape index: {}]
  %s1 = inlined_call_operand.vmem [shape: bf16[2,8,8,8], index: 1, kind: output, shape index: {}]
  %s2 = sld [smem:[#allocation0]]
  $region37: #{_lambda_.17} parent=0
    _
  %s4 = ssub.s32 1, %s2
  %s5 = scalar_select 0, %s4, %s2
  loop: start=0, step=1, limit=4
  $region2: #{_lambda_.17} parent=0 // loop_pre_header
    _
  $region3: #{_lambda_.17} parent=0 // loop_header
    %s7 = sphi 0, %s11
    %p8 = scmp.ge.s32.totalorder %s7, 4
    %s17 = sphi 0, %s19
    %s20 = sphi 0, %s17
    %s21 = sphi 0, %s20
    %s37 = sphi 0, %s21
    %s43 = sphi 0, %s45
    %s46 = sphi 0, %s43
    %s47 = sphi 0, %s46
    %s63 = sphi 0, %s47
  $region4: #{_lambda_.17} parent=0 // loop_header_branch
    %10 = sbr.rel (%p8) target = $region8
  $region5: #{_lambda_.17} parent=0 // loop_body
    %s12 = ssub.s32 %s7, 1
    %s13 = ssub.s32 %s7, 2
    %s14 = sadd.s32 %s7, 1
    %s15 = ssub.s32 %s7, %s14
    %p16 = scmp.eq.s32.totalorder %s15, 0
    %s18 = sadd.s32 %s17, 1
    %s19 = scalar_select %p16, %s17, %s18
    %p22 = pneg %p16
    %p23 = scmp.eq.s32.totalorder %s7, 1
    %p24 = por %p22, %p23
    %p25 = scmp.ne.s32.totalorder %s17, %s20
    %p26 = scmp.eq.s32.totalorder %s7, 0
    %p27 = por %p25, %p26
    %p28 = scmp.ne.s32.totalorder %s17, %s20
    %p29 = scmp.eq.s32.totalorder %s12, 1
    %p30 = por %p28, %p29
    %p31 = scmp.ne.s32.totalorder %s20, %s21
    %p32 = scmp.eq.s32.totalorder %s12, 0
    %p33 = por %p31, %p32
    %p34 = scmp.ne.s32.totalorder %s20, %s21
    %p35 = scmp.eq.s32.totalorder %s13, 1
    %p36 = por %p34, %p35
    %p38 = scmp.ne.s32.totalorder %s21, %s37
    %p39 = scmp.eq.s32.totalorder %s13, 0
    %p40 = por %p38, %p39
    %s41 = ssub.s32 %s7, %s14
    %p42 = scmp.eq.s32.totalorder %s41, 0
    %s44 = sadd.s32 %s43, 1
    %s45 = scalar_select %p42, %s43, %s44
    %p48 = pneg %p42
    %p49 = scmp.eq.s32.totalorder %s7, 1
    %p50 = por %p48, %p49
    %p51 = scmp.ne.s32.totalorder %s43, %s46
    %p52 = scmp.eq.s32.totalorder %s7, 0
    %p53 = por %p51, %p52
    %p54 = scmp.ne.s32.totalorder %s43, %s46
    %p55 = scmp.eq.s32.totalorder %s12, 1
    %p56 = por %p54, %p55
    %p57 = scmp.ne.s32.totalorder %s46, %s47
    %p58 = scmp.eq.s32.totalorder %s12, 0
    %p59 = por %p57, %p58
    %p60 = scmp.ne.s32.totalorder %s46, %s47
    %p61 = scmp.eq.s32.totalorder %s13, 1
    %p62 = por %p60, %p61
    %p64 = scmp.ne.s32.totalorder %s47, %s63
    %p65 = scmp.eq.s32.totalorder %s13, 0
    %p66 = por %p64, %p65
    %p67 = scmp.le.s32.totalorder 1, %s7
    %p68 = scmp.lt.s32.totalorder %s7, 3
    %p69 = pnand %p67, %p68
    %p70 = pneg %p69
    // Predicated region
    $region9: #{_lambda_.17} parent=5 // pred_check
      _
    $region10: #{_lambda_.17} parent=5 // pred_check_branch
      %72 = sbr.rel (%p69) target = $region12
    $region11: #{_lambda_.17} parent=5 // pred_region
      %s73 = ssub.s32 %s7, 1
    $region12: #{_lambda_.17} parent=5 // pred_fallthru
      _
    %p74 = scmp.lt.s32.totalorder %s7, 2
    // Predicated region
    $region13: #{_lambda_.17} parent=5 // pred_check
      %p75 = pneg %p74
    $region14: #{_lambda_.17} parent=5 // pred_check_branch
      %77 = sbr.rel (%p75) target = $region16
    $region15: #{_lambda_.17} parent=5 // pred_region
      // Predicated region
      $region17: #{_lambda_.17} parent=15 // pred_check
        %p78 = pneg %p27
      $region18: #{_lambda_.17} parent=15 // pred_check_branch
        %80 = sbr.rel (%p78) target = $region20
      $region19: #{_lambda_.17} parent=15 // pred_region
        %s81 = smul.u32 4, %s7
        %p82 = scmp.lt.s32.totalorder %s81, 7
        %s83 = scalar_select %p82, %s81, 7
        %s84 = smul.addr %s83, 18
        %s85 = smul.addr %s84, 4
        %s86 = scalar_lea.vmem %s0, %s85
        %s87 = smul.u32 4, %s7
      $region20: #{_lambda_.17} parent=15 // pred_fallthru
        _
    $region16: #{_lambda_.17} parent=5 // pred_fallthru
      _
    %p88 = scmp.le.s32.totalorder 1, %s7
    %p89 = scmp.lt.s32.totalorder %s7, 3
    %p90 = pnand %p88, %p89
    %p91 = pneg %p90
    // Predicated region
    $region21: #{_lambda_.17} parent=5 // pred_check
      _
    $region22: #{_lambda_.17} parent=5 // pred_check_branch
      %93 = sbr.rel (%p90) target = $region24
    $region23: #{_lambda_.17} parent=5 // pred_region
      %s94 = ssub.s32 %s7, 1
      %s95 = smul.u32 4, %s12
      %p96 = scmp.lt.s32.totalorder %s95, 7
      %s97 = scalar_select %p96, %s95, 7
      %s98 = smul.addr %s97, 18
      %s99 = smul.addr %s98, 4
      %s100 = scalar_lea.vmem %s0, %s99
      %p101 = pneg %p33
      %p102 = pneg %p30
      %p103 = pneg %p59
      %p104 = pneg %p56
      %p105 = scmp.lt.s32.totalorder %s12, 1
      %s106 = scalar_select %p105, %s12, 1
      %s107 = smul.addr %s106, 8
      %s108 = smul.addr %s107, 4
      %s109 = scalar_lea.vmem %s1, %s108
      %s110 = smul.u32 4, %s12
      %p111 = scmp.lt.s32.totalorder %s110, 7
      %s112 = scalar_select %p111, %s110, 7
      %s113 = smul.addr %s112, 18
      %s114 = smul.addr %s113, 4
      %s115 = scalar_lea.vmem %s0, %s114
      %s116 = smul.u32 4, %s12
      %p117 = scmp.lt.s32.totalorder %s12, 1
      %s118 = scalar_select %p117, %s12, 1
      %s119 = smul.addr %s118, 8
      %s120 = smul.addr %s119, 4
      %s121 = scalar_lea.vmem %s1, %s120
      %v122 = vld [vmem:[%s115] sm:$0xf]
      %v123 = vld [vmem:[%s115 + $0x8] sm:$0xf]
      %v124 = vld [vmem:[%s115 + $0x10] sm:$0xf]
      %v125 = vld [vmem:[%s115 + $0x18] sm:$0xf]
      %v126 = vld [vmem:[%s115 + $0x20] sm:$0xf]
      %v127 = vld [vmem:[%s115 + $0x28] sm:$0xf]
      %v128 = vld [vmem:[%s115 + $0x30] sm:$0xf]
      %v129 = vld [vmem:[%s115 + $0x38] sm:$0xf]
      %s130 = scalar_lea.vmem %s115, 72
      %v131 = vld [vmem:[%s130] sm:$0xf]
      %v132 = vld [vmem:[%s130 + $0x8] sm:$0xf]
      %v133 = vld [vmem:[%s130 + $0x10] sm:$0xf]
      %v134 = vld [vmem:[%s130 + $0x18] sm:$0xf]
      %v135 = vld [vmem:[%s130 + $0x20] sm:$0xf]
      %v136 = vld [vmem:[%s130 + $0x28] sm:$0xf]
      %v137 = vld [vmem:[%s130 + $0x30] sm:$0xf]
      %v138 = vld [vmem:[%s130 + $0x38] sm:$0xf]
      %v139 = vmax.bf16 %v122, %v131
      %v140 = vmax.bf16 %v123, %v132
      %v141 = vmax.bf16 %v124, %v133
      %v142 = vmax.bf16 %v125, %v134
      %v143 = vmax.bf16 %v126, %v135
      %v144 = vmax.bf16 %v127, %v136
      %v145 = vmax.bf16 %v128, %v137
      %v146 = vmax.bf16 %v129, %v138
      %v147 = vld [vmem:[%s115 + $0x4] sm:$0x1]
      %v148 = vld [vmem:[%s115 + $0xc] sm:$0x1]
      %v149 = vld [vmem:[%s115 + $0x14] sm:$0x1]
      %v150 = vld [vmem:[%s115 + $0x1c] sm:$0x1]
      %v151 = vld [vmem:[%s115 + $0x24] sm:$0x1]
      %v152 = vld [vmem:[%s115 + $0x2c] sm:$0x1]
      %v153 = vld [vmem:[%s115 + $0x34] sm:$0x1]
      %v154 = vld [vmem:[%s115 + $0x3c] sm:$0x1]
      %vm155 = vsmask.f32 3328
      %vm156 = vsmask.f32 7440
      %vm157 = vmor %vm155, %vm156
      %v159 = vshrl.u32 %v122, 16
      %v161 = vrot.slane %v159, 4
      %v162 = vshll.u32 %v122, 16
      %v164 = vrot.slane %v162, 5
      %v165 = vor.u32 %v161, %v164
      %v166 = vrot.slane %v165, 4
      %v168 = vshll.u32 %v147, 16
      %v170 = vrot.slane %v168, 5
      %v171 = vsel %vm157, %v166, %v170
      %v173 = vshrl.u32 %v123, 16
      %v175 = vrot.slane %v173, 4
      %v176 = vshll.u32 %v123, 16
      %v178 = vrot.slane %v176, 5
      %v179 = vor.u32 %v175, %v178
      %v180 = vrot.slane %v179, 4
      %v182 = vshll.u32 %v148, 16
      %v184 = vrot.slane %v182, 5
      %v185 = vsel %vm157, %v180, %v184
      %v187 = vshrl.u32 %v124, 16
      %v189 = vrot.slane %v187, 4
      %v190 = vshll.u32 %v124, 16
      %v192 = vrot.slane %v190, 5
      %v193 = vor.u32 %v189, %v192
      %v194 = vrot.slane %v193, 4
      %v196 = vshll.u32 %v149, 16
      %v198 = vrot.slane %v196, 5
      %v199 = vsel %vm157, %v194, %v198
      %v201 = vshrl.u32 %v125, 16
      %v203 = vrot.slane %v201, 4
      %v204 = vshll.u32 %v125, 16
      %v206 = vrot.slane %v204, 5
      %v207 = vor.u32 %v203, %v206
      %v208 = vrot.slane %v207, 4
      %v210 = vshll.u32 %v150, 16
      %v212 = vrot.slane %v210, 5
      %v213 = vsel %vm157, %v208, %v212
      %v215 = vshrl.u32 %v126, 16
      %v217 = vrot.slane %v215, 4
      %v218 = vshll.u32 %v126, 16
      %v220 = vrot.slane %v218, 5
      %v221 = vor.u32 %v217, %v220
      %v222 = vrot.slane %v221, 4
      %v224 = vshll.u32 %v151, 16
      %v226 = vrot.slane %v224, 5
      %v227 = vsel %vm157, %v222, %v226
      %v229 = vshrl.u32 %v127, 16
      %v231 = vrot.slane %v229, 4
      %v232 = vshll.u32 %v127, 16
      %v234 = vrot.slane %v232, 5
      %v235 = vor.u32 %v231, %v234
      %v236 = vrot.slane %v235, 4
      %v238 = vshll.u32 %v152, 16
      %v240 = vrot.slane %v238, 5
      %v241 = vsel %vm157, %v236, %v240
      %v243 = vshrl.u32 %v128, 16
      %v245 = vrot.slane %v243, 4
      %v246 = vshll.u32 %v128, 16
      %v248 = vrot.slane %v246, 5
      %v249 = vor.u32 %v245, %v248
      %v250 = vrot.slane %v249, 4
      %v252 = vshll.u32 %v153, 16
      %v254 = vrot.slane %v252, 5
      %v255 = vsel %vm157, %v250, %v254
      %v257 = vshrl.u32 %v129, 16
      %v259 = vrot.slane %v257, 4
      %v260 = vshll.u32 %v129, 16
      %v262 = vrot.slane %v260, 5
      %v263 = vor.u32 %v259, %v262
      %v264 = vrot.slane %v263, 4
      %v266 = vshll.u32 %v154, 16
      %v268 = vrot.slane %v266, 5
      %v269 = vsel %vm157, %v264, %v268
      %v278 = vmax.bf16 %v139, %v171
      %v279 = vmax.bf16 %v140, %v185
      %v280 = vmax.bf16 %v141, %v199
      %v281 = vmax.bf16 %v142, %v213
      %v282 = vmax.bf16 %v143, %v227
      %v283 = vmax.bf16 %v144, %v241
      %v284 = vmax.bf16 %v145, %v255
      %v285 = vmax.bf16 %v146, %v269
      %s286 = scalar_lea.vmem %s115, 144
      %v287 = vld [vmem:[%s286] sm:$0xf]
      %v288 = vld [vmem:[%s286 + $0x8] sm:$0xf]
      %v289 = vld [vmem:[%s286 + $0x10] sm:$0xf]
      %v290 = vld [vmem:[%s286 + $0x18] sm:$0xf]
      %v291 = vld [vmem:[%s286 + $0x20] sm:$0xf]
      %v292 = vld [vmem:[%s286 + $0x28] sm:$0xf]
      %v293 = vld [vmem:[%s286 + $0x30] sm:$0xf]
      %v294 = vld [vmem:[%s286 + $0x38] sm:$0xf]
      %v295 = vmax.bf16 %v278, %v287
      %v296 = vmax.bf16 %v279, %v288
      %v297 = vmax.bf16 %v280, %v289
      %v298 = vmax.bf16 %v281, %v290
      %v299 = vmax.bf16 %v282, %v291
      %v300 = vmax.bf16 %v283, %v292
      %v301 = vmax.bf16 %v284, %v293
      %v302 = vmax.bf16 %v285, %v294
      %s303 = scalar_lea.vmem %s115, 216
      %v304 = vld [vmem:[%s303] sm:$0xf]
      %v305 = vld [vmem:[%s303 + $0x8] sm:$0xf]
      %v306 = vld [vmem:[%s303 + $0x10] sm:$0xf]
      %v307 = vld [vmem:[%s303 + $0x18] sm:$0xf]
      %v308 = vld [vmem:[%s303 + $0x20] sm:$0xf]
      %v309 = vld [vmem:[%s303 + $0x28] sm:$0xf]
      %v310 = vld [vmem:[%s303 + $0x30] sm:$0xf]
      %v311 = vld [vmem:[%s303 + $0x38] sm:$0xf]
      %v312 = vmax.bf16 %v295, %v304
      %v313 = vmax.bf16 %v296, %v305
      %v314 = vmax.bf16 %v297, %v306
      %v315 = vmax.bf16 %v298, %v307
      %v316 = vmax.bf16 %v299, %v308
      %v317 = vmax.bf16 %v300, %v309
      %v318 = vmax.bf16 %v301, %v310
      %v319 = vmax.bf16 %v302, %v311
      %v320 = vld [vmem:[%s286 + $0x4] sm:$0x1]
      %v321 = vld [vmem:[%s286 + $0xc] sm:$0x1]
      %v322 = vld [vmem:[%s286 + $0x14] sm:$0x1]
      %v323 = vld [vmem:[%s286 + $0x1c] sm:$0x1]
      %v324 = vld [vmem:[%s286 + $0x24] sm:$0x1]
      %v325 = vld [vmem:[%s286 + $0x2c] sm:$0x1]
      %v326 = vld [vmem:[%s286 + $0x34] sm:$0x1]
      %v327 = vld [vmem:[%s286 + $0x3c] sm:$0x1]
      %v329 = vshrl.u32 %v287, 16
      %v331 = vrot.slane %v329, 4
      %v332 = vshll.u32 %v287, 16
      %v334 = vrot.slane %v332, 5
      %v335 = vor.u32 %v331, %v334
      %v336 = vrot.slane %v335, 4
      %v338 = vshll.u32 %v320, 16
      %v340 = vrot.slane %v338, 5
      %v341 = vsel %vm157, %v336, %v340
      %v343 = vshrl.u32 %v288, 16
      %v345 = vrot.slane %v343, 4
      %v346 = vshll.u32 %v288, 16
      %v348 = vrot.slane %v346, 5
      %v349 = vor.u32 %v345, %v348
      %v350 = vrot.slane %v349, 4
      %v352 = vshll.u32 %v321, 16
      %v354 = vrot.slane %v352, 5
      %v355 = vsel %vm157, %v350, %v354
      %v357 = vshrl.u32 %v289, 16
      %v359 = vrot.slane %v357, 4
      %v360 = vshll.u32 %v289, 16
      %v362 = vrot.slane %v360, 5
      %v363 = vor.u32 %v359, %v362
      %v364 = vrot.slane %v363, 4
      %v366 = vshll.u32 %v322, 16
      %v368 = vrot.slane %v366, 5
      %v369 = vsel %vm157, %v364, %v368
      %v371 = vshrl.u32 %v290, 16
      %v373 = vrot.slane %v371, 4
      %v374 = vshll.u32 %v290, 16
      %v376 = vrot.slane %v374, 5
      %v377 = vor.u32 %v373, %v376
      %v378 = vrot.slane %v377, 4
      %v380 = vshll.u32 %v323, 16
      %v382 = vrot.slane %v380, 5
      %v383 = vsel %vm157, %v378, %v382
      %v385 = vshrl.u32 %v291, 16
      %v387 = vrot.slane %v385, 4
      %v388 = vshll.u32 %v291, 16
      %v390 = vrot.slane %v388, 5
      %v391 = vor.u32 %v387, %v390
      %v392 = vrot.slane %v391, 4
      %v394 = vshll.u32 %v324, 16
      %v396 = vrot.slane %v394, 5
      %v397 = vsel %vm157, %v392, %v396
      %v399 = vshrl.u32 %v292, 16
      %v401 = vrot.slane %v399, 4
      %v402 = vshll.u32 %v292, 16
      %v404 = vrot.slane %v402, 5
      %v405 = vor.u32 %v401, %v404
      %v406 = vrot.slane %v405, 4
      %v408 = vshll.u32 %v325, 16
      %v410 = vrot.slane %v408, 5
      %v411 = vsel %vm157, %v406, %v410
      %v413 = vshrl.u32 %v293, 16
      %v415 = vrot.slane %v413, 4
      %v416 = vshll.u32 %v293, 16
      %v418 = vrot.slane %v416, 5
      %v419 = vor.u32 %v415, %v418
      %v420 = vrot.slane %v419, 4
      %v422 = vshll.u32 %v326, 16
      %v424 = vrot.slane %v422, 5
      %v425 = vsel %vm157, %v420, %v424
      %v427 = vshrl.u32 %v294, 16
      %v429 = vrot.slane %v427, 4
      %v430 = vshll.u32 %v294, 16
      %v432 = vrot.slane %v430, 5
      %v433 = vor.u32 %v429, %v432
      %v434 = vrot.slane %v433, 4
      %v436 = vshll.u32 %v327, 16
      %v438 = vrot.slane %v436, 5
      %v439 = vsel %vm157, %v434, %v438
      %v448 = vmax.bf16 %v312, %v341
      %v449 = vmax.bf16 %v313, %v355
      %v450 = vmax.bf16 %v314, %v369
      %v451 = vmax.bf16 %v315, %v383
      %v452 = vmax.bf16 %v316, %v397
      %v453 = vmax.bf16 %v317, %v411
      %v454 = vmax.bf16 %v318, %v425
      %v455 = vmax.bf16 %v319, %v439
      %s456 = scalar_lea.vmem %s115, 8
      %v457 = vld [vmem:[%s456] sm:$0xf]
      %v458 = vld [vmem:[%s456 + $0x8] sm:$0xf]
      %v459 = vld [vmem:[%s456 + $0x10] sm:$0xf]
      %v460 = vld [vmem:[%s456 + $0x18] sm:$0xf]
      %v461 = vld [vmem:[%s456 + $0x20] sm:$0xf]
      %v462 = vld [vmem:[%s456 + $0x28] sm:$0xf]
      %v463 = vld [vmem:[%s456 + $0x30] sm:$0xf]
      %v464 = vld [vmem:[%s456 + $0x38] sm:$0xf]
      %v465 = vmax.bf16 %v448, %v457
      %v466 = vmax.bf16 %v449, %v458
      %v467 = vmax.bf16 %v450, %v459
      %v468 = vmax.bf16 %v451, %v460
      %v469 = vmax.bf16 %v452, %v461
      %v470 = vmax.bf16 %v453, %v462
      %v471 = vmax.bf16 %v454, %v463
      %v472 = vmax.bf16 %v455, %v464
      %s473 = scalar_lea.vmem %s115, 80
      %v474 = vld [vmem:[%s473] sm:$0xf]
      %v475 = vld [vmem:[%s473 + $0x8] sm:$0xf]
      %v476 = vld [vmem:[%s473 + $0x10] sm:$0xf]
      %v477 = vld [vmem:[%s473 + $0x18] sm:$0xf]
      %v478 = vld [vmem:[%s473 + $0x20] sm:$0xf]
      %v479 = vld [vmem:[%s473 + $0x28] sm:$0xf]
      %v480 = vld [vmem:[%s473 + $0x30] sm:$0xf]
      %v481 = vld [vmem:[%s473 + $0x38] sm:$0xf]
      %v482 = vmax.bf16 %v465, %v474
      %v483 = vmax.bf16 %v466, %v475
      %v484 = vmax.bf16 %v467, %v476
      %v485 = vmax.bf16 %v468, %v477
      %v486 = vmax.bf16 %v469, %v478
      %v487 = vmax.bf16 %v470, %v479
      %v488 = vmax.bf16 %v471, %v480
      %v489 = vmax.bf16 %v472, %v481
      %v490 = vld [vmem:[%s456 + $0x4] sm:$0x1]
      %v491 = vld [vmem:[%s456 + $0xc] sm:$0x1]
      %v492 = vld [vmem:[%s456 + $0x14] sm:$0x1]
      %v493 = vld [vmem:[%s456 + $0x1c] sm:$0x1]
      %v494 = vld [vmem:[%s456 + $0x24] sm:$0x1]
      %v495 = vld [vmem:[%s456 + $0x2c] sm:$0x1]
      %v496 = vld [vmem:[%s456 + $0x34] sm:$0x1]
      %v497 = vld [vmem:[%s456 + $0x3c] sm:$0x1]
      %v499 = vshrl.u32 %v457, 16
      %v501 = vrot.slane %v499, 4
      %v502 = vshll.u32 %v457, 16
      %v504 = vrot.slane %v502, 5
      %v505 = vor.u32 %v501, %v504
      %v506 = vrot.slane %v505, 4
      %v508 = vshll.u32 %v490, 16
      %v510 = vrot.slane %v508, 5
      %v511 = vsel %vm157, %v506, %v510
      %v513 = vshrl.u32 %v458, 16
      %v515 = vrot.slane %v513, 4
      %v516 = vshll.u32 %v458, 16
      %v518 = vrot.slane %v516, 5
      %v519 = vor.u32 %v515, %v518
      %v520 = vrot.slane %v519, 4
      %v522 = vshll.u32 %v491, 16
      %v524 = vrot.slane %v522, 5
      %v525 = vsel %vm157, %v520, %v524
      %v527 = vshrl.u32 %v459, 16
      %v529 = vrot.slane %v527, 4
      %v530 = vshll.u32 %v459, 16
      %v532 = vrot.slane %v530, 5
      %v533 = vor.u32 %v529, %v532
      %v534 = vrot.slane %v533, 4
      %v536 = vshll.u32 %v492, 16
      %v538 = vrot.slane %v536, 5
      %v539 = vsel %vm157, %v534, %v538
      %v541 = vshrl.u32 %v460, 16
      %v543 = vrot.slane %v541, 4
      %v544 = vshll.u32 %v460, 16
      %v546 = vrot.slane %v544, 5
      %v547 = vor.u32 %v543, %v546
      %v548 = vrot.slane %v547, 4
      %v550 = vshll.u32 %v493, 16
      %v552 = vrot.slane %v550, 5
      %v553 = vsel %vm157, %v548, %v552
      %v555 = vshrl.u32 %v461, 16
      %v557 = vrot.slane %v555, 4
      %v558 = vshll.u32 %v461, 16
      %v560 = vrot.slane %v558, 5
      %v561 = vor.u32 %v557, %v560
      %v562 = vrot.slane %v561, 4
      %v564 = vshll.u32 %v494, 16
      %v566 = vrot.slane %v564, 5
      %v567 = vsel %vm157, %v562, %v566
      %v569 = vshrl.u32 %v462, 16
      %v571 = vrot.slane %v569, 4
      %v572 = vshll.u32 %v462, 16
      %v574 = vrot.slane %v572, 5
      %v575 = vor.u32 %v571, %v574
      %v576 = vrot.slane %v575, 4
      %v578 = vshll.u32 %v495, 16
      %v580 = vrot.slane %v578, 5
      %v581 = vsel %vm157, %v576, %v580
      %v583 = vshrl.u32 %v463, 16
      %v585 = vrot.slane %v583, 4
      %v586 = vshll.u32 %v463, 16
      %v588 = vrot.slane %v586, 5
      %v589 = vor.u32 %v585, %v588
      %v590 = vrot.slane %v589, 4
      %v592 = vshll.u32 %v496, 16
      %v594 = vrot.slane %v592, 5
      %v595 = vsel %vm157, %v590, %v594
      %v597 = vshrl.u32 %v464, 16
      %v599 = vrot.slane %v597, 4
      %v600 = vshll.u32 %v464, 16
      %v602 = vrot.slane %v600, 5
      %v603 = vor.u32 %v599, %v602
      %v604 = vrot.slane %v603, 4
      %v606 = vshll.u32 %v497, 16
      %v608 = vrot.slane %v606, 5
      %v609 = vsel %vm157, %v604, %v608
      %v618 = vmax.bf16 %v482, %v511
      %v619 = vmax.bf16 %v483, %v525
      %v620 = vmax.bf16 %v484, %v539
      %v621 = vmax.bf16 %v485, %v553
      %v622 = vmax.bf16 %v486, %v567
      %v623 = vmax.bf16 %v487, %v581
      %v624 = vmax.bf16 %v488, %v595
      %v625 = vmax.bf16 %v489, %v609
      %vm626 = vcmask 60416
      %627 = vst.msk [vmem:[%s121] sm:$0xf] %vm626, %v618
      %628 = vst.msk [vmem:[%s121 + $0x4] sm:$0xf] %vm626, %v619
      %629 = vst.msk [vmem:[%s121 + $0x8] sm:$0xf] %vm626, %v620
      %630 = vst.msk [vmem:[%s121 + $0xc] sm:$0xf] %vm626, %v621
      %631 = vst.msk [vmem:[%s121 + $0x10] sm:$0xf] %vm626, %v622
      %632 = vst.msk [vmem:[%s121 + $0x14] sm:$0xf] %vm626, %v623
      %633 = vst.msk [vmem:[%s121 + $0x18] sm:$0xf] %vm626, %v624
      %634 = vst.msk [vmem:[%s121 + $0x1c] sm:$0xf] %vm626, %v625
      %p635 = scmp.lt.s32.totalorder %s12, 1
      %s636 = scalar_select %p635, %s12, 1
      %s637 = smul.addr %s636, 8
      %s638 = smul.addr %s637, 4
      %s639 = scalar_lea.vmem %s1, %s638
      // Predicated region
      $region25: #{_lambda_.17} parent=23 // pred_check
        %p640 = pneg %p56
      $region26: #{_lambda_.17} parent=23 // pred_check_branch
        %642 = sbr.rel (%p640) target = $region28
      $region27: #{_lambda_.17} parent=23 // pred_region
        _
      $region28: #{_lambda_.17} parent=23 // pred_fallthru
        _
    $region24: #{_lambda_.17} parent=5 // pred_fallthru
      _
    %p643 = scmp.le.s32.totalorder 2, %s7
    // Predicated region
    $region29: #{_lambda_.17} parent=5 // pred_check
      %p644 = pneg %p643
    $region30: #{_lambda_.17} parent=5 // pred_check_branch
      %646 = sbr.rel (%p644) target = $region32
    $region31: #{_lambda_.17} parent=5 // pred_region
      %s647 = ssub.s32 %s7, 2
      // Predicated region
      $region33: #{_lambda_.17} parent=31 // pred_check
        %p648 = pneg %p62
      $region34: #{_lambda_.17} parent=31 // pred_check_branch
        %650 = sbr.rel (%p648) target = $region36
      $region35: #{_lambda_.17} parent=31 // pred_region
        %p651 = scmp.lt.s32.totalorder %s13, 1
        %s652 = scalar_select %p651, %s13, 1
        %s653 = smul.addr %s652, 8
        %s654 = smul.addr %s653, 4
        %s655 = scalar_lea.vmem %s1, %s654
      $region36: #{_lambda_.17} parent=31 // pred_fallthru
        _
    $region32: #{_lambda_.17} parent=5 // pred_fallthru
      _
  $region6: #{_lambda_.17} parent=0 // loop_footer
    %s11 = sadd.s32 1, %s7
  $region7: #{_lambda_.17} parent=0 // loop_footer_branch
    %6 = sbr.rel target = $region3
  $region8: #{_lambda_.17} parent=0 // loop_exit
    _

// kernel: _lambda_.19
$region0: #{_lambda_.19}
  #allocation0 [shape = 'u32[]', space=smem, size = 0x4, offset = 0x4, fixed_abs, tag = 'smem constant byte address 0x4 - core index']
  #allocation1 [shape = 'u32[144,128]{1,0:T(1,128)}', space=vmem, size = 0x12000, scoped, tag = 'internal scratch']
  %s0 = inlined_call_operand.vmem [shape: bf16[128,8], index: 0, kind: input, shape index: {}]
  %s1 = inlined_call_operand.vmem [shape: bf16[8,8], index: 1, kind: input, shape index: {}]
  %s2 = inlined_call_operand.vmem [shape: f32[1,8], index: 2, kind: input, shape index: {}]
  %s3 = inlined_call_operand.vmem [shape: f32[1,8], index: 3, kind: input, shape index: {}]
  %s4 = inlined_call_operand.vmem [shape: bf16[128,8], index: 4, kind: output, shape index: {}]
  %s5 = sld [smem:[#allocation0]]
  $region49: #{_lambda_.19} parent=0
    _
  %s7 = ssub.s32 1, %s5
  %s8 = scalar_select 0, %s7, %s5
  loop: start=0, step=1, limit=4
  $region2: #{_lambda_.19} parent=0 // loop_pre_header
    _
  $region3: #{_lambda_.19} parent=0 // loop_header
    %s10 = sphi 0, %s14
    %p11 = scmp.ge.s32.totalorder %s10, 4
    %s20 = sphi 0, %s22
    %s23 = sphi 0, %s20
    %s24 = sphi 0, %s23
    %s40 = sphi 0, %s24
    %s44 = sphi 0, %s44
    %s46 = sphi 0, %s44
    %s47 = sphi 0, %s46
    %s61 = sphi 0, %s47
    %s65 = sphi 0, %s65
    %s67 = sphi 0, %s65
    %s68 = sphi 0, %s67
    %s82 = sphi 0, %s68
    %s86 = sphi 0, %s86
    %s88 = sphi 0, %s86
    %s89 = sphi 0, %s88
    %s103 = sphi 0, %s89
    %s109 = sphi 0, %s111
    %s112 = sphi 0, %s109
    %s113 = sphi 0, %s112
    %s129 = sphi 0, %s113
  $region4: #{_lambda_.19} parent=0 // loop_header_branch
    %13 = sbr.rel (%p11) target = $region8
  $region5: #{_lambda_.19} parent=0 // loop_body
    %s15 = ssub.s32 %s10, 1
    %s16 = ssub.s32 %s10, 2
    %s17 = sadd.s32 %s10, 1
    %s18 = ssub.s32 %s10, %s17
    %p19 = scmp.eq.s32.totalorder %s18, 0
    %s21 = sadd.s32 %s20, 1
    %s22 = scalar_select %p19, %s20, %s21
    %p25 = pneg %p19
    %p26 = scmp.eq.s32.totalorder %s10, 1
    %p27 = por %p25, %p26
    %p28 = scmp.ne.s32.totalorder %s20, %s23
    %p29 = scmp.eq.s32.totalorder %s10, 0
    %p30 = por %p28, %p29
    %p31 = scmp.ne.s32.totalorder %s20, %s23
    %p32 = scmp.eq.s32.totalorder %s15, 1
    %p33 = por %p31, %p32
    %p34 = scmp.ne.s32.totalorder %s23, %s24
    %p35 = scmp.eq.s32.totalorder %s15, 0
    %p36 = por %p34, %p35
    %p37 = scmp.ne.s32.totalorder %s23, %s24
    %p38 = scmp.eq.s32.totalorder %s16, 1
    %p39 = por %p37, %p38
    %p41 = scmp.ne.s32.totalorder %s24, %s40
    %p42 = scmp.eq.s32.totalorder %s16, 0
    %p43 = por %p41, %p42
    %s45 = sadd.s32 %s44, 1
    %p48 = scmp.eq.s32.totalorder %s10, 1
    %p49 = scmp.ne.s32.totalorder %s44, %s46
    %p50 = scmp.eq.s32.totalorder %s10, 0
    %p51 = por %p49, %p50
    %p52 = scmp.ne.s32.totalorder %s44, %s46
    %p53 = scmp.eq.s32.totalorder %s15, 1
    %p54 = por %p52, %p53
    %p55 = scmp.ne.s32.totalorder %s46, %s47
    %p56 = scmp.eq.s32.totalorder %s15, 0
    %p57 = por %p55, %p56
    %p58 = scmp.ne.s32.totalorder %s46, %s47
    %p59 = scmp.eq.s32.totalorder %s16, 1
    %p60 = por %p58, %p59
    %p62 = scmp.ne.s32.totalorder %s47, %s61
    %p63 = scmp.eq.s32.totalorder %s16, 0
    %p64 = por %p62, %p63
    %s66 = sadd.s32 %s65, 1
    %p69 = scmp.eq.s32.totalorder %s10, 1
    %p70 = scmp.ne.s32.totalorder %s65, %s67
    %p71 = scmp.eq.s32.totalorder %s10, 0
    %p72 = por %p70, %p71
    %p73 = scmp.ne.s32.totalorder %s65, %s67
    %p74 = scmp.eq.s32.totalorder %s15, 1
    %p75 = por %p73, %p74
    %p76 = scmp.ne.s32.totalorder %s67, %s68
    %p77 = scmp.eq.s32.totalorder %s15, 0
    %p78 = por %p76, %p77
    %p79 = scmp.ne.s32.totalorder %s67, %s68
    %p80 = scmp.eq.s32.totalorder %s16, 1
    %p81 = por %p79, %p80
    %p83 = scmp.ne.s32.totalorder %s68, %s82
    %p84 = scmp.eq.s32.totalorder %s16, 0
    %p85 = por %p83, %p84
    %s87 = sadd.s32 %s86, 1
    %p90 = scmp.eq.s32.totalorder %s10, 1
    %p91 = scmp.ne.s32.totalorder %s86, %s88
    %p92 = scmp.eq.s32.totalorder %s10, 0
    %p93 = por %p91, %p92
    %p94 = scmp.ne.s32.totalorder %s86, %s88
    %p95 = scmp.eq.s32.totalorder %s15, 1
    %p96 = por %p94, %p95
    %p97 = scmp.ne.s32.totalorder %s88, %s89
    %p98 = scmp.eq.s32.totalorder %s15, 0
    %p99 = por %p97, %p98
    %p100 = scmp.ne.s32.totalorder %s88, %s89
    %p101 = scmp.eq.s32.totalorder %s16, 1
    %p102 = por %p100, %p101
    %p104 = scmp.ne.s32.totalorder %s89, %s103
    %p105 = scmp.eq.s32.totalorder %s16, 0
    %p106 = por %p104, %p105
    %s107 = ssub.s32 %s10, %s17
    %p108 = scmp.eq.s32.totalorder %s107, 0
    %s110 = sadd.s32 %s109, 1
    %s111 = scalar_select %p108, %s109, %s110
    %p114 = pneg %p108
    %p115 = scmp.eq.s32.totalorder %s10, 1
    %p116 = por %p114, %p115
    %p117 = scmp.ne.s32.totalorder %s109, %s112
    %p118 = scmp.eq.s32.totalorder %s10, 0
    %p119 = por %p117, %p118
    %p120 = scmp.ne.s32.totalorder %s109, %s112
    %p121 = scmp.eq.s32.totalorder %s15, 1
    %p122 = por %p120, %p121
    %p123 = scmp.ne.s32.totalorder %s112, %s113
    %p124 = scmp.eq.s32.totalorder %s15, 0
    %p125 = por %p123, %p124
    %p126 = scmp.ne.s32.totalorder %s112, %s113
    %p127 = scmp.eq.s32.totalorder %s16, 1
    %p128 = por %p126, %p127
    %p130 = scmp.ne.s32.totalorder %s113, %s129
    %p131 = scmp.eq.s32.totalorder %s16, 0
    %p132 = por %p130, %p131
    %p133 = scmp.le.s32.totalorder 1, %s10
    %p134 = scmp.lt.s32.totalorder %s10, 3
    %p135 = pnand %p133, %p134
    %p136 = pneg %p135
    // Predicated region
    $region9: #{_lambda_.19} parent=5 // pred_check
      _
    $region10: #{_lambda_.19} parent=5 // pred_check_branch
      %138 = sbr.rel (%p135) target = $region12
    $region11: #{_lambda_.19} parent=5 // pred_region
      %s139 = ssub.s32 %s10, 1
      // Predicated region
      $region13: #{_lambda_.19} parent=11 // pred_check
        %p140 = pneg %p57
      $region14: #{_lambda_.19} parent=11 // pred_check_branch
        %142 = sbr.rel (%p140) target = $region16
      $region15: #{_lambda_.19} parent=11 // pred_region
        _
      $region16: #{_lambda_.19} parent=11 // pred_fallthru
        _
      // Predicated region
      $region17: #{_lambda_.19} parent=11 // pred_check
        %p143 = pneg %p78
      $region18: #{_lambda_.19} parent=11 // pred_check_branch
        %145 = sbr.rel (%p143) target = $region20
      $region19: #{_lambda_.19} parent=11 // pred_region
        _
      $region20: #{_lambda_.19} parent=11 // pred_fallthru
        _
      // Predicated region
      $region21: #{_lambda_.19} parent=11 // pred_check
        %p146 = pneg %p99
      $region22: #{_lambda_.19} parent=11 // pred_check_branch
        %148 = sbr.rel (%p146) target = $region24
      $region23: #{_lambda_.19} parent=11 // pred_region
        _
      $region24: #{_lambda_.19} parent=11 // pred_fallthru
        _
    $region12: #{_lambda_.19} parent=5 // pred_fallthru
      _
    %p149 = scmp.lt.s32.totalorder %s10, 2
    // Predicated region
    $region25: #{_lambda_.19} parent=5 // pred_check
      %p150 = pneg %p149
    $region26: #{_lambda_.19} parent=5 // pred_check_branch
      %152 = sbr.rel (%p150) target = $region28
    $region27: #{_lambda_.19} parent=5 // pred_region
      // Predicated region
      $region29: #{_lambda_.19} parent=27 // pred_check
        %p153 = pneg %p30
      $region30: #{_lambda_.19} parent=27 // pred_check_branch
        %155 = sbr.rel (%p153) target = $region32
      $region31: #{_lambda_.19} parent=27 // pred_region
        %s156 = smul.u32 8, %s10
        %p157 = scmp.lt.s32.totalorder %s156, 15
        %s158 = scalar_select %p157, %s156, 15
        %s159 = smul.addr %s158, 4
        %s160 = scalar_lea.vmem %s0, %s159
        %s161 = smul.u32 8, %s10
      $region32: #{_lambda_.19} parent=27 // pred_fallthru
        _
    $region28: #{_lambda_.19} parent=5 // pred_fallthru
      _
    %p162 = scmp.le.s32.totalorder 1, %s10
    %p163 = scmp.lt.s32.totalorder %s10, 3
    %p164 = pnand %p162, %p163
    %p165 = pneg %p164
    // Predicated region
    $region33: #{_lambda_.19} parent=5 // pred_check
      _
    $region34: #{_lambda_.19} parent=5 // pred_check_branch
      %167 = sbr.rel (%p164) target = $region36
    $region35: #{_lambda_.19} parent=5 // pred_region
      %s168 = ssub.s32 %s10, 1
      %s169 = smul.u32 8, %s15
      %p170 = scmp.lt.s32.totalorder %s169, 15
      %s171 = scalar_select %p170, %s169, 15
      %s172 = smul.addr %s171, 4
      %s173 = scalar_lea.vmem %s0, %s172
      %p174 = pneg %p36
      %p175 = pneg %p33
      %p176 = pneg %p57
      %p177 = pneg %p54
      %p178 = pneg %p78
      %p179 = pneg %p75
      %p180 = pneg %p99
      %p181 = pneg %p96
      %p182 = pneg %p125
      %p183 = pneg %p122
      %s184 = smul.u32 8, %s15
      %p185 = scmp.lt.s32.totalorder %s184, 15
      %s186 = scalar_select %p185, %s184, 15
      %s187 = smul.addr %s186, 4
      %s188 = scalar_lea.vmem %s4, %s187
      %s189 = smul.u32 8, %s15
      %p190 = scmp.lt.s32.totalorder %s189, 15
      %s191 = scalar_select %p190, %s189, 15
      %s192 = smul.addr %s191, 4
      %s193 = scalar_lea.vmem %s0, %s192
      %s194 = smul.u32 8, %s15
      %s195 = smul.u32 8, %s15
      %p196 = scmp.lt.s32.totalorder %s195, 15
      %s197 = scalar_select %p196, %s195, 15
      %s198 = smul.addr %s197, 4
      %s199 = scalar_lea.vmem %s4, %s198
      %s200 = smul.u32 8, %s15
      %v202 = vld [vmem:[%s193] sm:$0xf]
      %v203 = vld [vmem:[%s193 + $0x4] sm:$0xf]
      %v204 = vld [vmem:[%s193 + $0x8] sm:$0xf]
      %v205 = vld [vmem:[%s193 + $0xc] sm:$0xf]
      %v206 = vld [vmem:[%s193 + $0x10] sm:$0xf]
      %v207 = vld [vmem:[%s193 + $0x14] sm:$0xf]
      %v208 = vld [vmem:[%s193 + $0x18] sm:$0xf]
      %v209 = vld [vmem:[%s193 + $0x1c] sm:$0xf]
      %v210 = vld [vmem:[%s1] sm:$0xf]
      %v219 = vunpack.c.l.b16 %v202
      %v220 = vunpack.c.l.b16 %v203
      %v221 = vunpack.c.l.b16 %v204
      %v222 = vunpack.c.l.b16 %v205
      %v223 = vunpack.c.l.b16 %v206
      %v224 = vunpack.c.l.b16 %v207
      %v225 = vunpack.c.l.b16 %v208
      %v226 = vunpack.c.l.b16 %v209
      %v227 = vpack.c.b16 %v220, %v219
      %v228 = vpack.c.b16 %v222, %v221
      %v229 = vpack.c.b16 %v224, %v223
      %v230 = vpack.c.b16 %v226, %v225
      %vm231 = vcmask 64512
      %v233 = vsel %vm231, %v227, 0
      %v236 = vsel %vm231, %v228, 0
      %v239 = vsel %vm231, %v229, 0
      %v242 = vsel %vm231, %v230, 0
      %vm244 = vcmask 1043456
      %v246 = vsel %vm244, %v210, 0
      %248 = vmatprep.subr.bf16.mxu0 0
      %249 = vmatpush1.bf16.msra.mxu0 %v246
      %250 = vmatprep.subr.bf16.mxu0 0
      %251 = vmatpush1.bf16.msra.mxu0 0
      %252 = vmatprep.subr.bf16.mxu0 0
      %253 = vmatpush1.bf16.msra.mxu0 0
      %254 = vmatprep.subr.bf16.mxu0 0
      %255 = vmatpush1.bf16.msra.mxu0 0
      %256 = vmatprep.subr.bf16.mxu0 0
      %257 = vmatpush1.bf16.msra.mxu0 0
      %258 = vmatprep.subr.bf16.mxu0 0
      %259 = vmatpush1.bf16.msra.mxu0 0
      %260 = vmatprep.subr.bf16.mxu0 0
      %261 = vmatpush1.bf16.msra.mxu0 0
      %262 = vmatprep.subr.bf16.mxu0 0
      %263 = vmatpush1.bf16.msra.mxu0 0
      %264 = vmatprep.subr.bf16.mxu0 0
      %265 = vmatpush1.bf16.msra.mxu0 0
      %266 = vmatprep.subr.bf16.mxu0 0
      %267 = vmatpush1.bf16.msra.mxu0 0
      %268 = vmatprep.subr.bf16.mxu0 0
      %269 = vmatpush1.bf16.msra.mxu0 0
      %270 = vmatprep.subr.bf16.mxu0 0
      %271 = vmatpush1.bf16.msra.mxu0 0
      %272 = vmatprep.subr.bf16.mxu0 0
      %273 = vmatpush1.bf16.msra.mxu0 0
      %274 = vmatprep.subr.bf16.mxu0 0
      %275 = vmatpush1.bf16.msra.mxu0 0
      %276 = vmatprep.subr.bf16.mxu0 0
      %277 = vmatpush1.bf16.msra.mxu0 0
      %278 = vmatprep.subr.bf16.mxu0 0
      %279 = vmatpush1.bf16.msra.mxu0 0
      %280 = vmatprep.mubr.bf16.mxu0 0
      %281 = vmatmul.mubr.bf16.gmra.mrb[0].mxu0 %v233
      %v282 = vpop.f32.mrb[0].mxu0
      %v283 = vadd.f32 0.0, %v282
      %v284 = vpop.f32.mrb[0].mxu0
      %v285 = vpop.f32.mrb[0].mxu0
      %v286 = vadd.f32 0.0, %v285
      %v287 = vpop.f32.mrb[0].mxu0
      %288 = vmatprep.mubr.bf16.mxu0 0
      %289 = vmatmul.mubr.bf16.gmra.mrb[0].mxu0 %v236
      %v290 = vpop.f32.mrb[0].mxu0
      %v291 = vadd.f32 0.0, %v290
      %v292 = vpop.f32.mrb[0].mxu0
      %v293 = vpop.f32.mrb[0].mxu0
      %v294 = vadd.f32 0.0, %v293
      %v295 = vpop.f32.mrb[0].mxu0
      %296 = vmatprep.mubr.bf16.mxu0 0
      %297 = vmatmul.mubr.bf16.gmra.mrb[0].mxu0 %v239
      %v298 = vpop.f32.mrb[0].mxu0
      %v299 = vadd.f32 0.0, %v298
      %v300 = vpop.f32.mrb[0].mxu0
      %v301 = vpop.f32.mrb[0].mxu0
      %v302 = vadd.f32 0.0, %v301
      %v303 = vpop.f32.mrb[0].mxu0
      %304 = vmatprep.mubr.bf16.mxu0 0
      %305 = vmatmul.mubr.bf16.gmra.mrb[0].mxu0 %v242
      %v306 = vpop.f32.mrb[0].mxu0
      %v307 = vadd.f32 0.0, %v306
      %v308 = vpop.f32.mrb[0].mxu0
      %v309 = vpop.f32.mrb[0].mxu0
      %v310 = vadd.f32 0.0, %v309
      %v311 = vpop.f32.mrb[0].mxu0
      %312 = vdwg.mxu0
      %v313 = vld [vmem:[%s2] sm:$0x1]
      %v315 = vlaneseq
      %v316 = vshrl.u32 %v315, 7
      %v317 = vsub.s32 0, %v316
      %v318 = vrot.slane %v313, %v317
      %v320 = vmul.f32 %v283, %v318
      %v321 = vmul.f32 %v286, %v318
      %v322 = vmul.f32 %v291, %v318
      %v323 = vmul.f32 %v294, %v318
      %v324 = vmul.f32 %v299, %v318
      %v325 = vmul.f32 %v302, %v318
      %v326 = vmul.f32 %v307, %v318
      %v327 = vmul.f32 %v310, %v318
      %v328 = vld [vmem:[%s3] sm:$0x1]
      %v330 = vlaneseq
      %v331 = vshrl.u32 %v330, 7
      %v332 = vsub.s32 0, %v331
      %v333 = vrot.slane %v328, %v332
      %v335 = vadd.f32 %v320, %v333
      %v336 = vadd.f32 %v321, %v333
      %v337 = vadd.f32 %v322, %v333
      %v338 = vadd.f32 %v323, %v333
      %v339 = vadd.f32 %v324, %v333
      %v340 = vadd.f32 %v325, %v333
      %v341 = vadd.f32 %v326, %v333
      %v342 = vadd.f32 %v327, %v333
      %v343 = vmax.f32 %v335, 0.0
      %v344 = vmax.f32 %v336, 0.0
      %v345 = vmax.f32 %v337, 0.0
      %v346 = vmax.f32 %v338, 0.0
      %v347 = vmax.f32 %v339, 0.0
      %v348 = vmax.f32 %v340, 0.0
      %v349 = vmax.f32 %v341, 0.0
      %v350 = vmax.f32 %v342, 0.0
      %v351 = vpack.c.bf16 %v344, %v343
      %v352 = vpack.c.bf16 %v346, %v345
      %v353 = vpack.c.bf16 %v348, %v347
      %v354 = vpack.c.bf16 %v350, %v349
      %v359 = vunpack.c.l.b16 %v351
      %v360 = vunpack.c.h.b16 %v351
      %v361 = vunpack.c.l.b16 %v352
      %v362 = vunpack.c.h.b16 %v352
      %v363 = vunpack.c.l.b16 %v353
      %v364 = vunpack.c.h.b16 %v353
      %v365 = vunpack.c.l.b16 %v354
      %v366 = vunpack.c.h.b16 %v354
      %v367 = vpack.c.b16 %v359, %v359
      %v368 = vpack.c.b16 %v360, %v360
      %v369 = vpack.c.b16 %v361, %v361
      %v370 = vpack.c.b16 %v362, %v362
      %v371 = vpack.c.b16 %v363, %v363
      %v372 = vpack.c.b16 %v364, %v364
      %v373 = vpack.c.b16 %v365, %v365
      %v374 = vpack.c.b16 %v366, %v366
      %vm383 = vcmask 60416
      %384 = vst.msk [vmem:[%s199] sm:$0xf] %vm383, %v367
      %385 = vst.msk [vmem:[%s199 + $0x4] sm:$0xf] %vm383, %v368
      %386 = vst.msk [vmem:[%s199 + $0x8] sm:$0xf] %vm383, %v369
      %387 = vst.msk [vmem:[%s199 + $0xc] sm:$0xf] %vm383, %v370
      %388 = vst.msk [vmem:[%s199 + $0x10] sm:$0xf] %vm383, %v371
      %389 = vst.msk [vmem:[%s199 + $0x14] sm:$0xf] %vm383, %v372
      %390 = vst.msk [vmem:[%s199 + $0x18] sm:$0xf] %vm383, %v373
      %391 = vst.msk [vmem:[%s199 + $0x1c] sm:$0xf] %vm383, %v374
      %s392 = smul.u32 8, %s15
      %p393 = scmp.lt.s32.totalorder %s392, 15
      %s394 = scalar_select %p393, %s392, 15
      %s395 = smul.addr %s394, 4
      %s396 = scalar_lea.vmem %s4, %s395
      // Predicated region
      $region37: #{_lambda_.19} parent=35 // pred_check
        %p397 = pneg %p122
      $region38: #{_lambda_.19} parent=35 // pred_check_branch
        %399 = sbr.rel (%p397) target = $region40
      $region39: #{_lambda_.19} parent=35 // pred_region
        %s400 = smul.u32 8, %s15
      $region40: #{_lambda_.19} parent=35 // pred_fallthru
        _
    $region36: #{_lambda_.19} parent=5 // pred_fallthru
      _
    %p401 = scmp.le.s32.totalorder 2, %s10
    // Predicated region
    $region41: #{_lambda_.19} parent=5 // pred_check
      %p402 = pneg %p401
    $region42: #{_lambda_.19} parent=5 // pred_check_branch
      %404 = sbr.rel (%p402) target = $region44
    $region43: #{_lambda_.19} parent=5 // pred_region
      %s405 = ssub.s32 %s10, 2
      // Predicated region
      $region45: #{_lambda_.19} parent=43 // pred_check
        %p406 = pneg %p128
      $region46: #{_lambda_.19} parent=43 // pred_check_branch
        %408 = sbr.rel (%p406) target = $region48
      $region47: #{_lambda_.19} parent=43 // pred_region
        %s409 = smul.u32 8, %s16
        %p410 = scmp.lt.s32.totalorder %s409, 15
        %s411 = scalar_select %p410, %s409, 15
        %s412 = smul.addr %s411, 4
        %s413 = scalar_lea.vmem %s4, %s412
      $region48: #{_lambda_.19} parent=43 // pred_fallthru
        _
    $region44: #{_lambda_.19} parent=5 // pred_fallthru
      _
  $region6: #{_lambda_.19} parent=0 // loop_footer
    %s14 = sadd.s32 1, %s10
  $region7: #{_lambda_.19} parent=0 // loop_footer_branch
    %9 = sbr.rel target = $region3
  $region8: #{_lambda_.19} parent=0 // loop_exit
    _

// kernel: _lambda_.18
$region0: #{_lambda_.18}
  #allocation0 [shape = 'u32[]', space=smem, size = 0x4, offset = 0x4, fixed_abs, tag = 'smem constant byte address 0x4 - core index']
  #allocation1 [shape = 'u32[144,128]{1,0:T(1,128)}', space=vmem, size = 0x12000, scoped, tag = 'internal scratch']
  %s0 = inlined_call_operand.vmem [shape: bf16[8,5,5,8], index: 0, kind: input, shape index: {}]
  %s1 = inlined_call_operand.vmem [shape: f32[9,1,8], index: 1, kind: input, shape index: {}]
  %s2 = inlined_call_operand.vmem [shape: f32[1,8], index: 2, kind: input, shape index: {}]
  %s3 = inlined_call_operand.vmem [shape: f32[1,8], index: 3, kind: input, shape index: {}]
  %s4 = inlined_call_operand.vmem [shape: bf16[8,8], index: 4, kind: input, shape index: {}]
  %s5 = inlined_call_operand.vmem [shape: f32[1,8], index: 5, kind: input, shape index: {}]
  %s6 = inlined_call_operand.vmem [shape: f32[1,8], index: 6, kind: input, shape index: {}]
  %s7 = inlined_call_operand.vmem [shape: bf16[2,16,8], index: 7, kind: output, shape index: {}]
  %s8 = sld [smem:[#allocation0]]
  $region61: #{_lambda_.18} parent=0
    _
  %s10 = ssub.s32 1, %s8
  %s11 = scalar_select 0, %s10, %s8
  loop: start=0, step=1, limit=4
  $region2: #{_lambda_.18} parent=0 // loop_pre_header
    _
  $region3: #{_lambda_.18} parent=0 // loop_header
    %s13 = sphi 0, %s17
    %p14 = scmp.ge.s32.totalorder %s13, 4
    %s23 = sphi 0, %s25
    %s26 = sphi 0, %s23
    %s27 = sphi 0, %s26
    %s43 = sphi 0, %s27
    %s47 = sphi 0, %s47
    %s49 = sphi 0, %s47
    %s50 = sphi 0, %s49
    %s64 = sphi 0, %s50
    %s68 = sphi 0, %s68
    %s70 = sphi 0, %s68
    %s71 = sphi 0, %s70
    %s85 = sphi 0, %s71
    %s89 = sphi 0, %s89
    %s91 = sphi 0, %s89
    %s92 = sphi 0, %s91
    %s106 = sphi 0, %s92
    %s110 = sphi 0, %s110
    %s112 = sphi 0, %s110
    %s113 = sphi 0, %s112
    %s127 = sphi 0, %s113
    %s131 = sphi 0, %s131
    %s133 = sphi 0, %s131
    %s134 = sphi 0, %s133
    %s148 = sphi 0, %s134
    %s152 = sphi 0, %s152
    %s154 = sphi 0, %s152
    %s155 = sphi 0, %s154
    %s169 = sphi 0, %s155
    %s175 = sphi 0, %s177
    %s178 = sphi 0, %s175
    %s179 = sphi 0, %s178
    %s195 = sphi 0, %s179
  $region4: #{_lambda_.18} parent=0 // loop_header_branch
    %16 = sbr.rel (%p14) target = $region8
  $region5: #{_lambda_.18} parent=0 // loop_body
    %s18 = ssub.s32 %s13, 1
    %s19 = ssub.s32 %s13, 2
    %s20 = sadd.s32 %s13, 1
    %s21 = ssub.s32 %s13, %s20
    %p22 = scmp.eq.s32.totalorder %s21, 0
    %s24 = sadd.s32 %s23, 1
    %s25 = scalar_select %p22, %s23, %s24
    %p28 = pneg %p22
    %p29 = scmp.eq.s32.totalorder %s13, 1
    %p30 = por %p28, %p29
    %p31 = scmp.ne.s32.totalorder %s23, %s26
    %p32 = scmp.eq.s32.totalorder %s13, 0
    %p33 = por %p31, %p32
    %p34 = scmp.ne.s32.totalorder %s23, %s26
    %p35 = scmp.eq.s32.totalorder %s18, 1
    %p36 = por %p34, %p35
    %p37 = scmp.ne.s32.totalorder %s26, %s27
    %p38 = scmp.eq.s32.totalorder %s18, 0
    %p39 = por %p37, %p38
    %p40 = scmp.ne.s32.totalorder %s26, %s27
    %p41 = scmp.eq.s32.totalorder %s19, 1
    %p42 = por %p40, %p41
    %p44 = scmp.ne.s32.totalorder %s27, %s43
    %p45 = scmp.eq.s32.totalorder %s19, 0
    %p46 = por %p44, %p45
    %s48 = sadd.s32 %s47, 1
    %p51 = scmp.eq.s32.totalorder %s13, 1
    %p52 = scmp.ne.s32.totalorder %s47, %s49
    %p53 = scmp.eq.s32.totalorder %s13, 0
    %p54 = por %p52, %p53
    %p55 = scmp.ne.s32.totalorder %s47, %s49
    %p56 = scmp.eq.s32.totalorder %s18, 1
    %p57 = por %p55, %p56
    %p58 = scmp.ne.s32.totalorder %s49, %s50
    %p59 = scmp.eq.s32.totalorder %s18, 0
    %p60 = por %p58, %p59
    %p61 = scmp.ne.s32.totalorder %s49, %s50
    %p62 = scmp.eq.s32.totalorder %s19, 1
    %p63 = por %p61, %p62
    %p65 = scmp.ne.s32.totalorder %s50, %s64
    %p66 = scmp.eq.s32.totalorder %s19, 0
    %p67 = por %p65, %p66
    %s69 = sadd.s32 %s68, 1
    %p72 = scmp.eq.s32.totalorder %s13, 1
    %p73 = scmp.ne.s32.totalorder %s68, %s70
    %p74 = scmp.eq.s32.totalorder %s13, 0
    %p75 = por %p73, %p74
    %p76 = scmp.ne.s32.totalorder %s68, %s70
    %p77 = scmp.eq.s32.totalorder %s18, 1
    %p78 = por %p76, %p77
    %p79 = scmp.ne.s32.totalorder %s70, %s71
    %p80 = scmp.eq.s32.totalorder %s18, 0
    %p81 = por %p79, %p80
    %p82 = scmp.ne.s32.totalorder %s70, %s71
    %p83 = scmp.eq.s32.totalorder %s19, 1
    %p84 = por %p82, %p83
    %p86 = scmp.ne.s32.totalorder %s71, %s85
    %p87 = scmp.eq.s32.totalorder %s19, 0
    %p88 = por %p86, %p87
    %s90 = sadd.s32 %s89, 1
    %p93 = scmp.eq.s32.totalorder %s13, 1
    %p94 = scmp.ne.s32.totalorder %s89, %s91
    %p95 = scmp.eq.s32.totalorder %s13, 0
    %p96 = por %p94, %p95
    %p97 = scmp.ne.s32.totalorder %s89, %s91
    %p98 = scmp.eq.s32.totalorder %s18, 1
    %p99 = por %p97, %p98
    %p100 = scmp.ne.s32.totalorder %s91, %s92
    %p101 = scmp.eq.s32.totalorder %s18, 0
    %p102 = por %p100, %p101
    %p103 = scmp.ne.s32.totalorder %s91, %s92
    %p104 = scmp.eq.s32.totalorder %s19, 1
    %p105 = por %p103, %p104
    %p107 = scmp.ne.s32.totalorder %s92, %s106
    %p108 = scmp.eq.s32.totalorder %s19, 0
    %p109 = por %p107, %p108
    %s111 = sadd.s32 %s110, 1
    %p114 = scmp.eq.s32.totalorder %s13, 1
    %p115 = scmp.ne.s32.totalorder %s110, %s112
    %p116 = scmp.eq.s32.totalorder %s13, 0
    %p117 = por %p115, %p116
    %p118 = scmp.ne.s32.totalorder %s110, %s112
    %p119 = scmp.eq.s32.totalorder %s18, 1
    %p120 = por %p118, %p119
    %p121 = scmp.ne.s32.totalorder %s112, %s113
    %p122 = scmp.eq.s32.totalorder %s18, 0
    %p123 = por %p121, %p122
    %p124 = scmp.ne.s32.totalorder %s112, %s113
    %p125 = scmp.eq.s32.totalorder %s19, 1
    %p126 = por %p124, %p125
    %p128 = scmp.ne.s32.totalorder %s113, %s127
    %p129 = scmp.eq.s32.totalorder %s19, 0
    %p130 = por %p128, %p129
    %s132 = sadd.s32 %s131, 1
    %p135 = scmp.eq.s32.totalorder %s13, 1
    %p136 = scmp.ne.s32.totalorder %s131, %s133
    %p137 = scmp.eq.s32.totalorder %s13, 0
    %p138 = por %p136, %p137
    %p139 = scmp.ne.s32.totalorder %s131, %s133
    %p140 = scmp.eq.s32.totalorder %s18, 1
    %p141 = por %p139, %p140
    %p142 = scmp.ne.s32.totalorder %s133, %s134
    %p143 = scmp.eq.s32.totalorder %s18, 0
    %p144 = por %p142, %p143
    %p145 = scmp.ne.s32.totalorder %s133, %s134
    %p146 = scmp.eq.s32.totalorder %s19, 1
    %p147 = por %p145, %p146
    %p149 = scmp.ne.s32.totalorder %s134, %s148
    %p150 = scmp.eq.s32.totalorder %s19, 0
    %p151 = por %p149, %p150
    %s153 = sadd.s32 %s152, 1
    %p156 = scmp.eq.s32.totalorder %s13, 1
    %p157 = scmp.ne.s32.totalorder %s152, %s154
    %p158 = scmp.eq.s32.totalorder %s13, 0
    %p159 = por %p157, %p158
    %p160 = scmp.ne.s32.totalorder %s152, %s154
    %p161 = scmp.eq.s32.totalorder %s18, 1
    %p162 = por %p160, %p161
    %p163 = scmp.ne.s32.totalorder %s154, %s155
    %p164 = scmp.eq.s32.totalorder %s18, 0
    %p165 = por %p163, %p164
    %p166 = scmp.ne.s32.totalorder %s154, %s155
    %p167 = scmp.eq.s32.totalorder %s19, 1
    %p168 = por %p166, %p167
    %p170 = scmp.ne.s32.totalorder %s155, %s169
    %p171 = scmp.eq.s32.totalorder %s19, 0
    %p172 = por %p170, %p171
    %s173 = ssub.s32 %s13, %s20
    %p174 = scmp.eq.s32.totalorder %s173, 0
    %s176 = sadd.s32 %s175, 1
    %s177 = scalar_select %p174, %s175, %s176
    %p180 = pneg %p174
    %p181 = scmp.eq.s32.totalorder %s13, 1
    %p182 = por %p180, %p181
    %p183 = scmp.ne.s32.totalorder %s175, %s178
    %p184 = scmp.eq.s32.totalorder %s13, 0
    %p185 = por %p183, %p184
    %p186 = scmp.ne.s32.totalorder %s175, %s178
    %p187 = scmp.eq.s32.totalorder %s18, 1
    %p188 = por %p186, %p187
    %p189 = scmp.ne.s32.totalorder %s178, %s179
    %p190 = scmp.eq.s32.totalorder %s18, 0
    %p191 = por %p189, %p190
    %p192 = scmp.ne.s32.totalorder %s178, %s179
    %p193 = scmp.eq.s32.totalorder %s19, 1
    %p194 = por %p192, %p193
    %p196 = scmp.ne.s32.totalorder %s179, %s195
    %p197 = scmp.eq.s32.totalorder %s19, 0
    %p198 = por %p196, %p197
    %p199 = scmp.le.s32.totalorder 1, %s13
    %p200 = scmp.lt.s32.totalorder %s13, 3
    %p201 = pnand %p199, %p200
    %p202 = pneg %p201
    // Predicated region
    $region9: #{_lambda_.18} parent=5 // pred_check
      _
    $region10: #{_lambda_.18} parent=5 // pred_check_branch
      %204 = sbr.rel (%p201) target = $region12
    $region11: #{_lambda_.18} parent=5 // pred_region
      %s205 = ssub.s32 %s13, 1
      // Predicated region
      $region13: #{_lambda_.18} parent=11 // pred_check
        %p206 = pneg %p60
      $region14: #{_lambda_.18} parent=11 // pred_check_branch
        %208 = sbr.rel (%p206) target = $region16
      $region15: #{_lambda_.18} parent=11 // pred_region
        _
      $region16: #{_lambda_.18} parent=11 // pred_fallthru
        _
      // Predicated region
      $region17: #{_lambda_.18} parent=11 // pred_check
        %p209 = pneg %p81
      $region18: #{_lambda_.18} parent=11 // pred_check_branch
        %211 = sbr.rel (%p209) target = $region20
      $region19: #{_lambda_.18} parent=11 // pred_region
        _
      $region20: #{_lambda_.18} parent=11 // pred_fallthru
        _
      // Predicated region
      $region21: #{_lambda_.18} parent=11 // pred_check
        %p212 = pneg %p102
      $region22: #{_lambda_.18} parent=11 // pred_check_branch
        %214 = sbr.rel (%p212) target = $region24
      $region23: #{_lambda_.18} parent=11 // pred_region
        _
      $region24: #{_lambda_.18} parent=11 // pred_fallthru
        _
      // Predicated region
      $region25: #{_lambda_.18} parent=11 // pred_check
        %p215 = pneg %p123
      $region26: #{_lambda_.18} parent=11 // pred_check_branch
        %217 = sbr.rel (%p215) target = $region28
      $region27: #{_lambda_.18} parent=11 // pred_region
        _
      $region28: #{_lambda_.18} parent=11 // pred_fallthru
        _
      // Predicated region
      $region29: #{_lambda_.18} parent=11 // pred_check
        %p218 = pneg %p144
      $region30: #{_lambda_.18} parent=11 // pred_check_branch
        %220 = sbr.rel (%p218) target = $region32
      $region31: #{_lambda_.18} parent=11 // pred_region
        _
      $region32: #{_lambda_.18} parent=11 // pred_fallthru
        _
      // Predicated region
      $region33: #{_lambda_.18} parent=11 // pred_check
        %p221 = pneg %p165
      $region34: #{_lambda_.18} parent=11 // pred_check_branch
        %223 = sbr.rel (%p221) target = $region36
      $region35: #{_lambda_.18} parent=11 // pred_region
        _
      $region36: #{_lambda_.18} parent=11 // pred_fallthru
        _
    $region12: #{_lambda_.18} parent=5 // pred_fallthru
      _
    %p224 = scmp.lt.s32.totalorder %s13, 2
    // Predicated region
    $region37: #{_lambda_.18} parent=5 // pred_check
      %p225 = pneg %p224
    $region38: #{_lambda_.18} parent=5 // pred_check_branch
      %227 = sbr.rel (%p225) target = $region40
    $region39: #{_lambda_.18} parent=5 // pred_region
      // Predicated region
      $region41: #{_lambda_.18} parent=39 // pred_check
        %p228 = pneg %p33
      $region42: #{_lambda_.18} parent=39 // pred_check_branch
        %230 = sbr.rel (%p228) target = $region44
      $region43: #{_lambda_.18} parent=39 // pred_region
        %s231 = smul.u32 4, %s13
        %p232 = scmp.lt.s32.totalorder %s231, 7
        %s233 = scalar_select %p232, %s231, 7
        %s234 = smul.addr %s233, 5
        %s235 = smul.addr %s234, 4
        %s236 = scalar_lea.vmem %s0, %s235
        %s237 = smul.u32 4, %s13
      $region44: #{_lambda_.18} parent=39 // pred_fallthru
        _
    $region40: #{_lambda_.18} parent=5 // pred_fallthru
      _
    %p238 = scmp.le.s32.totalorder 1, %s13
    %p239 = scmp.lt.s32.totalorder %s13, 3
    %p240 = pnand %p238, %p239
    %p241 = pneg %p240
    // Predicated region
    $region45: #{_lambda_.18} parent=5 // pred_check
      _
    $region46: #{_lambda_.18} parent=5 // pred_check_branch
      %243 = sbr.rel (%p240) target = $region48
    $region47: #{_lambda_.18} parent=5 // pred_region
      %s244 = ssub.s32 %s13, 1
      %s245 = smul.u32 4, %s18
      %p246 = scmp.lt.s32.totalorder %s245, 7
      %s247 = scalar_select %p246, %s245, 7
      %s248 = smul.addr %s247, 5
      %s249 = smul.addr %s248, 4
      %s250 = scalar_lea.vmem %s0, %s249
      %p251 = pneg %p39
      %p252 = pneg %p36
      %p253 = pneg %p60
      %p254 = pneg %p57
      %p255 = pneg %p81
      %p256 = pneg %p78
      %p257 = pneg %p102
      %p258 = pneg %p99
      %p259 = pneg %p123
      %p260 = pneg %p120
      %p261 = pneg %p144
      %p262 = pneg %p141
      %p263 = pneg %p165
      %p264 = pneg %p162
      %p265 = pneg %p191
      %p266 = pneg %p188
      %p267 = scmp.lt.s32.totalorder %s18, 1
      %s268 = scalar_select %p267, %s18, 1
      %s269 = smul.addr %s268, 2
      %s270 = smul.addr %s269, 4
      %s271 = scalar_lea.vmem %s7, %s270
      %s272 = smul.u32 4, %s18
      %p273 = scmp.lt.s32.totalorder %s272, 7
      %s274 = scalar_select %p273, %s272, 7
      %s275 = smul.addr %s274, 5
      %s276 = smul.addr %s275, 4
      %s277 = scalar_lea.vmem %s0, %s276
      %s278 = smul.u32 4, %s18
      %p279 = scmp.lt.s32.totalorder %s18, 1
      %s280 = scalar_select %p279, %s18, 1
      %s281 = smul.addr %s280, 2
      %s282 = smul.addr %s281, 4
      %s283 = scalar_lea.vmem %s7, %s282
      %v285 = vld [vmem:[%s277] sm:$0x3]
      %v286 = vld [vmem:[%s277 + $0x4] sm:$0x3]
      %v287 = vld [vmem:[%s277 + $0x8] sm:$0x3]
      %v288 = vld [vmem:[%s277 + $0xc] sm:$0x3]
      %v289 = vunpack.c.l.bf16 %v285
      %v290 = vunpack.c.l.bf16 %v286
      %v291 = vunpack.c.l.bf16 %v287
      %v292 = vunpack.c.l.bf16 %v288
      %v293 = vld [vmem:[%s1] sm:$0x1]
      %v295 = vlaneseq
      %v296 = vshrl.u32 %v295, 7
      %v297 = vsub.s32 0, %v296
      %v298 = vrot.slane %v293, %v297
      %v300 = vmul.f32 %v289, %v298
      %v301 = vmul.f32 %v290, %v298
      %v302 = vmul.f32 %v291, %v298
      %v303 = vmul.f32 %v292, %v298
      %s304 = scalar_lea.vmem %s277, 20
      %v305 = vld [vmem:[%s304] sm:$0x3]
      %v306 = vld [vmem:[%s304 + $0x4] sm:$0x3]
      %v307 = vld [vmem:[%s304 + $0x8] sm:$0x3]
      %v308 = vld [vmem:[%s304 + $0xc] sm:$0x3]
      %v309 = vunpack.c.l.bf16 %v305
      %v310 = vunpack.c.l.bf16 %v306
      %v311 = vunpack.c.l.bf16 %v307
      %v312 = vunpack.c.l.bf16 %v308
      %s313 = scalar_lea.vmem %s1, 1
      %v314 = vld [vmem:[%s313] sm:$0x1]
      %v316 = vlaneseq
      %v317 = vshrl.u32 %v316, 7
      %v318 = vsub.s32 0, %v317
      %v319 = vrot.slane %v314, %v318
      %v321 = vmul.f32 %v309, %v319
      %v322 = vmul.f32 %v310, %v319
      %v323 = vmul.f32 %v311, %v319
      %v324 = vmul.f32 %v312, %v319
      %v325 = vld [vmem:[%s277] sm:$0x7]
      %v326 = vld [vmem:[%s277 + $0x4] sm:$0x7]
      %v327 = vld [vmem:[%s277 + $0x8] sm:$0x7]
      %v328 = vld [vmem:[%s277 + $0xc] sm:$0x7]
      %v329 = vunpack.c.l.bf16 %v325
      %v330 = vunpack.c.l.bf16 %v326
      %v331 = vunpack.c.l.bf16 %v327
      %v332 = vunpack.c.l.bf16 %v328
      %s333 = scalar_lea.vmem %s1, 2
      %v334 = vld [vmem:[%s333] sm:$0x1]
      %v336 = vlaneseq
      %v337 = vshrl.u32 %v336, 7
      %v338 = vsub.s32 0, %v337
      %v339 = vrot.slane %v334, %v338
      %v341 = vmul.f32 %v329, %v339
      %v342 = vmul.f32 %v330, %v339
      %v343 = vmul.f32 %v331, %v339
      %v344 = vmul.f32 %v332, %v339
      %s345 = scalar_lea.vmem %s277, 40
      %v346 = vld [vmem:[%s345] sm:$0x3]
      %v347 = vld [vmem:[%s345 + $0x4] sm:$0x3]
      %v348 = vld [vmem:[%s345 + $0x8] sm:$0x3]
      %v349 = vld [vmem:[%s345 + $0xc] sm:$0x3]
      %v350 = vunpack.c.l.bf16 %v346
      %v351 = vunpack.c.l.bf16 %v347
      %v352 = vunpack.c.l.bf16 %v348
      %v353 = vunpack.c.l.bf16 %v349
      %s354 = scalar_lea.vmem %s1, 3
      %v355 = vld [vmem:[%s354] sm:$0x1]
      %v357 = vlaneseq
      %v358 = vshrl.u32 %v357, 7
      %v359 = vsub.s32 0, %v358
      %v360 = vrot.slane %v355, %v359
      %v362 = vmul.f32 %v350, %v360
      %v363 = vmul.f32 %v351, %v360
      %v364 = vmul.f32 %v352, %v360
      %v365 = vmul.f32 %v353, %v360
      %v366 = vadd.f32 %v300, %v362
      %v367 = vadd.f32 %v301, %v363
      %v368 = vadd.f32 %v302, %v364
      %v369 = vadd.f32 %v303, %v365
      %s370 = scalar_lea.vmem %s277, 60
      %v371 = vld [vmem:[%s370] sm:$0x3]
      %v372 = vld [vmem:[%s370 + $0x4] sm:$0x3]
      %v373 = vld [vmem:[%s370 + $0x8] sm:$0x3]
      %v374 = vld [vmem:[%s370 + $0xc] sm:$0x3]
      %v375 = vunpack.c.l.bf16 %v371
      %v376 = vunpack.c.l.bf16 %v372
      %v377 = vunpack.c.l.bf16 %v373
      %v378 = vunpack.c.l.bf16 %v374
      %s379 = scalar_lea.vmem %s1, 4
      %v380 = vld [vmem:[%s379] sm:$0x1]
      %v382 = vlaneseq
      %v383 = vshrl.u32 %v382, 7
      %v384 = vsub.s32 0, %v383
      %v385 = vrot.slane %v380, %v384
      %v387 = vmul.f32 %v375, %v385
      %v388 = vmul.f32 %v376, %v385
      %v389 = vmul.f32 %v377, %v385
      %v390 = vmul.f32 %v378, %v385
      %v391 = vadd.f32 %v321, %v387
      %v392 = vadd.f32 %v322, %v388
      %v393 = vadd.f32 %v323, %v389
      %v394 = vadd.f32 %v324, %v390
      %v395 = vld [vmem:[%s345] sm:$0x7]
      %v396 = vld [vmem:[%s345 + $0x4] sm:$0x7]
      %v397 = vld [vmem:[%s345 + $0x8] sm:$0x7]
      %v398 = vld [vmem:[%s345 + $0xc] sm:$0x7]
      %v399 = vunpack.c.l.bf16 %v395
      %v400 = vunpack.c.l.bf16 %v396
      %v401 = vunpack.c.l.bf16 %v397
      %v402 = vunpack.c.l.bf16 %v398
      %s403 = scalar_lea.vmem %s1, 5
      %v404 = vld [vmem:[%s403] sm:$0x1]
      %v406 = vlaneseq
      %v407 = vshrl.u32 %v406, 7
      %v408 = vsub.s32 0, %v407
      %v409 = vrot.slane %v404, %v408
      %v411 = vmul.f32 %v399, %v409
      %v412 = vmul.f32 %v400, %v409
      %v413 = vmul.f32 %v401, %v409
      %v414 = vmul.f32 %v402, %v409
      %v415 = vadd.f32 %v341, %v411
      %v416 = vadd.f32 %v342, %v412
      %v417 = vadd.f32 %v343, %v413
      %v418 = vadd.f32 %v344, %v414
      %s419 = scalar_lea.vmem %s277, 4
      %v420 = vld [vmem:[%s419] sm:$0x3]
      %v421 = vld [vmem:[%s419 + $0x4] sm:$0x3]
      %v422 = vld [vmem:[%s419 + $0x8] sm:$0x3]
      %v423 = vld [vmem:[%s419 + $0xc] sm:$0x3]
      %v424 = vunpack.c.l.bf16 %v420
      %v425 = vunpack.c.l.bf16 %v421
      %v426 = vunpack.c.l.bf16 %v422
      %v427 = vunpack.c.l.bf16 %v423
      %s428 = scalar_lea.vmem %s1, 6
      %v429 = vld [vmem:[%s428] sm:$0x1]
      %v431 = vlaneseq
      %v432 = vshrl.u32 %v431, 7
      %v433 = vsub.s32 0, %v432
      %v434 = vrot.slane %v429, %v433
      %v436 = vmul.f32 %v424, %v434
      %v437 = vmul.f32 %v425, %v434
      %v438 = vmul.f32 %v426, %v434
      %v439 = vmul.f32 %v427, %v434
      %v440 = vadd.f32 %v366, %v436
      %v441 = vadd.f32 %v367, %v437
      %v442 = vadd.f32 %v368, %v438
      %v443 = vadd.f32 %v369, %v439
      %s444 = scalar_lea.vmem %s277, 24
      %v445 = vld [vmem:[%s444] sm:$0x3]
      %v446 = vld [vmem:[%s444 + $0x4] sm:$0x3]
      %v447 = vld [vmem:[%s444 + $0x8] sm:$0x3]
      %v448 = vld [vmem:[%s444 + $0xc] sm:$0x3]
      %v449 = vunpack.c.l.bf16 %v445
      %v450 = vunpack.c.l.bf16 %v446
      %v451 = vunpack.c.l.bf16 %v447
      %v452 = vunpack.c.l.bf16 %v448
      %s453 = scalar_lea.vmem %s1, 7
      %v454 = vld [vmem:[%s453] sm:$0x1]
      %v456 = vlaneseq
      %v457 = vshrl.u32 %v456, 7
      %v458 = vsub.s32 0, %v457
      %v459 = vrot.slane %v454, %v458
      %v461 = vmul.f32 %v449, %v459
      %v462 = vmul.f32 %v450, %v459
      %v463 = vmul.f32 %v451, %v459
      %v464 = vmul.f32 %v452, %v459
      %v465 = vadd.f32 %v391, %v461
      %v466 = vadd.f32 %v392, %v462
      %v467 = vadd.f32 %v393, %v463
      %v468 = vadd.f32 %v394, %v464
      %v469 = vld [vmem:[%s419] sm:$0x7]
      %v470 = vld [vmem:[%s419 + $0x4] sm:$0x7]
      %v471 = vld [vmem:[%s419 + $0x8] sm:$0x7]
      %v472 = vld [vmem:[%s419 + $0xc] sm:$0x7]
      %v473 = vunpack.c.l.bf16 %v469
      %v474 = vunpack.c.l.bf16 %v470
      %v475 = vunpack.c.l.bf16 %v471
      %v476 = vunpack.c.l.bf16 %v472
      %s477 = scalar_lea.vmem %s1, 8
      %v478 = vld [vmem:[%s477] sm:$0x1]
      %v480 = vlaneseq
      %v481 = vshrl.u32 %v480, 7
      %v482 = vsub.s32 0, %v481
      %v483 = vrot.slane %v478, %v482
      %v485 = vmul.f32 %v473, %v483
      %v486 = vmul.f32 %v474, %v483
      %v487 = vmul.f32 %v475, %v483
      %v488 = vmul.f32 %v476, %v483
      %v489 = vadd.f32 %v415, %v485
      %v490 = vadd.f32 %v416, %v486
      %v491 = vadd.f32 %v417, %v487
      %v492 = vadd.f32 %v418, %v488
      %v493 = vadd.f32 %v440, %v465
      %v494 = vadd.f32 %v441, %v466
      %v495 = vadd.f32 %v442, %v467
      %v496 = vadd.f32 %v443, %v468
      %v501 = vrot.slane %v489, 1
      %v502 = vrot.slane %v490, 1
      %v503 = vrot.slane %v491, 1
      %v504 = vrot.slane %v492, 1
      %v509 = vadd.f32 %v493, %v501
      %v510 = vadd.f32 %v494, %v502
      %v511 = vadd.f32 %v495, %v503
      %v512 = vadd.f32 %v496, %v504
      %v513 = vld [vmem:[%s2] sm:$0x1]
      %v515 = vlaneseq
      %v516 = vshrl.u32 %v515, 7
      %v517 = vsub.s32 0, %v516
      %v518 = vrot.slane %v513, %v517
      %v520 = vmul.f32 %v509, %v518
      %v521 = vmul.f32 %v510, %v518
      %v522 = vmul.f32 %v511, %v518
      %v523 = vmul.f32 %v512, %v518
      %v524 = vld [vmem:[%s3] sm:$0x1]
      %v526 = vlaneseq
      %v527 = vshrl.u32 %v526, 7
      %v528 = vsub.s32 0, %v527
      %v529 = vrot.slane %v524, %v528
      %v531 = vadd.f32 %v520, %v529
      %v532 = vadd.f32 %v521, %v529
      %v533 = vadd.f32 %v522, %v529
      %v534 = vadd.f32 %v523, %v529
      %v539 = vcombine.low %v531, %v532
      %v540 = vcombine.low %v533, %v534
      %v543 = vpack.c.bf16 %v540, %v539
      %v544 = vld [vmem:[%s4] sm:$0xf]
      %vm545 = vcmask 64512
      %v547 = vsel %vm545, %v543, 0
      %vm549 = vcmask 1043456
      %v551 = vsel %vm549, %v544, 0
      %553 = vmatprep.subr.bf16.mxu0 0
      %554 = vmatpush1.bf16.msra.mxu0 %v551
      %555 = vmatprep.subr.bf16.mxu0 0
      %556 = vmatpush1.bf16.msra.mxu0 0
      %557 = vmatprep.subr.bf16.mxu0 0
      %558 = vmatpush1.bf16.msra.mxu0 0
      %559 = vmatprep.subr.bf16.mxu0 0
      %560 = vmatpush1.bf16.msra.mxu0 0
      %561 = vmatprep.subr.bf16.mxu0 0
      %562 = vmatpush1.bf16.msra.mxu0 0
      %563 = vmatprep.subr.bf16.mxu0 0
      %564 = vmatpush1.bf16.msra.mxu0 0
      %565 = vmatprep.subr.bf16.mxu0 0
      %566 = vmatpush1.bf16.msra.mxu0 0
      %567 = vmatprep.subr.bf16.mxu0 0
      %568 = vmatpush1.bf16.msra.mxu0 0
      %569 = vmatprep.subr.bf16.mxu0 0
      %570 = vmatpush1.bf16.msra.mxu0 0
      %571 = vmatprep.subr.bf16.mxu0 0
      %572 = vmatpush1.bf16.msra.mxu0 0
      %573 = vmatprep.subr.bf16.mxu0 0
      %574 = vmatpush1.bf16.msra.mxu0 0
      %575 = vmatprep.subr.bf16.mxu0 0
      %576 = vmatpush1.bf16.msra.mxu0 0
      %577 = vmatprep.subr.bf16.mxu0 0
      %578 = vmatpush1.bf16.msra.mxu0 0
      %579 = vmatprep.subr.bf16.mxu0 0
      %580 = vmatpush1.bf16.msra.mxu0 0
      %581 = vmatprep.subr.bf16.mxu0 0
      %582 = vmatpush1.bf16.msra.mxu0 0
      %583 = vmatprep.subr.bf16.mxu0 0
      %584 = vmatpush1.bf16.msra.mxu0 0
      %585 = vmatprep.mubr.bf16.mxu0 0
      %586 = vmatmul.mubr.bf16.gmra.mrb[0].mxu0 %v547
      %v587 = vpop.f32.mrb[0].mxu0
      %v588 = vadd.f32 0.0, %v587
      %v589 = vpop.f32.mrb[0].mxu0
      %v590 = vpop.f32.mrb[0].mxu0
      %v591 = vadd.f32 0.0, %v590
      %v592 = vpop.f32.mrb[0].mxu0
      %593 = vdwg.mxu0
      %v594 = vld [vmem:[%s5] sm:$0x1]
      %v596 = vlaneseq
      %v597 = vshrl.u32 %v596, 7
      %v598 = vsub.s32 0, %v597
      %v599 = vrot.slane %v594, %v598
      %v601 = vmul.f32 %v588, %v599
      %v602 = vmul.f32 %v591, %v599
      %v603 = vld [vmem:[%s6] sm:$0x1]
      %v605 = vlaneseq
      %v606 = vshrl.u32 %v605, 7
      %v607 = vsub.s32 0, %v606
      %v608 = vrot.slane %v603, %v607
      %v610 = vadd.f32 %v601, %v608
      %v611 = vadd.f32 %v602, %v608
      %v612 = vmax.f32 %v610, 0.0
      %v613 = vmax.f32 %v611, 0.0
      %v614 = vpack.c.bf16 %v613, %v612
      %v616 = vunpack.c.l.b16 %v614
      %v617 = vunpack.c.h.b16 %v614
      %v618 = vpack.c.b16 %v616, %v616
      %v619 = vpack.c.b16 %v617, %v617
      %vm622 = vcmask 60416
      %623 = vst.msk [vmem:[%s283] sm:$0xf] %vm622, %v618
      %624 = vst.msk [vmem:[%s283 + $0x4] sm:$0xf] %vm622, %v619
      %p625 = scmp.lt.s32.totalorder %s18, 1
      %s626 = scalar_select %p625, %s18, 1
      %s627 = smul.addr %s626, 2
      %s628 = smul.addr %s627, 4
      %s629 = scalar_lea.vmem %s7, %s628
      // Predicated region
      $region49: #{_lambda_.18} parent=47 // pred_check
        %p630 = pneg %p188
      $region50: #{_lambda_.18} parent=47 // pred_check_branch
        %632 = sbr.rel (%p630) target = $region52
      $region51: #{_lambda_.18} parent=47 // pred_region
        _
      $region52: #{_lambda_.18} parent=47 // pred_fallthru
        _
    $region48: #{_lambda_.18} parent=5 // pred_fallthru
      _
    %p633 = scmp.le.s32.totalorder 2, %s13
    // Predicated region
    $region53: #{_lambda_.18} parent=5 // pred_check
      %p634 = pneg %p633
    $region54: #{_lambda_.18} parent=5 // pred_check_branch
      %636 = sbr.rel (%p634) target = $region56
    $region55: #{_lambda_.18} parent=5 // pred_region
      %s637 = ssub.s32 %s13, 2
      // Predicated region
      $region57: #{_lambda_.18} parent=55 // pred_check
        %p638 = pneg %p194
      $region58: #{_lambda_.18} parent=55 // pred_check_branch
        %640 = sbr.rel (%p638) target = $region60
      $region59: #{_lambda_.18} parent=55 // pred_region
        %p641 = scmp.lt.s32.totalorder %s19, 1
        %s642 = scalar_select %p641, %s19, 1
        %s643 = smul.addr %s642, 2
        %s644 = smul.addr %s643, 4
        %s645 = scalar_lea.vmem %s7, %s644
      $region60: #{_lambda_.18} parent=55 // pred_fallthru
        _
    $region56: #{_lambda_.18} parent=5 // pred_fallthru
      _
  $region6: #{_lambda_.18} parent=0 // loop_footer
    %s17 = sadd.s32 1, %s13
  $region7: #{_lambda_.18} parent=0 // loop_footer_branch
    %12 = sbr.rel target = $region3
  $region8: #{_lambda_.18} parent=0 // loop_exit
    _

// kernel: _lambda_.21
$region0: #{_lambda_.21}
  #allocation0 [shape = 'u32[]', space=smem, size = 0x4, offset = 0x4, fixed_abs, tag = 'smem constant byte address 0x4 - core index']
  #allocation1 [shape = 'u32[144,128]{1,0:T(1,128)}', space=vmem, size = 0x12000, scoped, tag = 'internal scratch']
  #allocation2 [shape = 'f32[6,6,8]{2,1,0:T(8,128)}', space=vmem, size = 0x6000, scoped, tag = 'scratch operand']
  %s0 = inlined_call_operand.vmem [shape: bf16[2,16,8], index: 0, kind: input, shape index: {}]
  %s1 = inlined_call_operand.vmem [shape: bf16[8,8], index: 1, kind: input, shape index: {}]
  %s2 = inlined_call_operand.vmem [shape: f32[1,8], index: 2, kind: input, shape index: {}]
  %s3 = inlined_call_operand.vmem [shape: f32[1,8], index: 3, kind: input, shape index: {}]
  %s4 = inlined_call_operand.vmem [shape: f32[9,1,8], index: 4, kind: input, shape index: {}]
  %s5 = inlined_call_operand.vmem [shape: f32[1,8], index: 5, kind: input, shape index: {}]
  %s6 = inlined_call_operand.vmem [shape: f32[1,8], index: 6, kind: input, shape index: {}]
  %s7 = inlined_call_operand.vmem [shape: bf16[8,8], index: 7, kind: input, shape index: {}]
  %s8 = inlined_call_operand.vmem [shape: f32[1,8], index: 8, kind: input, shape index: {}]
  %s9 = inlined_call_operand.vmem [shape: f32[1,8], index: 9, kind: input, shape index: {}]
  %s10 = inlined_call_operand.vmem [shape: bf16[2,16,8], index: 10, kind: output, shape index: {}]
  %s11 = sld [smem:[#allocation0]]
  $region77: #{_lambda_.21} parent=0
    _
  %s13 = ssub.s32 1, %s11
  %s14 = scalar_select 0, %s13, %s11
  loop: start=0, step=1, limit=4
  $region2: #{_lambda_.21} parent=0 // loop_pre_header
    _
  $region3: #{_lambda_.21} parent=0 // loop_header
    %s16 = sphi 0, %s20
    %p17 = scmp.ge.s32.totalorder %s16, 4
    %s26 = sphi 0, %s28
    %s29 = sphi 0, %s26
    %s30 = sphi 0, %s29
    %s46 = sphi 0, %s30
    %s50 = sphi 0, %s50
    %s52 = sphi 0, %s50
    %s53 = sphi 0, %s52
    %s67 = sphi 0, %s53
    %s71 = sphi 0, %s71
    %s73 = sphi 0, %s71
    %s74 = sphi 0, %s73
    %s88 = sphi 0, %s74
    %s92 = sphi 0, %s92
    %s94 = sphi 0, %s92
    %s95 = sphi 0, %s94
    %s109 = sphi 0, %s95
    %s113 = sphi 0, %s113
    %s115 = sphi 0, %s113
    %s116 = sphi 0, %s115
    %s130 = sphi 0, %s116
    %s134 = sphi 0, %s134
    %s136 = sphi 0, %s134
    %s137 = sphi 0, %s136
    %s151 = sphi 0, %s137
    %s155 = sphi 0, %s155
    %s157 = sphi 0, %s155
    %s158 = sphi 0, %s157
    %s172 = sphi 0, %s158
    %s176 = sphi 0, %s176
    %s178 = sphi 0, %s176
    %s179 = sphi 0, %s178
    %s193 = sphi 0, %s179
    %s197 = sphi 0, %s197
    %s199 = sphi 0, %s197
    %s200 = sphi 0, %s199
    %s214 = sphi 0, %s200
    %s218 = sphi 0, %s218
    %s220 = sphi 0, %s218
    %s221 = sphi 0, %s220
    %s235 = sphi 0, %s221
    %s241 = sphi 0, %s243
    %s244 = sphi 0, %s241
    %s245 = sphi 0, %s244
    %s261 = sphi 0, %s245
  $region4: #{_lambda_.21} parent=0 // loop_header_branch
    %19 = sbr.rel (%p17) target = $region8
  $region5: #{_lambda_.21} parent=0 // loop_body
    %s21 = ssub.s32 %s16, 1
    %s22 = ssub.s32 %s16, 2
    %s23 = sadd.s32 %s16, 1
    %s24 = ssub.s32 %s16, %s23
    %p25 = scmp.eq.s32.totalorder %s24, 0
    %s27 = sadd.s32 %s26, 1
    %s28 = scalar_select %p25, %s26, %s27
    %p31 = pneg %p25
    %p32 = scmp.eq.s32.totalorder %s16, 1
    %p33 = por %p31, %p32
    %p34 = scmp.ne.s32.totalorder %s26, %s29
    %p35 = scmp.eq.s32.totalorder %s16, 0
    %p36 = por %p34, %p35
    %p37 = scmp.ne.s32.totalorder %s26, %s29
    %p38 = scmp.eq.s32.totalorder %s21, 1
    %p39 = por %p37, %p38
    %p40 = scmp.ne.s32.totalorder %s29, %s30
    %p41 = scmp.eq.s32.totalorder %s21, 0
    %p42 = por %p40, %p41
    %p43 = scmp.ne.s32.totalorder %s29, %s30
    %p44 = scmp.eq.s32.totalorder %s22, 1
    %p45 = por %p43, %p44
    %p47 = scmp.ne.s32.totalorder %s30, %s46
    %p48 = scmp.eq.s32.totalorder %s22, 0
    %p49 = por %p47, %p48
    %s51 = sadd.s32 %s50, 1
    %p54 = scmp.eq.s32.totalorder %s16, 1
    %p55 = scmp.ne.s32.totalorder %s50, %s52
    %p56 = scmp.eq.s32.totalorder %s16, 0
    %p57 = por %p55, %p56
    %p58 = scmp.ne.s32.totalorder %s50, %s52
    %p59 = scmp.eq.s32.totalorder %s21, 1
    %p60 = por %p58, %p59
    %p61 = scmp.ne.s32.totalorder %s52, %s53
    %p62 = scmp.eq.s32.totalorder %s21, 0
    %p63 = por %p61, %p62
    %p64 = scmp.ne.s32.totalorder %s52, %s53
    %p65 = scmp.eq.s32.totalorder %s22, 1
    %p66 = por %p64, %p65
    %p68 = scmp.ne.s32.totalorder %s53, %s67
    %p69 = scmp.eq.s32.totalorder %s22, 0
    %p70 = por %p68, %p69
    %s72 = sadd.s32 %s71, 1
    %p75 = scmp.eq.s32.totalorder %s16, 1
    %p76 = scmp.ne.s32.totalorder %s71, %s73
    %p77 = scmp.eq.s32.totalorder %s16, 0
    %p78 = por %p76, %p77
    %p79 = scmp.ne.s32.totalorder %s71, %s73
    %p80 = scmp.eq.s32.totalorder %s21, 1
    %p81 = por %p79, %p80
    %p82 = scmp.ne.s32.totalorder %s73, %s74
    %p83 = scmp.eq.s32.totalorder %s21, 0
    %p84 = por %p82, %p83
    %p85 = scmp.ne.s32.totalorder %s73, %s74
    %p86 = scmp.eq.s32.totalorder %s22, 1
    %p87 = por %p85, %p86
    %p89 = scmp.ne.s32.totalorder %s74, %s88
    %p90 = scmp.eq.s32.totalorder %s22, 0
    %p91 = por %p89, %p90
    %s93 = sadd.s32 %s92, 1
    %p96 = scmp.eq.s32.totalorder %s16, 1
    %p97 = scmp.ne.s32.totalorder %s92, %s94
    %p98 = scmp.eq.s32.totalorder %s16, 0
    %p99 = por %p97, %p98
    %p100 = scmp.ne.s32.totalorder %s92, %s94
    %p101 = scmp.eq.s32.totalorder %s21, 1
    %p102 = por %p100, %p101
    %p103 = scmp.ne.s32.totalorder %s94, %s95
    %p104 = scmp.eq.s32.totalorder %s21, 0
    %p105 = por %p103, %p104
    %p106 = scmp.ne.s32.totalorder %s94, %s95
    %p107 = scmp.eq.s32.totalorder %s22, 1
    %p108 = por %p106, %p107
    %p110 = scmp.ne.s32.totalorder %s95, %s109
    %p111 = scmp.eq.s32.totalorder %s22, 0
    %p112 = por %p110, %p111
    %s114 = sadd.s32 %s113, 1
    %p117 = scmp.eq.s32.totalorder %s16, 1
    %p118 = scmp.ne.s32.totalorder %s113, %s115
    %p119 = scmp.eq.s32.totalorder %s16, 0
    %p120 = por %p118, %p119
    %p121 = scmp.ne.s32.totalorder %s113, %s115
    %p122 = scmp.eq.s32.totalorder %s21, 1
    %p123 = por %p121, %p122
    %p124 = scmp.ne.s32.totalorder %s115, %s116
    %p125 = scmp.eq.s32.totalorder %s21, 0
    %p126 = por %p124, %p125
    %p127 = scmp.ne.s32.totalorder %s115, %s116
    %p128 = scmp.eq.s32.totalorder %s22, 1
    %p129 = por %p127, %p128
    %p131 = scmp.ne.s32.totalorder %s116, %s130
    %p132 = scmp.eq.s32.totalorder %s22, 0
    %p133 = por %p131, %p132
    %s135 = sadd.s32 %s134, 1
    %p138 = scmp.eq.s32.totalorder %s16, 1
    %p139 = scmp.ne.s32.totalorder %s134, %s136
    %p140 = scmp.eq.s32.totalorder %s16, 0
    %p141 = por %p139, %p140
    %p142 = scmp.ne.s32.totalorder %s134, %s136
    %p143 = scmp.eq.s32.totalorder %s21, 1
    %p144 = por %p142, %p143
    %p145 = scmp.ne.s32.totalorder %s136, %s137
    %p146 = scmp.eq.s32.totalorder %s21, 0
    %p147 = por %p145, %p146
    %p148 = scmp.ne.s32.totalorder %s136, %s137
    %p149 = scmp.eq.s32.totalorder %s22, 1
    %p150 = por %p148, %p149
    %p152 = scmp.ne.s32.totalorder %s137, %s151
    %p153 = scmp.eq.s32.totalorder %s22, 0
    %p154 = por %p152, %p153
    %s156 = sadd.s32 %s155, 1
    %p159 = scmp.eq.s32.totalorder %s16, 1
    %p160 = scmp.ne.s32.totalorder %s155, %s157
    %p161 = scmp.eq.s32.totalorder %s16, 0
    %p162 = por %p160, %p161
    %p163 = scmp.ne.s32.totalorder %s155, %s157
    %p164 = scmp.eq.s32.totalorder %s21, 1
    %p165 = por %p163, %p164
    %p166 = scmp.ne.s32.totalorder %s157, %s158
    %p167 = scmp.eq.s32.totalorder %s21, 0
    %p168 = por %p166, %p167
    %p169 = scmp.ne.s32.totalorder %s157, %s158
    %p170 = scmp.eq.s32.totalorder %s22, 1
    %p171 = por %p169, %p170
    %p173 = scmp.ne.s32.totalorder %s158, %s172
    %p174 = scmp.eq.s32.totalorder %s22, 0
    %p175 = por %p173, %p174
    %s177 = sadd.s32 %s176, 1
    %p180 = scmp.eq.s32.totalorder %s16, 1
    %p181 = scmp.ne.s32.totalorder %s176, %s178
    %p182 = scmp.eq.s32.totalorder %s16, 0
    %p183 = por %p181, %p182
    %p184 = scmp.ne.s32.totalorder %s176, %s178
    %p185 = scmp.eq.s32.totalorder %s21, 1
    %p186 = por %p184, %p185
    %p187 = scmp.ne.s32.totalorder %s178, %s179
    %p188 = scmp.eq.s32.totalorder %s21, 0
    %p189 = por %p187, %p188
    %p190 = scmp.ne.s32.totalorder %s178, %s179
    %p191 = scmp.eq.s32.totalorder %s22, 1
    %p192 = por %p190, %p191
    %p194 = scmp.ne.s32.totalorder %s179, %s193
    %p195 = scmp.eq.s32.totalorder %s22, 0
    %p196 = por %p194, %p195
    %s198 = sadd.s32 %s197, 1
    %p201 = scmp.eq.s32.totalorder %s16, 1
    %p202 = scmp.ne.s32.totalorder %s197, %s199
    %p203 = scmp.eq.s32.totalorder %s16, 0
    %p204 = por %p202, %p203
    %p205 = scmp.ne.s32.totalorder %s197, %s199
    %p206 = scmp.eq.s32.totalorder %s21, 1
    %p207 = por %p205, %p206
    %p208 = scmp.ne.s32.totalorder %s199, %s200
    %p209 = scmp.eq.s32.totalorder %s21, 0
    %p210 = por %p208, %p209
    %p211 = scmp.ne.s32.totalorder %s199, %s200
    %p212 = scmp.eq.s32.totalorder %s22, 1
    %p213 = por %p211, %p212
    %p215 = scmp.ne.s32.totalorder %s200, %s214
    %p216 = scmp.eq.s32.totalorder %s22, 0
    %p217 = por %p215, %p216
    %s219 = sadd.s32 %s218, 1
    %p222 = scmp.eq.s32.totalorder %s16, 1
    %p223 = scmp.ne.s32.totalorder %s218, %s220
    %p224 = scmp.eq.s32.totalorder %s16, 0
    %p225 = por %p223, %p224
    %p226 = scmp.ne.s32.totalorder %s218, %s220
    %p227 = scmp.eq.s32.totalorder %s21, 1
    %p228 = por %p226, %p227
    %p229 = scmp.ne.s32.totalorder %s220, %s221
    %p230 = scmp.eq.s32.totalorder %s21, 0
    %p231 = por %p229, %p230
    %p232 = scmp.ne.s32.totalorder %s220, %s221
    %p233 = scmp.eq.s32.totalorder %s22, 1
    %p234 = por %p232, %p233
    %p236 = scmp.ne.s32.totalorder %s221, %s235
    %p237 = scmp.eq.s32.totalorder %s22, 0
    %p238 = por %p236, %p237
    %s239 = ssub.s32 %s16, %s23
    %p240 = scmp.eq.s32.totalorder %s239, 0
    %s242 = sadd.s32 %s241, 1
    %s243 = scalar_select %p240, %s241, %s242
    %p246 = pneg %p240
    %p247 = scmp.eq.s32.totalorder %s16, 1
    %p248 = por %p246, %p247
    %p249 = scmp.ne.s32.totalorder %s241, %s244
    %p250 = scmp.eq.s32.totalorder %s16, 0
    %p251 = por %p249, %p250
    %p252 = scmp.ne.s32.totalorder %s241, %s244
    %p253 = scmp.eq.s32.totalorder %s21, 1
    %p254 = por %p252, %p253
    %p255 = scmp.ne.s32.totalorder %s244, %s245
    %p256 = scmp.eq.s32.totalorder %s21, 0
    %p257 = por %p255, %p256
    %p258 = scmp.ne.s32.totalorder %s244, %s245
    %p259 = scmp.eq.s32.totalorder %s22, 1
    %p260 = por %p258, %p259
    %p262 = scmp.ne.s32.totalorder %s245, %s261
    %p263 = scmp.eq.s32.totalorder %s22, 0
    %p264 = por %p262, %p263
    %p265 = scmp.le.s32.totalorder 1, %s16
    %p266 = scmp.lt.s32.totalorder %s16, 3
    %p267 = pnand %p265, %p266
    %p268 = pneg %p267
    // Predicated region
    $region9: #{_lambda_.21} parent=5 // pred_check
      _
    $region10: #{_lambda_.21} parent=5 // pred_check_branch
      %270 = sbr.rel (%p267) target = $region12
    $region11: #{_lambda_.21} parent=5 // pred_region
      %s271 = ssub.s32 %s16, 1
      // Predicated region
      $region13: #{_lambda_.21} parent=11 // pred_check
        %p272 = pneg %p63
      $region14: #{_lambda_.21} parent=11 // pred_check_branch
        %274 = sbr.rel (%p272) target = $region16
      $region15: #{_lambda_.21} parent=11 // pred_region
        _
      $region16: #{_lambda_.21} parent=11 // pred_fallthru
        _
      // Predicated region
      $region17: #{_lambda_.21} parent=11 // pred_check
        %p275 = pneg %p84
      $region18: #{_lambda_.21} parent=11 // pred_check_branch
        %277 = sbr.rel (%p275) target = $region20
      $region19: #{_lambda_.21} parent=11 // pred_region
        _
      $region20: #{_lambda_.21} parent=11 // pred_fallthru
        _
      // Predicated region
      $region21: #{_lambda_.21} parent=11 // pred_check
        %p278 = pneg %p105
      $region22: #{_lambda_.21} parent=11 // pred_check_branch
        %280 = sbr.rel (%p278) target = $region24
      $region23: #{_lambda_.21} parent=11 // pred_region
        _
      $region24: #{_lambda_.21} parent=11 // pred_fallthru
        _
      // Predicated region
      $region25: #{_lambda_.21} parent=11 // pred_check
        %p281 = pneg %p126
      $region26: #{_lambda_.21} parent=11 // pred_check_branch
        %283 = sbr.rel (%p281) target = $region28
      $region27: #{_lambda_.21} parent=11 // pred_region
        _
      $region28: #{_lambda_.21} parent=11 // pred_fallthru
        _
      // Predicated region
      $region29: #{_lambda_.21} parent=11 // pred_check
        %p284 = pneg %p147
      $region30: #{_lambda_.21} parent=11 // pred_check_branch
        %286 = sbr.rel (%p284) target = $region32
      $region31: #{_lambda_.21} parent=11 // pred_region
        _
      $region32: #{_lambda_.21} parent=11 // pred_fallthru
        _
      // Predicated region
      $region33: #{_lambda_.21} parent=11 // pred_check
        %p287 = pneg %p168
      $region34: #{_lambda_.21} parent=11 // pred_check_branch
        %289 = sbr.rel (%p287) target = $region36
      $region35: #{_lambda_.21} parent=11 // pred_region
        _
      $region36: #{_lambda_.21} parent=11 // pred_fallthru
        _
      // Predicated region
      $region37: #{_lambda_.21} parent=11 // pred_check
        %p290 = pneg %p189
      $region38: #{_lambda_.21} parent=11 // pred_check_branch
        %292 = sbr.rel (%p290) target = $region40
      $region39: #{_lambda_.21} parent=11 // pred_region
        _
      $region40: #{_lambda_.21} parent=11 // pred_fallthru
        _
      // Predicated region
      $region41: #{_lambda_.21} parent=11 // pred_check
        %p293 = pneg %p210
      $region42: #{_lambda_.21} parent=11 // pred_check_branch
        %295 = sbr.rel (%p293) target = $region44
      $region43: #{_lambda_.21} parent=11 // pred_region
        _
      $region44: #{_lambda_.21} parent=11 // pred_fallthru
        _
      // Predicated region
      $region45: #{_lambda_.21} parent=11 // pred_check
        %p296 = pneg %p231
      $region46: #{_lambda_.21} parent=11 // pred_check_branch
        %298 = sbr.rel (%p296) target = $region48
      $region47: #{_lambda_.21} parent=11 // pred_region
        _
      $region48: #{_lambda_.21} parent=11 // pred_fallthru
        _
    $region12: #{_lambda_.21} parent=5 // pred_fallthru
      _
    %p299 = scmp.lt.s32.totalorder %s16, 2
    // Predicated region
    $region49: #{_lambda_.21} parent=5 // pred_check
      %p300 = pneg %p299
    $region50: #{_lambda_.21} parent=5 // pred_check_branch
      %302 = sbr.rel (%p300) target = $region52
    $region51: #{_lambda_.21} parent=5 // pred_region
      // Predicated region
      $region53: #{_lambda_.21} parent=51 // pred_check
        %p303 = pneg %p36
      $region54: #{_lambda_.21} parent=51 // pred_check_branch
        %305 = sbr.rel (%p303) target = $region56
      $region55: #{_lambda_.21} parent=51 // pred_region
        %p306 = scmp.lt.s32.totalorder %s16, 1
        %s307 = scalar_select %p306, %s16, 1
        %s308 = smul.addr %s307, 2
        %s309 = smul.addr %s308, 4
        %s310 = scalar_lea.vmem %s0, %s309
      $region56: #{_lambda_.21} parent=51 // pred_fallthru
        _
    $region52: #{_lambda_.21} parent=5 // pred_fallthru
      _
    %p311 = scmp.le.s32.totalorder 1, %s16
    %p312 = scmp.lt.s32.totalorder %s16, 3
    %p313 = pnand %p311, %p312
    %p314 = pneg %p313
    // Predicated region
    $region57: #{_lambda_.21} parent=5 // pred_check
      _
    $region58: #{_lambda_.21} parent=5 // pred_check_branch
      %316 = sbr.rel (%p313) target = $region60
    $region59: #{_lambda_.21} parent=5 // pred_region
      %s317 = ssub.s32 %s16, 1
      %p318 = scmp.lt.s32.totalorder %s21, 1
      %s319 = scalar_select %p318, %s21, 1
      %s320 = smul.addr %s319, 2
      %s321 = smul.addr %s320, 4
      %s322 = scalar_lea.vmem %s0, %s321
      %p323 = pneg %p42
      %p324 = pneg %p39
      %p325 = pneg %p63
      %p326 = pneg %p60
      %p327 = pneg %p84
      %p328 = pneg %p81
      %p329 = pneg %p105
      %p330 = pneg %p102
      %p331 = pneg %p126
      %p332 = pneg %p123
      %p333 = pneg %p147
      %p334 = pneg %p144
      %p335 = pneg %p168
      %p336 = pneg %p165
      %p337 = pneg %p189
      %p338 = pneg %p186
      %p339 = pneg %p210
      %p340 = pneg %p207
      %p341 = pneg %p231
      %p342 = pneg %p228
      %p343 = pneg %p257
      %p344 = pneg %p254
      %p345 = scmp.lt.s32.totalorder %s21, 1
      %s346 = scalar_select %p345, %s21, 1
      %s347 = smul.addr %s346, 2
      %s348 = smul.addr %s347, 4
      %s349 = scalar_lea.vmem %s10, %s348
      %p350 = scmp.lt.s32.totalorder %s21, 1
      %s351 = scalar_select %p350, %s21, 1
      %s352 = smul.addr %s351, 2
      %s353 = smul.addr %s352, 4
      %s354 = scalar_lea.vmem %s0, %s353
      %p355 = scmp.lt.s32.totalorder %s21, 1
      %s356 = scalar_select %p355, %s21, 1
      %s357 = smul.addr %s356, 2
      %s358 = smul.addr %s357, 4
      %s359 = scalar_lea.vmem %s10, %s358
      %p361 = scmp.eq.s32.totalorder %s21, 0
      // Predicated region
      $region61: #{_lambda_.21} parent=59 // pred_check
        %p362 = pneg %p361
      $region62: #{_lambda_.21} parent=59 // pred_check_branch
        %364 = sbr.rel (%p362) target = $region64
      $region63: #{_lambda_.21} parent=59 // pred_region
        %vm365 = vcmask 62464
        %366 = vst.msk [vmem:[#allocation2] sm:$0x3f] %vm365, 0.0
        %367 = vst.msk [vmem:[#allocation2 + $0x8] sm:$0x3f] %vm365, 0.0
        %368 = vst.msk [vmem:[#allocation2 + $0x10] sm:$0x3f] %vm365, 0.0
        %369 = vst.msk [vmem:[#allocation2 + $0x18] sm:$0x3f] %vm365, 0.0
        %370 = vst.msk [vmem:[#allocation2 + $0x20] sm:$0x3f] %vm365, 0.0
        %371 = vst.msk [vmem:[#allocation2 + $0x28] sm:$0x3f] %vm365, 0.0
      $region64: #{_lambda_.21} parent=59 // pred_fallthru
        _
      %v372 = vld [vmem:[%s354] sm:$0xf]
      %v373 = vld [vmem:[%s354 + $0x4] sm:$0xf]
      %v374 = vld [vmem:[%s1] sm:$0xf]
      %v377 = vunpack.c.l.b16 %v372
      %v378 = vunpack.c.l.b16 %v373
      %v379 = vpack.c.b16 %v378, %v377
      %vm380 = vcmask 64512
      %v382 = vsel %vm380, %v379, 0
      %vm384 = vcmask 1043456
      %v386 = vsel %vm384, %v374, 0
      %388 = vmatprep.subr.bf16.mxu0 0
      %389 = vmatpush1.bf16.msra.mxu0 %v386
      %390 = vmatprep.subr.bf16.mxu0 0
      %391 = vmatpush1.bf16.msra.mxu0 0
      %392 = vmatprep.subr.bf16.mxu0 0
      %393 = vmatpush1.bf16.msra.mxu0 0
      %394 = vmatprep.subr.bf16.mxu0 0
      %395 = vmatpush1.bf16.msra.mxu0 0
      %396 = vmatprep.subr.bf16.mxu0 0
      %397 = vmatpush1.bf16.msra.mxu0 0
      %398 = vmatprep.subr.bf16.mxu0 0
      %399 = vmatpush1.bf16.msra.mxu0 0
      %400 = vmatprep.subr.bf16.mxu0 0
      %401 = vmatpush1.bf16.msra.mxu0 0
      %402 = vmatprep.subr.bf16.mxu0 0
      %403 = vmatpush1.bf16.msra.mxu0 0
      %404 = vmatprep.subr.bf16.mxu0 0
      %405 = vmatpush1.bf16.msra.mxu0 0
      %406 = vmatprep.subr.bf16.mxu0 0
      %407 = vmatpush1.bf16.msra.mxu0 0
      %408 = vmatprep.subr.bf16.mxu0 0
      %409 = vmatpush1.bf16.msra.mxu0 0
      %410 = vmatprep.subr.bf16.mxu0 0
      %411 = vmatpush1.bf16.msra.mxu0 0
      %412 = vmatprep.subr.bf16.mxu0 0
      %413 = vmatpush1.bf16.msra.mxu0 0
      %414 = vmatprep.subr.bf16.mxu0 0
      %415 = vmatpush1.bf16.msra.mxu0 0
      %416 = vmatprep.subr.bf16.mxu0 0
      %417 = vmatpush1.bf16.msra.mxu0 0
      %418 = vmatprep.subr.bf16.mxu0 0
      %419 = vmatpush1.bf16.msra.mxu0 0
      %420 = vmatprep.mubr.bf16.mxu0 0
      %421 = vmatmul.mubr.bf16.gmra.mrb[0].mxu0 %v382
      %v422 = vpop.f32.mrb[0].mxu0
      %v423 = vadd.f32 0.0, %v422
      %v424 = vpop.f32.mrb[0].mxu0
      %v425 = vpop.f32.mrb[0].mxu0
      %v426 = vadd.f32 0.0, %v425
      %v427 = vpop.f32.mrb[0].mxu0
      %428 = vdwg.mxu0
      %v429 = vld [vmem:[%s2] sm:$0x1]
      %v431 = vlaneseq
      %v432 = vshrl.u32 %v431, 7
      %v433 = vsub.s32 0, %v432
      %v434 = vrot.slane %v429, %v433
      %v436 = vmul.f32 %v423, %v434
      %v437 = vmul.f32 %v426, %v434
      %v438 = vld [vmem:[%s3] sm:$0x1]
      %v440 = vlaneseq
      %v441 = vshrl.u32 %v440, 7
      %v442 = vsub.s32 0, %v441
      %v443 = vrot.slane %v438, %v442
      %v445 = vadd.f32 %v436, %v443
      %v446 = vadd.f32 %v437, %v443
      %v447 = vmax.f32 %v445, 0.0
      %v448 = vmax.f32 %v446, 0.0
      %v451 = vcombine.high %v447, %v447
      %v452 = vcombine.high %v448, %v448
      %s455 = scalar_lea.vmem [#allocation2], 8
      %vm456 = vcmask 60416
      %457 = vst.msk [vmem:[%s455 + $0x1] sm:$0xf] %vm456, %v447
      %458 = vst.msk [vmem:[%s455 + $0x9] sm:$0xf] %vm456, %v451
      %459 = vst.msk [vmem:[%s455 + $0x11] sm:$0xf] %vm456, %v448
      %460 = vst.msk [vmem:[%s455 + $0x19] sm:$0xf] %vm456, %v452
      %v461 = vld [vmem:[#allocation2] sm:$0xf]
      %v462 = vld [vmem:[#allocation2 + $0x8] sm:$0xf]
      %v463 = vld [vmem:[#allocation2 + $0x10] sm:$0xf]
      %v464 = vld [vmem:[#allocation2 + $0x18] sm:$0xf]
      %v465 = vld [vmem:[%s4] sm:$0x1]
      %v467 = vlaneseq
      %v468 = vshrl.u32 %v467, 7
      %v469 = vsub.s32 0, %v468
      %v470 = vrot.slane %v465, %v469
      %v472 = vmul.f32 %v461, %v470
      %v473 = vmul.f32 %v462, %v470
      %v474 = vmul.f32 %v463, %v470
      %v475 = vmul.f32 %v464, %v470
      %v476 = vld [vmem:[#allocation2 + $0x1] sm:$0xf]
      %v477 = vld [vmem:[#allocation2 + $0x9] sm:$0xf]
      %v478 = vld [vmem:[#allocation2 + $0x11] sm:$0xf]
      %v479 = vld [vmem:[#allocation2 + $0x19] sm:$0xf]
      %s480 = scalar_lea.vmem %s4, 1
      %v481 = vld [vmem:[%s480] sm:$0x1]
      %v483 = vlaneseq
      %v484 = vshrl.u32 %v483, 7
      %v485 = vsub.s32 0, %v484
      %v486 = vrot.slane %v481, %v485
      %v488 = vmul.f32 %v476, %v486
      %v489 = vmul.f32 %v477, %v486
      %v490 = vmul.f32 %v478, %v486
      %v491 = vmul.f32 %v479, %v486
      %v492 = vld [vmem:[#allocation2 + $0x2] sm:$0xf]
      %v493 = vld [vmem:[#allocation2 + $0xa] sm:$0xf]
      %v494 = vld [vmem:[#allocation2 + $0x12] sm:$0xf]
      %v495 = vld [vmem:[#allocation2 + $0x1a] sm:$0xf]
      %s496 = scalar_lea.vmem %s4, 2
      %v497 = vld [vmem:[%s496] sm:$0x1]
      %v499 = vlaneseq
      %v500 = vshrl.u32 %v499, 7
      %v501 = vsub.s32 0, %v500
      %v502 = vrot.slane %v497, %v501
      %v504 = vmul.f32 %v492, %v502
      %v505 = vmul.f32 %v493, %v502
      %v506 = vmul.f32 %v494, %v502
      %v507 = vmul.f32 %v495, %v502
      %v508 = vld [vmem:[%s455] sm:$0xf]
      %v509 = vld [vmem:[%s455 + $0x8] sm:$0xf]
      %v510 = vld [vmem:[%s455 + $0x10] sm:$0xf]
      %v511 = vld [vmem:[%s455 + $0x18] sm:$0xf]
      %s512 = scalar_lea.vmem %s4, 3
      %v513 = vld [vmem:[%s512] sm:$0x1]
      %v515 = vlaneseq
      %v516 = vshrl.u32 %v515, 7
      %v517 = vsub.s32 0, %v516
      %v518 = vrot.slane %v513, %v517
      %v520 = vmul.f32 %v508, %v518
      %v521 = vmul.f32 %v509, %v518
      %v522 = vmul.f32 %v510, %v518
      %v523 = vmul.f32 %v511, %v518
      %v524 = vadd.f32 %v472, %v520
      %v525 = vadd.f32 %v473, %v521
      %v526 = vadd.f32 %v474, %v522
      %v527 = vadd.f32 %v475, %v523
      %v528 = vld [vmem:[%s455 + $0x1] sm:$0xf]
      %v529 = vld [vmem:[%s455 + $0x9] sm:$0xf]
      %v530 = vld [vmem:[%s455 + $0x11] sm:$0xf]
      %v531 = vld [vmem:[%s455 + $0x19] sm:$0xf]
      %s532 = scalar_lea.vmem %s4, 4
      %v533 = vld [vmem:[%s532] sm:$0x1]
      %v535 = vlaneseq
      %v536 = vshrl.u32 %v535, 7
      %v537 = vsub.s32 0, %v536
      %v538 = vrot.slane %v533, %v537
      %v540 = vmul.f32 %v528, %v538
      %v541 = vmul.f32 %v529, %v538
      %v542 = vmul.f32 %v530, %v538
      %v543 = vmul.f32 %v531, %v538
      %v544 = vadd.f32 %v488, %v540
      %v545 = vadd.f32 %v489, %v541
      %v546 = vadd.f32 %v490, %v542
      %v547 = vadd.f32 %v491, %v543
      %v548 = vld [vmem:[%s455 + $0x2] sm:$0xf]
      %v549 = vld [vmem:[%s455 + $0xa] sm:$0xf]
      %v550 = vld [vmem:[%s455 + $0x12] sm:$0xf]
      %v551 = vld [vmem:[%s455 + $0x1a] sm:$0xf]
      %s552 = scalar_lea.vmem %s4, 5
      %v553 = vld [vmem:[%s552] sm:$0x1]
      %v555 = vlaneseq
      %v556 = vshrl.u32 %v555, 7
      %v557 = vsub.s32 0, %v556
      %v558 = vrot.slane %v553, %v557
      %v560 = vmul.f32 %v548, %v558
      %v561 = vmul.f32 %v549, %v558
      %v562 = vmul.f32 %v550, %v558
      %v563 = vmul.f32 %v551, %v558
      %v564 = vadd.f32 %v504, %v560
      %v565 = vadd.f32 %v505, %v561
      %v566 = vadd.f32 %v506, %v562
      %v567 = vadd.f32 %v507, %v563
      %s568 = scalar_lea.vmem [#allocation2], 16
      %v569 = vld [vmem:[%s568] sm:$0xf]
      %v570 = vld [vmem:[%s568 + $0x8] sm:$0xf]
      %v571 = vld [vmem:[%s568 + $0x10] sm:$0xf]
      %v572 = vld [vmem:[%s568 + $0x18] sm:$0xf]
      %s573 = scalar_lea.vmem %s4, 6
      %v574 = vld [vmem:[%s573] sm:$0x1]
      %v576 = vlaneseq
      %v577 = vshrl.u32 %v576, 7
      %v578 = vsub.s32 0, %v577
      %v579 = vrot.slane %v574, %v578
      %v581 = vmul.f32 %v569, %v579
      %v582 = vmul.f32 %v570, %v579
      %v583 = vmul.f32 %v571, %v579
      %v584 = vmul.f32 %v572, %v579
      %v585 = vadd.f32 %v524, %v581
      %v586 = vadd.f32 %v525, %v582
      %v587 = vadd.f32 %v526, %v583
      %v588 = vadd.f32 %v527, %v584
      %v589 = vld [vmem:[%s568 + $0x1] sm:$0xf]
      %v590 = vld [vmem:[%s568 + $0x9] sm:$0xf]
      %v591 = vld [vmem:[%s568 + $0x11] sm:$0xf]
      %v592 = vld [vmem:[%s568 + $0x19] sm:$0xf]
      %s593 = scalar_lea.vmem %s4, 7
      %v594 = vld [vmem:[%s593] sm:$0x1]
      %v596 = vlaneseq
      %v597 = vshrl.u32 %v596, 7
      %v598 = vsub.s32 0, %v597
      %v599 = vrot.slane %v594, %v598
      %v601 = vmul.f32 %v589, %v599
      %v602 = vmul.f32 %v590, %v599
      %v603 = vmul.f32 %v591, %v599
      %v604 = vmul.f32 %v592, %v599
      %v605 = vadd.f32 %v544, %v601
      %v606 = vadd.f32 %v545, %v602
      %v607 = vadd.f32 %v546, %v603
      %v608 = vadd.f32 %v547, %v604
      %v609 = vld [vmem:[%s568 + $0x2] sm:$0xf]
      %v610 = vld [vmem:[%s568 + $0xa] sm:$0xf]
      %v611 = vld [vmem:[%s568 + $0x12] sm:$0xf]
      %v612 = vld [vmem:[%s568 + $0x1a] sm:$0xf]
      %s613 = scalar_lea.vmem %s4, 8
      %v614 = vld [vmem:[%s613] sm:$0x1]
      %v616 = vlaneseq
      %v617 = vshrl.u32 %v616, 7
      %v618 = vsub.s32 0, %v617
      %v619 = vrot.slane %v614, %v618
      %v621 = vmul.f32 %v609, %v619
      %v622 = vmul.f32 %v610, %v619
      %v623 = vmul.f32 %v611, %v619
      %v624 = vmul.f32 %v612, %v619
      %v625 = vadd.f32 %v564, %v621
      %v626 = vadd.f32 %v565, %v622
      %v627 = vadd.f32 %v566, %v623
      %v628 = vadd.f32 %v567, %v624
      %v629 = vadd.f32 %v585, %v605
      %v630 = vadd.f32 %v586, %v606
      %v631 = vadd.f32 %v587, %v607
      %v632 = vadd.f32 %v588, %v608
      %v633 = vadd.f32 %v629, %v625
      %v634 = vadd.f32 %v630, %v626
      %v635 = vadd.f32 %v631, %v627
      %v636 = vadd.f32 %v632, %v628
      %v637 = vld [vmem:[%s5] sm:$0x1]
      %v639 = vlaneseq
      %v640 = vshrl.u32 %v639, 7
      %v641 = vsub.s32 0, %v640
      %v642 = vrot.slane %v637, %v641
      %v644 = vmul.f32 %v633, %v642
      %v645 = vmul.f32 %v634, %v642
      %v646 = vmul.f32 %v635, %v642
      %v647 = vmul.f32 %v636, %v642
      %v648 = vld [vmem:[%s6] sm:$0x1]
      %v650 = vlaneseq
      %v651 = vshrl.u32 %v650, 7
      %v652 = vsub.s32 0, %v651
      %v653 = vrot.slane %v648, %v652
      %v655 = vadd.f32 %v644, %v653
      %v656 = vadd.f32 %v645, %v653
      %v657 = vadd.f32 %v646, %v653
      %v658 = vadd.f32 %v647, %v653
      %v663 = vcombine.low %v655, %v656
      %v664 = vcombine.low %v657, %v658
      %v667 = vpack.c.bf16 %v664, %v663
      %v668 = vld [vmem:[%s7] sm:$0xf]
      %v670 = vsel %vm380, %v667, 0
      %v673 = vsel %vm384, %v668, 0
      %675 = vmatprep.subr.bf16.mxu0 0
      %676 = vmatpush1.bf16.msra.mxu0 %v673
      %677 = vmatprep.subr.bf16.mxu0 0
      %678 = vmatpush1.bf16.msra.mxu0 0
      %679 = vmatprep.subr.bf16.mxu0 0
      %680 = vmatpush1.bf16.msra.mxu0 0
      %681 = vmatprep.subr.bf16.mxu0 0
      %682 = vmatpush1.bf16.msra.mxu0 0
      %683 = vmatprep.subr.bf16.mxu0 0
      %684 = vmatpush1.bf16.msra.mxu0 0
      %685 = vmatprep.subr.bf16.mxu0 0
      %686 = vmatpush1.bf16.msra.mxu0 0
      %687 = vmatprep.subr.bf16.mxu0 0
      %688 = vmatpush1.bf16.msra.mxu0 0
      %689 = vmatprep.subr.bf16.mxu0 0
      %690 = vmatpush1.bf16.msra.mxu0 0
      %691 = vmatprep.subr.bf16.mxu0 0
      %692 = vmatpush1.bf16.msra.mxu0 0
      %693 = vmatprep.subr.bf16.mxu0 0
      %694 = vmatpush1.bf16.msra.mxu0 0
      %695 = vmatprep.subr.bf16.mxu0 0
      %696 = vmatpush1.bf16.msra.mxu0 0
      %697 = vmatprep.subr.bf16.mxu0 0
      %698 = vmatpush1.bf16.msra.mxu0 0
      %699 = vmatprep.subr.bf16.mxu0 0
      %700 = vmatpush1.bf16.msra.mxu0 0
      %701 = vmatprep.subr.bf16.mxu0 0
      %702 = vmatpush1.bf16.msra.mxu0 0
      %703 = vmatprep.subr.bf16.mxu0 0
      %704 = vmatpush1.bf16.msra.mxu0 0
      %705 = vmatprep.subr.bf16.mxu0 0
      %706 = vmatpush1.bf16.msra.mxu0 0
      %707 = vmatprep.mubr.bf16.mxu0 0
      %708 = vmatmul.mubr.bf16.gmra.mrb[0].mxu0 %v670
      %v709 = vpop.f32.mrb[0].mxu0
      %v710 = vadd.f32 0.0, %v709
      %v711 = vpop.f32.mrb[0].mxu0
      %v712 = vpop.f32.mrb[0].mxu0
      %v713 = vadd.f32 0.0, %v712
      %v714 = vpop.f32.mrb[0].mxu0
      %715 = vdwg.mxu0
      %v716 = vld [vmem:[%s8] sm:$0x1]
      %v718 = vlaneseq
      %v719 = vshrl.u32 %v718, 7
      %v720 = vsub.s32 0, %v719
      %v721 = vrot.slane %v716, %v720
      %v723 = vmul.f32 %v710, %v721
      %v724 = vmul.f32 %v713, %v721
      %v725 = vld [vmem:[%s9] sm:$0x1]
      %v727 = vlaneseq
      %v728 = vshrl.u32 %v727, 7
      %v729 = vsub.s32 0, %v728
      %v730 = vrot.slane %v725, %v729
      %v732 = vadd.f32 %v723, %v730
      %v733 = vadd.f32 %v724, %v730
      %v734 = vmax.f32 %v732, 0.0
      %v735 = vmax.f32 %v733, 0.0
      %v736 = vpack.c.bf16 %v735, %v734
      %v738 = vunpack.c.l.b16 %v736
      %v739 = vunpack.c.h.b16 %v736
      %v740 = vpack.c.b16 %v738, %v738
      %v741 = vpack.c.b16 %v739, %v739
      %744 = vst.msk [vmem:[%s359] sm:$0xf] %vm456, %v740
      %745 = vst.msk [vmem:[%s359 + $0x4] sm:$0xf] %vm456, %v741
      %p746 = scmp.lt.s32.totalorder %s21, 1
      %s747 = scalar_select %p746, %s21, 1
      %s748 = smul.addr %s747, 2
      %s749 = smul.addr %s748, 4
      %s750 = scalar_lea.vmem %s10, %s749
      // Predicated region
      $region65: #{_lambda_.21} parent=59 // pred_check
        %p751 = pneg %p254
      $region66: #{_lambda_.21} parent=59 // pred_check_branch
        %753 = sbr.rel (%p751) target = $region68
      $region67: #{_lambda_.21} parent=59 // pred_region
        _
      $region68: #{_lambda_.21} parent=59 // pred_fallthru
        _
    $region60: #{_lambda_.21} parent=5 // pred_fallthru
      _
    %p754 = scmp.le.s32.totalorder 2, %s16
    // Predicated region
    $region69: #{_lambda_.21} parent=5 // pred_check
      %p755 = pneg %p754
    $region70: #{_lambda_.21} parent=5 // pred_check_branch
      %757 = sbr.rel (%p755) target = $region72
    $region71: #{_lambda_.21} parent=5 // pred_region
      %s758 = ssub.s32 %s16, 2
      // Predicated region
      $region73: #{_lambda_.21} parent=71 // pred_check
        %p759 = pneg %p260
      $region74: #{_lambda_.21} parent=71 // pred_check_branch
        %761 = sbr.rel (%p759) target = $region76
      $region75: #{_lambda_.21} parent=71 // pred_region
        %p762 = scmp.lt.s32.totalorder %s22, 1
        %s763 = scalar_select %p762, %s22, 1
        %s764 = smul.addr %s763, 2
        %s765 = smul.addr %s764, 4
        %s766 = scalar_lea.vmem %s10, %s765
      $region76: #{_lambda_.21} parent=71 // pred_fallthru
        _
    $region72: #{_lambda_.21} parent=5 // pred_fallthru
      _
  $region6: #{_lambda_.21} parent=0 // loop_footer
    %s20 = sadd.s32 1, %s16
  $region7: #{_lambda_.21} parent=0 // loop_footer_branch
    %15 = sbr.rel target = $region3
  $region8: #{_lambda_.21} parent=0 // loop_exit
    _

// kernel: _lambda_.22
$region0: #{_lambda_.22}
  #allocation0 [shape = 'u32[]', space=smem, size = 0x4, offset = 0x4, fixed_abs, tag = 'smem constant byte address 0x4 - core index']
  #allocation1 [shape = 'u32[144,128]{1,0:T(1,128)}', space=vmem, size = 0x12000, scoped, tag = 'internal scratch']
  %s0 = inlined_call_operand.vmem [shape: bf16[8,3,3,16], index: 0, kind: input, shape index: {}]
  %s1 = inlined_call_operand.vmem [shape: f32[9,1,16], index: 1, kind: input, shape index: {}]
  %s2 = inlined_call_operand.vmem [shape: f32[1,16], index: 2, kind: input, shape index: {}]
  %s3 = inlined_call_operand.vmem [shape: f32[1,16], index: 3, kind: input, shape index: {}]
  %s4 = inlined_call_operand.vmem [shape: bf16[16,16], index: 4, kind: input, shape index: {}]
  %s5 = inlined_call_operand.vmem [shape: f32[1,16], index: 5, kind: input, shape index: {}]
  %s6 = inlined_call_operand.vmem [shape: f32[1,16], index: 6, kind: input, shape index: {}]
  %s7 = inlined_call_operand.vmem [shape: bf16[2,4,16], index: 7, kind: output, shape index: {}]
  %s8 = sld [smem:[#allocation0]]
  $region61: #{_lambda_.22} parent=0
    _
  %s10 = ssub.s32 1, %s8
  %s11 = scalar_select 0, %s10, %s8
  loop: start=0, step=1, limit=4
  $region2: #{_lambda_.22} parent=0 // loop_pre_header
    _
  $region3: #{_lambda_.22} parent=0 // loop_header
    %s13 = sphi 0, %s17
    %p14 = scmp.ge.s32.totalorder %s13, 4
    %s23 = sphi 0, %s25
    %s26 = sphi 0, %s23
    %s27 = sphi 0, %s26
    %s43 = sphi 0, %s27
    %s47 = sphi 0, %s47
    %s49 = sphi 0, %s47
    %s50 = sphi 0, %s49
    %s64 = sphi 0, %s50
    %s68 = sphi 0, %s68
    %s70 = sphi 0, %s68
    %s71 = sphi 0, %s70
    %s85 = sphi 0, %s71
    %s89 = sphi 0, %s89
    %s91 = sphi 0, %s89
    %s92 = sphi 0, %s91
    %s106 = sphi 0, %s92
    %s110 = sphi 0, %s110
    %s112 = sphi 0, %s110
    %s113 = sphi 0, %s112
    %s127 = sphi 0, %s113
    %s131 = sphi 0, %s131
    %s133 = sphi 0, %s131
    %s134 = sphi 0, %s133
    %s148 = sphi 0, %s134
    %s152 = sphi 0, %s152
    %s154 = sphi 0, %s152
    %s155 = sphi 0, %s154
    %s169 = sphi 0, %s155
    %s175 = sphi 0, %s177
    %s178 = sphi 0, %s175
    %s179 = sphi 0, %s178
    %s195 = sphi 0, %s179
  $region4: #{_lambda_.22} parent=0 // loop_header_branch
    %16 = sbr.rel (%p14) target = $region8
  $region5: #{_lambda_.22} parent=0 // loop_body
    %s18 = ssub.s32 %s13, 1
    %s19 = ssub.s32 %s13, 2
    %s20 = sadd.s32 %s13, 1
    %s21 = ssub.s32 %s13, %s20
    %p22 = scmp.eq.s32.totalorder %s21, 0
    %s24 = sadd.s32 %s23, 1
    %s25 = scalar_select %p22, %s23, %s24
    %p28 = pneg %p22
    %p29 = scmp.eq.s32.totalorder %s13, 1
    %p30 = por %p28, %p29
    %p31 = scmp.ne.s32.totalorder %s23, %s26
    %p32 = scmp.eq.s32.totalorder %s13, 0
    %p33 = por %p31, %p32
    %p34 = scmp.ne.s32.totalorder %s23, %s26
    %p35 = scmp.eq.s32.totalorder %s18, 1
    %p36 = por %p34, %p35
    %p37 = scmp.ne.s32.totalorder %s26, %s27
    %p38 = scmp.eq.s32.totalorder %s18, 0
    %p39 = por %p37, %p38
    %p40 = scmp.ne.s32.totalorder %s26, %s27
    %p41 = scmp.eq.s32.totalorder %s19, 1
    %p42 = por %p40, %p41
    %p44 = scmp.ne.s32.totalorder %s27, %s43
    %p45 = scmp.eq.s32.totalorder %s19, 0
    %p46 = por %p44, %p45
    %s48 = sadd.s32 %s47, 1
    %p51 = scmp.eq.s32.totalorder %s13, 1
    %p52 = scmp.ne.s32.totalorder %s47, %s49
    %p53 = scmp.eq.s32.totalorder %s13, 0
    %p54 = por %p52, %p53
    %p55 = scmp.ne.s32.totalorder %s47, %s49
    %p56 = scmp.eq.s32.totalorder %s18, 1
    %p57 = por %p55, %p56
    %p58 = scmp.ne.s32.totalorder %s49, %s50
    %p59 = scmp.eq.s32.totalorder %s18, 0
    %p60 = por %p58, %p59
    %p61 = scmp.ne.s32.totalorder %s49, %s50
    %p62 = scmp.eq.s32.totalorder %s19, 1
    %p63 = por %p61, %p62
    %p65 = scmp.ne.s32.totalorder %s50, %s64
    %p66 = scmp.eq.s32.totalorder %s19, 0
    %p67 = por %p65, %p66
    %s69 = sadd.s32 %s68, 1
    %p72 = scmp.eq.s32.totalorder %s13, 1
    %p73 = scmp.ne.s32.totalorder %s68, %s70
    %p74 = scmp.eq.s32.totalorder %s13, 0
    %p75 = por %p73, %p74
    %p76 = scmp.ne.s32.totalorder %s68, %s70
    %p77 = scmp.eq.s32.totalorder %s18, 1
    %p78 = por %p76, %p77
    %p79 = scmp.ne.s32.totalorder %s70, %s71
    %p80 = scmp.eq.s32.totalorder %s18, 0
    %p81 = por %p79, %p80
    %p82 = scmp.ne.s32.totalorder %s70, %s71
    %p83 = scmp.eq.s32.totalorder %s19, 1
    %p84 = por %p82, %p83
    %p86 = scmp.ne.s32.totalorder %s71, %s85
    %p87 = scmp.eq.s32.totalorder %s19, 0
    %p88 = por %p86, %p87
    %s90 = sadd.s32 %s89, 1
    %p93 = scmp.eq.s32.totalorder %s13, 1
    %p94 = scmp.ne.s32.totalorder %s89, %s91
    %p95 = scmp.eq.s32.totalorder %s13, 0
    %p96 = por %p94, %p95
    %p97 = scmp.ne.s32.totalorder %s89, %s91
    %p98 = scmp.eq.s32.totalorder %s18, 1
    %p99 = por %p97, %p98
    %p100 = scmp.ne.s32.totalorder %s91, %s92
    %p101 = scmp.eq.s32.totalorder %s18, 0
    %p102 = por %p100, %p101
    %p103 = scmp.ne.s32.totalorder %s91, %s92
    %p104 = scmp.eq.s32.totalorder %s19, 1
    %p105 = por %p103, %p104
    %p107 = scmp.ne.s32.totalorder %s92, %s106
    %p108 = scmp.eq.s32.totalorder %s19, 0
    %p109 = por %p107, %p108
    %s111 = sadd.s32 %s110, 1
    %p114 = scmp.eq.s32.totalorder %s13, 1
    %p115 = scmp.ne.s32.totalorder %s110, %s112
    %p116 = scmp.eq.s32.totalorder %s13, 0
    %p117 = por %p115, %p116
    %p118 = scmp.ne.s32.totalorder %s110, %s112
    %p119 = scmp.eq.s32.totalorder %s18, 1
    %p120 = por %p118, %p119
    %p121 = scmp.ne.s32.totalorder %s112, %s113
    %p122 = scmp.eq.s32.totalorder %s18, 0
    %p123 = por %p121, %p122
    %p124 = scmp.ne.s32.totalorder %s112, %s113
    %p125 = scmp.eq.s32.totalorder %s19, 1
    %p126 = por %p124, %p125
    %p128 = scmp.ne.s32.totalorder %s113, %s127
    %p129 = scmp.eq.s32.totalorder %s19, 0
    %p130 = por %p128, %p129
    %s132 = sadd.s32 %s131, 1
    %p135 = scmp.eq.s32.totalorder %s13, 1
    %p136 = scmp.ne.s32.totalorder %s131, %s133
    %p137 = scmp.eq.s32.totalorder %s13, 0
    %p138 = por %p136, %p137
    %p139 = scmp.ne.s32.totalorder %s131, %s133
    %p140 = scmp.eq.s32.totalorder %s18, 1
    %p141 = por %p139, %p140
    %p142 = scmp.ne.s32.totalorder %s133, %s134
    %p143 = scmp.eq.s32.totalorder %s18, 0
    %p144 = por %p142, %p143
    %p145 = scmp.ne.s32.totalorder %s133, %s134
    %p146 = scmp.eq.s32.totalorder %s19, 1
    %p147 = por %p145, %p146
    %p149 = scmp.ne.s32.totalorder %s134, %s148
    %p150 = scmp.eq.s32.totalorder %s19, 0
    %p151 = por %p149, %p150
    %s153 = sadd.s32 %s152, 1
    %p156 = scmp.eq.s32.totalorder %s13, 1
    %p157 = scmp.ne.s32.totalorder %s152, %s154
    %p158 = scmp.eq.s32.totalorder %s13, 0
    %p159 = por %p157, %p158
    %p160 = scmp.ne.s32.totalorder %s152, %s154
    %p161 = scmp.eq.s32.totalorder %s18, 1
    %p162 = por %p160, %p161
    %p163 = scmp.ne.s32.totalorder %s154, %s155
    %p164 = scmp.eq.s32.totalorder %s18, 0
    %p165 = por %p163, %p164
    %p166 = scmp.ne.s32.totalorder %s154, %s155
    %p167 = scmp.eq.s32.totalorder %s19, 1
    %p168 = por %p166, %p167
    %p170 = scmp.ne.s32.totalorder %s155, %s169
    %p171 = scmp.eq.s32.totalorder %s19, 0
    %p172 = por %p170, %p171
    %s173 = ssub.s32 %s13, %s20
    %p174 = scmp.eq.s32.totalorder %s173, 0
    %s176 = sadd.s32 %s175, 1
    %s177 = scalar_select %p174, %s175, %s176
    %p180 = pneg %p174
    %p181 = scmp.eq.s32.totalorder %s13, 1
    %p182 = por %p180, %p181
    %p183 = scmp.ne.s32.totalorder %s175, %s178
    %p184 = scmp.eq.s32.totalorder %s13, 0
    %p185 = por %p183, %p184
    %p186 = scmp.ne.s32.totalorder %s175, %s178
    %p187 = scmp.eq.s32.totalorder %s18, 1
    %p188 = por %p186, %p187
    %p189 = scmp.ne.s32.totalorder %s178, %s179
    %p190 = scmp.eq.s32.totalorder %s18, 0
    %p191 = por %p189, %p190
    %p192 = scmp.ne.s32.totalorder %s178, %s179
    %p193 = scmp.eq.s32.totalorder %s19, 1
    %p194 = por %p192, %p193
    %p196 = scmp.ne.s32.totalorder %s179, %s195
    %p197 = scmp.eq.s32.totalorder %s19, 0
    %p198 = por %p196, %p197
    %p199 = scmp.le.s32.totalorder 1, %s13
    %p200 = scmp.lt.s32.totalorder %s13, 3
    %p201 = pnand %p199, %p200
    %p202 = pneg %p201
    // Predicated region
    $region9: #{_lambda_.22} parent=5 // pred_check
      _
    $region10: #{_lambda_.22} parent=5 // pred_check_branch
      %204 = sbr.rel (%p201) target = $region12
    $region11: #{_lambda_.22} parent=5 // pred_region
      %s205 = ssub.s32 %s13, 1
      // Predicated region
      $region13: #{_lambda_.22} parent=11 // pred_check
        %p206 = pneg %p60
      $region14: #{_lambda_.22} parent=11 // pred_check_branch
        %208 = sbr.rel (%p206) target = $region16
      $region15: #{_lambda_.22} parent=11 // pred_region
        _
      $region16: #{_lambda_.22} parent=11 // pred_fallthru
        _
      // Predicated region
      $region17: #{_lambda_.22} parent=11 // pred_check
        %p209 = pneg %p81
      $region18: #{_lambda_.22} parent=11 // pred_check_branch
        %211 = sbr.rel (%p209) target = $region20
      $region19: #{_lambda_.22} parent=11 // pred_region
        _
      $region20: #{_lambda_.22} parent=11 // pred_fallthru
        _
      // Predicated region
      $region21: #{_lambda_.22} parent=11 // pred_check
        %p212 = pneg %p102
      $region22: #{_lambda_.22} parent=11 // pred_check_branch
        %214 = sbr.rel (%p212) target = $region24
      $region23: #{_lambda_.22} parent=11 // pred_region
        _
      $region24: #{_lambda_.22} parent=11 // pred_fallthru
        _
      // Predicated region
      $region25: #{_lambda_.22} parent=11 // pred_check
        %p215 = pneg %p123
      $region26: #{_lambda_.22} parent=11 // pred_check_branch
        %217 = sbr.rel (%p215) target = $region28
      $region27: #{_lambda_.22} parent=11 // pred_region
        _
      $region28: #{_lambda_.22} parent=11 // pred_fallthru
        _
      // Predicated region
      $region29: #{_lambda_.22} parent=11 // pred_check
        %p218 = pneg %p144
      $region30: #{_lambda_.22} parent=11 // pred_check_branch
        %220 = sbr.rel (%p218) target = $region32
      $region31: #{_lambda_.22} parent=11 // pred_region
        _
      $region32: #{_lambda_.22} parent=11 // pred_fallthru
        _
      // Predicated region
      $region33: #{_lambda_.22} parent=11 // pred_check
        %p221 = pneg %p165
      $region34: #{_lambda_.22} parent=11 // pred_check_branch
        %223 = sbr.rel (%p221) target = $region36
      $region35: #{_lambda_.22} parent=11 // pred_region
        _
      $region36: #{_lambda_.22} parent=11 // pred_fallthru
        _
    $region12: #{_lambda_.22} parent=5 // pred_fallthru
      _
    %p224 = scmp.lt.s32.totalorder %s13, 2
    // Predicated region
    $region37: #{_lambda_.22} parent=5 // pred_check
      %p225 = pneg %p224
    $region38: #{_lambda_.22} parent=5 // pred_check_branch
      %227 = sbr.rel (%p225) target = $region40
    $region39: #{_lambda_.22} parent=5 // pred_region
      // Predicated region
      $region41: #{_lambda_.22} parent=39 // pred_check
        %p228 = pneg %p33
      $region42: #{_lambda_.22} parent=39 // pred_check_branch
        %230 = sbr.rel (%p228) target = $region44
      $region43: #{_lambda_.22} parent=39 // pred_region
        %s231 = smul.u32 4, %s13
        %p232 = scmp.lt.s32.totalorder %s231, 7
        %s233 = scalar_select %p232, %s231, 7
        %s234 = smul.addr %s233, 3
        %s235 = smul.addr %s234, 2
        %s236 = scalar_lea.vmem %s0, %s235
        %s237 = smul.u32 4, %s13
      $region44: #{_lambda_.22} parent=39 // pred_fallthru
        _
    $region40: #{_lambda_.22} parent=5 // pred_fallthru
      _
    %p238 = scmp.le.s32.totalorder 1, %s13
    %p239 = scmp.lt.s32.totalorder %s13, 3
    %p240 = pnand %p238, %p239
    %p241 = pneg %p240
    // Predicated region
    $region45: #{_lambda_.22} parent=5 // pred_check
      _
    $region46: #{_lambda_.22} parent=5 // pred_check_branch
      %243 = sbr.rel (%p240) target = $region48
    $region47: #{_lambda_.22} parent=5 // pred_region
      %s244 = ssub.s32 %s13, 1
      %s245 = smul.u32 4, %s18
      %p246 = scmp.lt.s32.totalorder %s245, 7
      %s247 = scalar_select %p246, %s245, 7
      %s248 = smul.addr %s247, 3
      %s249 = smul.addr %s248, 2
      %s250 = scalar_lea.vmem %s0, %s249
      %p251 = pneg %p39
      %p252 = pneg %p36
      %p253 = pneg %p60
      %p254 = pneg %p57
      %p255 = pneg %p81
      %p256 = pneg %p78
      %p257 = pneg %p102
      %p258 = pneg %p99
      %p259 = pneg %p123
      %p260 = pneg %p120
      %p261 = pneg %p144
      %p262 = pneg %p141
      %p263 = pneg %p165
      %p264 = pneg %p162
      %p265 = pneg %p191
      %p266 = pneg %p188
      %p267 = scmp.lt.s32.totalorder %s18, 1
      %s268 = scalar_select %p267, %s18, 1
      %s269 = smul.addr %s268, 2
      %s270 = scalar_lea.vmem %s7, %s269
      %s271 = smul.u32 4, %s18
      %p272 = scmp.lt.s32.totalorder %s271, 7
      %s273 = scalar_select %p272, %s271, 7
      %s274 = smul.addr %s273, 3
      %s275 = smul.addr %s274, 2
      %s276 = scalar_lea.vmem %s0, %s275
      %s277 = smul.u32 4, %s18
      %p278 = scmp.lt.s32.totalorder %s18, 1
      %s279 = scalar_select %p278, %s18, 1
      %s280 = smul.addr %s279, 2
      %s281 = scalar_lea.vmem %s7, %s280
      %v283 = vld [vmem:[%s276] sm:$0x1]
      %v284 = vld [vmem:[%s276 + $0x2] sm:$0x1]
      %v285 = vunpack.c.l.bf16 %v283
      %v286 = vunpack.c.l.bf16 %v284
      %v287 = vld [vmem:[%s1] sm:$0x1]
      %v289 = vlaneseq
      %v290 = vshrl.u32 %v289, 7
      %v291 = vsub.s32 0, %v290
      %v292 = vrot.slane %v287, %v291
      %v294 = vmul.f32 %v285, %v292
      %v295 = vmul.f32 %v286, %v292
      %s296 = scalar_lea.vmem %s276, 6
      %v297 = vld [vmem:[%s296] sm:$0x1]
      %v298 = vld [vmem:[%s296 + $0x2] sm:$0x1]
      %v299 = vunpack.c.l.bf16 %v297
      %v300 = vunpack.c.l.bf16 %v298
      %s301 = scalar_lea.vmem %s1, 1
      %v302 = vld [vmem:[%s301] sm:$0x1]
      %v304 = vlaneseq
      %v305 = vshrl.u32 %v304, 7
      %v306 = vsub.s32 0, %v305
      %v307 = vrot.slane %v302, %v306
      %v309 = vmul.f32 %v299, %v307
      %v310 = vmul.f32 %v300, %v307
      %v311 = vld [vmem:[%s276] sm:$0x3]
      %v312 = vld [vmem:[%s276 + $0x2] sm:$0x3]
      %v313 = vunpack.c.l.bf16 %v311
      %v314 = vunpack.c.l.bf16 %v312
      %s315 = scalar_lea.vmem %s1, 2
      %v316 = vld [vmem:[%s315] sm:$0x1]
      %v318 = vlaneseq
      %v319 = vshrl.u32 %v318, 7
      %v320 = vsub.s32 0, %v319
      %v321 = vrot.slane %v316, %v320
      %v323 = vmul.f32 %v313, %v321
      %v324 = vmul.f32 %v314, %v321
      %s325 = scalar_lea.vmem %s276, 12
      %v326 = vld [vmem:[%s325] sm:$0x1]
      %v327 = vld [vmem:[%s325 + $0x2] sm:$0x1]
      %v328 = vunpack.c.l.bf16 %v326
      %v329 = vunpack.c.l.bf16 %v327
      %s330 = scalar_lea.vmem %s1, 3
      %v331 = vld [vmem:[%s330] sm:$0x1]
      %v333 = vlaneseq
      %v334 = vshrl.u32 %v333, 7
      %v335 = vsub.s32 0, %v334
      %v336 = vrot.slane %v331, %v335
      %v338 = vmul.f32 %v328, %v336
      %v339 = vmul.f32 %v329, %v336
      %v340 = vadd.f32 %v294, %v338
      %v341 = vadd.f32 %v295, %v339
      %s342 = scalar_lea.vmem %s276, 18
      %v343 = vld [vmem:[%s342] sm:$0x1]
      %v344 = vld [vmem:[%s342 + $0x2] sm:$0x1]
      %v345 = vunpack.c.l.bf16 %v343
      %v346 = vunpack.c.l.bf16 %v344
      %s347 = scalar_lea.vmem %s1, 4
      %v348 = vld [vmem:[%s347] sm:$0x1]
      %v350 = vlaneseq
      %v351 = vshrl.u32 %v350, 7
      %v352 = vsub.s32 0, %v351
      %v353 = vrot.slane %v348, %v352
      %v355 = vmul.f32 %v345, %v353
      %v356 = vmul.f32 %v346, %v353
      %v357 = vadd.f32 %v309, %v355
      %v358 = vadd.f32 %v310, %v356
      %v359 = vld [vmem:[%s325] sm:$0x3]
      %v360 = vld [vmem:[%s325 + $0x2] sm:$0x3]
      %v361 = vunpack.c.l.bf16 %v359
      %v362 = vunpack.c.l.bf16 %v360
      %s363 = scalar_lea.vmem %s1, 5
      %v364 = vld [vmem:[%s363] sm:$0x1]
      %v366 = vlaneseq
      %v367 = vshrl.u32 %v366, 7
      %v368 = vsub.s32 0, %v367
      %v369 = vrot.slane %v364, %v368
      %v371 = vmul.f32 %v361, %v369
      %v372 = vmul.f32 %v362, %v369
      %v373 = vadd.f32 %v323, %v371
      %v374 = vadd.f32 %v324, %v372
      %s375 = scalar_lea.vmem %s276, 2
      %v376 = vld [vmem:[%s375] sm:$0x1]
      %v377 = vld [vmem:[%s375 + $0x2] sm:$0x1]
      %v378 = vunpack.c.l.bf16 %v376
      %v379 = vunpack.c.l.bf16 %v377
      %s380 = scalar_lea.vmem %s1, 6
      %v381 = vld [vmem:[%s380] sm:$0x1]
      %v383 = vlaneseq
      %v384 = vshrl.u32 %v383, 7
      %v385 = vsub.s32 0, %v384
      %v386 = vrot.slane %v381, %v385
      %v388 = vmul.f32 %v378, %v386
      %v389 = vmul.f32 %v379, %v386
      %v390 = vadd.f32 %v340, %v388
      %v391 = vadd.f32 %v341, %v389
      %s392 = scalar_lea.vmem %s276, 8
      %v393 = vld [vmem:[%s392] sm:$0x1]
      %v394 = vld [vmem:[%s392 + $0x2] sm:$0x1]
      %v395 = vunpack.c.l.bf16 %v393
      %v396 = vunpack.c.l.bf16 %v394
      %s397 = scalar_lea.vmem %s1, 7
      %v398 = vld [vmem:[%s397] sm:$0x1]
      %v400 = vlaneseq
      %v401 = vshrl.u32 %v400, 7
      %v402 = vsub.s32 0, %v401
      %v403 = vrot.slane %v398, %v402
      %v405 = vmul.f32 %v395, %v403
      %v406 = vmul.f32 %v396, %v403
      %v407 = vadd.f32 %v357, %v405
      %v408 = vadd.f32 %v358, %v406
      %v409 = vld [vmem:[%s375] sm:$0x3]
      %v410 = vld [vmem:[%s375 + $0x2] sm:$0x3]
      %v411 = vunpack.c.l.bf16 %v409
      %v412 = vunpack.c.l.bf16 %v410
      %s413 = scalar_lea.vmem %s1, 8
      %v414 = vld [vmem:[%s413] sm:$0x1]
      %v416 = vlaneseq
      %v417 = vshrl.u32 %v416, 7
      %v418 = vsub.s32 0, %v417
      %v419 = vrot.slane %v414, %v418
      %v421 = vmul.f32 %v411, %v419
      %v422 = vmul.f32 %v412, %v419
      %v423 = vadd.f32 %v373, %v421
      %v424 = vadd.f32 %v374, %v422
      %v425 = vadd.f32 %v390, %v407
      %v426 = vadd.f32 %v391, %v408
      %v429 = vrot.slane %v423, 5
      %v430 = vrot.slane %v429, 4
      %v431 = vrot.slane %v424, 5
      %v432 = vrot.slane %v431, 4
      %v435 = vadd.f32 %v425, %v430
      %v436 = vadd.f32 %v426, %v432
      %v437 = vld [vmem:[%s2] sm:$0x1]
      %v439 = vlaneseq
      %v440 = vshrl.u32 %v439, 7
      %v441 = vsub.s32 0, %v440
      %v442 = vrot.slane %v437, %v441
      %v444 = vmul.f32 %v435, %v442
      %v445 = vmul.f32 %v436, %v442
      %v446 = vld [vmem:[%s3] sm:$0x1]
      %v448 = vlaneseq
      %v449 = vshrl.u32 %v448, 7
      %v450 = vsub.s32 0, %v449
      %v451 = vrot.slane %v446, %v450
      %v453 = vadd.f32 %v444, %v451
      %v454 = vadd.f32 %v445, %v451
      %v457 = vcombine.low %v453, %v454
      %v459 = vunpack.c.l.s4 1983009808
      %v460 = vunpack.c.0.s8 %v459
      %v461 = vlaneseq
      %v462 = vshrl.u32 %v461, 7
      %v463 = vsub.s32 %v460, %v462
      %v464 = vrot.slane %v457, %v463
      %v466 = vpack.c.bf16 %v464, %v464
      %v467 = vld [vmem:[%s4] sm:$0xf]
      %v468 = vld [vmem:[%s4 + $0x4] sm:$0xf]
      %v471 = vunpack.c.l.b16 %v467
      %v472 = vunpack.c.l.b16 %v468
      %v473 = vpack.c.b16 %v472, %v471
      %vm475 = vcmask 130048
      %v477 = vsel %vm475, %v466, 0
      %479 = vmatprep.subr.bf16.mxu0 0
      %480 = vmatpush1.bf16.msra.mxu0 %v473
      %481 = vmatprep.subr.bf16.mxu0 0
      %482 = vmatpush1.bf16.msra.mxu0 0
      %483 = vmatprep.subr.bf16.mxu0 0
      %484 = vmatpush1.bf16.msra.mxu0 0
      %485 = vmatprep.subr.bf16.mxu0 0
      %486 = vmatpush1.bf16.msra.mxu0 0
      %487 = vmatprep.subr.bf16.mxu0 0
      %488 = vmatpush1.bf16.msra.mxu0 0
      %489 = vmatprep.subr.bf16.mxu0 0
      %490 = vmatpush1.bf16.msra.mxu0 0
      %491 = vmatprep.subr.bf16.mxu0 0
      %492 = vmatpush1.bf16.msra.mxu0 0
      %493 = vmatprep.subr.bf16.mxu0 0
      %494 = vmatpush1.bf16.msra.mxu0 0
      %495 = vmatprep.subr.bf16.mxu0 0
      %496 = vmatpush1.bf16.msra.mxu0 0
      %497 = vmatprep.subr.bf16.mxu0 0
      %498 = vmatpush1.bf16.msra.mxu0 0
      %499 = vmatprep.subr.bf16.mxu0 0
      %500 = vmatpush1.bf16.msra.mxu0 0
      %501 = vmatprep.subr.bf16.mxu0 0
      %502 = vmatpush1.bf16.msra.mxu0 0
      %503 = vmatprep.subr.bf16.mxu0 0
      %504 = vmatpush1.bf16.msra.mxu0 0
      %505 = vmatprep.subr.bf16.mxu0 0
      %506 = vmatpush1.bf16.msra.mxu0 0
      %507 = vmatprep.subr.bf16.mxu0 0
      %508 = vmatpush1.bf16.msra.mxu0 0
      %509 = vmatprep.subr.bf16.mxu0 0
      %510 = vmatpush1.bf16.msra.mxu0 0
      %511 = vmatprep.mubr.bf16.mxu0 0
      %512 = vmatmul.mubr.bf16.gmra.mrb[0].mxu0 %v477
      %v513 = vpop.f32.mrb[0].mxu0
      %v514 = vadd.f32 0.0, %v513
      %v515 = vpop.f32.mrb[0].mxu0
      %v516 = vpop.f32.mrb[0].mxu0
      %v517 = vpop.f32.mrb[0].mxu0
      %518 = vdwg.mxu0
      %v519 = vld [vmem:[%s5] sm:$0x1]
      %v521 = vlaneseq
      %v522 = vshrl.u32 %v521, 7
      %v523 = vsub.s32 0, %v522
      %v524 = vrot.slane %v519, %v523
      %v526 = vmul.f32 %v514, %v524
      %v527 = vld [vmem:[%s6] sm:$0x1]
      %v529 = vlaneseq
      %v530 = vshrl.u32 %v529, 7
      %v531 = vsub.s32 0, %v530
      %v532 = vrot.slane %v527, %v531
      %v534 = vadd.f32 %v526, %v532
      %v535 = vmax.f32 %v534, 0.0
      %v536 = vpack.c.bf16 %v535, %v535
      %vm537 = vcmask 123904
      %538 = vst.msk [vmem:[%s281] sm:$0x3] %vm537, %v536
      %p539 = scmp.lt.s32.totalorder %s18, 1
      %s540 = scalar_select %p539, %s18, 1
      %s541 = smul.addr %s540, 2
      %s542 = scalar_lea.vmem %s7, %s541
      // Predicated region
      $region49: #{_lambda_.22} parent=47 // pred_check
        %p543 = pneg %p188
      $region50: #{_lambda_.22} parent=47 // pred_check_branch
        %545 = sbr.rel (%p543) target = $region52
      $region51: #{_lambda_.22} parent=47 // pred_region
        _
      $region52: #{_lambda_.22} parent=47 // pred_fallthru
        _
    $region48: #{_lambda_.22} parent=5 // pred_fallthru
      _
    %p546 = scmp.le.s32.totalorder 2, %s13
    // Predicated region
    $region53: #{_lambda_.22} parent=5 // pred_check
      %p547 = pneg %p546
    $region54: #{_lambda_.22} parent=5 // pred_check_branch
      %549 = sbr.rel (%p547) target = $region56
    $region55: #{_lambda_.22} parent=5 // pred_region
      %s550 = ssub.s32 %s13, 2
      // Predicated region
      $region57: #{_lambda_.22} parent=55 // pred_check
        %p551 = pneg %p194
      $region58: #{_lambda_.22} parent=55 // pred_check_branch
        %553 = sbr.rel (%p551) target = $region60
      $region59: #{_lambda_.22} parent=55 // pred_region
        %p554 = scmp.lt.s32.totalorder %s19, 1
        %s555 = scalar_select %p554, %s19, 1
        %s556 = smul.addr %s555, 2
        %s557 = scalar_lea.vmem %s7, %s556
      $region60: #{_lambda_.22} parent=55 // pred_fallthru
        _
    $region56: #{_lambda_.22} parent=5 // pred_fallthru
      _
  $region6: #{_lambda_.22} parent=0 // loop_footer
    %s17 = sadd.s32 1, %s13
  $region7: #{_lambda_.22} parent=0 // loop_footer_branch
    %12 = sbr.rel target = $region3
  $region8: #{_lambda_.22} parent=0 // loop_exit
    _

// kernel: _lambda_.23
$region0: #{_lambda_.23}
  #allocation0 [shape = 'u32[]', space=smem, size = 0x4, offset = 0x4, fixed_abs, tag = 'smem constant byte address 0x4 - core index']
  #allocation1 [shape = 'u32[144,128]{1,0:T(1,128)}', space=vmem, size = 0x12000, scoped, tag = 'internal scratch']
  %s0 = inlined_call_operand.vmem [shape: bf16[32,16], index: 0, kind: input, shape index: {}]
  %s1 = inlined_call_operand.vmem [shape: bf16[16,16], index: 1, kind: input, shape index: {}]
  %s2 = inlined_call_operand.vmem [shape: f32[1,16], index: 2, kind: input, shape index: {}]
  %s3 = inlined_call_operand.vmem [shape: f32[1,16], index: 3, kind: input, shape index: {}]
  %s4 = inlined_call_operand.vmem [shape: bf16[32,16], index: 4, kind: output, shape index: {}]
  %s5 = sld [smem:[#allocation0]]
  $region49: #{_lambda_.23} parent=0
    _
  %s7 = ssub.s32 1, %s5
  %s8 = scalar_select 0, %s7, %s5
  loop: start=0, step=1, limit=4
  $region2: #{_lambda_.23} parent=0 // loop_pre_header
    _
  $region3: #{_lambda_.23} parent=0 // loop_header
    %s10 = sphi 0, %s14
    %p11 = scmp.ge.s32.totalorder %s10, 4
    %s20 = sphi 0, %s22
    %s23 = sphi 0, %s20
    %s24 = sphi 0, %s23
    %s40 = sphi 0, %s24
    %s44 = sphi 0, %s44
    %s46 = sphi 0, %s44
    %s47 = sphi 0, %s46
    %s61 = sphi 0, %s47
    %s65 = sphi 0, %s65
    %s67 = sphi 0, %s65
    %s68 = sphi 0, %s67
    %s82 = sphi 0, %s68
    %s86 = sphi 0, %s86
    %s88 = sphi 0, %s86
    %s89 = sphi 0, %s88
    %s103 = sphi 0, %s89
    %s109 = sphi 0, %s111
    %s112 = sphi 0, %s109
    %s113 = sphi 0, %s112
    %s129 = sphi 0, %s113
  $region4: #{_lambda_.23} parent=0 // loop_header_branch
    %13 = sbr.rel (%p11) target = $region8
  $region5: #{_lambda_.23} parent=0 // loop_body
    %s15 = ssub.s32 %s10, 1
    %s16 = ssub.s32 %s10, 2
    %s17 = sadd.s32 %s10, 1
    %s18 = ssub.s32 %s10, %s17
    %p19 = scmp.eq.s32.totalorder %s18, 0
    %s21 = sadd.s32 %s20, 1
    %s22 = scalar_select %p19, %s20, %s21
    %p25 = pneg %p19
    %p26 = scmp.eq.s32.totalorder %s10, 1
    %p27 = por %p25, %p26
    %p28 = scmp.ne.s32.totalorder %s20, %s23
    %p29 = scmp.eq.s32.totalorder %s10, 0
    %p30 = por %p28, %p29
    %p31 = scmp.ne.s32.totalorder %s20, %s23
    %p32 = scmp.eq.s32.totalorder %s15, 1
    %p33 = por %p31, %p32
    %p34 = scmp.ne.s32.totalorder %s23, %s24
    %p35 = scmp.eq.s32.totalorder %s15, 0
    %p36 = por %p34, %p35
    %p37 = scmp.ne.s32.totalorder %s23, %s24
    %p38 = scmp.eq.s32.totalorder %s16, 1
    %p39 = por %p37, %p38
    %p41 = scmp.ne.s32.totalorder %s24, %s40
    %p42 = scmp.eq.s32.totalorder %s16, 0
    %p43 = por %p41, %p42
    %s45 = sadd.s32 %s44, 1
    %p48 = scmp.eq.s32.totalorder %s10, 1
    %p49 = scmp.ne.s32.totalorder %s44, %s46
    %p50 = scmp.eq.s32.totalorder %s10, 0
    %p51 = por %p49, %p50
    %p52 = scmp.ne.s32.totalorder %s44, %s46
    %p53 = scmp.eq.s32.totalorder %s15, 1
    %p54 = por %p52, %p53
    %p55 = scmp.ne.s32.totalorder %s46, %s47
    %p56 = scmp.eq.s32.totalorder %s15, 0
    %p57 = por %p55, %p56
    %p58 = scmp.ne.s32.totalorder %s46, %s47
    %p59 = scmp.eq.s32.totalorder %s16, 1
    %p60 = por %p58, %p59
    %p62 = scmp.ne.s32.totalorder %s47, %s61
    %p63 = scmp.eq.s32.totalorder %s16, 0
    %p64 = por %p62, %p63
    %s66 = sadd.s32 %s65, 1
    %p69 = scmp.eq.s32.totalorder %s10, 1
    %p70 = scmp.ne.s32.totalorder %s65, %s67
    %p71 = scmp.eq.s32.totalorder %s10, 0
    %p72 = por %p70, %p71
    %p73 = scmp.ne.s32.totalorder %s65, %s67
    %p74 = scmp.eq.s32.totalorder %s15, 1
    %p75 = por %p73, %p74
    %p76 = scmp.ne.s32.totalorder %s67, %s68
    %p77 = scmp.eq.s32.totalorder %s15, 0
    %p78 = por %p76, %p77
    %p79 = scmp.ne.s32.totalorder %s67, %s68
    %p80 = scmp.eq.s32.totalorder %s16, 1
    %p81 = por %p79, %p80
    %p83 = scmp.ne.s32.totalorder %s68, %s82
    %p84 = scmp.eq.s32.totalorder %s16, 0
    %p85 = por %p83, %p84
    %s87 = sadd.s32 %s86, 1
    %p90 = scmp.eq.s32.totalorder %s10, 1
    %p91 = scmp.ne.s32.totalorder %s86, %s88
    %p92 = scmp.eq.s32.totalorder %s10, 0
    %p93 = por %p91, %p92
    %p94 = scmp.ne.s32.totalorder %s86, %s88
    %p95 = scmp.eq.s32.totalorder %s15, 1
    %p96 = por %p94, %p95
    %p97 = scmp.ne.s32.totalorder %s88, %s89
    %p98 = scmp.eq.s32.totalorder %s15, 0
    %p99 = por %p97, %p98
    %p100 = scmp.ne.s32.totalorder %s88, %s89
    %p101 = scmp.eq.s32.totalorder %s16, 1
    %p102 = por %p100, %p101
    %p104 = scmp.ne.s32.totalorder %s89, %s103
    %p105 = scmp.eq.s32.totalorder %s16, 0
    %p106 = por %p104, %p105
    %s107 = ssub.s32 %s10, %s17
    %p108 = scmp.eq.s32.totalorder %s107, 0
    %s110 = sadd.s32 %s109, 1
    %s111 = scalar_select %p108, %s109, %s110
    %p114 = pneg %p108
    %p115 = scmp.eq.s32.totalorder %s10, 1
    %p116 = por %p114, %p115
    %p117 = scmp.ne.s32.totalorder %s109, %s112
    %p118 = scmp.eq.s32.totalorder %s10, 0
    %p119 = por %p117, %p118
    %p120 = scmp.ne.s32.totalorder %s109, %s112
    %p121 = scmp.eq.s32.totalorder %s15, 1
    %p122 = por %p120, %p121
    %p123 = scmp.ne.s32.totalorder %s112, %s113
    %p124 = scmp.eq.s32.totalorder %s15, 0
    %p125 = por %p123, %p124
    %p126 = scmp.ne.s32.totalorder %s112, %s113
    %p127 = scmp.eq.s32.totalorder %s16, 1
    %p128 = por %p126, %p127
    %p130 = scmp.ne.s32.totalorder %s113, %s129
    %p131 = scmp.eq.s32.totalorder %s16, 0
    %p132 = por %p130, %p131
    %p133 = scmp.le.s32.totalorder 1, %s10
    %p134 = scmp.lt.s32.totalorder %s10, 3
    %p135 = pnand %p133, %p134
    %p136 = pneg %p135
    // Predicated region
    $region9: #{_lambda_.23} parent=5 // pred_check
      _
    $region10: #{_lambda_.23} parent=5 // pred_check_branch
      %138 = sbr.rel (%p135) target = $region12
    $region11: #{_lambda_.23} parent=5 // pred_region
      %s139 = ssub.s32 %s10, 1
      // Predicated region
      $region13: #{_lambda_.23} parent=11 // pred_check
        %p140 = pneg %p57
      $region14: #{_lambda_.23} parent=11 // pred_check_branch
        %142 = sbr.rel (%p140) target = $region16
      $region15: #{_lambda_.23} parent=11 // pred_region
        _
      $region16: #{_lambda_.23} parent=11 // pred_fallthru
        _
      // Predicated region
      $region17: #{_lambda_.23} parent=11 // pred_check
        %p143 = pneg %p78
      $region18: #{_lambda_.23} parent=11 // pred_check_branch
        %145 = sbr.rel (%p143) target = $region20
      $region19: #{_lambda_.23} parent=11 // pred_region
        _
      $region20: #{_lambda_.23} parent=11 // pred_fallthru
        _
      // Predicated region
      $region21: #{_lambda_.23} parent=11 // pred_check
        %p146 = pneg %p99
      $region22: #{_lambda_.23} parent=11 // pred_check_branch
        %148 = sbr.rel (%p146) target = $region24
      $region23: #{_lambda_.23} parent=11 // pred_region
        _
      $region24: #{_lambda_.23} parent=11 // pred_fallthru
        _
    $region12: #{_lambda_.23} parent=5 // pred_fallthru
      _
    %p149 = scmp.lt.s32.totalorder %s10, 2
    // Predicated region
    $region25: #{_lambda_.23} parent=5 // pred_check
      %p150 = pneg %p149
    $region26: #{_lambda_.23} parent=5 // pred_check_branch
      %152 = sbr.rel (%p150) target = $region28
    $region27: #{_lambda_.23} parent=5 // pred_region
      // Predicated region
      $region29: #{_lambda_.23} parent=27 // pred_check
        %p153 = pneg %p30
      $region30: #{_lambda_.23} parent=27 // pred_check_branch
        %155 = sbr.rel (%p153) target = $region32
      $region31: #{_lambda_.23} parent=27 // pred_region
        %s156 = smul.u32 2, %s10
        %p157 = scmp.lt.s32.totalorder %s156, 3
        %s158 = scalar_select %p157, %s156, 3
        %s159 = smul.addr %s158, 4
        %s160 = scalar_lea.vmem %s0, %s159
        %s161 = smul.u32 2, %s10
      $region32: #{_lambda_.23} parent=27 // pred_fallthru
        _
    $region28: #{_lambda_.23} parent=5 // pred_fallthru
      _
    %p162 = scmp.le.s32.totalorder 1, %s10
    %p163 = scmp.lt.s32.totalorder %s10, 3
    %p164 = pnand %p162, %p163
    %p165 = pneg %p164
    // Predicated region
    $region33: #{_lambda_.23} parent=5 // pred_check
      _
    $region34: #{_lambda_.23} parent=5 // pred_check_branch
      %167 = sbr.rel (%p164) target = $region36
    $region35: #{_lambda_.23} parent=5 // pred_region
      %s168 = ssub.s32 %s10, 1
      %s169 = smul.u32 2, %s15
      %p170 = scmp.lt.s32.totalorder %s169, 3
      %s171 = scalar_select %p170, %s169, 3
      %s172 = smul.addr %s171, 4
      %s173 = scalar_lea.vmem %s0, %s172
      %p174 = pneg %p36
      %p175 = pneg %p33
      %p176 = pneg %p57
      %p177 = pneg %p54
      %p178 = pneg %p78
      %p179 = pneg %p75
      %p180 = pneg %p99
      %p181 = pneg %p96
      %p182 = pneg %p125
      %p183 = pneg %p122
      %s184 = smul.u32 2, %s15
      %p185 = scmp.lt.s32.totalorder %s184, 3
      %s186 = scalar_select %p185, %s184, 3
      %s187 = smul.addr %s186, 4
      %s188 = scalar_lea.vmem %s4, %s187
      %s189 = smul.u32 2, %s15
      %p190 = scmp.lt.s32.totalorder %s189, 3
      %s191 = scalar_select %p190, %s189, 3
      %s192 = smul.addr %s191, 4
      %s193 = scalar_lea.vmem %s0, %s192
      %s194 = smul.u32 2, %s15
      %s195 = smul.u32 2, %s15
      %p196 = scmp.lt.s32.totalorder %s195, 3
      %s197 = scalar_select %p196, %s195, 3
      %s198 = smul.addr %s197, 4
      %s199 = scalar_lea.vmem %s4, %s198
      %s200 = smul.u32 2, %s15
      %v202 = vld [vmem:[%s193] sm:$0xf]
      %v203 = vld [vmem:[%s193 + $0x4] sm:$0xf]
      %v204 = vld [vmem:[%s1] sm:$0xf]
      %v205 = vld [vmem:[%s1 + $0x4] sm:$0xf]
      %v208 = vunpack.c.l.b16 %v202
      %v209 = vunpack.c.l.b16 %v203
      %v210 = vpack.c.b16 %v209, %v208
      %v213 = vunpack.c.l.b16 %v204
      %v214 = vunpack.c.l.b16 %v205
      %v215 = vpack.c.b16 %v214, %v213
      %vm217 = vcmask 130048
      %v219 = vsel %vm217, %v210, 0
      %221 = vmatprep.subr.bf16.mxu0 0
      %222 = vmatpush1.bf16.msra.mxu0 %v215
      %223 = vmatprep.subr.bf16.mxu0 0
      %224 = vmatpush1.bf16.msra.mxu0 0
      %225 = vmatprep.subr.bf16.mxu0 0
      %226 = vmatpush1.bf16.msra.mxu0 0
      %227 = vmatprep.subr.bf16.mxu0 0
      %228 = vmatpush1.bf16.msra.mxu0 0
      %229 = vmatprep.subr.bf16.mxu0 0
      %230 = vmatpush1.bf16.msra.mxu0 0
      %231 = vmatprep.subr.bf16.mxu0 0
      %232 = vmatpush1.bf16.msra.mxu0 0
      %233 = vmatprep.subr.bf16.mxu0 0
      %234 = vmatpush1.bf16.msra.mxu0 0
      %235 = vmatprep.subr.bf16.mxu0 0
      %236 = vmatpush1.bf16.msra.mxu0 0
      %237 = vmatprep.subr.bf16.mxu0 0
      %238 = vmatpush1.bf16.msra.mxu0 0
      %239 = vmatprep.subr.bf16.mxu0 0
      %240 = vmatpush1.bf16.msra.mxu0 0
      %241 = vmatprep.subr.bf16.mxu0 0
      %242 = vmatpush1.bf16.msra.mxu0 0
      %243 = vmatprep.subr.bf16.mxu0 0
      %244 = vmatpush1.bf16.msra.mxu0 0
      %245 = vmatprep.subr.bf16.mxu0 0
      %246 = vmatpush1.bf16.msra.mxu0 0
      %247 = vmatprep.subr.bf16.mxu0 0
      %248 = vmatpush1.bf16.msra.mxu0 0
      %249 = vmatprep.subr.bf16.mxu0 0
      %250 = vmatpush1.bf16.msra.mxu0 0
      %251 = vmatprep.subr.bf16.mxu0 0
      %252 = vmatpush1.bf16.msra.mxu0 0
      %253 = vmatprep.mubr.bf16.mxu0 0
      %254 = vmatmul.mubr.bf16.gmra.mrb[0].mxu0 %v219
      %v255 = vpop.f32.mrb[0].mxu0
      %v256 = vadd.f32 0.0, %v255
      %v257 = vpop.f32.mrb[0].mxu0
      %v258 = vpop.f32.mrb[0].mxu0
      %v259 = vadd.f32 0.0, %v258
      %v260 = vpop.f32.mrb[0].mxu0
      %261 = vdwg.mxu0
      %v262 = vld [vmem:[%s2] sm:$0x1]
      %v264 = vlaneseq
      %v265 = vshrl.u32 %v264, 7
      %v266 = vsub.s32 0, %v265
      %v267 = vrot.slane %v262, %v266
      %v269 = vmul.f32 %v256, %v267
      %v270 = vmul.f32 %v259, %v267
      %v271 = vld [vmem:[%s3] sm:$0x1]
      %v273 = vlaneseq
      %v274 = vshrl.u32 %v273, 7
      %v275 = vsub.s32 0, %v274
      %v276 = vrot.slane %v271, %v275
      %v278 = vadd.f32 %v269, %v276
      %v279 = vadd.f32 %v270, %v276
      %v280 = vmax.f32 %v278, 0.0
      %v281 = vmax.f32 %v279, 0.0
      %v282 = vpack.c.bf16 %v281, %v280
      %v284 = vunpack.c.l.b16 %v282
      %v285 = vunpack.c.h.b16 %v282
      %v286 = vpack.c.b16 %v284, %v284
      %v287 = vpack.c.b16 %v285, %v285
      %vm290 = vcmask 125952
      %291 = vst.msk [vmem:[%s199] sm:$0xf] %vm290, %v286
      %292 = vst.msk [vmem:[%s199 + $0x4] sm:$0xf] %vm290, %v287
      %s293 = smul.u32 2, %s15
      %p294 = scmp.lt.s32.totalorder %s293, 3
      %s295 = scalar_select %p294, %s293, 3
      %s296 = smul.addr %s295, 4
      %s297 = scalar_lea.vmem %s4, %s296
      // Predicated region
      $region37: #{_lambda_.23} parent=35 // pred_check
        %p298 = pneg %p122
      $region38: #{_lambda_.23} parent=35 // pred_check_branch
        %300 = sbr.rel (%p298) target = $region40
      $region39: #{_lambda_.23} parent=35 // pred_region
        %s301 = smul.u32 2, %s15
      $region40: #{_lambda_.23} parent=35 // pred_fallthru
        _
    $region36: #{_lambda_.23} parent=5 // pred_fallthru
      _
    %p302 = scmp.le.s32.totalorder 2, %s10
    // Predicated region
    $region41: #{_lambda_.23} parent=5 // pred_check
      %p303 = pneg %p302
    $region42: #{_lambda_.23} parent=5 // pred_check_branch
      %305 = sbr.rel (%p303) target = $region44
    $region43: #{_lambda_.23} parent=5 // pred_region
      %s306 = ssub.s32 %s10, 2
      // Predicated region
      $region45: #{_lambda_.23} parent=43 // pred_check
        %p307 = pneg %p128
      $region46: #{_lambda_.23} parent=43 // pred_check_branch
        %309 = sbr.rel (%p307) target = $region48
      $region47: #{_lambda_.23} parent=43 // pred_region
        %s310 = smul.u32 2, %s16
        %p311 = scmp.lt.s32.totalorder %s310, 3
        %s312 = scalar_select %p311, %s310, 3
        %s313 = smul.addr %s312, 4
        %s314 = scalar_lea.vmem %s4, %s313
      $region48: #{_lambda_.23} parent=43 // pred_fallthru
        _
    $region44: #{_lambda_.23} parent=5 // pred_fallthru
      _
  $region6: #{_lambda_.23} parent=0 // loop_footer
    %s14 = sadd.s32 1, %s10
  $region7: #{_lambda_.23} parent=0 // loop_footer_branch
    %9 = sbr.rel target = $region3
  $region8: #{_lambda_.23} parent=0 // loop_exit
    _

// kernel: _lambda_.27
$region0: #{_lambda_.27}
  #allocation0 [shape = 'u32[]', space=smem, size = 0x4, offset = 0x4, fixed_abs, tag = 'smem constant byte address 0x4 - core index']
  #allocation1 [shape = 'u32[144,128]{1,0:T(1,128)}', space=vmem, size = 0x12000, scoped, tag = 'internal scratch']
  %s0 = inlined_call_operand.vmem [shape: bf16[8,32], index: 0, kind: input, shape index: {}]
  %s1 = inlined_call_operand.vmem [shape: bf16[32,32], index: 1, kind: input, shape index: {}]
  %s2 = inlined_call_operand.vmem [shape: f32[1,32], index: 2, kind: input, shape index: {}]
  %s3 = inlined_call_operand.vmem [shape: f32[1,32], index: 3, kind: input, shape index: {}]
  %s4 = inlined_call_operand.vmem [shape: bf16[8,32], index: 4, kind: output, shape index: {}]
  %s5 = sld [smem:[#allocation0]]
  $region26: #{_lambda_.27} parent=0
    _
  %s7 = ssub.s32 1, %s5
  %s8 = scalar_select 0, %s7, %s5
  // Predicated region
  $region2: #{_lambda_.27} parent=0 // pred_check
    _
  $region3: #{_lambda_.27} parent=0 // pred_check_branch
    %10 = sbr.rel (0) target = $region5
  $region4: #{_lambda_.27} parent=0 // pred_region
    _
  $region5: #{_lambda_.27} parent=0 // pred_fallthru
    _
  // Predicated region
  $region6: #{_lambda_.27} parent=0 // pred_check
    _
  $region7: #{_lambda_.27} parent=0 // pred_check_branch
    %12 = sbr.rel (0) target = $region9
  $region8: #{_lambda_.27} parent=0 // pred_region
    _
  $region9: #{_lambda_.27} parent=0 // pred_fallthru
    _
  // Predicated region
  $region10: #{_lambda_.27} parent=0 // pred_check
    _
  $region11: #{_lambda_.27} parent=0 // pred_check_branch
    %14 = sbr.rel (0) target = $region13
  $region12: #{_lambda_.27} parent=0 // pred_region
    _
  $region13: #{_lambda_.27} parent=0 // pred_fallthru
    _
  // Predicated region
  $region14: #{_lambda_.27} parent=0 // pred_check
    _
  $region15: #{_lambda_.27} parent=0 // pred_check_branch
    %16 = sbr.rel (0) target = $region17
  $region16: #{_lambda_.27} parent=0 // pred_region
    _
  $region17: #{_lambda_.27} parent=0 // pred_fallthru
    _
  %v18 = vld [vmem:[%s0] sm:$0xf]
  %v19 = vld [vmem:[%s1] sm:$0xf]
  %v20 = vld [vmem:[%s1 + $0x4] sm:$0xf]
  %v21 = vld [vmem:[%s1 + $0x8] sm:$0xf]
  %v22 = vld [vmem:[%s1 + $0xc] sm:$0xf]
  %v27 = vunpack.c.l.b16 %v19
  %v28 = vunpack.c.l.b16 %v20
  %v29 = vunpack.c.l.b16 %v21
  %v30 = vunpack.c.l.b16 %v22
  %v31 = vpack.c.b16 %v28, %v27
  %v32 = vpack.c.b16 %v30, %v29
  %vm35 = vcmask 261120
  %v37 = vsel %vm35, %v18, 0
  %39 = vmatprep.subr.bf16.mxu0 0
  %40 = vmatpush1.bf16.msra.mxu0 %v31
  %41 = vmatprep.subr.bf16.mxu0 0
  %42 = vmatpush1.bf16.msra.mxu0 %v32
  %43 = vmatprep.subr.bf16.mxu0 0
  %44 = vmatpush1.bf16.msra.mxu0 0
  %45 = vmatprep.subr.bf16.mxu0 0
  %46 = vmatpush1.bf16.msra.mxu0 0
  %47 = vmatprep.subr.bf16.mxu0 0
  %48 = vmatpush1.bf16.msra.mxu0 0
  %49 = vmatprep.subr.bf16.mxu0 0
  %50 = vmatpush1.bf16.msra.mxu0 0
  %51 = vmatprep.subr.bf16.mxu0 0
  %52 = vmatpush1.bf16.msra.mxu0 0
  %53 = vmatprep.subr.bf16.mxu0 0
  %54 = vmatpush1.bf16.msra.mxu0 0
  %55 = vmatprep.subr.bf16.mxu0 0
  %56 = vmatpush1.bf16.msra.mxu0 0
  %57 = vmatprep.subr.bf16.mxu0 0
  %58 = vmatpush1.bf16.msra.mxu0 0
  %59 = vmatprep.subr.bf16.mxu0 0
  %60 = vmatpush1.bf16.msra.mxu0 0
  %61 = vmatprep.subr.bf16.mxu0 0
  %62 = vmatpush1.bf16.msra.mxu0 0
  %63 = vmatprep.subr.bf16.mxu0 0
  %64 = vmatpush1.bf16.msra.mxu0 0
  %65 = vmatprep.subr.bf16.mxu0 0
  %66 = vmatpush1.bf16.msra.mxu0 0
  %67 = vmatprep.subr.bf16.mxu0 0
  %68 = vmatpush1.bf16.msra.mxu0 0
  %69 = vmatprep.subr.bf16.mxu0 0
  %70 = vmatpush1.bf16.msra.mxu0 0
  %71 = vmatprep.mubr.bf16.mxu0 0
  %72 = vmatmul.mubr.bf16.gmra.mrb[0].mxu0 %v37
  %v73 = vpop.f32.mrb[0].mxu0
  %v74 = vadd.f32 0.0, %v73
  %v75 = vpop.f32.mrb[0].mxu0
  %v76 = vpop.f32.mrb[0].mxu0
  %v77 = vpop.f32.mrb[0].mxu0
  %78 = vdwg.mxu0
  %v79 = vld [vmem:[%s2] sm:$0x1]
  %v81 = vlaneseq
  %v82 = vshrl.u32 %v81, 7
  %v83 = vsub.s32 0, %v82
  %v84 = vrot.slane %v79, %v83
  %v86 = vmul.f32 %v74, %v84
  %v87 = vld [vmem:[%s3] sm:$0x1]
  %v89 = vlaneseq
  %v90 = vshrl.u32 %v89, 7
  %v91 = vsub.s32 0, %v90
  %v92 = vrot.slane %v87, %v91
  %v94 = vadd.f32 %v86, %v92
  %v95 = vmax.f32 %v94, 0.0
  %v96 = vpack.c.bf16 %v95, %v95
  %vm97 = vcmask 257024
  %98 = vst.msk [vmem:[%s4] sm:$0xf] %vm97, %v96
  // Predicated region
  $region18: #{_lambda_.27} parent=0 // pred_check
    _
  $region19: #{_lambda_.27} parent=0 // pred_check_branch
    %100 = sbr.rel (0) target = $region21
  $region20: #{_lambda_.27} parent=0 // pred_region
    _
  $region21: #{_lambda_.27} parent=0 // pred_fallthru
    _
  // Predicated region
  $region22: #{_lambda_.27} parent=0 // pred_check
    _
  $region23: #{_lambda_.27} parent=0 // pred_check_branch
    %102 = sbr.rel (0) target = $region25
  $region24: #{_lambda_.27} parent=0 // pred_region
    _
  $region25: #{_lambda_.27} parent=0 // pred_fallthru
    _

// kernel: _lambda_.25
$region0: #{_lambda_.25}
  #allocation0 [shape = 'u32[]', space=smem, size = 0x4, offset = 0x4, fixed_abs, tag = 'smem constant byte address 0x4 - core index']
  #allocation1 [shape = 'u32[144,128]{1,0:T(1,128)}', space=vmem, size = 0x12000, scoped, tag = 'internal scratch']
  #allocation2 [shape = 'f32[4,4,16]{2,1,0:T(4,128)}', space=vmem, size = 0x2000, scoped, tag = 'scratch operand']
  %s0 = inlined_call_operand.vmem [shape: bf16[2,4,16], index: 0, kind: input, shape index: {}]
  %s1 = inlined_call_operand.vmem [shape: bf16[16,16], index: 1, kind: input, shape index: {}]
  %s2 = inlined_call_operand.vmem [shape: f32[1,16], index: 2, kind: input, shape index: {}]
  %s3 = inlined_call_operand.vmem [shape: f32[1,16], index: 3, kind: input, shape index: {}]
  %s4 = inlined_call_operand.vmem [shape: f32[9,1,16], index: 4, kind: input, shape index: {}]
  %s5 = inlined_call_operand.vmem [shape: f32[1,16], index: 5, kind: input, shape index: {}]
  %s6 = inlined_call_operand.vmem [shape: f32[1,16], index: 6, kind: input, shape index: {}]
  %s7 = inlined_call_operand.vmem [shape: bf16[16,16], index: 7, kind: input, shape index: {}]
  %s8 = inlined_call_operand.vmem [shape: f32[1,16], index: 8, kind: input, shape index: {}]
  %s9 = inlined_call_operand.vmem [shape: f32[1,16], index: 9, kind: input, shape index: {}]
  %s10 = inlined_call_operand.vmem [shape: bf16[2,4,16], index: 10, kind: output, shape index: {}]
  %s11 = sld [smem:[#allocation0]]
  $region77: #{_lambda_.25} parent=0
    _
  %s13 = ssub.s32 1, %s11
  %s14 = scalar_select 0, %s13, %s11
  loop: start=0, step=1, limit=4
  $region2: #{_lambda_.25} parent=0 // loop_pre_header
    _
  $region3: #{_lambda_.25} parent=0 // loop_header
    %s16 = sphi 0, %s20
    %p17 = scmp.ge.s32.totalorder %s16, 4
    %s26 = sphi 0, %s28
    %s29 = sphi 0, %s26
    %s30 = sphi 0, %s29
    %s46 = sphi 0, %s30
    %s50 = sphi 0, %s50
    %s52 = sphi 0, %s50
    %s53 = sphi 0, %s52
    %s67 = sphi 0, %s53
    %s71 = sphi 0, %s71
    %s73 = sphi 0, %s71
    %s74 = sphi 0, %s73
    %s88 = sphi 0, %s74
    %s92 = sphi 0, %s92
    %s94 = sphi 0, %s92
    %s95 = sphi 0, %s94
    %s109 = sphi 0, %s95
    %s113 = sphi 0, %s113
    %s115 = sphi 0, %s113
    %s116 = sphi 0, %s115
    %s130 = sphi 0, %s116
    %s134 = sphi 0, %s134
    %s136 = sphi 0, %s134
    %s137 = sphi 0, %s136
    %s151 = sphi 0, %s137
    %s155 = sphi 0, %s155
    %s157 = sphi 0, %s155
    %s158 = sphi 0, %s157
    %s172 = sphi 0, %s158
    %s176 = sphi 0, %s176
    %s178 = sphi 0, %s176
    %s179 = sphi 0, %s178
    %s193 = sphi 0, %s179
    %s197 = sphi 0, %s197
    %s199 = sphi 0, %s197
    %s200 = sphi 0, %s199
    %s214 = sphi 0, %s200
    %s218 = sphi 0, %s218
    %s220 = sphi 0, %s218
    %s221 = sphi 0, %s220
    %s235 = sphi 0, %s221
    %s241 = sphi 0, %s243
    %s244 = sphi 0, %s241
    %s245 = sphi 0, %s244
    %s261 = sphi 0, %s245
  $region4: #{_lambda_.25} parent=0 // loop_header_branch
    %19 = sbr.rel (%p17) target = $region8
  $region5: #{_lambda_.25} parent=0 // loop_body
    %s21 = ssub.s32 %s16, 1
    %s22 = ssub.s32 %s16, 2
    %s23 = sadd.s32 %s16, 1
    %s24 = ssub.s32 %s16, %s23
    %p25 = scmp.eq.s32.totalorder %s24, 0
    %s27 = sadd.s32 %s26, 1
    %s28 = scalar_select %p25, %s26, %s27
    %p31 = pneg %p25
    %p32 = scmp.eq.s32.totalorder %s16, 1
    %p33 = por %p31, %p32
    %p34 = scmp.ne.s32.totalorder %s26, %s29
    %p35 = scmp.eq.s32.totalorder %s16, 0
    %p36 = por %p34, %p35
    %p37 = scmp.ne.s32.totalorder %s26, %s29
    %p38 = scmp.eq.s32.totalorder %s21, 1
    %p39 = por %p37, %p38
    %p40 = scmp.ne.s32.totalorder %s29, %s30
    %p41 = scmp.eq.s32.totalorder %s21, 0
    %p42 = por %p40, %p41
    %p43 = scmp.ne.s32.totalorder %s29, %s30
    %p44 = scmp.eq.s32.totalorder %s22, 1
    %p45 = por %p43, %p44
    %p47 = scmp.ne.s32.totalorder %s30, %s46
    %p48 = scmp.eq.s32.totalorder %s22, 0
    %p49 = por %p47, %p48
    %s51 = sadd.s32 %s50, 1
    %p54 = scmp.eq.s32.totalorder %s16, 1
    %p55 = scmp.ne.s32.totalorder %s50, %s52
    %p56 = scmp.eq.s32.totalorder %s16, 0
    %p57 = por %p55, %p56
    %p58 = scmp.ne.s32.totalorder %s50, %s52
    %p59 = scmp.eq.s32.totalorder %s21, 1
    %p60 = por %p58, %p59
    %p61 = scmp.ne.s32.totalorder %s52, %s53
    %p62 = scmp.eq.s32.totalorder %s21, 0
    %p63 = por %p61, %p62
    %p64 = scmp.ne.s32.totalorder %s52, %s53
    %p65 = scmp.eq.s32.totalorder %s22, 1
    %p66 = por %p64, %p65
    %p68 = scmp.ne.s32.totalorder %s53, %s67
    %p69 = scmp.eq.s32.totalorder %s22, 0
    %p70 = por %p68, %p69
    %s72 = sadd.s32 %s71, 1
    %p75 = scmp.eq.s32.totalorder %s16, 1
    %p76 = scmp.ne.s32.totalorder %s71, %s73
    %p77 = scmp.eq.s32.totalorder %s16, 0
    %p78 = por %p76, %p77
    %p79 = scmp.ne.s32.totalorder %s71, %s73
    %p80 = scmp.eq.s32.totalorder %s21, 1
    %p81 = por %p79, %p80
    %p82 = scmp.ne.s32.totalorder %s73, %s74
    %p83 = scmp.eq.s32.totalorder %s21, 0
    %p84 = por %p82, %p83
    %p85 = scmp.ne.s32.totalorder %s73, %s74
    %p86 = scmp.eq.s32.totalorder %s22, 1
    %p87 = por %p85, %p86
    %p89 = scmp.ne.s32.totalorder %s74, %s88
    %p90 = scmp.eq.s32.totalorder %s22, 0
    %p91 = por %p89, %p90
    %s93 = sadd.s32 %s92, 1
    %p96 = scmp.eq.s32.totalorder %s16, 1
    %p97 = scmp.ne.s32.totalorder %s92, %s94
    %p98 = scmp.eq.s32.totalorder %s16, 0
    %p99 = por %p97, %p98
    %p100 = scmp.ne.s32.totalorder %s92, %s94
    %p101 = scmp.eq.s32.totalorder %s21, 1
    %p102 = por %p100, %p101
    %p103 = scmp.ne.s32.totalorder %s94, %s95
    %p104 = scmp.eq.s32.totalorder %s21, 0
    %p105 = por %p103, %p104
    %p106 = scmp.ne.s32.totalorder %s94, %s95
    %p107 = scmp.eq.s32.totalorder %s22, 1
    %p108 = por %p106, %p107
    %p110 = scmp.ne.s32.totalorder %s95, %s109
    %p111 = scmp.eq.s32.totalorder %s22, 0
    %p112 = por %p110, %p111
    %s114 = sadd.s32 %s113, 1
    %p117 = scmp.eq.s32.totalorder %s16, 1
    %p118 = scmp.ne.s32.totalorder %s113, %s115
    %p119 = scmp.eq.s32.totalorder %s16, 0
    %p120 = por %p118, %p119
    %p121 = scmp.ne.s32.totalorder %s113, %s115
    %p122 = scmp.eq.s32.totalorder %s21, 1
    %p123 = por %p121, %p122
    %p124 = scmp.ne.s32.totalorder %s115, %s116
    %p125 = scmp.eq.s32.totalorder %s21, 0
    %p126 = por %p124, %p125
    %p127 = scmp.ne.s32.totalorder %s115, %s116
    %p128 = scmp.eq.s32.totalorder %s22, 1
    %p129 = por %p127, %p128
    %p131 = scmp.ne.s32.totalorder %s116, %s130
    %p132 = scmp.eq.s32.totalorder %s22, 0
    %p133 = por %p131, %p132
    %s135 = sadd.s32 %s134, 1
    %p138 = scmp.eq.s32.totalorder %s16, 1
    %p139 = scmp.ne.s32.totalorder %s134, %s136
    %p140 = scmp.eq.s32.totalorder %s16, 0
    %p141 = por %p139, %p140
    %p142 = scmp.ne.s32.totalorder %s134, %s136
    %p143 = scmp.eq.s32.totalorder %s21, 1
    %p144 = por %p142, %p143
    %p145 = scmp.ne.s32.totalorder %s136, %s137
    %p146 = scmp.eq.s32.totalorder %s21, 0
    %p147 = por %p145, %p146
    %p148 = scmp.ne.s32.totalorder %s136, %s137
    %p149 = scmp.eq.s32.totalorder %s22, 1
    %p150 = por %p148, %p149
    %p152 = scmp.ne.s32.totalorder %s137, %s151
    %p153 = scmp.eq.s32.totalorder %s22, 0
    %p154 = por %p152, %p153
    %s156 = sadd.s32 %s155, 1
    %p159 = scmp.eq.s32.totalorder %s16, 1
    %p160 = scmp.ne.s32.totalorder %s155, %s157
    %p161 = scmp.eq.s32.totalorder %s16, 0
    %p162 = por %p160, %p161
    %p163 = scmp.ne.s32.totalorder %s155, %s157
    %p164 = scmp.eq.s32.totalorder %s21, 1
    %p165 = por %p163, %p164
    %p166 = scmp.ne.s32.totalorder %s157, %s158
    %p167 = scmp.eq.s32.totalorder %s21, 0
    %p168 = por %p166, %p167
    %p169 = scmp.ne.s32.totalorder %s157, %s158
    %p170 = scmp.eq.s32.totalorder %s22, 1
    %p171 = por %p169, %p170
    %p173 = scmp.ne.s32.totalorder %s158, %s172
    %p174 = scmp.eq.s32.totalorder %s22, 0
    %p175 = por %p173, %p174
    %s177 = sadd.s32 %s176, 1
    %p180 = scmp.eq.s32.totalorder %s16, 1
    %p181 = scmp.ne.s32.totalorder %s176, %s178
    %p182 = scmp.eq.s32.totalorder %s16, 0
    %p183 = por %p181, %p182
    %p184 = scmp.ne.s32.totalorder %s176, %s178
    %p185 = scmp.eq.s32.totalorder %s21, 1
    %p186 = por %p184, %p185
    %p187 = scmp.ne.s32.totalorder %s178, %s179
    %p188 = scmp.eq.s32.totalorder %s21, 0
    %p189 = por %p187, %p188
    %p190 = scmp.ne.s32.totalorder %s178, %s179
    %p191 = scmp.eq.s32.totalorder %s22, 1
    %p192 = por %p190, %p191
    %p194 = scmp.ne.s32.totalorder %s179, %s193
    %p195 = scmp.eq.s32.totalorder %s22, 0
    %p196 = por %p194, %p195
    %s198 = sadd.s32 %s197, 1
    %p201 = scmp.eq.s32.totalorder %s16, 1
    %p202 = scmp.ne.s32.totalorder %s197, %s199
    %p203 = scmp.eq.s32.totalorder %s16, 0
    %p204 = por %p202, %p203
    %p205 = scmp.ne.s32.totalorder %s197, %s199
    %p206 = scmp.eq.s32.totalorder %s21, 1
    %p207 = por %p205, %p206
    %p208 = scmp.ne.s32.totalorder %s199, %s200
    %p209 = scmp.eq.s32.totalorder %s21, 0
    %p210 = por %p208, %p209
    %p211 = scmp.ne.s32.totalorder %s199, %s200
    %p212 = scmp.eq.s32.totalorder %s22, 1
    %p213 = por %p211, %p212
    %p215 = scmp.ne.s32.totalorder %s200, %s214
    %p216 = scmp.eq.s32.totalorder %s22, 0
    %p217 = por %p215, %p216
    %s219 = sadd.s32 %s218, 1
    %p222 = scmp.eq.s32.totalorder %s16, 1
    %p223 = scmp.ne.s32.totalorder %s218, %s220
    %p224 = scmp.eq.s32.totalorder %s16, 0
    %p225 = por %p223, %p224
    %p226 = scmp.ne.s32.totalorder %s218, %s220
    %p227 = scmp.eq.s32.totalorder %s21, 1
    %p228 = por %p226, %p227
    %p229 = scmp.ne.s32.totalorder %s220, %s221
    %p230 = scmp.eq.s32.totalorder %s21, 0
    %p231 = por %p229, %p230
    %p232 = scmp.ne.s32.totalorder %s220, %s221
    %p233 = scmp.eq.s32.totalorder %s22, 1
    %p234 = por %p232, %p233
    %p236 = scmp.ne.s32.totalorder %s221, %s235
    %p237 = scmp.eq.s32.totalorder %s22, 0
    %p238 = por %p236, %p237
    %s239 = ssub.s32 %s16, %s23
    %p240 = scmp.eq.s32.totalorder %s239, 0
    %s242 = sadd.s32 %s241, 1
    %s243 = scalar_select %p240, %s241, %s242
    %p246 = pneg %p240
    %p247 = scmp.eq.s32.totalorder %s16, 1
    %p248 = por %p246, %p247
    %p249 = scmp.ne.s32.totalorder %s241, %s244
    %p250 = scmp.eq.s32.totalorder %s16, 0
    %p251 = por %p249, %p250
    %p252 = scmp.ne.s32.totalorder %s241, %s244
    %p253 = scmp.eq.s32.totalorder %s21, 1
    %p254 = por %p252, %p253
    %p255 = scmp.ne.s32.totalorder %s244, %s245
    %p256 = scmp.eq.s32.totalorder %s21, 0
    %p257 = por %p255, %p256
    %p258 = scmp.ne.s32.totalorder %s244, %s245
    %p259 = scmp.eq.s32.totalorder %s22, 1
    %p260 = por %p258, %p259
    %p262 = scmp.ne.s32.totalorder %s245, %s261
    %p263 = scmp.eq.s32.totalorder %s22, 0
    %p264 = por %p262, %p263
    %p265 = scmp.le.s32.totalorder 1, %s16
    %p266 = scmp.lt.s32.totalorder %s16, 3
    %p267 = pnand %p265, %p266
    %p268 = pneg %p267
    // Predicated region
    $region9: #{_lambda_.25} parent=5 // pred_check
      _
    $region10: #{_lambda_.25} parent=5 // pred_check_branch
      %270 = sbr.rel (%p267) target = $region12
    $region11: #{_lambda_.25} parent=5 // pred_region
      %s271 = ssub.s32 %s16, 1
      // Predicated region
      $region13: #{_lambda_.25} parent=11 // pred_check
        %p272 = pneg %p63
      $region14: #{_lambda_.25} parent=11 // pred_check_branch
        %274 = sbr.rel (%p272) target = $region16
      $region15: #{_lambda_.25} parent=11 // pred_region
        _
      $region16: #{_lambda_.25} parent=11 // pred_fallthru
        _
      // Predicated region
      $region17: #{_lambda_.25} parent=11 // pred_check
        %p275 = pneg %p84
      $region18: #{_lambda_.25} parent=11 // pred_check_branch
        %277 = sbr.rel (%p275) target = $region20
      $region19: #{_lambda_.25} parent=11 // pred_region
        _
      $region20: #{_lambda_.25} parent=11 // pred_fallthru
        _
      // Predicated region
      $region21: #{_lambda_.25} parent=11 // pred_check
        %p278 = pneg %p105
      $region22: #{_lambda_.25} parent=11 // pred_check_branch
        %280 = sbr.rel (%p278) target = $region24
      $region23: #{_lambda_.25} parent=11 // pred_region
        _
      $region24: #{_lambda_.25} parent=11 // pred_fallthru
        _
      // Predicated region
      $region25: #{_lambda_.25} parent=11 // pred_check
        %p281 = pneg %p126
      $region26: #{_lambda_.25} parent=11 // pred_check_branch
        %283 = sbr.rel (%p281) target = $region28
      $region27: #{_lambda_.25} parent=11 // pred_region
        _
      $region28: #{_lambda_.25} parent=11 // pred_fallthru
        _
      // Predicated region
      $region29: #{_lambda_.25} parent=11 // pred_check
        %p284 = pneg %p147
      $region30: #{_lambda_.25} parent=11 // pred_check_branch
        %286 = sbr.rel (%p284) target = $region32
      $region31: #{_lambda_.25} parent=11 // pred_region
        _
      $region32: #{_lambda_.25} parent=11 // pred_fallthru
        _
      // Predicated region
      $region33: #{_lambda_.25} parent=11 // pred_check
        %p287 = pneg %p168
      $region34: #{_lambda_.25} parent=11 // pred_check_branch
        %289 = sbr.rel (%p287) target = $region36
      $region35: #{_lambda_.25} parent=11 // pred_region
        _
      $region36: #{_lambda_.25} parent=11 // pred_fallthru
        _
      // Predicated region
      $region37: #{_lambda_.25} parent=11 // pred_check
        %p290 = pneg %p189
      $region38: #{_lambda_.25} parent=11 // pred_check_branch
        %292 = sbr.rel (%p290) target = $region40
      $region39: #{_lambda_.25} parent=11 // pred_region
        _
      $region40: #{_lambda_.25} parent=11 // pred_fallthru
        _
      // Predicated region
      $region41: #{_lambda_.25} parent=11 // pred_check
        %p293 = pneg %p210
      $region42: #{_lambda_.25} parent=11 // pred_check_branch
        %295 = sbr.rel (%p293) target = $region44
      $region43: #{_lambda_.25} parent=11 // pred_region
        _
      $region44: #{_lambda_.25} parent=11 // pred_fallthru
        _
      // Predicated region
      $region45: #{_lambda_.25} parent=11 // pred_check
        %p296 = pneg %p231
      $region46: #{_lambda_.25} parent=11 // pred_check_branch
        %298 = sbr.rel (%p296) target = $region48
      $region47: #{_lambda_.25} parent=11 // pred_region
        _
      $region48: #{_lambda_.25} parent=11 // pred_fallthru
        _
    $region12: #{_lambda_.25} parent=5 // pred_fallthru
      _
    %p299 = scmp.lt.s32.totalorder %s16, 2
    // Predicated region
    $region49: #{_lambda_.25} parent=5 // pred_check
      %p300 = pneg %p299
    $region50: #{_lambda_.25} parent=5 // pred_check_branch
      %302 = sbr.rel (%p300) target = $region52
    $region51: #{_lambda_.25} parent=5 // pred_region
      // Predicated region
      $region53: #{_lambda_.25} parent=51 // pred_check
        %p303 = pneg %p36
      $region54: #{_lambda_.25} parent=51 // pred_check_branch
        %305 = sbr.rel (%p303) target = $region56
      $region55: #{_lambda_.25} parent=51 // pred_region
        %p306 = scmp.lt.s32.totalorder %s16, 1
        %s307 = scalar_select %p306, %s16, 1
        %s308 = smul.addr %s307, 2
        %s309 = scalar_lea.vmem %s0, %s308
      $region56: #{_lambda_.25} parent=51 // pred_fallthru
        _
    $region52: #{_lambda_.25} parent=5 // pred_fallthru
      _
    %p310 = scmp.le.s32.totalorder 1, %s16
    %p311 = scmp.lt.s32.totalorder %s16, 3
    %p312 = pnand %p310, %p311
    %p313 = pneg %p312
    // Predicated region
    $region57: #{_lambda_.25} parent=5 // pred_check
      _
    $region58: #{_lambda_.25} parent=5 // pred_check_branch
      %315 = sbr.rel (%p312) target = $region60
    $region59: #{_lambda_.25} parent=5 // pred_region
      %s316 = ssub.s32 %s16, 1
      %p317 = scmp.lt.s32.totalorder %s21, 1
      %s318 = scalar_select %p317, %s21, 1
      %s319 = smul.addr %s318, 2
      %s320 = scalar_lea.vmem %s0, %s319
      %p321 = pneg %p42
      %p322 = pneg %p39
      %p323 = pneg %p63
      %p324 = pneg %p60
      %p325 = pneg %p84
      %p326 = pneg %p81
      %p327 = pneg %p105
      %p328 = pneg %p102
      %p329 = pneg %p126
      %p330 = pneg %p123
      %p331 = pneg %p147
      %p332 = pneg %p144
      %p333 = pneg %p168
      %p334 = pneg %p165
      %p335 = pneg %p189
      %p336 = pneg %p186
      %p337 = pneg %p210
      %p338 = pneg %p207
      %p339 = pneg %p231
      %p340 = pneg %p228
      %p341 = pneg %p257
      %p342 = pneg %p254
      %p343 = scmp.lt.s32.totalorder %s21, 1
      %s344 = scalar_select %p343, %s21, 1
      %s345 = smul.addr %s344, 2
      %s346 = scalar_lea.vmem %s10, %s345
      %p347 = scmp.lt.s32.totalorder %s21, 1
      %s348 = scalar_select %p347, %s21, 1
      %s349 = smul.addr %s348, 2
      %s350 = scalar_lea.vmem %s0, %s349
      %p351 = scmp.lt.s32.totalorder %s21, 1
      %s352 = scalar_select %p351, %s21, 1
      %s353 = smul.addr %s352, 2
      %s354 = scalar_lea.vmem %s10, %s353
      %p356 = scmp.eq.s32.totalorder %s21, 0
      // Predicated region
      $region61: #{_lambda_.25} parent=59 // pred_check
        %p357 = pneg %p356
      $region62: #{_lambda_.25} parent=59 // pred_check_branch
        %359 = sbr.rel (%p357) target = $region64
      $region63: #{_lambda_.25} parent=59 // pred_region
        %vm360 = vcmask 125952
        %361 = vst.msk [vmem:[#allocation2] sm:$0xf] %vm360, 0.0
        %362 = vst.msk [vmem:[#allocation2 + $0x4] sm:$0xf] %vm360, 0.0
        %363 = vst.msk [vmem:[#allocation2 + $0x8] sm:$0xf] %vm360, 0.0
        %364 = vst.msk [vmem:[#allocation2 + $0xc] sm:$0xf] %vm360, 0.0
      $region64: #{_lambda_.25} parent=59 // pred_fallthru
        _
      %v365 = vld [vmem:[%s350] sm:$0x3]
      %v366 = vld [vmem:[%s1] sm:$0xf]
      %v367 = vld [vmem:[%s1 + $0x4] sm:$0xf]
      %v370 = vunpack.c.l.b16 %v366
      %v371 = vunpack.c.l.b16 %v367
      %v372 = vpack.c.b16 %v371, %v370
      %vm374 = vcmask 130048
      %v376 = vsel %vm374, %v365, 0
      %378 = vmatprep.subr.bf16.mxu0 0
      %379 = vmatpush1.bf16.msra.mxu0 %v372
      %380 = vmatprep.subr.bf16.mxu0 0
      %381 = vmatpush1.bf16.msra.mxu0 0
      %382 = vmatprep.subr.bf16.mxu0 0
      %383 = vmatpush1.bf16.msra.mxu0 0
      %384 = vmatprep.subr.bf16.mxu0 0
      %385 = vmatpush1.bf16.msra.mxu0 0
      %386 = vmatprep.subr.bf16.mxu0 0
      %387 = vmatpush1.bf16.msra.mxu0 0
      %388 = vmatprep.subr.bf16.mxu0 0
      %389 = vmatpush1.bf16.msra.mxu0 0
      %390 = vmatprep.subr.bf16.mxu0 0
      %391 = vmatpush1.bf16.msra.mxu0 0
      %392 = vmatprep.subr.bf16.mxu0 0
      %393 = vmatpush1.bf16.msra.mxu0 0
      %394 = vmatprep.subr.bf16.mxu0 0
      %395 = vmatpush1.bf16.msra.mxu0 0
      %396 = vmatprep.subr.bf16.mxu0 0
      %397 = vmatpush1.bf16.msra.mxu0 0
      %398 = vmatprep.subr.bf16.mxu0 0
      %399 = vmatpush1.bf16.msra.mxu0 0
      %400 = vmatprep.subr.bf16.mxu0 0
      %401 = vmatpush1.bf16.msra.mxu0 0
      %402 = vmatprep.subr.bf16.mxu0 0
      %403 = vmatpush1.bf16.msra.mxu0 0
      %404 = vmatprep.subr.bf16.mxu0 0
      %405 = vmatpush1.bf16.msra.mxu0 0
      %406 = vmatprep.subr.bf16.mxu0 0
      %407 = vmatpush1.bf16.msra.mxu0 0
      %408 = vmatprep.subr.bf16.mxu0 0
      %409 = vmatpush1.bf16.msra.mxu0 0
      %410 = vmatprep.mubr.bf16.mxu0 0
      %411 = vmatmul.mubr.bf16.gmra.mrb[0].mxu0 %v376
      %v412 = vpop.f32.mrb[0].mxu0
      %v413 = vadd.f32 0.0, %v412
      %v414 = vpop.f32.mrb[0].mxu0
      %v415 = vpop.f32.mrb[0].mxu0
      %v416 = vpop.f32.mrb[0].mxu0
      %417 = vdwg.mxu0
      %v418 = vld [vmem:[%s2] sm:$0x1]
      %v420 = vlaneseq
      %v421 = vshrl.u32 %v420, 7
      %v422 = vsub.s32 0, %v421
      %v423 = vrot.slane %v418, %v422
      %v425 = vmul.f32 %v413, %v423
      %v426 = vld [vmem:[%s3] sm:$0x1]
      %v428 = vlaneseq
      %v429 = vshrl.u32 %v428, 7
      %v430 = vsub.s32 0, %v429
      %v431 = vrot.slane %v426, %v430
      %v433 = vadd.f32 %v425, %v431
      %v434 = vmax.f32 %v433, 0.0
      %v437 = vunpack.c.l.s4 1983009808
      %v438 = vunpack.c.0.s8 %v437
      %v439 = vlaneseq
      %v440 = vshrl.u32 %v439, 7
      %v441 = vsub.s32 %v438, %v440
      %v442 = vrot.slane %v434, %v441
      %v443 = vcombine.high %v442, %v442
      %s446 = scalar_lea.vmem [#allocation2], 4
      %vm447 = vcmask 123904
      %448 = vst.msk [vmem:[%s446 + $0x1] sm:$0x3] %vm447, %v442
      %449 = vst.msk [vmem:[%s446 + $0x5] sm:$0x3] %vm447, %v443
      %v450 = vld [vmem:[#allocation2] sm:$0x3]
      %v451 = vld [vmem:[#allocation2 + $0x4] sm:$0x3]
      %v452 = vld [vmem:[%s4] sm:$0x1]
      %v454 = vlaneseq
      %v455 = vshrl.u32 %v454, 7
      %v456 = vsub.s32 0, %v455
      %v457 = vrot.slane %v452, %v456
      %v459 = vmul.f32 %v450, %v457
      %v460 = vmul.f32 %v451, %v457
      %v461 = vld [vmem:[#allocation2 + $0x1] sm:$0x3]
      %v462 = vld [vmem:[#allocation2 + $0x5] sm:$0x3]
      %s463 = scalar_lea.vmem %s4, 1
      %v464 = vld [vmem:[%s463] sm:$0x1]
      %v466 = vlaneseq
      %v467 = vshrl.u32 %v466, 7
      %v468 = vsub.s32 0, %v467
      %v469 = vrot.slane %v464, %v468
      %v471 = vmul.f32 %v461, %v469
      %v472 = vmul.f32 %v462, %v469
      %v473 = vld [vmem:[#allocation2 + $0x2] sm:$0x3]
      %v474 = vld [vmem:[#allocation2 + $0x6] sm:$0x3]
      %s475 = scalar_lea.vmem %s4, 2
      %v476 = vld [vmem:[%s475] sm:$0x1]
      %v478 = vlaneseq
      %v479 = vshrl.u32 %v478, 7
      %v480 = vsub.s32 0, %v479
      %v481 = vrot.slane %v476, %v480
      %v483 = vmul.f32 %v473, %v481
      %v484 = vmul.f32 %v474, %v481
      %v485 = vld [vmem:[%s446] sm:$0x3]
      %v486 = vld [vmem:[%s446 + $0x4] sm:$0x3]
      %s487 = scalar_lea.vmem %s4, 3
      %v488 = vld [vmem:[%s487] sm:$0x1]
      %v490 = vlaneseq
      %v491 = vshrl.u32 %v490, 7
      %v492 = vsub.s32 0, %v491
      %v493 = vrot.slane %v488, %v492
      %v495 = vmul.f32 %v485, %v493
      %v496 = vmul.f32 %v486, %v493
      %v497 = vadd.f32 %v459, %v495
      %v498 = vadd.f32 %v460, %v496
      %v499 = vld [vmem:[%s446 + $0x1] sm:$0x3]
      %v500 = vld [vmem:[%s446 + $0x5] sm:$0x3]
      %s501 = scalar_lea.vmem %s4, 4
      %v502 = vld [vmem:[%s501] sm:$0x1]
      %v504 = vlaneseq
      %v505 = vshrl.u32 %v504, 7
      %v506 = vsub.s32 0, %v505
      %v507 = vrot.slane %v502, %v506
      %v509 = vmul.f32 %v499, %v507
      %v510 = vmul.f32 %v500, %v507
      %v511 = vadd.f32 %v471, %v509
      %v512 = vadd.f32 %v472, %v510
      %v513 = vld [vmem:[%s446 + $0x2] sm:$0x3]
      %v514 = vld [vmem:[%s446 + $0x6] sm:$0x3]
      %s515 = scalar_lea.vmem %s4, 5
      %v516 = vld [vmem:[%s515] sm:$0x1]
      %v518 = vlaneseq
      %v519 = vshrl.u32 %v518, 7
      %v520 = vsub.s32 0, %v519
      %v521 = vrot.slane %v516, %v520
      %v523 = vmul.f32 %v513, %v521
      %v524 = vmul.f32 %v514, %v521
      %v525 = vadd.f32 %v483, %v523
      %v526 = vadd.f32 %v484, %v524
      %s527 = scalar_lea.vmem [#allocation2], 8
      %v528 = vld [vmem:[%s527] sm:$0x3]
      %v529 = vld [vmem:[%s527 + $0x4] sm:$0x3]
      %s530 = scalar_lea.vmem %s4, 6
      %v531 = vld [vmem:[%s530] sm:$0x1]
      %v533 = vlaneseq
      %v534 = vshrl.u32 %v533, 7
      %v535 = vsub.s32 0, %v534
      %v536 = vrot.slane %v531, %v535
      %v538 = vmul.f32 %v528, %v536
      %v539 = vmul.f32 %v529, %v536
      %v540 = vadd.f32 %v497, %v538
      %v541 = vadd.f32 %v498, %v539
      %v542 = vld [vmem:[%s527 + $0x1] sm:$0x3]
      %v543 = vld [vmem:[%s527 + $0x5] sm:$0x3]
      %s544 = scalar_lea.vmem %s4, 7
      %v545 = vld [vmem:[%s544] sm:$0x1]
      %v547 = vlaneseq
      %v548 = vshrl.u32 %v547, 7
      %v549 = vsub.s32 0, %v548
      %v550 = vrot.slane %v545, %v549
      %v552 = vmul.f32 %v542, %v550
      %v553 = vmul.f32 %v543, %v550
      %v554 = vadd.f32 %v511, %v552
      %v555 = vadd.f32 %v512, %v553
      %v556 = vld [vmem:[%s527 + $0x2] sm:$0x3]
      %v557 = vld [vmem:[%s527 + $0x6] sm:$0x3]
      %s558 = scalar_lea.vmem %s4, 8
      %v559 = vld [vmem:[%s558] sm:$0x1]
      %v561 = vlaneseq
      %v562 = vshrl.u32 %v561, 7
      %v563 = vsub.s32 0, %v562
      %v564 = vrot.slane %v559, %v563
      %v566 = vmul.f32 %v556, %v564
      %v567 = vmul.f32 %v557, %v564
      %v568 = vadd.f32 %v525, %v566
      %v569 = vadd.f32 %v526, %v567
      %v570 = vadd.f32 %v540, %v554
      %v571 = vadd.f32 %v541, %v555
      %v572 = vadd.f32 %v570, %v568
      %v573 = vadd.f32 %v571, %v569
      %v574 = vld [vmem:[%s5] sm:$0x1]
      %v576 = vlaneseq
      %v577 = vshrl.u32 %v576, 7
      %v578 = vsub.s32 0, %v577
      %v579 = vrot.slane %v574, %v578
      %v581 = vmul.f32 %v572, %v579
      %v582 = vmul.f32 %v573, %v579
      %v583 = vld [vmem:[%s6] sm:$0x1]
      %v585 = vlaneseq
      %v586 = vshrl.u32 %v585, 7
      %v587 = vsub.s32 0, %v586
      %v588 = vrot.slane %v583, %v587
      %v590 = vadd.f32 %v581, %v588
      %v591 = vadd.f32 %v582, %v588
      %v594 = vcombine.low %v590, %v591
      %v596 = vunpack.c.l.s4 1983009808
      %v597 = vunpack.c.0.s8 %v596
      %v598 = vlaneseq
      %v599 = vshrl.u32 %v598, 7
      %v600 = vsub.s32 %v597, %v599
      %v601 = vrot.slane %v594, %v600
      %v603 = vpack.c.bf16 %v601, %v601
      %v604 = vld [vmem:[%s7] sm:$0xf]
      %v605 = vld [vmem:[%s7 + $0x4] sm:$0xf]
      %v608 = vunpack.c.l.b16 %v604
      %v609 = vunpack.c.l.b16 %v605
      %v610 = vpack.c.b16 %v609, %v608
      %v613 = vsel %vm374, %v603, 0
      %615 = vmatprep.subr.bf16.mxu0 0
      %616 = vmatpush1.bf16.msra.mxu0 %v610
      %617 = vmatprep.subr.bf16.mxu0 0
      %618 = vmatpush1.bf16.msra.mxu0 0
      %619 = vmatprep.subr.bf16.mxu0 0
      %620 = vmatpush1.bf16.msra.mxu0 0
      %621 = vmatprep.subr.bf16.mxu0 0
      %622 = vmatpush1.bf16.msra.mxu0 0
      %623 = vmatprep.subr.bf16.mxu0 0
      %624 = vmatpush1.bf16.msra.mxu0 0
      %625 = vmatprep.subr.bf16.mxu0 0
      %626 = vmatpush1.bf16.msra.mxu0 0
      %627 = vmatprep.subr.bf16.mxu0 0
      %628 = vmatpush1.bf16.msra.mxu0 0
      %629 = vmatprep.subr.bf16.mxu0 0
      %630 = vmatpush1.bf16.msra.mxu0 0
      %631 = vmatprep.subr.bf16.mxu0 0
      %632 = vmatpush1.bf16.msra.mxu0 0
      %633 = vmatprep.subr.bf16.mxu0 0
      %634 = vmatpush1.bf16.msra.mxu0 0
      %635 = vmatprep.subr.bf16.mxu0 0
      %636 = vmatpush1.bf16.msra.mxu0 0
      %637 = vmatprep.subr.bf16.mxu0 0
      %638 = vmatpush1.bf16.msra.mxu0 0
      %639 = vmatprep.subr.bf16.mxu0 0
      %640 = vmatpush1.bf16.msra.mxu0 0
      %641 = vmatprep.subr.bf16.mxu0 0
      %642 = vmatpush1.bf16.msra.mxu0 0
      %643 = vmatprep.subr.bf16.mxu0 0
      %644 = vmatpush1.bf16.msra.mxu0 0
      %645 = vmatprep.subr.bf16.mxu0 0
      %646 = vmatpush1.bf16.msra.mxu0 0
      %647 = vmatprep.mubr.bf16.mxu0 0
      %648 = vmatmul.mubr.bf16.gmra.mrb[0].mxu0 %v613
      %v649 = vpop.f32.mrb[0].mxu0
      %v650 = vadd.f32 0.0, %v649
      %v651 = vpop.f32.mrb[0].mxu0
      %v652 = vpop.f32.mrb[0].mxu0
      %v653 = vpop.f32.mrb[0].mxu0
      %654 = vdwg.mxu0
      %v655 = vld [vmem:[%s8] sm:$0x1]
      %v657 = vlaneseq
      %v658 = vshrl.u32 %v657, 7
      %v659 = vsub.s32 0, %v658
      %v660 = vrot.slane %v655, %v659
      %v662 = vmul.f32 %v650, %v660
      %v663 = vld [vmem:[%s9] sm:$0x1]
      %v665 = vlaneseq
      %v666 = vshrl.u32 %v665, 7
      %v667 = vsub.s32 0, %v666
      %v668 = vrot.slane %v663, %v667
      %v670 = vadd.f32 %v662, %v668
      %v671 = vmax.f32 %v670, 0.0
      %v672 = vpack.c.bf16 %v671, %v671
      %673 = vst.msk [vmem:[%s354] sm:$0x3] %vm447, %v672
      %p674 = scmp.lt.s32.totalorder %s21, 1
      %s675 = scalar_select %p674, %s21, 1
      %s676 = smul.addr %s675, 2
      %s677 = scalar_lea.vmem %s10, %s676
      // Predicated region
      $region65: #{_lambda_.25} parent=59 // pred_check
        %p678 = pneg %p254
      $region66: #{_lambda_.25} parent=59 // pred_check_branch
        %680 = sbr.rel (%p678) target = $region68
      $region67: #{_lambda_.25} parent=59 // pred_region
        _
      $region68: #{_lambda_.25} parent=59 // pred_fallthru
        _
    $region60: #{_lambda_.25} parent=5 // pred_fallthru
      _
    %p681 = scmp.le.s32.totalorder 2, %s16
    // Predicated region
    $region69: #{_lambda_.25} parent=5 // pred_check
      %p682 = pneg %p681
    $region70: #{_lambda_.25} parent=5 // pred_check_branch
      %684 = sbr.rel (%p682) target = $region72
    $region71: #{_lambda_.25} parent=5 // pred_region
      %s685 = ssub.s32 %s16, 2
      // Predicated region
      $region73: #{_lambda_.25} parent=71 // pred_check
        %p686 = pneg %p260
      $region74: #{_lambda_.25} parent=71 // pred_check_branch
        %688 = sbr.rel (%p686) target = $region76
      $region75: #{_lambda_.25} parent=71 // pred_region
        %p689 = scmp.lt.s32.totalorder %s22, 1
        %s690 = scalar_select %p689, %s22, 1
        %s691 = smul.addr %s690, 2
        %s692 = scalar_lea.vmem %s10, %s691
      $region76: #{_lambda_.25} parent=71 // pred_fallthru
        _
    $region72: #{_lambda_.25} parent=5 // pred_fallthru
      _
  $region6: #{_lambda_.25} parent=0 // loop_footer
    %s20 = sadd.s32 1, %s16
  $region7: #{_lambda_.25} parent=0 // loop_footer_branch
    %15 = sbr.rel target = $region3
  $region8: #{_lambda_.25} parent=0 // loop_exit
    _

// kernel: _lambda_.26
$region0: #{_lambda_.26}
  #allocation0 [shape = 'u32[]', space=smem, size = 0x4, offset = 0x4, fixed_abs, tag = 'smem constant byte address 0x4 - core index']
  #allocation1 [shape = 'u32[144,128]{1,0:T(1,128)}', space=vmem, size = 0x12000, scoped, tag = 'internal scratch']
  %s0 = inlined_call_operand.vmem [shape: bf16[8,2,2,32], index: 0, kind: input, shape index: {}]
  %s1 = inlined_call_operand.vmem [shape: f32[9,1,32], index: 1, kind: input, shape index: {}]
  %s2 = inlined_call_operand.vmem [shape: f32[1,32], index: 2, kind: input, shape index: {}]
  %s3 = inlined_call_operand.vmem [shape: f32[1,32], index: 3, kind: input, shape index: {}]
  %s4 = inlined_call_operand.vmem [shape: bf16[32,32], index: 4, kind: input, shape index: {}]
  %s5 = inlined_call_operand.vmem [shape: f32[1,32], index: 5, kind: input, shape index: {}]
  %s6 = inlined_call_operand.vmem [shape: f32[1,32], index: 6, kind: input, shape index: {}]
  %s7 = inlined_call_operand.vmem [shape: bf16[2,1,32], index: 7, kind: output, shape index: {}]
  %s8 = sld [smem:[#allocation0]]
  $region61: #{_lambda_.26} parent=0
    _
  %s10 = ssub.s32 1, %s8
  %s11 = scalar_select 0, %s10, %s8
  loop: start=0, step=1, limit=4
  $region2: #{_lambda_.26} parent=0 // loop_pre_header
    _
  $region3: #{_lambda_.26} parent=0 // loop_header
    %s13 = sphi 0, %s17
    %p14 = scmp.ge.s32.totalorder %s13, 4
    %s23 = sphi 0, %s25
    %s26 = sphi 0, %s23
    %s27 = sphi 0, %s26
    %s43 = sphi 0, %s27
    %s47 = sphi 0, %s47
    %s49 = sphi 0, %s47
    %s50 = sphi 0, %s49
    %s64 = sphi 0, %s50
    %s68 = sphi 0, %s68
    %s70 = sphi 0, %s68
    %s71 = sphi 0, %s70
    %s85 = sphi 0, %s71
    %s89 = sphi 0, %s89
    %s91 = sphi 0, %s89
    %s92 = sphi 0, %s91
    %s106 = sphi 0, %s92
    %s110 = sphi 0, %s110
    %s112 = sphi 0, %s110
    %s113 = sphi 0, %s112
    %s127 = sphi 0, %s113
    %s131 = sphi 0, %s131
    %s133 = sphi 0, %s131
    %s134 = sphi 0, %s133
    %s148 = sphi 0, %s134
    %s152 = sphi 0, %s152
    %s154 = sphi 0, %s152
    %s155 = sphi 0, %s154
    %s169 = sphi 0, %s155
    %s175 = sphi 0, %s177
    %s178 = sphi 0, %s175
    %s179 = sphi 0, %s178
    %s195 = sphi 0, %s179
  $region4: #{_lambda_.26} parent=0 // loop_header_branch
    %16 = sbr.rel (%p14) target = $region8
  $region5: #{_lambda_.26} parent=0 // loop_body
    %s18 = ssub.s32 %s13, 1
    %s19 = ssub.s32 %s13, 2
    %s20 = sadd.s32 %s13, 1
    %s21 = ssub.s32 %s13, %s20
    %p22 = scmp.eq.s32.totalorder %s21, 0
    %s24 = sadd.s32 %s23, 1
    %s25 = scalar_select %p22, %s23, %s24
    %p28 = pneg %p22
    %p29 = scmp.eq.s32.totalorder %s13, 1
    %p30 = por %p28, %p29
    %p31 = scmp.ne.s32.totalorder %s23, %s26
    %p32 = scmp.eq.s32.totalorder %s13, 0
    %p33 = por %p31, %p32
    %p34 = scmp.ne.s32.totalorder %s23, %s26
    %p35 = scmp.eq.s32.totalorder %s18, 1
    %p36 = por %p34, %p35
    %p37 = scmp.ne.s32.totalorder %s26, %s27
    %p38 = scmp.eq.s32.totalorder %s18, 0
    %p39 = por %p37, %p38
    %p40 = scmp.ne.s32.totalorder %s26, %s27
    %p41 = scmp.eq.s32.totalorder %s19, 1
    %p42 = por %p40, %p41
    %p44 = scmp.ne.s32.totalorder %s27, %s43
    %p45 = scmp.eq.s32.totalorder %s19, 0
    %p46 = por %p44, %p45
    %s48 = sadd.s32 %s47, 1
    %p51 = scmp.eq.s32.totalorder %s13, 1
    %p52 = scmp.ne.s32.totalorder %s47, %s49
    %p53 = scmp.eq.s32.totalorder %s13, 0
    %p54 = por %p52, %p53
    %p55 = scmp.ne.s32.totalorder %s47, %s49
    %p56 = scmp.eq.s32.totalorder %s18, 1
    %p57 = por %p55, %p56
    %p58 = scmp.ne.s32.totalorder %s49, %s50
    %p59 = scmp.eq.s32.totalorder %s18, 0
    %p60 = por %p58, %p59
    %p61 = scmp.ne.s32.totalorder %s49, %s50
    %p62 = scmp.eq.s32.totalorder %s19, 1
    %p63 = por %p61, %p62
    %p65 = scmp.ne.s32.totalorder %s50, %s64
    %p66 = scmp.eq.s32.totalorder %s19, 0
    %p67 = por %p65, %p66
    %s69 = sadd.s32 %s68, 1
    %p72 = scmp.eq.s32.totalorder %s13, 1
    %p73 = scmp.ne.s32.totalorder %s68, %s70
    %p74 = scmp.eq.s32.totalorder %s13, 0
    %p75 = por %p73, %p74
    %p76 = scmp.ne.s32.totalorder %s68, %s70
    %p77 = scmp.eq.s32.totalorder %s18, 1
    %p78 = por %p76, %p77
    %p79 = scmp.ne.s32.totalorder %s70, %s71
    %p80 = scmp.eq.s32.totalorder %s18, 0
    %p81 = por %p79, %p80
    %p82 = scmp.ne.s32.totalorder %s70, %s71
    %p83 = scmp.eq.s32.totalorder %s19, 1
    %p84 = por %p82, %p83
    %p86 = scmp.ne.s32.totalorder %s71, %s85
    %p87 = scmp.eq.s32.totalorder %s19, 0
    %p88 = por %p86, %p87
    %s90 = sadd.s32 %s89, 1
    %p93 = scmp.eq.s32.totalorder %s13, 1
    %p94 = scmp.ne.s32.totalorder %s89, %s91
    %p95 = scmp.eq.s32.totalorder %s13, 0
    %p96 = por %p94, %p95
    %p97 = scmp.ne.s32.totalorder %s89, %s91
    %p98 = scmp.eq.s32.totalorder %s18, 1
    %p99 = por %p97, %p98
    %p100 = scmp.ne.s32.totalorder %s91, %s92
    %p101 = scmp.eq.s32.totalorder %s18, 0
    %p102 = por %p100, %p101
    %p103 = scmp.ne.s32.totalorder %s91, %s92
    %p104 = scmp.eq.s32.totalorder %s19, 1
    %p105 = por %p103, %p104
    %p107 = scmp.ne.s32.totalorder %s92, %s106
    %p108 = scmp.eq.s32.totalorder %s19, 0
    %p109 = por %p107, %p108
    %s111 = sadd.s32 %s110, 1
    %p114 = scmp.eq.s32.totalorder %s13, 1
    %p115 = scmp.ne.s32.totalorder %s110, %s112
    %p116 = scmp.eq.s32.totalorder %s13, 0
    %p117 = por %p115, %p116
    %p118 = scmp.ne.s32.totalorder %s110, %s112
    %p119 = scmp.eq.s32.totalorder %s18, 1
    %p120 = por %p118, %p119
    %p121 = scmp.ne.s32.totalorder %s112, %s113
    %p122 = scmp.eq.s32.totalorder %s18, 0
    %p123 = por %p121, %p122
    %p124 = scmp.ne.s32.totalorder %s112, %s113
    %p125 = scmp.eq.s32.totalorder %s19, 1
    %p126 = por %p124, %p125
    %p128 = scmp.ne.s32.totalorder %s113, %s127
    %p129 = scmp.eq.s32.totalorder %s19, 0
    %p130 = por %p128, %p129
    %s132 = sadd.s32 %s131, 1
    %p135 = scmp.eq.s32.totalorder %s13, 1
    %p136 = scmp.ne.s32.totalorder %s131, %s133
    %p137 = scmp.eq.s32.totalorder %s13, 0
    %p138 = por %p136, %p137
    %p139 = scmp.ne.s32.totalorder %s131, %s133
    %p140 = scmp.eq.s32.totalorder %s18, 1
    %p141 = por %p139, %p140
    %p142 = scmp.ne.s32.totalorder %s133, %s134
    %p143 = scmp.eq.s32.totalorder %s18, 0
    %p144 = por %p142, %p143
    %p145 = scmp.ne.s32.totalorder %s133, %s134
    %p146 = scmp.eq.s32.totalorder %s19, 1
    %p147 = por %p145, %p146
    %p149 = scmp.ne.s32.totalorder %s134, %s148
    %p150 = scmp.eq.s32.totalorder %s19, 0
    %p151 = por %p149, %p150
    %s153 = sadd.s32 %s152, 1
    %p156 = scmp.eq.s32.totalorder %s13, 1
    %p157 = scmp.ne.s32.totalorder %s152, %s154
    %p158 = scmp.eq.s32.totalorder %s13, 0
    %p159 = por %p157, %p158
    %p160 = scmp.ne.s32.totalorder %s152, %s154
    %p161 = scmp.eq.s32.totalorder %s18, 1
    %p162 = por %p160, %p161
    %p163 = scmp.ne.s32.totalorder %s154, %s155
    %p164 = scmp.eq.s32.totalorder %s18, 0
    %p165 = por %p163, %p164
    %p166 = scmp.ne.s32.totalorder %s154, %s155
    %p167 = scmp.eq.s32.totalorder %s19, 1
    %p168 = por %p166, %p167
    %p170 = scmp.ne.s32.totalorder %s155, %s169
    %p171 = scmp.eq.s32.totalorder %s19, 0
    %p172 = por %p170, %p171
    %s173 = ssub.s32 %s13, %s20
    %p174 = scmp.eq.s32.totalorder %s173, 0
    %s176 = sadd.s32 %s175, 1
    %s177 = scalar_select %p174, %s175, %s176
    %p180 = pneg %p174
    %p181 = scmp.eq.s32.totalorder %s13, 1
    %p182 = por %p180, %p181
    %p183 = scmp.ne.s32.totalorder %s175, %s178
    %p184 = scmp.eq.s32.totalorder %s13, 0
    %p185 = por %p183, %p184
    %p186 = scmp.ne.s32.totalorder %s175, %s178
    %p187 = scmp.eq.s32.totalorder %s18, 1
    %p188 = por %p186, %p187
    %p189 = scmp.ne.s32.totalorder %s178, %s179
    %p190 = scmp.eq.s32.totalorder %s18, 0
    %p191 = por %p189, %p190
    %p192 = scmp.ne.s32.totalorder %s178, %s179
    %p193 = scmp.eq.s32.totalorder %s19, 1
    %p194 = por %p192, %p193
    %p196 = scmp.ne.s32.totalorder %s179, %s195
    %p197 = scmp.eq.s32.totalorder %s19, 0
    %p198 = por %p196, %p197
    %p199 = scmp.le.s32.totalorder 1, %s13
    %p200 = scmp.lt.s32.totalorder %s13, 3
    %p201 = pnand %p199, %p200
    %p202 = pneg %p201
    // Predicated region
    $region9: #{_lambda_.26} parent=5 // pred_check
      _
    $region10: #{_lambda_.26} parent=5 // pred_check_branch
      %204 = sbr.rel (%p201) target = $region12
    $region11: #{_lambda_.26} parent=5 // pred_region
      %s205 = ssub.s32 %s13, 1
      // Predicated region
      $region13: #{_lambda_.26} parent=11 // pred_check
        %p206 = pneg %p60
      $region14: #{_lambda_.26} parent=11 // pred_check_branch
        %208 = sbr.rel (%p206) target = $region16
      $region15: #{_lambda_.26} parent=11 // pred_region
        _
      $region16: #{_lambda_.26} parent=11 // pred_fallthru
        _
      // Predicated region
      $region17: #{_lambda_.26} parent=11 // pred_check
        %p209 = pneg %p81
      $region18: #{_lambda_.26} parent=11 // pred_check_branch
        %211 = sbr.rel (%p209) target = $region20
      $region19: #{_lambda_.26} parent=11 // pred_region
        _
      $region20: #{_lambda_.26} parent=11 // pred_fallthru
        _
      // Predicated region
      $region21: #{_lambda_.26} parent=11 // pred_check
        %p212 = pneg %p102
      $region22: #{_lambda_.26} parent=11 // pred_check_branch
        %214 = sbr.rel (%p212) target = $region24
      $region23: #{_lambda_.26} parent=11 // pred_region
        _
      $region24: #{_lambda_.26} parent=11 // pred_fallthru
        _
      // Predicated region
      $region25: #{_lambda_.26} parent=11 // pred_check
        %p215 = pneg %p123
      $region26: #{_lambda_.26} parent=11 // pred_check_branch
        %217 = sbr.rel (%p215) target = $region28
      $region27: #{_lambda_.26} parent=11 // pred_region
        _
      $region28: #{_lambda_.26} parent=11 // pred_fallthru
        _
      // Predicated region
      $region29: #{_lambda_.26} parent=11 // pred_check
        %p218 = pneg %p144
      $region30: #{_lambda_.26} parent=11 // pred_check_branch
        %220 = sbr.rel (%p218) target = $region32
      $region31: #{_lambda_.26} parent=11 // pred_region
        _
      $region32: #{_lambda_.26} parent=11 // pred_fallthru
        _
      // Predicated region
      $region33: #{_lambda_.26} parent=11 // pred_check
        %p221 = pneg %p165
      $region34: #{_lambda_.26} parent=11 // pred_check_branch
        %223 = sbr.rel (%p221) target = $region36
      $region35: #{_lambda_.26} parent=11 // pred_region
        _
      $region36: #{_lambda_.26} parent=11 // pred_fallthru
        _
    $region12: #{_lambda_.26} parent=5 // pred_fallthru
      _
    %p224 = scmp.lt.s32.totalorder %s13, 2
    // Predicated region
    $region37: #{_lambda_.26} parent=5 // pred_check
      %p225 = pneg %p224
    $region38: #{_lambda_.26} parent=5 // pred_check_branch
      %227 = sbr.rel (%p225) target = $region40
    $region39: #{_lambda_.26} parent=5 // pred_region
      // Predicated region
      $region41: #{_lambda_.26} parent=39 // pred_check
        %p228 = pneg %p33
      $region42: #{_lambda_.26} parent=39 // pred_check_branch
        %230 = sbr.rel (%p228) target = $region44
      $region43: #{_lambda_.26} parent=39 // pred_region
        %s231 = smul.u32 4, %s13
        %p232 = scmp.lt.s32.totalorder %s231, 7
        %s233 = scalar_select %p232, %s231, 7
        %s234 = smul.addr %s233, 2
        %s235 = scalar_lea.vmem %s0, %s234
        %s236 = smul.u32 4, %s13
      $region44: #{_lambda_.26} parent=39 // pred_fallthru
        _
    $region40: #{_lambda_.26} parent=5 // pred_fallthru
      _
    %p237 = scmp.le.s32.totalorder 1, %s13
    %p238 = scmp.lt.s32.totalorder %s13, 3
    %p239 = pnand %p237, %p238
    %p240 = pneg %p239
    // Predicated region
    $region45: #{_lambda_.26} parent=5 // pred_check
      _
    $region46: #{_lambda_.26} parent=5 // pred_check_branch
      %242 = sbr.rel (%p239) target = $region48
    $region47: #{_lambda_.26} parent=5 // pred_region
      %s243 = ssub.s32 %s13, 1
      %s244 = smul.u32 4, %s18
      %p245 = scmp.lt.s32.totalorder %s244, 7
      %s246 = scalar_select %p245, %s244, 7
      %s247 = smul.addr %s246, 2
      %s248 = scalar_lea.vmem %s0, %s247
      %p249 = pneg %p39
      %p250 = pneg %p36
      %p251 = pneg %p60
      %p252 = pneg %p57
      %p253 = pneg %p81
      %p254 = pneg %p78
      %p255 = pneg %p102
      %p256 = pneg %p99
      %p257 = pneg %p123
      %p258 = pneg %p120
      %p259 = pneg %p144
      %p260 = pneg %p141
      %p261 = pneg %p165
      %p262 = pneg %p162
      %p263 = pneg %p191
      %p264 = pneg %p188
      %p265 = scmp.lt.s32.totalorder %s18, 1
      %s266 = scalar_select %p265, %s18, 1
      %s267 = scalar_lea.vmem %s7, %s266
      %s268 = smul.u32 4, %s18
      %p269 = scmp.lt.s32.totalorder %s268, 7
      %s270 = scalar_select %p269, %s268, 7
      %s271 = smul.addr %s270, 2
      %s272 = scalar_lea.vmem %s0, %s271
      %s273 = smul.u32 4, %s18
      %p274 = scmp.lt.s32.totalorder %s18, 1
      %s275 = scalar_select %p274, %s18, 1
      %s276 = scalar_lea.vmem %s7, %s275
      %v278 = vld [vmem:[%s272] sm:$0x1]
      %v279 = vunpack.c.l.bf16 %v278
      %v280 = vld [vmem:[%s1] sm:$0x1]
      %v281 = vmul.f32 %v279, %v280
      %s282 = scalar_lea.vmem %s272, 2
      %v283 = vld [vmem:[%s282] sm:$0x1]
      %v284 = vunpack.c.l.bf16 %v283
      %s285 = scalar_lea.vmem %s1, 1
      %v286 = vld [vmem:[%s285] sm:$0x1]
      %v287 = vmul.f32 %v284, %v286
      %s288 = scalar_lea.vmem %s1, 2
      %v289 = vld [vmem:[%s288] sm:$0x1]
      %v292 = vunpack.c.l.s4 857870592
      %v293 = vunpack.c.0.s8 %v292
      %v294 = vlaneseq
      %v295 = vshrl.u32 %v294, 7
      %v296 = vsub.s32 %v293, %v295
      %v297 = vrot.slane %v289, %v296
      %v299 = vmul.f32 %v279, %v297
      %s300 = scalar_lea.vmem %s272, 4
      %v301 = vld [vmem:[%s300] sm:$0x1]
      %v302 = vunpack.c.l.bf16 %v301
      %s303 = scalar_lea.vmem %s1, 3
      %v304 = vld [vmem:[%s303] sm:$0x1]
      %v305 = vmul.f32 %v302, %v304
      %v306 = vadd.f32 %v281, %v305
      %s307 = scalar_lea.vmem %s272, 6
      %v308 = vld [vmem:[%s307] sm:$0x1]
      %v309 = vunpack.c.l.bf16 %v308
      %s310 = scalar_lea.vmem %s1, 4
      %v311 = vld [vmem:[%s310] sm:$0x1]
      %v312 = vmul.f32 %v309, %v311
      %v313 = vadd.f32 %v287, %v312
      %s314 = scalar_lea.vmem %s1, 5
      %v315 = vld [vmem:[%s314] sm:$0x1]
      %v318 = vunpack.c.l.s4 857870592
      %v319 = vunpack.c.0.s8 %v318
      %v320 = vlaneseq
      %v321 = vshrl.u32 %v320, 7
      %v322 = vsub.s32 %v319, %v321
      %v323 = vrot.slane %v315, %v322
      %v325 = vmul.f32 %v302, %v323
      %v326 = vadd.f32 %v299, %v325
      %s327 = scalar_lea.vmem %s272, 1
      %v328 = vld [vmem:[%s327] sm:$0x1]
      %v329 = vunpack.c.l.bf16 %v328
      %s330 = scalar_lea.vmem %s1, 6
      %v331 = vld [vmem:[%s330] sm:$0x1]
      %v332 = vmul.f32 %v329, %v331
      %v333 = vadd.f32 %v306, %v332
      %s334 = scalar_lea.vmem %s272, 3
      %v335 = vld [vmem:[%s334] sm:$0x1]
      %v336 = vunpack.c.l.bf16 %v335
      %s337 = scalar_lea.vmem %s1, 7
      %v338 = vld [vmem:[%s337] sm:$0x1]
      %v339 = vmul.f32 %v336, %v338
      %v340 = vadd.f32 %v313, %v339
      %s341 = scalar_lea.vmem %s1, 8
      %v342 = vld [vmem:[%s341] sm:$0x1]
      %v345 = vunpack.c.l.s4 857870592
      %v346 = vunpack.c.0.s8 %v345
      %v347 = vlaneseq
      %v348 = vshrl.u32 %v347, 7
      %v349 = vsub.s32 %v346, %v348
      %v350 = vrot.slane %v342, %v349
      %v352 = vmul.f32 %v329, %v350
      %v353 = vadd.f32 %v326, %v352
      %v354 = vadd.f32 %v333, %v340
      %v356 = vrot.slane %v353, 7
      %v357 = vrot.slane %v356, 2
      %v359 = vadd.f32 %v354, %v357
      %v360 = vld [vmem:[%s2] sm:$0x1]
      %v361 = vmul.f32 %v359, %v360
      %v362 = vld [vmem:[%s3] sm:$0x1]
      %v363 = vadd.f32 %v361, %v362
      %v364 = vpack.c.bf16 %v363, %v363
      %v365 = vld [vmem:[%s4] sm:$0xf]
      %v366 = vld [vmem:[%s4 + $0x4] sm:$0xf]
      %v367 = vld [vmem:[%s4 + $0x8] sm:$0xf]
      %v368 = vld [vmem:[%s4 + $0xc] sm:$0xf]
      %v373 = vunpack.c.l.b16 %v365
      %v374 = vunpack.c.l.b16 %v366
      %v375 = vunpack.c.l.b16 %v367
      %v376 = vunpack.c.l.b16 %v368
      %v377 = vpack.c.b16 %v374, %v373
      %v378 = vpack.c.b16 %v376, %v375
      %vm381 = vcmask 261120
      %v383 = vsel %vm381, %v364, 0
      %385 = vmatprep.subr.bf16.mxu0 0
      %386 = vmatpush1.bf16.msra.mxu0 %v377
      %387 = vmatprep.subr.bf16.mxu0 0
      %388 = vmatpush1.bf16.msra.mxu0 %v378
      %389 = vmatprep.subr.bf16.mxu0 0
      %390 = vmatpush1.bf16.msra.mxu0 0
      %391 = vmatprep.subr.bf16.mxu0 0
      %392 = vmatpush1.bf16.msra.mxu0 0
      %393 = vmatprep.subr.bf16.mxu0 0
      %394 = vmatpush1.bf16.msra.mxu0 0
      %395 = vmatprep.subr.bf16.mxu0 0
      %396 = vmatpush1.bf16.msra.mxu0 0
      %397 = vmatprep.subr.bf16.mxu0 0
      %398 = vmatpush1.bf16.msra.mxu0 0
      %399 = vmatprep.subr.bf16.mxu0 0
      %400 = vmatpush1.bf16.msra.mxu0 0
      %401 = vmatprep.subr.bf16.mxu0 0
      %402 = vmatpush1.bf16.msra.mxu0 0
      %403 = vmatprep.subr.bf16.mxu0 0
      %404 = vmatpush1.bf16.msra.mxu0 0
      %405 = vmatprep.subr.bf16.mxu0 0
      %406 = vmatpush1.bf16.msra.mxu0 0
      %407 = vmatprep.subr.bf16.mxu0 0
      %408 = vmatpush1.bf16.msra.mxu0 0
      %409 = vmatprep.subr.bf16.mxu0 0
      %410 = vmatpush1.bf16.msra.mxu0 0
      %411 = vmatprep.subr.bf16.mxu0 0
      %412 = vmatpush1.bf16.msra.mxu0 0
      %413 = vmatprep.subr.bf16.mxu0 0
      %414 = vmatpush1.bf16.msra.mxu0 0
      %415 = vmatprep.subr.bf16.mxu0 0
      %416 = vmatpush1.bf16.msra.mxu0 0
      %417 = vmatprep.mubr.bf16.mxu0 0
      %418 = vmatmul.mubr.bf16.gmra.mrb[0].mxu0 %v383
      %v419 = vpop.f32.mrb[0].mxu0
      %v420 = vadd.f32 0.0, %v419
      %v421 = vpop.f32.mrb[0].mxu0
      %v422 = vpop.f32.mrb[0].mxu0
      %v423 = vpop.f32.mrb[0].mxu0
      %424 = vdwg.mxu0
      %v425 = vld [vmem:[%s5] sm:$0x1]
      %v426 = vmul.f32 %v420, %v425
      %v427 = vld [vmem:[%s6] sm:$0x1]
      %v428 = vadd.f32 %v426, %v427
      %v429 = vmax.f32 %v428, 0.0
      %v430 = vpack.c.bf16 %v429, %v429
      %vm431 = vcmask 253952
      %vm432 = vsmask.f32 256
      %vm433 = vmand %vm431, %vm432
      %v434 = vld [vmem:[%s276] sm:$0x1]
      %v435 = vsel %vm433, %v430, %v434
      %436 = vst [vmem:[%s276] sm:$0x1] %v435
      %p437 = scmp.lt.s32.totalorder %s18, 1
      %s438 = scalar_select %p437, %s18, 1
      %s439 = scalar_lea.vmem %s7, %s438
      // Predicated region
      $region49: #{_lambda_.26} parent=47 // pred_check
        %p440 = pneg %p188
      $region50: #{_lambda_.26} parent=47 // pred_check_branch
        %442 = sbr.rel (%p440) target = $region52
      $region51: #{_lambda_.26} parent=47 // pred_region
        _
      $region52: #{_lambda_.26} parent=47 // pred_fallthru
        _
    $region48: #{_lambda_.26} parent=5 // pred_fallthru
      _
    %p443 = scmp.le.s32.totalorder 2, %s13
    // Predicated region
    $region53: #{_lambda_.26} parent=5 // pred_check
      %p444 = pneg %p443
    $region54: #{_lambda_.26} parent=5 // pred_check_branch
      %446 = sbr.rel (%p444) target = $region56
    $region55: #{_lambda_.26} parent=5 // pred_region
      %s447 = ssub.s32 %s13, 2
      // Predicated region
      $region57: #{_lambda_.26} parent=55 // pred_check
        %p448 = pneg %p194
      $region58: #{_lambda_.26} parent=55 // pred_check_branch
        %450 = sbr.rel (%p448) target = $region60
      $region59: #{_lambda_.26} parent=55 // pred_region
        %p451 = scmp.lt.s32.totalorder %s19, 1
        %s452 = scalar_select %p451, %s19, 1
        %s453 = scalar_lea.vmem %s7, %s452
      $region60: #{_lambda_.26} parent=55 // pred_fallthru
        _
    $region56: #{_lambda_.26} parent=5 // pred_fallthru
      _
  $region6: #{_lambda_.26} parent=0 // loop_footer
    %s17 = sadd.s32 1, %s13
  $region7: #{_lambda_.26} parent=0 // loop_footer_branch
    %12 = sbr.rel target = $region3
  $region8: #{_lambda_.26} parent=0 // loop_exit
    _

// kernel: _lambda_.30
$region0: #{_lambda_.30}
  #allocation0 [shape = 'u32[]', space=smem, size = 0x4, offset = 0x4, fixed_abs, tag = 'smem constant byte address 0x4 - core index']
  #allocation1 [shape = 'u32[144,128]{1,0:T(1,128)}', space=vmem, size = 0x12000, scoped, tag = 'internal scratch']
  %s0 = inlined_call_operand.vmem [shape: bf16[2,64], index: 0, kind: input, shape index: {}]
  %s1 = inlined_call_operand.vmem [shape: bf16[64,128], index: 1, kind: input, shape index: {}]
  %s2 = inlined_call_operand.vmem [shape: f32[1,128], index: 2, kind: input, shape index: {}]
  %s3 = inlined_call_operand.vmem [shape: f32[1,128], index: 3, kind: input, shape index: {}]
  %s4 = inlined_call_operand.vmem [shape: bf16[2,128], index: 4, kind: output, shape index: {}]
  %s5 = sld [smem:[#allocation0]]
  $region26: #{_lambda_.30} parent=0
    _
  %s7 = ssub.s32 1, %s5
  %s8 = scalar_select 0, %s7, %s5
  // Predicated region
  $region2: #{_lambda_.30} parent=0 // pred_check
    _
  $region3: #{_lambda_.30} parent=0 // pred_check_branch
    %10 = sbr.rel (0) target = $region5
  $region4: #{_lambda_.30} parent=0 // pred_region
    _
  $region5: #{_lambda_.30} parent=0 // pred_fallthru
    _
  // Predicated region
  $region6: #{_lambda_.30} parent=0 // pred_check
    _
  $region7: #{_lambda_.30} parent=0 // pred_check_branch
    %12 = sbr.rel (0) target = $region9
  $region8: #{_lambda_.30} parent=0 // pred_region
    _
  $region9: #{_lambda_.30} parent=0 // pred_fallthru
    _
  // Predicated region
  $region10: #{_lambda_.30} parent=0 // pred_check
    _
  $region11: #{_lambda_.30} parent=0 // pred_check_branch
    %14 = sbr.rel (0) target = $region13
  $region12: #{_lambda_.30} parent=0 // pred_region
    _
  $region13: #{_lambda_.30} parent=0 // pred_fallthru
    _
  // Predicated region
  $region14: #{_lambda_.30} parent=0 // pred_check
    _
  $region15: #{_lambda_.30} parent=0 // pred_check_branch
    %16 = sbr.rel (0) target = $region17
  $region16: #{_lambda_.30} parent=0 // pred_region
    _
  $region17: #{_lambda_.30} parent=0 // pred_fallthru
    _
  %v18 = vld [vmem:[%s0] sm:$0x1]
  %v19 = vld [vmem:[%s1] sm:$0xf]
  %v20 = vld [vmem:[%s1 + $0x4] sm:$0xf]
  %v21 = vld [vmem:[%s1 + $0x8] sm:$0xf]
  %v22 = vld [vmem:[%s1 + $0xc] sm:$0xf]
  %v23 = vld [vmem:[%s1 + $0x10] sm:$0xf]
  %v24 = vld [vmem:[%s1 + $0x14] sm:$0xf]
  %v25 = vld [vmem:[%s1 + $0x18] sm:$0xf]
  %v26 = vld [vmem:[%s1 + $0x1c] sm:$0xf]
  %v35 = vunpack.c.l.b16 %v19
  %v36 = vunpack.c.l.b16 %v20
  %v37 = vunpack.c.l.b16 %v21
  %v38 = vunpack.c.l.b16 %v22
  %v39 = vunpack.c.l.b16 %v23
  %v40 = vunpack.c.l.b16 %v24
  %v41 = vunpack.c.l.b16 %v25
  %v42 = vunpack.c.l.b16 %v26
  %v43 = vpack.c.b16 %v36, %v35
  %v44 = vpack.c.b16 %v38, %v37
  %v45 = vpack.c.b16 %v40, %v39
  %v46 = vpack.c.b16 %v42, %v41
  %vm51 = vcmask 523264
  %v53 = vsel %vm51, %v18, 0
  %55 = vmatprep.subr.bf16.mxu0 0
  %56 = vmatpush1.bf16.msra.mxu0 %v43
  %57 = vmatprep.subr.bf16.mxu0 0
  %58 = vmatpush1.bf16.msra.mxu0 %v44
  %59 = vmatprep.subr.bf16.mxu0 0
  %60 = vmatpush1.bf16.msra.mxu0 %v45
  %61 = vmatprep.subr.bf16.mxu0 0
  %62 = vmatpush1.bf16.msra.mxu0 %v46
  %63 = vmatprep.subr.bf16.mxu0 0
  %64 = vmatpush1.bf16.msra.mxu0 0
  %65 = vmatprep.subr.bf16.mxu0 0
  %66 = vmatpush1.bf16.msra.mxu0 0
  %67 = vmatprep.subr.bf16.mxu0 0
  %68 = vmatpush1.bf16.msra.mxu0 0
  %69 = vmatprep.subr.bf16.mxu0 0
  %70 = vmatpush1.bf16.msra.mxu0 0
  %71 = vmatprep.subr.bf16.mxu0 0
  %72 = vmatpush1.bf16.msra.mxu0 0
  %73 = vmatprep.subr.bf16.mxu0 0
  %74 = vmatpush1.bf16.msra.mxu0 0
  %75 = vmatprep.subr.bf16.mxu0 0
  %76 = vmatpush1.bf16.msra.mxu0 0
  %77 = vmatprep.subr.bf16.mxu0 0
  %78 = vmatpush1.bf16.msra.mxu0 0
  %79 = vmatprep.subr.bf16.mxu0 0
  %80 = vmatpush1.bf16.msra.mxu0 0
  %81 = vmatprep.subr.bf16.mxu0 0
  %82 = vmatpush1.bf16.msra.mxu0 0
  %83 = vmatprep.subr.bf16.mxu0 0
  %84 = vmatpush1.bf16.msra.mxu0 0
  %85 = vmatprep.subr.bf16.mxu0 0
  %86 = vmatpush1.bf16.msra.mxu0 0
  %87 = vmatprep.mubr.bf16.mxu0 0
  %88 = vmatmul.mubr.bf16.gmra.mrb[0].mxu0 %v53
  %v89 = vpop.f32.mrb[0].mxu0
  %v90 = vadd.f32 0.0, %v89
  %v91 = vpop.f32.mrb[0].mxu0
  %v92 = vpop.f32.mrb[0].mxu0
  %v93 = vpop.f32.mrb[0].mxu0
  %94 = vdwg.mxu0
  %v95 = vld [vmem:[%s2] sm:$0x1]
  %v97 = vlaneseq
  %v98 = vshrl.u32 %v97, 7
  %v99 = vsub.s32 0, %v98
  %v100 = vrot.slane %v95, %v99
  %v102 = vmul.f32 %v90, %v100
  %v103 = vld [vmem:[%s3] sm:$0x1]
  %v105 = vlaneseq
  %v106 = vshrl.u32 %v105, 7
  %v107 = vsub.s32 0, %v106
  %v108 = vrot.slane %v103, %v107
  %v110 = vadd.f32 %v102, %v108
  %v111 = vmax.f32 %v110, 0.0
  %v112 = vpack.c.bf16 %v111, %v111
  %113 = vst [vmem:[%s4] sm:$0x1] %v112
  // Predicated region
  $region18: #{_lambda_.30} parent=0 // pred_check
    _
  $region19: #{_lambda_.30} parent=0 // pred_check_branch
    %115 = sbr.rel (0) target = $region21
  $region20: #{_lambda_.30} parent=0 // pred_region
    _
  $region21: #{_lambda_.30} parent=0 // pred_fallthru
    _
  // Predicated region
  $region22: #{_lambda_.30} parent=0 // pred_check
    _
  $region23: #{_lambda_.30} parent=0 // pred_check_branch
    %117 = sbr.rel (0) target = $region25
  $region24: #{_lambda_.30} parent=0 // pred_region
    _
  $region25: #{_lambda_.30} parent=0 // pred_fallthru
    _

// kernel: _lambda_.29
$region0: #{_lambda_.29}
  #allocation0 [shape = 'u32[]', space=smem, size = 0x4, offset = 0x4, fixed_abs, tag = 'smem constant byte address 0x4 - core index']
  #allocation1 [shape = 'u32[144,128]{1,0:T(1,128)}', space=vmem, size = 0x12000, scoped, tag = 'internal scratch']
  #allocation2 [shape = 'f32[3,3,32]{2,1,0:T(4,128)}', space=vmem, size = 0x1800, scoped, tag = 'scratch operand']
  %s0 = inlined_call_operand.vmem [shape: bf16[2,1,32], index: 0, kind: input, shape index: {}]
  %s1 = inlined_call_operand.vmem [shape: bf16[32,32], index: 1, kind: input, shape index: {}]
  %s2 = inlined_call_operand.vmem [shape: f32[1,32], index: 2, kind: input, shape index: {}]
  %s3 = inlined_call_operand.vmem [shape: f32[1,32], index: 3, kind: input, shape index: {}]
  %s4 = inlined_call_operand.vmem [shape: f32[9,1,32], index: 4, kind: input, shape index: {}]
  %s5 = inlined_call_operand.vmem [shape: f32[1,32], index: 5, kind: input, shape index: {}]
  %s6 = inlined_call_operand.vmem [shape: f32[1,32], index: 6, kind: input, shape index: {}]
  %s7 = inlined_call_operand.vmem [shape: bf16[32,32], index: 7, kind: input, shape index: {}]
  %s8 = inlined_call_operand.vmem [shape: f32[1,32], index: 8, kind: input, shape index: {}]
  %s9 = inlined_call_operand.vmem [shape: f32[1,32], index: 9, kind: input, shape index: {}]
  %s10 = inlined_call_operand.vmem [shape: bf16[2,1,32], index: 10, kind: output, shape index: {}]
  %s11 = sld [smem:[#allocation0]]
  $region77: #{_lambda_.29} parent=0
    _
  %s13 = ssub.s32 1, %s11
  %s14 = scalar_select 0, %s13, %s11
  loop: start=0, step=1, limit=4
  $region2: #{_lambda_.29} parent=0 // loop_pre_header
    _
  $region3: #{_lambda_.29} parent=0 // loop_header
    %s16 = sphi 0, %s20
    %p17 = scmp.ge.s32.totalorder %s16, 4
    %s26 = sphi 0, %s28
    %s29 = sphi 0, %s26
    %s30 = sphi 0, %s29
    %s46 = sphi 0, %s30
    %s50 = sphi 0, %s50
    %s52 = sphi 0, %s50
    %s53 = sphi 0, %s52
    %s67 = sphi 0, %s53
    %s71 = sphi 0, %s71
    %s73 = sphi 0, %s71
    %s74 = sphi 0, %s73
    %s88 = sphi 0, %s74
    %s92 = sphi 0, %s92
    %s94 = sphi 0, %s92
    %s95 = sphi 0, %s94
    %s109 = sphi 0, %s95
    %s113 = sphi 0, %s113
    %s115 = sphi 0, %s113
    %s116 = sphi 0, %s115
    %s130 = sphi 0, %s116
    %s134 = sphi 0, %s134
    %s136 = sphi 0, %s134
    %s137 = sphi 0, %s136
    %s151 = sphi 0, %s137
    %s155 = sphi 0, %s155
    %s157 = sphi 0, %s155
    %s158 = sphi 0, %s157
    %s172 = sphi 0, %s158
    %s176 = sphi 0, %s176
    %s178 = sphi 0, %s176
    %s179 = sphi 0, %s178
    %s193 = sphi 0, %s179
    %s197 = sphi 0, %s197
    %s199 = sphi 0, %s197
    %s200 = sphi 0, %s199
    %s214 = sphi 0, %s200
    %s218 = sphi 0, %s218
    %s220 = sphi 0, %s218
    %s221 = sphi 0, %s220
    %s235 = sphi 0, %s221
    %s241 = sphi 0, %s243
    %s244 = sphi 0, %s241
    %s245 = sphi 0, %s244
    %s261 = sphi 0, %s245
  $region4: #{_lambda_.29} parent=0 // loop_header_branch
    %19 = sbr.rel (%p17) target = $region8
  $region5: #{_lambda_.29} parent=0 // loop_body
    %s21 = ssub.s32 %s16, 1
    %s22 = ssub.s32 %s16, 2
    %s23 = sadd.s32 %s16, 1
    %s24 = ssub.s32 %s16, %s23
    %p25 = scmp.eq.s32.totalorder %s24, 0
    %s27 = sadd.s32 %s26, 1
    %s28 = scalar_select %p25, %s26, %s27
    %p31 = pneg %p25
    %p32 = scmp.eq.s32.totalorder %s16, 1
    %p33 = por %p31, %p32
    %p34 = scmp.ne.s32.totalorder %s26, %s29
    %p35 = scmp.eq.s32.totalorder %s16, 0
    %p36 = por %p34, %p35
    %p37 = scmp.ne.s32.totalorder %s26, %s29
    %p38 = scmp.eq.s32.totalorder %s21, 1
    %p39 = por %p37, %p38
    %p40 = scmp.ne.s32.totalorder %s29, %s30
    %p41 = scmp.eq.s32.totalorder %s21, 0
    %p42 = por %p40, %p41
    %p43 = scmp.ne.s32.totalorder %s29, %s30
    %p44 = scmp.eq.s32.totalorder %s22, 1
    %p45 = por %p43, %p44
    %p47 = scmp.ne.s32.totalorder %s30, %s46
    %p48 = scmp.eq.s32.totalorder %s22, 0
    %p49 = por %p47, %p48
    %s51 = sadd.s32 %s50, 1
    %p54 = scmp.eq.s32.totalorder %s16, 1
    %p55 = scmp.ne.s32.totalorder %s50, %s52
    %p56 = scmp.eq.s32.totalorder %s16, 0
    %p57 = por %p55, %p56
    %p58 = scmp.ne.s32.totalorder %s50, %s52
    %p59 = scmp.eq.s32.totalorder %s21, 1
    %p60 = por %p58, %p59
    %p61 = scmp.ne.s32.totalorder %s52, %s53
    %p62 = scmp.eq.s32.totalorder %s21, 0
    %p63 = por %p61, %p62
    %p64 = scmp.ne.s32.totalorder %s52, %s53
    %p65 = scmp.eq.s32.totalorder %s22, 1
    %p66 = por %p64, %p65
    %p68 = scmp.ne.s32.totalorder %s53, %s67
    %p69 = scmp.eq.s32.totalorder %s22, 0
    %p70 = por %p68, %p69
    %s72 = sadd.s32 %s71, 1
    %p75 = scmp.eq.s32.totalorder %s16, 1
    %p76 = scmp.ne.s32.totalorder %s71, %s73
    %p77 = scmp.eq.s32.totalorder %s16, 0
    %p78 = por %p76, %p77
    %p79 = scmp.ne.s32.totalorder %s71, %s73
    %p80 = scmp.eq.s32.totalorder %s21, 1
    %p81 = por %p79, %p80
    %p82 = scmp.ne.s32.totalorder %s73, %s74
    %p83 = scmp.eq.s32.totalorder %s21, 0
    %p84 = por %p82, %p83
    %p85 = scmp.ne.s32.totalorder %s73, %s74
    %p86 = scmp.eq.s32.totalorder %s22, 1
    %p87 = por %p85, %p86
    %p89 = scmp.ne.s32.totalorder %s74, %s88
    %p90 = scmp.eq.s32.totalorder %s22, 0
    %p91 = por %p89, %p90
    %s93 = sadd.s32 %s92, 1
    %p96 = scmp.eq.s32.totalorder %s16, 1
    %p97 = scmp.ne.s32.totalorder %s92, %s94
    %p98 = scmp.eq.s32.totalorder %s16, 0
    %p99 = por %p97, %p98
    %p100 = scmp.ne.s32.totalorder %s92, %s94
    %p101 = scmp.eq.s32.totalorder %s21, 1
    %p102 = por %p100, %p101
    %p103 = scmp.ne.s32.totalorder %s94, %s95
    %p104 = scmp.eq.s32.totalorder %s21, 0
    %p105 = por %p103, %p104
    %p106 = scmp.ne.s32.totalorder %s94, %s95
    %p107 = scmp.eq.s32.totalorder %s22, 1
    %p108 = por %p106, %p107
    %p110 = scmp.ne.s32.totalorder %s95, %s109
    %p111 = scmp.eq.s32.totalorder %s22, 0
    %p112 = por %p110, %p111
    %s114 = sadd.s32 %s113, 1
    %p117 = scmp.eq.s32.totalorder %s16, 1
    %p118 = scmp.ne.s32.totalorder %s113, %s115
    %p119 = scmp.eq.s32.totalorder %s16, 0
    %p120 = por %p118, %p119
    %p121 = scmp.ne.s32.totalorder %s113, %s115
    %p122 = scmp.eq.s32.totalorder %s21, 1
    %p123 = por %p121, %p122
    %p124 = scmp.ne.s32.totalorder %s115, %s116
    %p125 = scmp.eq.s32.totalorder %s21, 0
    %p126 = por %p124, %p125
    %p127 = scmp.ne.s32.totalorder %s115, %s116
    %p128 = scmp.eq.s32.totalorder %s22, 1
    %p129 = por %p127, %p128
    %p131 = scmp.ne.s32.totalorder %s116, %s130
    %p132 = scmp.eq.s32.totalorder %s22, 0
    %p133 = por %p131, %p132
    %s135 = sadd.s32 %s134, 1
    %p138 = scmp.eq.s32.totalorder %s16, 1
    %p139 = scmp.ne.s32.totalorder %s134, %s136
    %p140 = scmp.eq.s32.totalorder %s16, 0
    %p141 = por %p139, %p140
    %p142 = scmp.ne.s32.totalorder %s134, %s136
    %p143 = scmp.eq.s32.totalorder %s21, 1
    %p144 = por %p142, %p143
    %p145 = scmp.ne.s32.totalorder %s136, %s137
    %p146 = scmp.eq.s32.totalorder %s21, 0
    %p147 = por %p145, %p146
    %p148 = scmp.ne.s32.totalorder %s136, %s137
    %p149 = scmp.eq.s32.totalorder %s22, 1
    %p150 = por %p148, %p149
    %p152 = scmp.ne.s32.totalorder %s137, %s151
    %p153 = scmp.eq.s32.totalorder %s22, 0
    %p154 = por %p152, %p153
    %s156 = sadd.s32 %s155, 1
    %p159 = scmp.eq.s32.totalorder %s16, 1
    %p160 = scmp.ne.s32.totalorder %s155, %s157
    %p161 = scmp.eq.s32.totalorder %s16, 0
    %p162 = por %p160, %p161
    %p163 = scmp.ne.s32.totalorder %s155, %s157
    %p164 = scmp.eq.s32.totalorder %s21, 1
    %p165 = por %p163, %p164
    %p166 = scmp.ne.s32.totalorder %s157, %s158
    %p167 = scmp.eq.s32.totalorder %s21, 0
    %p168 = por %p166, %p167
    %p169 = scmp.ne.s32.totalorder %s157, %s158
    %p170 = scmp.eq.s32.totalorder %s22, 1
    %p171 = por %p169, %p170
    %p173 = scmp.ne.s32.totalorder %s158, %s172
    %p174 = scmp.eq.s32.totalorder %s22, 0
    %p175 = por %p173, %p174
    %s177 = sadd.s32 %s176, 1
    %p180 = scmp.eq.s32.totalorder %s16, 1
    %p181 = scmp.ne.s32.totalorder %s176, %s178
    %p182 = scmp.eq.s32.totalorder %s16, 0
    %p183 = por %p181, %p182
    %p184 = scmp.ne.s32.totalorder %s176, %s178
    %p185 = scmp.eq.s32.totalorder %s21, 1
    %p186 = por %p184, %p185
    %p187 = scmp.ne.s32.totalorder %s178, %s179
    %p188 = scmp.eq.s32.totalorder %s21, 0
    %p189 = por %p187, %p188
    %p190 = scmp.ne.s32.totalorder %s178, %s179
    %p191 = scmp.eq.s32.totalorder %s22, 1
    %p192 = por %p190, %p191
    %p194 = scmp.ne.s32.totalorder %s179, %s193
    %p195 = scmp.eq.s32.totalorder %s22, 0
    %p196 = por %p194, %p195
    %s198 = sadd.s32 %s197, 1
    %p201 = scmp.eq.s32.totalorder %s16, 1
    %p202 = scmp.ne.s32.totalorder %s197, %s199
    %p203 = scmp.eq.s32.totalorder %s16, 0
    %p204 = por %p202, %p203
    %p205 = scmp.ne.s32.totalorder %s197, %s199
    %p206 = scmp.eq.s32.totalorder %s21, 1
    %p207 = por %p205, %p206
    %p208 = scmp.ne.s32.totalorder %s199, %s200
    %p209 = scmp.eq.s32.totalorder %s21, 0
    %p210 = por %p208, %p209
    %p211 = scmp.ne.s32.totalorder %s199, %s200
    %p212 = scmp.eq.s32.totalorder %s22, 1
    %p213 = por %p211, %p212
    %p215 = scmp.ne.s32.totalorder %s200, %s214
    %p216 = scmp.eq.s32.totalorder %s22, 0
    %p217 = por %p215, %p216
    %s219 = sadd.s32 %s218, 1
    %p222 = scmp.eq.s32.totalorder %s16, 1
    %p223 = scmp.ne.s32.totalorder %s218, %s220
    %p224 = scmp.eq.s32.totalorder %s16, 0
    %p225 = por %p223, %p224
    %p226 = scmp.ne.s32.totalorder %s218, %s220
    %p227 = scmp.eq.s32.totalorder %s21, 1
    %p228 = por %p226, %p227
    %p229 = scmp.ne.s32.totalorder %s220, %s221
    %p230 = scmp.eq.s32.totalorder %s21, 0
    %p231 = por %p229, %p230
    %p232 = scmp.ne.s32.totalorder %s220, %s221
    %p233 = scmp.eq.s32.totalorder %s22, 1
    %p234 = por %p232, %p233
    %p236 = scmp.ne.s32.totalorder %s221, %s235
    %p237 = scmp.eq.s32.totalorder %s22, 0
    %p238 = por %p236, %p237
    %s239 = ssub.s32 %s16, %s23
    %p240 = scmp.eq.s32.totalorder %s239, 0
    %s242 = sadd.s32 %s241, 1
    %s243 = scalar_select %p240, %s241, %s242
    %p246 = pneg %p240
    %p247 = scmp.eq.s32.totalorder %s16, 1
    %p248 = por %p246, %p247
    %p249 = scmp.ne.s32.totalorder %s241, %s244
    %p250 = scmp.eq.s32.totalorder %s16, 0
    %p251 = por %p249, %p250
    %p252 = scmp.ne.s32.totalorder %s241, %s244
    %p253 = scmp.eq.s32.totalorder %s21, 1
    %p254 = por %p252, %p253
    %p255 = scmp.ne.s32.totalorder %s244, %s245
    %p256 = scmp.eq.s32.totalorder %s21, 0
    %p257 = por %p255, %p256
    %p258 = scmp.ne.s32.totalorder %s244, %s245
    %p259 = scmp.eq.s32.totalorder %s22, 1
    %p260 = por %p258, %p259
    %p262 = scmp.ne.s32.totalorder %s245, %s261
    %p263 = scmp.eq.s32.totalorder %s22, 0
    %p264 = por %p262, %p263
    %p265 = scmp.le.s32.totalorder 1, %s16
    %p266 = scmp.lt.s32.totalorder %s16, 3
    %p267 = pnand %p265, %p266
    %p268 = pneg %p267
    // Predicated region
    $region9: #{_lambda_.29} parent=5 // pred_check
      _
    $region10: #{_lambda_.29} parent=5 // pred_check_branch
      %270 = sbr.rel (%p267) target = $region12
    $region11: #{_lambda_.29} parent=5 // pred_region
      %s271 = ssub.s32 %s16, 1
      // Predicated region
      $region13: #{_lambda_.29} parent=11 // pred_check
        %p272 = pneg %p63
      $region14: #{_lambda_.29} parent=11 // pred_check_branch
        %274 = sbr.rel (%p272) target = $region16
      $region15: #{_lambda_.29} parent=11 // pred_region
        _
      $region16: #{_lambda_.29} parent=11 // pred_fallthru
        _
      // Predicated region
      $region17: #{_lambda_.29} parent=11 // pred_check
        %p275 = pneg %p84
      $region18: #{_lambda_.29} parent=11 // pred_check_branch
        %277 = sbr.rel (%p275) target = $region20
      $region19: #{_lambda_.29} parent=11 // pred_region
        _
      $region20: #{_lambda_.29} parent=11 // pred_fallthru
        _
      // Predicated region
      $region21: #{_lambda_.29} parent=11 // pred_check
        %p278 = pneg %p105
      $region22: #{_lambda_.29} parent=11 // pred_check_branch
        %280 = sbr.rel (%p278) target = $region24
      $region23: #{_lambda_.29} parent=11 // pred_region
        _
      $region24: #{_lambda_.29} parent=11 // pred_fallthru
        _
      // Predicated region
      $region25: #{_lambda_.29} parent=11 // pred_check
        %p281 = pneg %p126
      $region26: #{_lambda_.29} parent=11 // pred_check_branch
        %283 = sbr.rel (%p281) target = $region28
      $region27: #{_lambda_.29} parent=11 // pred_region
        _
      $region28: #{_lambda_.29} parent=11 // pred_fallthru
        _
      // Predicated region
      $region29: #{_lambda_.29} parent=11 // pred_check
        %p284 = pneg %p147
      $region30: #{_lambda_.29} parent=11 // pred_check_branch
        %286 = sbr.rel (%p284) target = $region32
      $region31: #{_lambda_.29} parent=11 // pred_region
        _
      $region32: #{_lambda_.29} parent=11 // pred_fallthru
        _
      // Predicated region
      $region33: #{_lambda_.29} parent=11 // pred_check
        %p287 = pneg %p168
      $region34: #{_lambda_.29} parent=11 // pred_check_branch
        %289 = sbr.rel (%p287) target = $region36
      $region35: #{_lambda_.29} parent=11 // pred_region
        _
      $region36: #{_lambda_.29} parent=11 // pred_fallthru
        _
      // Predicated region
      $region37: #{_lambda_.29} parent=11 // pred_check
        %p290 = pneg %p189
      $region38: #{_lambda_.29} parent=11 // pred_check_branch
        %292 = sbr.rel (%p290) target = $region40
      $region39: #{_lambda_.29} parent=11 // pred_region
        _
      $region40: #{_lambda_.29} parent=11 // pred_fallthru
        _
      // Predicated region
      $region41: #{_lambda_.29} parent=11 // pred_check
        %p293 = pneg %p210
      $region42: #{_lambda_.29} parent=11 // pred_check_branch
        %295 = sbr.rel (%p293) target = $region44
      $region43: #{_lambda_.29} parent=11 // pred_region
        _
      $region44: #{_lambda_.29} parent=11 // pred_fallthru
        _
      // Predicated region
      $region45: #{_lambda_.29} parent=11 // pred_check
        %p296 = pneg %p231
      $region46: #{_lambda_.29} parent=11 // pred_check_branch
        %298 = sbr.rel (%p296) target = $region48
      $region47: #{_lambda_.29} parent=11 // pred_region
        _
      $region48: #{_lambda_.29} parent=11 // pred_fallthru
        _
    $region12: #{_lambda_.29} parent=5 // pred_fallthru
      _
    %p299 = scmp.lt.s32.totalorder %s16, 2
    // Predicated region
    $region49: #{_lambda_.29} parent=5 // pred_check
      %p300 = pneg %p299
    $region50: #{_lambda_.29} parent=5 // pred_check_branch
      %302 = sbr.rel (%p300) target = $region52
    $region51: #{_lambda_.29} parent=5 // pred_region
      // Predicated region
      $region53: #{_lambda_.29} parent=51 // pred_check
        %p303 = pneg %p36
      $region54: #{_lambda_.29} parent=51 // pred_check_branch
        %305 = sbr.rel (%p303) target = $region56
      $region55: #{_lambda_.29} parent=51 // pred_region
        %p306 = scmp.lt.s32.totalorder %s16, 1
        %s307 = scalar_select %p306, %s16, 1
        %s308 = scalar_lea.vmem %s0, %s307
      $region56: #{_lambda_.29} parent=51 // pred_fallthru
        _
    $region52: #{_lambda_.29} parent=5 // pred_fallthru
      _
    %p309 = scmp.le.s32.totalorder 1, %s16
    %p310 = scmp.lt.s32.totalorder %s16, 3
    %p311 = pnand %p309, %p310
    %p312 = pneg %p311
    // Predicated region
    $region57: #{_lambda_.29} parent=5 // pred_check
      _
    $region58: #{_lambda_.29} parent=5 // pred_check_branch
      %314 = sbr.rel (%p311) target = $region60
    $region59: #{_lambda_.29} parent=5 // pred_region
      %s315 = ssub.s32 %s16, 1
      %p316 = scmp.lt.s32.totalorder %s21, 1
      %s317 = scalar_select %p316, %s21, 1
      %s318 = scalar_lea.vmem %s0, %s317
      %p319 = pneg %p42
      %p320 = pneg %p39
      %p321 = pneg %p63
      %p322 = pneg %p60
      %p323 = pneg %p84
      %p324 = pneg %p81
      %p325 = pneg %p105
      %p326 = pneg %p102
      %p327 = pneg %p126
      %p328 = pneg %p123
      %p329 = pneg %p147
      %p330 = pneg %p144
      %p331 = pneg %p168
      %p332 = pneg %p165
      %p333 = pneg %p189
      %p334 = pneg %p186
      %p335 = pneg %p210
      %p336 = pneg %p207
      %p337 = pneg %p231
      %p338 = pneg %p228
      %p339 = pneg %p257
      %p340 = pneg %p254
      %p341 = scmp.lt.s32.totalorder %s21, 1
      %s342 = scalar_select %p341, %s21, 1
      %s343 = scalar_lea.vmem %s10, %s342
      %p344 = scmp.lt.s32.totalorder %s21, 1
      %s345 = scalar_select %p344, %s21, 1
      %s346 = scalar_lea.vmem %s0, %s345
      %p347 = scmp.lt.s32.totalorder %s21, 1
      %s348 = scalar_select %p347, %s21, 1
      %s349 = scalar_lea.vmem %s10, %s348
      %p351 = scmp.eq.s32.totalorder %s21, 0
      // Predicated region
      $region61: #{_lambda_.29} parent=59 // pred_check
        %p352 = pneg %p351
      $region62: #{_lambda_.29} parent=59 // pred_check_branch
        %354 = sbr.rel (%p352) target = $region64
      $region63: #{_lambda_.29} parent=59 // pred_region
        %vm355 = vcmask 256000
        %356 = vst.msk [vmem:[#allocation2] sm:$0x7] %vm355, 0.0
        %357 = vst.msk [vmem:[#allocation2 + $0x4] sm:$0x7] %vm355, 0.0
        %358 = vst.msk [vmem:[#allocation2 + $0x8] sm:$0x7] %vm355, 0.0
      $region64: #{_lambda_.29} parent=59 // pred_fallthru
        _
      %v359 = vld [vmem:[%s346] sm:$0x1]
      %v360 = vld [vmem:[%s1] sm:$0xf]
      %v361 = vld [vmem:[%s1 + $0x4] sm:$0xf]
      %v362 = vld [vmem:[%s1 + $0x8] sm:$0xf]
      %v363 = vld [vmem:[%s1 + $0xc] sm:$0xf]
      %v368 = vunpack.c.l.b16 %v360
      %v369 = vunpack.c.l.b16 %v361
      %v370 = vunpack.c.l.b16 %v362
      %v371 = vunpack.c.l.b16 %v363
      %v372 = vpack.c.b16 %v369, %v368
      %v373 = vpack.c.b16 %v371, %v370
      %vm376 = vcmask 261120
      %v378 = vsel %vm376, %v359, 0
      %380 = vmatprep.subr.bf16.mxu0 0
      %381 = vmatpush1.bf16.msra.mxu0 %v372
      %382 = vmatprep.subr.bf16.mxu0 0
      %383 = vmatpush1.bf16.msra.mxu0 %v373
      %384 = vmatprep.subr.bf16.mxu0 0
      %385 = vmatpush1.bf16.msra.mxu0 0
      %386 = vmatprep.subr.bf16.mxu0 0
      %387 = vmatpush1.bf16.msra.mxu0 0
      %388 = vmatprep.subr.bf16.mxu0 0
      %389 = vmatpush1.bf16.msra.mxu0 0
      %390 = vmatprep.subr.bf16.mxu0 0
      %391 = vmatpush1.bf16.msra.mxu0 0
      %392 = vmatprep.subr.bf16.mxu0 0
      %393 = vmatpush1.bf16.msra.mxu0 0
      %394 = vmatprep.subr.bf16.mxu0 0
      %395 = vmatpush1.bf16.msra.mxu0 0
      %396 = vmatprep.subr.bf16.mxu0 0
      %397 = vmatpush1.bf16.msra.mxu0 0
      %398 = vmatprep.subr.bf16.mxu0 0
      %399 = vmatpush1.bf16.msra.mxu0 0
      %400 = vmatprep.subr.bf16.mxu0 0
      %401 = vmatpush1.bf16.msra.mxu0 0
      %402 = vmatprep.subr.bf16.mxu0 0
      %403 = vmatpush1.bf16.msra.mxu0 0
      %404 = vmatprep.subr.bf16.mxu0 0
      %405 = vmatpush1.bf16.msra.mxu0 0
      %406 = vmatprep.subr.bf16.mxu0 0
      %407 = vmatpush1.bf16.msra.mxu0 0
      %408 = vmatprep.subr.bf16.mxu0 0
      %409 = vmatpush1.bf16.msra.mxu0 0
      %410 = vmatprep.subr.bf16.mxu0 0
      %411 = vmatpush1.bf16.msra.mxu0 0
      %412 = vmatprep.mubr.bf16.mxu0 0
      %413 = vmatmul.mubr.bf16.gmra.mrb[0].mxu0 %v378
      %v414 = vpop.f32.mrb[0].mxu0
      %v415 = vadd.f32 0.0, %v414
      %v416 = vpop.f32.mrb[0].mxu0
      %v417 = vpop.f32.mrb[0].mxu0
      %v418 = vpop.f32.mrb[0].mxu0
      %419 = vdwg.mxu0
      %v420 = vld [vmem:[%s2] sm:$0x1]
      %v421 = vmul.f32 %v415, %v420
      %v422 = vld [vmem:[%s3] sm:$0x1]
      %v423 = vadd.f32 %v421, %v422
      %v424 = vmax.f32 %v423, 0.0
      %s425 = scalar_lea.vmem [#allocation2], 4
      %vm426 = vcmask 253952
      %427 = vst.msk [vmem:[%s425 + $0x1] sm:$0x1] %vm426, %v424
      %v428 = vld [vmem:[#allocation2] sm:$0x1]
      %v429 = vld [vmem:[%s4] sm:$0x1]
      %v430 = vmul.f32 %v428, %v429
      %v431 = vld [vmem:[#allocation2 + $0x1] sm:$0x1]
      %s432 = scalar_lea.vmem %s4, 1
      %v433 = vld [vmem:[%s432] sm:$0x1]
      %v434 = vmul.f32 %v431, %v433
      %v435 = vld [vmem:[#allocation2 + $0x2] sm:$0x1]
      %s436 = scalar_lea.vmem %s4, 2
      %v437 = vld [vmem:[%s436] sm:$0x1]
      %v438 = vmul.f32 %v435, %v437
      %v439 = vld [vmem:[%s425] sm:$0x1]
      %s440 = scalar_lea.vmem %s4, 3
      %v441 = vld [vmem:[%s440] sm:$0x1]
      %v442 = vmul.f32 %v439, %v441
      %v443 = vadd.f32 %v430, %v442
      %v444 = vld [vmem:[%s425 + $0x1] sm:$0x1]
      %s445 = scalar_lea.vmem %s4, 4
      %v446 = vld [vmem:[%s445] sm:$0x1]
      %v447 = vmul.f32 %v444, %v446
      %v448 = vadd.f32 %v434, %v447
      %v449 = vld [vmem:[%s425 + $0x2] sm:$0x1]
      %s450 = scalar_lea.vmem %s4, 5
      %v451 = vld [vmem:[%s450] sm:$0x1]
      %v452 = vmul.f32 %v449, %v451
      %v453 = vadd.f32 %v438, %v452
      %s454 = scalar_lea.vmem [#allocation2], 8
      %v455 = vld [vmem:[%s454] sm:$0x1]
      %s456 = scalar_lea.vmem %s4, 6
      %v457 = vld [vmem:[%s456] sm:$0x1]
      %v458 = vmul.f32 %v455, %v457
      %v459 = vadd.f32 %v443, %v458
      %v460 = vld [vmem:[%s454 + $0x1] sm:$0x1]
      %s461 = scalar_lea.vmem %s4, 7
      %v462 = vld [vmem:[%s461] sm:$0x1]
      %v463 = vmul.f32 %v460, %v462
      %v464 = vadd.f32 %v448, %v463
      %v465 = vld [vmem:[%s454 + $0x2] sm:$0x1]
      %s466 = scalar_lea.vmem %s4, 8
      %v467 = vld [vmem:[%s466] sm:$0x1]
      %v468 = vmul.f32 %v465, %v467
      %v469 = vadd.f32 %v453, %v468
      %v470 = vadd.f32 %v459, %v464
      %v471 = vadd.f32 %v470, %v469
      %v472 = vld [vmem:[%s5] sm:$0x1]
      %v473 = vmul.f32 %v471, %v472
      %v474 = vld [vmem:[%s6] sm:$0x1]
      %v475 = vadd.f32 %v473, %v474
      %v476 = vpack.c.bf16 %v475, %v475
      %v477 = vld [vmem:[%s7] sm:$0xf]
      %v478 = vld [vmem:[%s7 + $0x4] sm:$0xf]
      %v479 = vld [vmem:[%s7 + $0x8] sm:$0xf]
      %v480 = vld [vmem:[%s7 + $0xc] sm:$0xf]
      %v485 = vunpack.c.l.b16 %v477
      %v486 = vunpack.c.l.b16 %v478
      %v487 = vunpack.c.l.b16 %v479
      %v488 = vunpack.c.l.b16 %v480
      %v489 = vpack.c.b16 %v486, %v485
      %v490 = vpack.c.b16 %v488, %v487
      %v494 = vsel %vm376, %v476, 0
      %496 = vmatprep.subr.bf16.mxu0 0
      %497 = vmatpush1.bf16.msra.mxu0 %v489
      %498 = vmatprep.subr.bf16.mxu0 0
      %499 = vmatpush1.bf16.msra.mxu0 %v490
      %500 = vmatprep.subr.bf16.mxu0 0
      %501 = vmatpush1.bf16.msra.mxu0 0
      %502 = vmatprep.subr.bf16.mxu0 0
      %503 = vmatpush1.bf16.msra.mxu0 0
      %504 = vmatprep.subr.bf16.mxu0 0
      %505 = vmatpush1.bf16.msra.mxu0 0
      %506 = vmatprep.subr.bf16.mxu0 0
      %507 = vmatpush1.bf16.msra.mxu0 0
      %508 = vmatprep.subr.bf16.mxu0 0
      %509 = vmatpush1.bf16.msra.mxu0 0
      %510 = vmatprep.subr.bf16.mxu0 0
      %511 = vmatpush1.bf16.msra.mxu0 0
      %512 = vmatprep.subr.bf16.mxu0 0
      %513 = vmatpush1.bf16.msra.mxu0 0
      %514 = vmatprep.subr.bf16.mxu0 0
      %515 = vmatpush1.bf16.msra.mxu0 0
      %516 = vmatprep.subr.bf16.mxu0 0
      %517 = vmatpush1.bf16.msra.mxu0 0
      %518 = vmatprep.subr.bf16.mxu0 0
      %519 = vmatpush1.bf16.msra.mxu0 0
      %520 = vmatprep.subr.bf16.mxu0 0
      %521 = vmatpush1.bf16.msra.mxu0 0
      %522 = vmatprep.subr.bf16.mxu0 0
      %523 = vmatpush1.bf16.msra.mxu0 0
      %524 = vmatprep.subr.bf16.mxu0 0
      %525 = vmatpush1.bf16.msra.mxu0 0
      %526 = vmatprep.subr.bf16.mxu0 0
      %527 = vmatpush1.bf16.msra.mxu0 0
      %528 = vmatprep.mubr.bf16.mxu0 0
      %529 = vmatmul.mubr.bf16.gmra.mrb[0].mxu0 %v494
      %v530 = vpop.f32.mrb[0].mxu0
      %v531 = vadd.f32 0.0, %v530
      %v532 = vpop.f32.mrb[0].mxu0
      %v533 = vpop.f32.mrb[0].mxu0
      %v534 = vpop.f32.mrb[0].mxu0
      %535 = vdwg.mxu0
      %v536 = vld [vmem:[%s8] sm:$0x1]
      %v537 = vmul.f32 %v531, %v536
      %v538 = vld [vmem:[%s9] sm:$0x1]
      %v539 = vadd.f32 %v537, %v538
      %v540 = vmax.f32 %v539, 0.0
      %v541 = vpack.c.bf16 %v540, %v540
      %vm542 = vcmask 253952
      %vm543 = vsmask.f32 256
      %vm544 = vmand %vm542, %vm543
      %v545 = vld [vmem:[%s349] sm:$0x1]
      %v546 = vsel %vm544, %v541, %v545
      %547 = vst [vmem:[%s349] sm:$0x1] %v546
      %p548 = scmp.lt.s32.totalorder %s21, 1
      %s549 = scalar_select %p548, %s21, 1
      %s550 = scalar_lea.vmem %s10, %s549
      // Predicated region
      $region65: #{_lambda_.29} parent=59 // pred_check
        %p551 = pneg %p254
      $region66: #{_lambda_.29} parent=59 // pred_check_branch
        %553 = sbr.rel (%p551) target = $region68
      $region67: #{_lambda_.29} parent=59 // pred_region
        _
      $region68: #{_lambda_.29} parent=59 // pred_fallthru
        _
    $region60: #{_lambda_.29} parent=5 // pred_fallthru
      _
    %p554 = scmp.le.s32.totalorder 2, %s16
    // Predicated region
    $region69: #{_lambda_.29} parent=5 // pred_check
      %p555 = pneg %p554
    $region70: #{_lambda_.29} parent=5 // pred_check_branch
      %557 = sbr.rel (%p555) target = $region72
    $region71: #{_lambda_.29} parent=5 // pred_region
      %s558 = ssub.s32 %s16, 2
      // Predicated region
      $region73: #{_lambda_.29} parent=71 // pred_check
        %p559 = pneg %p260
      $region74: #{_lambda_.29} parent=71 // pred_check_branch
        %561 = sbr.rel (%p559) target = $region76
      $region75: #{_lambda_.29} parent=71 // pred_region
        %p562 = scmp.lt.s32.totalorder %s22, 1
        %s563 = scalar_select %p562, %s22, 1
        %s564 = scalar_lea.vmem %s10, %s563
      $region76: #{_lambda_.29} parent=71 // pred_fallthru
        _
    $region72: #{_lambda_.29} parent=5 // pred_fallthru
      _
  $region6: #{_lambda_.29} parent=0 // loop_footer
    %s20 = sadd.s32 1, %s16
  $region7: #{_lambda_.29} parent=0 // loop_footer_branch
    %15 = sbr.rel target = $region3
  $region8: #{_lambda_.29} parent=0 // loop_exit
    _

// kernel: _lambda_.31
$region0: #{_lambda_.31}
  #allocation0 [shape = 'u32[]', space=smem, size = 0x4, offset = 0x4, fixed_abs, tag = 'smem constant byte address 0x4 - core index']
  #allocation1 [shape = 'u32[144,128]{1,0:T(1,128)}', space=vmem, size = 0x12000, scoped, tag = 'internal scratch']
  %s0 = inlined_call_operand.vmem [shape: bf16[2,1,128], index: 0, kind: input, shape index: {}]
  %s1 = inlined_call_operand.vmem [shape: bf16[128,128], index: 1, kind: input, shape index: {}]
  %s2 = inlined_call_operand.vmem [shape: f32[1,128], index: 2, kind: input, shape index: {}]
  %s3 = inlined_call_operand.hbm [shape: f32[2,128], index: 3, kind: output, shape index: {}]
  %s4 = sld [smem:[#allocation0]]
  $region22: #{_lambda_.31} parent=0
    _
  %s6 = ssub.s32 1, %s4
  %s7 = scalar_select 0, %s6, %s4
  $region1: #{_lambda_.31} parent=0
    #allocation2 [shape = 'u8[1024]{0}', space=vmem, size = 0x400, scoped, tag = 'output window, operand 0, single buffered']
    #allocation3 [shape = 's32[1]{0}', space=sflag, size = 0x4, scoped, tag = 'scoped memory for _lambda_.31']
    %8 = vsyncpa [#allocation3], 0
    // Predicated region
    $region2: #{_lambda_.31} parent=1 // pred_check
      _
    $region3: #{_lambda_.31} parent=1 // pred_check_branch
      %10 = sbr.rel (0) target = $region5
    $region4: #{_lambda_.31} parent=1 // pred_region
      _
    $region5: #{_lambda_.31} parent=1 // pred_fallthru
      _
    // Predicated region
    $region6: #{_lambda_.31} parent=1 // pred_check
      _
    $region7: #{_lambda_.31} parent=1 // pred_check_branch
      %12 = sbr.rel (0) target = $region9
    $region8: #{_lambda_.31} parent=1 // pred_region
      _
    $region9: #{_lambda_.31} parent=1 // pred_fallthru
      _
    // Predicated region
    $region10: #{_lambda_.31} parent=1 // pred_check
      _
    $region11: #{_lambda_.31} parent=1 // pred_check_branch
      %14 = sbr.rel (0) target = $region13
    $region12: #{_lambda_.31} parent=1 // pred_region
      _
    $region13: #{_lambda_.31} parent=1 // pred_fallthru
      _
    %v16 = vld [vmem:[%s0] sm:$0x1]
    %v17 = vld [vmem:[%s0 + $0x1] sm:$0x1]
    %v18 = vunpack.c.l.bf16 %v16
    %v19 = vunpack.c.l.bf16 %v17
    %v20 = vadd.f32 %v18, 0.0
    %v21 = vadd.f32 %v19, 0.0
    %v22 = vpack.c.bf16 %v20, %v20
    %v23 = vpack.c.bf16 %v21, %v21
    %v24 = vld [vmem:[%s1] sm:$0xf]
    %v25 = vld [vmem:[%s1 + $0x4] sm:$0xf]
    %v26 = vld [vmem:[%s1 + $0x8] sm:$0xf]
    %v27 = vld [vmem:[%s1 + $0xc] sm:$0xf]
    %v28 = vld [vmem:[%s1 + $0x10] sm:$0xf]
    %v29 = vld [vmem:[%s1 + $0x14] sm:$0xf]
    %v30 = vld [vmem:[%s1 + $0x18] sm:$0xf]
    %v31 = vld [vmem:[%s1 + $0x1c] sm:$0xf]
    %v32 = vld [vmem:[%s1 + $0x20] sm:$0xf]
    %v33 = vld [vmem:[%s1 + $0x24] sm:$0xf]
    %v34 = vld [vmem:[%s1 + $0x28] sm:$0xf]
    %v35 = vld [vmem:[%s1 + $0x2c] sm:$0xf]
    %v36 = vld [vmem:[%s1 + $0x30] sm:$0xf]
    %v37 = vld [vmem:[%s1 + $0x34] sm:$0xf]
    %v38 = vld [vmem:[%s1 + $0x38] sm:$0xf]
    %v39 = vld [vmem:[%s1 + $0x3c] sm:$0xf]
    %v40 = vld [vmem:[%s2] sm:$0x1]
    %v42 = vlaneseq
    %v43 = vshrl.u32 %v42, 7
    %v44 = vsub.s32 0, %v43
    %v45 = vrot.slane %v40, %v44
    %v49 = vunpack.c.l.b16 %v22
    %v50 = vunpack.c.l.b16 %v23
    %v51 = vrot.slane %v50, 7
    %vm52 = vcmask 1041409
    %v53 = vsel %vm52, %v51, %v49
    %v54 = vpack.c.b16 %v53, %v53
    %v72 = vunpack.c.l.b16 %v24
    %v73 = vunpack.c.l.b16 %v25
    %v74 = vunpack.c.l.b16 %v26
    %v75 = vunpack.c.l.b16 %v27
    %v76 = vunpack.c.l.b16 %v28
    %v77 = vunpack.c.l.b16 %v29
    %v78 = vunpack.c.l.b16 %v30
    %v79 = vunpack.c.l.b16 %v31
    %v80 = vunpack.c.l.b16 %v32
    %v81 = vunpack.c.l.b16 %v33
    %v82 = vunpack.c.l.b16 %v34
    %v83 = vunpack.c.l.b16 %v35
    %v84 = vunpack.c.l.b16 %v36
    %v85 = vunpack.c.l.b16 %v37
    %v86 = vunpack.c.l.b16 %v38
    %v87 = vunpack.c.l.b16 %v39
    %v88 = vpack.c.b16 %v73, %v72
    %v89 = vpack.c.b16 %v75, %v74
    %v90 = vpack.c.b16 %v77, %v76
    %v91 = vpack.c.b16 %v79, %v78
    %v92 = vpack.c.b16 %v81, %v80
    %v93 = vpack.c.b16 %v83, %v82
    %v94 = vpack.c.b16 %v85, %v84
    %v95 = vpack.c.b16 %v87, %v86
    %104 = vmatprep.subr.bf16.mxu0 0
    %105 = vmatpush1.bf16.msra.mxu0 %v88
    %106 = vmatprep.subr.bf16.mxu0 0
    %107 = vmatpush1.bf16.msra.mxu0 %v89
    %108 = vmatprep.subr.bf16.mxu0 0
    %109 = vmatpush1.bf16.msra.mxu0 %v90
    %110 = vmatprep.subr.bf16.mxu0 0
    %111 = vmatpush1.bf16.msra.mxu0 %v91
    %112 = vmatprep.subr.bf16.mxu0 0
    %113 = vmatpush1.bf16.msra.mxu0 %v92
    %114 = vmatprep.subr.bf16.mxu0 0
    %115 = vmatpush1.bf16.msra.mxu0 %v93
    %116 = vmatprep.subr.bf16.mxu0 0
    %117 = vmatpush1.bf16.msra.mxu0 %v94
    %118 = vmatprep.subr.bf16.mxu0 0
    %119 = vmatpush1.bf16.msra.mxu0 %v95
    %120 = vmatprep.subr.bf16.mxu0 0
    %121 = vmatpush1.bf16.msra.mxu0 0
    %122 = vmatprep.subr.bf16.mxu0 0
    %123 = vmatpush1.bf16.msra.mxu0 0
    %124 = vmatprep.subr.bf16.mxu0 0
    %125 = vmatpush1.bf16.msra.mxu0 0
    %126 = vmatprep.subr.bf16.mxu0 0
    %127 = vmatpush1.bf16.msra.mxu0 0
    %128 = vmatprep.subr.bf16.mxu0 0
    %129 = vmatpush1.bf16.msra.mxu0 0
    %130 = vmatprep.subr.bf16.mxu0 0
    %131 = vmatpush1.bf16.msra.mxu0 0
    %132 = vmatprep.subr.bf16.mxu0 0
    %133 = vmatpush1.bf16.msra.mxu0 0
    %134 = vmatprep.subr.bf16.mxu0 0
    %135 = vmatpush1.bf16.msra.mxu0 0
    %136 = vmatprep.mubr.bf16.mxu0 0
    %137 = vmatmul.mubr.bf16.gmra.mrb[0].mxu0 %v54
    %v138 = vpop.f32.mrb[0].mxu0
    %v139 = vadd.f32 %v45, %v138
    %v140 = vpop.f32.mrb[0].mxu0
    %v141 = vpop.f32.mrb[0].mxu0
    %v142 = vpop.f32.mrb[0].mxu0
    %143 = vdwg.mxu0
    %144 = vst [vmem:[#allocation2] sm:$0x3] %v139
    // Predicated region
    $region14: #{_lambda_.31} parent=1 // pred_check
      _
    $region15: #{_lambda_.31} parent=1 // pred_check_branch
      %146 = sbr.rel (0) target = $region17
    $region16: #{_lambda_.31} parent=1 // pred_region
      %s148 = ssub.s32 32, 32
      %149 = vsyncadd [#allocation3], %s148
      %s151 = sshll.u32 [#allocation2], 4
      %s152 = int_to_ptr.vmem [resolvable:$true] %s151
      %154 = dma.vmem_to_hbm [thread:$0]  %s152, 32, %s3, [#allocation3]
    $region17: #{_lambda_.31} parent=1 // pred_fallthru
      _
    // Predicated region
    $region18: #{_lambda_.31} parent=1 // pred_check
      _
    $region19: #{_lambda_.31} parent=1 // pred_check_branch
      %156 = sbr.rel (0) target = $region21
    $region20: #{_lambda_.31} parent=1 // pred_region
      %157 = dma.done [#allocation3], 32
    $region21: #{_lambda_.31} parent=1 // pred_fallthru
      _
    %158 = vsyncpa [#allocation3], 1

</llo_original>
